<compile_context>
chip_gen: v6e
topology: v6e:2x2x1
jax: 0.10.0
libtpu: 0.0.40
codegen_flags: <defaults>
</compile_context>

<pallas_src>
import jax
import jax.numpy as jnp
from jax import lax
from jax.experimental import pallas as pl
from jax.experimental.pallas import tpu as pltpu


# -------------------------- Pallas kernel --------------------------

def _vmem_spec():
    return pl.BlockSpec(memory_space=pltpu.MemorySpace.VMEM)


def _cell_step(x_bf16, h, c, w_ref, b_ref, H):
    """One LSTM cell step. x_bf16:(B,in) bf16, h/c:(B,H) f32.
    w_ref: (in+H, 4H) bf16 (fused [w_ih; w_hh], gate order i,f,o,g),
    b_ref: (1, 4H) f32 (b_ih + b_hh, same gate order)."""
    xh = jnp.concatenate([x_bf16, h.astype(jnp.bfloat16)], axis=-1)   # (B, in+H)
    gates = jnp.dot(xh, w_ref[...], preferred_element_type=jnp.float32) + b_ref[...]
    # (i, f, o, g) layout: the three sigmoid gates are one contiguous (B,3H) slice.
    sig = jax.nn.sigmoid(gates[:, 0:3 * H])
    i_g = sig[:, 0 * H:1 * H]
    f_g = sig[:, 1 * H:2 * H]
    o_g = sig[:, 2 * H:3 * H]
    g_g = jnp.tanh(gates[:, 3 * H:4 * H])
    c_new = f_g * c + i_g * g_g
    h_new = o_g * jnp.tanh(c_new)
    return h_new, c_new


def _make_seq2seq_kernel(n_layers):
    def kernel(*refs):
        enc_xs_ref = refs[0]                              # (L, B, E) bf16
        dec_xs_ref = refs[1]                              # (T, B, E) bf16
        enc_w = refs[2:2 + 2 * n_layers]                  # per layer: w_cat, b
        dec_w = refs[2 + 2 * n_layers:2 + 4 * n_layers]   # per layer: w_cat, b
        fc_w_ref = refs[2 + 4 * n_layers]                 # (H, V) bf16
        fc_b_ref = refs[3 + 4 * n_layers]                 # (1, V) f32
        out_ref = refs[4 + 4 * n_layers]                  # (T, B, V) f32
        h_top_ref = refs[5 + 4 * n_layers]                # scratch (T, B, H) f32

        L, B, _ = enc_xs_ref.shape
        T = dec_xs_ref.shape[0]
        H = h_top_ref.shape[-1]
        V = out_ref.shape[-1]

        # ---------------- encoder recurrence ----------------
        def enc_body(t, carry):
            hs, cs = carry
            x = enc_xs_ref[t]                             # (B, E) bf16
            new_hs, new_cs = [], []
            for l in range(n_layers):
                h_l, c_l = _cell_step(x, hs[l], cs[l],
                                      enc_w[2 * l], enc_w[2 * l + 1], H)
                new_hs.append(h_l)
                new_cs.append(c_l)
                x = h_l.astype(jnp.bfloat16)
            return tuple(new_hs), tuple(new_cs)

        zeros = jnp.zeros((B, H), jnp.float32)
        init = (tuple(zeros for _ in range(n_layers)),
                tuple(zeros for _ in range(n_layers)))
        hs, cs = lax.fori_loop(0, L, enc_body, init, unroll=True)

        # ---------------- decoder recurrence (fc_out deferred) ----------------
        def dec_body(t, carry):
            hs, cs = carry
            x = dec_xs_ref[t]                             # (B, E) bf16
            new_hs, new_cs = [], []
            for l in range(n_layers):
                h_l, c_l = _cell_step(x, hs[l], cs[l],
                                      dec_w[2 * l], dec_w[2 * l + 1], H)
                new_hs.append(h_l)
                new_cs.append(c_l)
                x = h_l.astype(jnp.bfloat16)
            h_top_ref[t] = new_hs[-1]                     # top-layer h, f32 (B, H)
            return tuple(new_hs), tuple(new_cs)

        lax.fori_loop(0, T, dec_body, (hs, cs), unroll=True)

        # ---------------- batched fc_out projection ----------------
        # (T,B,H) f32 -> (T*B,H): H is the lane dim and B is a sublane multiple,
        # so this reshape is layout-free.
        h_flat = h_top_ref[...].reshape(T * B, H).astype(jnp.bfloat16)
        preds = jnp.dot(h_flat, fc_w_ref[...],
                        preferred_element_type=jnp.float32) + fc_b_ref[...]
        out_ref[...] = preds.reshape(T, B, V)             # one lane-dense slab store

    return kernel


# -------------------------- Kernel wrapper --------------------------

def seq2seq_pallas(params, enc_xs, dec_xs):
    """enc_xs: (L, B, E) bf16, dec_xs: (T, B, E) bf16 -> preds (T, B, V) f32."""
    n_layers = len(params['enc_lstm'])
    L, B, E = enc_xs.shape
    T = dec_xs.shape[0]
    H = params['enc_lstm'][0]['w_cat'].shape[-1] // 4
    V = params['fc_b'].shape[-1]

    args = [enc_xs, dec_xs]
    for lp in params['enc_lstm']:
        args += [lp['w_cat'], lp['b']]
    for lp in params['dec_lstm']:
        args += [lp['w_cat'], lp['b']]
    args += [params['fc_w_t'], params['fc_b']]

    per_step = sum(2 * B * ((E if l == 0 else H) + H) * 4 * H for l in range(n_layers))
    flops = (L + T) * per_step + 2 * T * B * H * V
    trans = 5 * (L + T) * B * H * n_layers
    bytes_acc = (sum(int(a.size) * a.dtype.itemsize for a in args)
                 + T * B * V * 4)

    # TODO(synk): on v7x the deferred fc projection / batch could be sharded over the
    # 2 TensorCores with a 'parallel' grid axis; at these sizes it is not worth it.
    preds = pl.pallas_call(
        _make_seq2seq_kernel(n_layers),
        out_shape=jax.ShapeDtypeStruct((T, B, V), jnp.float32),
        in_specs=[_vmem_spec()] * len(args),
        out_specs=_vmem_spec(),
        scratch_shapes=[pltpu.VMEM((T, B, H), jnp.float32)],
        cost_estimate=pl.CostEstimate(flops=int(flops), transcendentals=int(trans),
                                      bytes_accessed=int(bytes_acc)),
    )(*args)
    return preds


# -------------------------- Parameter init --------------------------

def _reorder_gates_pt_to_kernel(w, H):
    """PyTorch nn.LSTM gate order along the 4H axis is (i, f, g, o); the kernel uses
    (i, f, o, g) so the sigmoid gates are contiguous."""
    i = w[..., 0 * H:1 * H]
    f = w[..., 1 * H:2 * H]
    g = w[..., 2 * H:3 * H]
    o = w[..., 3 * H:4 * H]
    return jnp.concatenate([i, f, o, g], axis=-1)


def init_params(key, vocab_size, emb_dim, hidden_dim, n_layers):
    keys = jax.random.split(key, 2 + 2 * n_layers + 1)
    k = hidden_dim ** -0.5

    def uni(key, shape):
        return jax.random.uniform(key, shape, jnp.float32, -k, k)

    params = {}
    # bf16 embedding tables -> bf16 activations end-to-end (no per-step cast in-kernel).
    params['enc_emb'] = jax.random.normal(
        keys[0], (vocab_size, emb_dim), jnp.float32).astype(jnp.bfloat16)
    params['dec_emb'] = jax.random.normal(
        keys[1], (vocab_size, emb_dim), jnp.float32).astype(jnp.bfloat16)

    def lstm_layer_params(key, in_dim):
        k1, k2, k3, k4 = jax.random.split(key, 4)
        # PyTorch layout: w_ih (4H, in), w_hh (4H, H). Stored transposed, fused along
        # the input axis -> (in+H, 4H), gate columns permuted to (i, f, o, g).
        w_ih_t = uni(k1, (in_dim, 4 * hidden_dim))
        w_hh_t = uni(k2, (hidden_dim, 4 * hidden_dim))
        w_cat = jnp.concatenate([w_ih_t, w_hh_t], axis=0)
        w_cat = _reorder_gates_pt_to_kernel(w_cat, hidden_dim)
        b = uni(k3, (1, 4 * hidden_dim)) + uni(k4, (1, 4 * hidden_dim))  # b_ih + b_hh
        b = _reorder_gates_pt_to_kernel(b, hidden_dim)
        return {'w_cat': w_cat.astype(jnp.bfloat16), 'b': b}

    params['enc_lstm'] = [
        lstm_layer_params(keys[2 + l], emb_dim if l == 0 else hidden_dim)
        for l in range(n_layers)
    ]
    params['dec_lstm'] = [
        lstm_layer_params(keys[2 + n_layers + l], emb_dim if l == 0 else hidden_dim)
        for l in range(n_layers)
    ]
    fk1, fk2 = jax.random.split(keys[2 + 2 * n_layers], 2)
    params['fc_w_t'] = uni(fk1, (hidden_dim, vocab_size)).astype(jnp.bfloat16)
    params['fc_b'] = uni(fk2, (1, vocab_size))
    return params


# -------------------------- Model forward (glue in plain JAX) --------------------------

@jax.jit
def seq2seq_forward(params, src, trg):
    """src: (src_len, B) int32, trg: (trg_len, B) int32 -> outputs (trg_len, B, V) f32."""
    trg_len, B = trg.shape
    V = params['fc_b'].shape[-1]
    B_pad = ((B + 7) // 8) * 8  # pad batch to a sublane multiple

    # TODO(synk): nn.Dropout is identity here (eval mode).
    # TODO(synk): stochastic teacher forcing (random.random() < ratio) not reproduced;
    # deterministic ratio=1.0 -> decoder always consumes the ground-truth token, so the
    # whole decoder input sequence is known up-front and embedded with one XLA gather.
    enc_xs = params['enc_emb'][src]        # (src_len, B, E) bf16
    dec_xs = params['dec_emb'][trg[:-1]]   # (trg_len-1, B, E) bf16

    if B_pad != B:
        pad = ((0, 0), (0, B_pad - B), (0, 0))
        enc_xs = jnp.pad(enc_xs, pad)
        dec_xs = jnp.pad(dec_xs, pad)

    preds = seq2seq_pallas(params, enc_xs, dec_xs)   # (trg_len-1, B_pad, V) f32
    preds = preds[:, :B, :]

    # outputs[0] stays zeros, matching the reference Seq2Seq convention.
    outputs = jnp.concatenate([jnp.zeros((1, B, V), jnp.float32), preds], axis=0)
    return outputs


# -------------------------- Main --------------------------

if __name__ == "__main__":
    vocab_size = 512    # multiple of 128 -> lane-dense fc_out output
    emb_dim = 128       # multiple of 128
    hidden_dim = 128    # multiple of 128 -> gate slices are lane-aligned
    n_layers = 2
    batch = 4           # padded to 8 (sublane multiple) inside the wrapper
    src_len = 10
    trg_len = 9

    key = jax.random.PRNGKey(0)
    k_params, k_src, k_trg = jax.random.split(key, 3)

    params = init_params(k_params, vocab_size, emb_dim, hidden_dim, n_layers)
    src = jax.random.randint(k_src, (src_len, batch), 0, vocab_size, dtype=jnp.int32)
    trg = jax.random.randint(k_trg, (trg_len, batch), 0, vocab_size, dtype=jnp.int32)

    outputs = seq2seq_forward(params, src, trg)
    outputs = jax.block_until_ready(outputs)

    assert outputs.shape == (trg_len, batch, vocab_size)
    assert outputs.dtype == jnp.float32
    print("KERNEL_OK")
</pallas_src>

<mosaic_0001>
module attributes {stable_mosaic.version = 11 : i64} {
  func.func @kernel(%arg0: memref<10x8x128xbf16, #tpu.memory_space<vmem>>, %arg1: memref<8x8x128xbf16, #tpu.memory_space<vmem>>, %arg2: memref<256x512xbf16, #tpu.memory_space<vmem>>, %arg3: memref<1x512xf32, #tpu.memory_space<vmem>>, %arg4: memref<256x512xbf16, #tpu.memory_space<vmem>>, %arg5: memref<1x512xf32, #tpu.memory_space<vmem>>, %arg6: memref<256x512xbf16, #tpu.memory_space<vmem>>, %arg7: memref<1x512xf32, #tpu.memory_space<vmem>>, %arg8: memref<256x512xbf16, #tpu.memory_space<vmem>>, %arg9: memref<1x512xf32, #tpu.memory_space<vmem>>, %arg10: memref<128x512xbf16, #tpu.memory_space<vmem>>, %arg11: memref<1x512xf32, #tpu.memory_space<vmem>>, %arg12: memref<8x8x512xf32, #tpu.memory_space<vmem>>, %arg13: memref<8x8x128xf32, #tpu.memory_space<vmem>>) attributes {dimension_semantics = [], scalar_prefetch = 0 : i64, scratch_operands = 1 : i64, tpu.core_type = #tpu.core_type<tc>} {
    %cst = arith.constant 0.000000e+00 : f32
    %0 = vector.broadcast %cst : f32 to vector<8x128xf32>
    %c0_i32 = arith.constant 0 : i32
    %1 = arith.index_cast %c0_i32 : i32 to index
    %c0 = arith.constant 0 : index
    %c0_0 = arith.constant 0 : index
    %2 = vector.load %arg0[%1, %c0, %c0_0] : memref<10x8x128xbf16, #tpu.memory_space<vmem>>, vector<1x8x128xbf16>
    %3 = vector.shape_cast %2 : vector<1x8x128xbf16> to vector<8x128xbf16>
    %4 = arith.truncf %0 : vector<8x128xf32> to vector<8x128xbf16>
    %5 = tpu.concatenate %3, %4 in 1 : vector<8x128xbf16>, vector<8x128xbf16> -> vector<8x256xbf16>
    %c0_1 = arith.constant 0 : index
    %c0_2 = arith.constant 0 : index
    %6 = vector.load %arg2[%c0_1, %c0_2] : memref<256x512xbf16, #tpu.memory_space<vmem>>, vector<256x512xbf16>
    %cst_3 = arith.constant dense<0.000000e+00> : vector<8x512xf32>
    %7 = tpu.matmul %5, %6, %cst_3 {dimension_numbers = #tpu.dot_dimension_numbers<[1], [0], [0], [1], [0, 0, 1, 1], [], []>} : vector<8x256xbf16>, vector<256x512xbf16>, vector<8x512xf32> -> vector<8x512xf32>
    %c0_4 = arith.constant 0 : index
    %c0_5 = arith.constant 0 : index
    %8 = vector.load %arg3[%c0_4, %c0_5] : memref<1x512xf32, #tpu.memory_space<vmem>>, vector<1x512xf32>
    %9 = vector.broadcast %8 : vector<1x512xf32> to vector<8x512xf32>
    %10 = arith.addf %7, %9 : vector<8x512xf32>
    %11 = vector.extract_strided_slice %10 {offsets = [0, 0], sizes = [8, 384], strides = [1, 1]} : vector<8x512xf32> to vector<8x384xf32>
    %12 = arith.negf %11 : vector<8x384xf32>
    %13 = math.exp %12 : vector<8x384xf32>
    %cst_6 = arith.constant 1.000000e+00 : f32
    %14 = vector.broadcast %cst_6 : f32 to vector<8x384xf32>
    %15 = arith.addf %14, %13 : vector<8x384xf32>
    %16 = arith.divf %14, %15 : vector<8x384xf32>
    %17 = vector.extract_strided_slice %16 {offsets = [0, 0], sizes = [8, 128], strides = [1, 1]} : vector<8x384xf32> to vector<8x128xf32>
    %18 = vector.extract_strided_slice %16 {offsets = [0, 128], sizes = [8, 128], strides = [1, 1]} : vector<8x384xf32> to vector<8x128xf32>
    %19 = vector.extract_strided_slice %16 {offsets = [0, 256], sizes = [8, 128], strides = [1, 1]} : vector<8x384xf32> to vector<8x128xf32>
    %20 = vector.extract_strided_slice %10 {offsets = [0, 384], sizes = [8, 128], strides = [1, 1]} : vector<8x512xf32> to vector<8x128xf32>
    %21 = math.tanh %20 : vector<8x128xf32>
    %22 = arith.mulf %18, %0 : vector<8x128xf32>
    %23 = arith.mulf %17, %21 : vector<8x128xf32>
    %24 = arith.addf %22, %23 : vector<8x128xf32>
    %25 = math.tanh %24 : vector<8x128xf32>
    %26 = arith.mulf %19, %25 : vector<8x128xf32>
    %27 = arith.truncf %26 : vector<8x128xf32> to vector<8x128xbf16>
    %28 = arith.truncf %0 : vector<8x128xf32> to vector<8x128xbf16>
    %29 = tpu.concatenate %27, %28 in 1 : vector<8x128xbf16>, vector<8x128xbf16> -> vector<8x256xbf16>
    %c0_7 = arith.constant 0 : index
    %c0_8 = arith.constant 0 : index
    %30 = vector.load %arg4[%c0_7, %c0_8] : memref<256x512xbf16, #tpu.memory_space<vmem>>, vector<256x512xbf16>
    %cst_9 = arith.constant dense<0.000000e+00> : vector<8x512xf32>
    %31 = tpu.matmul %29, %30, %cst_9 {dimension_numbers = #tpu.dot_dimension_numbers<[1], [0], [0], [1], [0, 0, 1, 1], [], []>} : vector<8x256xbf16>, vector<256x512xbf16>, vector<8x512xf32> -> vector<8x512xf32>
    %c0_10 = arith.constant 0 : index
    %c0_11 = arith.constant 0 : index
    %32 = vector.load %arg5[%c0_10, %c0_11] : memref<1x512xf32, #tpu.memory_space<vmem>>, vector<1x512xf32>
    %33 = vector.broadcast %32 : vector<1x512xf32> to vector<8x512xf32>
    %34 = arith.addf %31, %33 : vector<8x512xf32>
    %35 = vector.extract_strided_slice %34 {offsets = [0, 0], sizes = [8, 384], strides = [1, 1]} : vector<8x512xf32> to vector<8x384xf32>
    %36 = arith.negf %35 : vector<8x384xf32>
    %37 = math.exp %36 : vector<8x384xf32>
    %cst_12 = arith.constant 1.000000e+00 : f32
    %38 = vector.broadcast %cst_12 : f32 to vector<8x384xf32>
    %39 = arith.addf %38, %37 : vector<8x384xf32>
    %40 = arith.divf %38, %39 : vector<8x384xf32>
    %41 = vector.extract_strided_slice %40 {offsets = [0, 0], sizes = [8, 128], strides = [1, 1]} : vector<8x384xf32> to vector<8x128xf32>
    %42 = vector.extract_strided_slice %40 {offsets = [0, 128], sizes = [8, 128], strides = [1, 1]} : vector<8x384xf32> to vector<8x128xf32>
    %43 = vector.extract_strided_slice %40 {offsets = [0, 256], sizes = [8, 128], strides = [1, 1]} : vector<8x384xf32> to vector<8x128xf32>
    %44 = vector.extract_strided_slice %34 {offsets = [0, 384], sizes = [8, 128], strides = [1, 1]} : vector<8x512xf32> to vector<8x128xf32>
    %45 = math.tanh %44 : vector<8x128xf32>
    %46 = arith.mulf %42, %0 : vector<8x128xf32>
    %47 = arith.mulf %41, %45 : vector<8x128xf32>
    %48 = arith.addf %46, %47 : vector<8x128xf32>
    %49 = math.tanh %48 : vector<8x128xf32>
    %50 = arith.mulf %43, %49 : vector<8x128xf32>
    %c1_i32 = arith.constant 1 : i32
    %51 = arith.index_cast %c1_i32 : i32 to index
    %c0_13 = arith.constant 0 : index
    %c0_14 = arith.constant 0 : index
    %52 = vector.load %arg0[%51, %c0_13, %c0_14] : memref<10x8x128xbf16, #tpu.memory_space<vmem>>, vector<1x8x128xbf16>
    %53 = vector.shape_cast %52 : vector<1x8x128xbf16> to vector<8x128xbf16>
    %54 = arith.truncf %26 : vector<8x128xf32> to vector<8x128xbf16>
    %55 = tpu.concatenate %53, %54 in 1 : vector<8x128xbf16>, vector<8x128xbf16> -> vector<8x256xbf16>
    %c0_15 = arith.constant 0 : index
    %c0_16 = arith.constant 0 : index
    %56 = vector.load %arg2[%c0_15, %c0_16] : memref<256x512xbf16, #tpu.memory_space<vmem>>, vector<256x512xbf16>
    %cst_17 = arith.constant dense<0.000000e+00> : vector<8x512xf32>
    %57 = tpu.matmul %55, %56, %cst_17 {dimension_numbers = #tpu.dot_dimension_numbers<[1], [0], [0], [1], [0, 0, 1, 1], [], []>} : vector<8x256xbf16>, vector<256x512xbf16>, vector<8x512xf32> -> vector<8x512xf32>
    %c0_18 = arith.constant 0 : index
    %c0_19 = arith.constant 0 : index
    %58 = vector.load %arg3[%c0_18, %c0_19] : memref<1x512xf32, #tpu.memory_space<vmem>>, vector<1x512xf32>
    %59 = vector.broadcast %58 : vector<1x512xf32> to vector<8x512xf32>
    %60 = arith.addf %57, %59 : vector<8x512xf32>
    %61 = vector.extract_strided_slice %60 {offsets = [0, 0], sizes = [8, 384], strides = [1, 1]} : vector<8x512xf32> to vector<8x384xf32>
    %62 = arith.negf %61 : vector<8x384xf32>
    %63 = math.exp %62 : vector<8x384xf32>
    %cst_20 = arith.constant 1.000000e+00 : f32
    %64 = vector.broadcast %cst_20 : f32 to vector<8x384xf32>
    %65 = arith.addf %64, %63 : vector<8x384xf32>
    %66 = arith.divf %64, %65 : vector<8x384xf32>
    %67 = vector.extract_strided_slice %66 {offsets = [0, 0], sizes = [8, 128], strides = [1, 1]} : vector<8x384xf32> to vector<8x128xf32>
    %68 = vector.extract_strided_slice %66 {offsets = [0, 128], sizes = [8, 128], strides = [1, 1]} : vector<8x384xf32> to vector<8x128xf32>
    %69 = vector.extract_strided_slice %66 {offsets = [0, 256], sizes = [8, 128], strides = [1, 1]} : vector<8x384xf32> to vector<8x128xf32>
    %70 = vector.extract_strided_slice %60 {offsets = [0, 384], sizes = [8, 128], strides = [1, 1]} : vector<8x512xf32> to vector<8x128xf32>
    %71 = math.tanh %70 : vector<8x128xf32>
    %72 = arith.mulf %68, %24 : vector<8x128xf32>
    %73 = arith.mulf %67, %71 : vector<8x128xf32>
    %74 = arith.addf %72, %73 : vector<8x128xf32>
    %75 = math.tanh %74 : vector<8x128xf32>
    %76 = arith.mulf %69, %75 : vector<8x128xf32>
    %77 = arith.truncf %76 : vector<8x128xf32> to vector<8x128xbf16>
    %78 = arith.truncf %50 : vector<8x128xf32> to vector<8x128xbf16>
    %79 = tpu.concatenate %77, %78 in 1 : vector<8x128xbf16>, vector<8x128xbf16> -> vector<8x256xbf16>
    %c0_21 = arith.constant 0 : index
    %c0_22 = arith.constant 0 : index
    %80 = vector.load %arg4[%c0_21, %c0_22] : memref<256x512xbf16, #tpu.memory_space<vmem>>, vector<256x512xbf16>
    %cst_23 = arith.constant dense<0.000000e+00> : vector<8x512xf32>
    %81 = tpu.matmul %79, %80, %cst_23 {dimension_numbers = #tpu.dot_dimension_numbers<[1], [0], [0], [1], [0, 0, 1, 1], [], []>} : vector<8x256xbf16>, vector<256x512xbf16>, vector<8x512xf32> -> vector<8x512xf32>
    %c0_24 = arith.constant 0 : index
    %c0_25 = arith.constant 0 : index
    %82 = vector.load %arg5[%c0_24, %c0_25] : memref<1x512xf32, #tpu.memory_space<vmem>>, vector<1x512xf32>
    %83 = vector.broadcast %82 : vector<1x512xf32> to vector<8x512xf32>
    %84 = arith.addf %81, %83 : vector<8x512xf32>
    %85 = vector.extract_strided_slice %84 {offsets = [0, 0], sizes = [8, 384], strides = [1, 1]} : vector<8x512xf32> to vector<8x384xf32>
    %86 = arith.negf %85 : vector<8x384xf32>
    %87 = math.exp %86 : vector<8x384xf32>
    %cst_26 = arith.constant 1.000000e+00 : f32
    %88 = vector.broadcast %cst_26 : f32 to vector<8x384xf32>
    %89 = arith.addf %88, %87 : vector<8x384xf32>
    %90 = arith.divf %88, %89 : vector<8x384xf32>
    %91 = vector.extract_strided_slice %90 {offsets = [0, 0], sizes = [8, 128], strides = [1, 1]} : vector<8x384xf32> to vector<8x128xf32>
    %92 = vector.extract_strided_slice %90 {offsets = [0, 128], sizes = [8, 128], strides = [1, 1]} : vector<8x384xf32> to vector<8x128xf32>
    %93 = vector.extract_strided_slice %90 {offsets = [0, 256], sizes = [8, 128], strides = [1, 1]} : vector<8x384xf32> to vector<8x128xf32>
    %94 = vector.extract_strided_slice %84 {offsets = [0, 384], sizes = [8, 128], strides = [1, 1]} : vector<8x512xf32> to vector<8x128xf32>
    %95 = math.tanh %94 : vector<8x128xf32>
    %96 = arith.mulf %92, %48 : vector<8x128xf32>
    %97 = arith.mulf %91, %95 : vector<8x128xf32>
    %98 = arith.addf %96, %97 : vector<8x128xf32>
    %99 = math.tanh %98 : vector<8x128xf32>
    %100 = arith.mulf %93, %99 : vector<8x128xf32>
    %c2_i32 = arith.constant 2 : i32
    %101 = arith.index_cast %c2_i32 : i32 to index
    %c0_27 = arith.constant 0 : index
    %c0_28 = arith.constant 0 : index
    %102 = vector.load %arg0[%101, %c0_27, %c0_28] : memref<10x8x128xbf16, #tpu.memory_space<vmem>>, vector<1x8x128xbf16>
    %103 = vector.shape_cast %102 : vector<1x8x128xbf16> to vector<8x128xbf16>
    %104 = arith.truncf %76 : vector<8x128xf32> to vector<8x128xbf16>
    %105 = tpu.concatenate %103, %104 in 1 : vector<8x128xbf16>, vector<8x128xbf16> -> vector<8x256xbf16>
    %c0_29 = arith.constant 0 : index
    %c0_30 = arith.constant 0 : index
    %106 = vector.load %arg2[%c0_29, %c0_30] : memref<256x512xbf16, #tpu.memory_space<vmem>>, vector<256x512xbf16>
    %cst_31 = arith.constant dense<0.000000e+00> : vector<8x512xf32>
    %107 = tpu.matmul %105, %106, %cst_31 {dimension_numbers = #tpu.dot_dimension_numbers<[1], [0], [0], [1], [0, 0, 1, 1], [], []>} : vector<8x256xbf16>, vector<256x512xbf16>, vector<8x512xf32> -> vector<8x512xf32>
    %c0_32 = arith.constant 0 : index
    %c0_33 = arith.constant 0 : index
    %108 = vector.load %arg3[%c0_32, %c0_33] : memref<1x512xf32, #tpu.memory_space<vmem>>, vector<1x512xf32>
    %109 = vector.broadcast %108 : vector<1x512xf32> to vector<8x512xf32>
    %110 = arith.addf %107, %109 : vector<8x512xf32>
    %111 = vector.extract_strided_slice %110 {offsets = [0, 0], sizes = [8, 384], strides = [1, 1]} : vector<8x512xf32> to vector<8x384xf32>
    %112 = arith.negf %111 : vector<8x384xf32>
    %113 = math.exp %112 : vector<8x384xf32>
    %cst_34 = arith.constant 1.000000e+00 : f32
    %114 = vector.broadcast %cst_34 : f32 to vector<8x384xf32>
    %115 = arith.addf %114, %113 : vector<8x384xf32>
    %116 = arith.divf %114, %115 : vector<8x384xf32>
    %117 = vector.extract_strided_slice %116 {offsets = [0, 0], sizes = [8, 128], strides = [1, 1]} : vector<8x384xf32> to vector<8x128xf32>
    %118 = vector.extract_strided_slice %116 {offsets = [0, 128], sizes = [8, 128], strides = [1, 1]} : vector<8x384xf32> to vector<8x128xf32>
    %119 = vector.extract_strided_slice %116 {offsets = [0, 256], sizes = [8, 128], strides = [1, 1]} : vector<8x384xf32> to vector<8x128xf32>
    %120 = vector.extract_strided_slice %110 {offsets = [0, 384], sizes = [8, 128], strides = [1, 1]} : vector<8x512xf32> to vector<8x128xf32>
    %121 = math.tanh %120 : vector<8x128xf32>
    %122 = arith.mulf %118, %74 : vector<8x128xf32>
    %123 = arith.mulf %117, %121 : vector<8x128xf32>
    %124 = arith.addf %122, %123 : vector<8x128xf32>
    %125 = math.tanh %124 : vector<8x128xf32>
    %126 = arith.mulf %119, %125 : vector<8x128xf32>
    %127 = arith.truncf %126 : vector<8x128xf32> to vector<8x128xbf16>
    %128 = arith.truncf %100 : vector<8x128xf32> to vector<8x128xbf16>
    %129 = tpu.concatenate %127, %128 in 1 : vector<8x128xbf16>, vector<8x128xbf16> -> vector<8x256xbf16>
    %c0_35 = arith.constant 0 : index
    %c0_36 = arith.constant 0 : index
    %130 = vector.load %arg4[%c0_35, %c0_36] : memref<256x512xbf16, #tpu.memory_space<vmem>>, vector<256x512xbf16>
    %cst_37 = arith.constant dense<0.000000e+00> : vector<8x512xf32>
    %131 = tpu.matmul %129, %130, %cst_37 {dimension_numbers = #tpu.dot_dimension_numbers<[1], [0], [0], [1], [0, 0, 1, 1], [], []>} : vector<8x256xbf16>, vector<256x512xbf16>, vector<8x512xf32> -> vector<8x512xf32>
    %c0_38 = arith.constant 0 : index
    %c0_39 = arith.constant 0 : index
    %132 = vector.load %arg5[%c0_38, %c0_39] : memref<1x512xf32, #tpu.memory_space<vmem>>, vector<1x512xf32>
    %133 = vector.broadcast %132 : vector<1x512xf32> to vector<8x512xf32>
    %134 = arith.addf %131, %133 : vector<8x512xf32>
    %135 = vector.extract_strided_slice %134 {offsets = [0, 0], sizes = [8, 384], strides = [1, 1]} : vector<8x512xf32> to vector<8x384xf32>
    %136 = arith.negf %135 : vector<8x384xf32>
    %137 = math.exp %136 : vector<8x384xf32>
    %cst_40 = arith.constant 1.000000e+00 : f32
    %138 = vector.broadcast %cst_40 : f32 to vector<8x384xf32>
    %139 = arith.addf %138, %137 : vector<8x384xf32>
    %140 = arith.divf %138, %139 : vector<8x384xf32>
    %141 = vector.extract_strided_slice %140 {offsets = [0, 0], sizes = [8, 128], strides = [1, 1]} : vector<8x384xf32> to vector<8x128xf32>
    %142 = vector.extract_strided_slice %140 {offsets = [0, 128], sizes = [8, 128], strides = [1, 1]} : vector<8x384xf32> to vector<8x128xf32>
    %143 = vector.extract_strided_slice %140 {offsets = [0, 256], sizes = [8, 128], strides = [1, 1]} : vector<8x384xf32> to vector<8x128xf32>
    %144 = vector.extract_strided_slice %134 {offsets = [0, 384], sizes = [8, 128], strides = [1, 1]} : vector<8x512xf32> to vector<8x128xf32>
    %145 = math.tanh %144 : vector<8x128xf32>
    %146 = arith.mulf %142, %98 : vector<8x128xf32>
    %147 = arith.mulf %141, %145 : vector<8x128xf32>
    %148 = arith.addf %146, %147 : vector<8x128xf32>
    %149 = math.tanh %148 : vector<8x128xf32>
    %150 = arith.mulf %143, %149 : vector<8x128xf32>
    %c3_i32 = arith.constant 3 : i32
    %151 = arith.index_cast %c3_i32 : i32 to index
    %c0_41 = arith.constant 0 : index
    %c0_42 = arith.constant 0 : index
    %152 = vector.load %arg0[%151, %c0_41, %c0_42] : memref<10x8x128xbf16, #tpu.memory_space<vmem>>, vector<1x8x128xbf16>
    %153 = vector.shape_cast %152 : vector<1x8x128xbf16> to vector<8x128xbf16>
    %154 = arith.truncf %126 : vector<8x128xf32> to vector<8x128xbf16>
    %155 = tpu.concatenate %153, %154 in 1 : vector<8x128xbf16>, vector<8x128xbf16> -> vector<8x256xbf16>
    %c0_43 = arith.constant 0 : index
    %c0_44 = arith.constant 0 : index
    %156 = vector.load %arg2[%c0_43, %c0_44] : memref<256x512xbf16, #tpu.memory_space<vmem>>, vector<256x512xbf16>
    %cst_45 = arith.constant dense<0.000000e+00> : vector<8x512xf32>
    %157 = tpu.matmul %155, %156, %cst_45 {dimension_numbers = #tpu.dot_dimension_numbers<[1], [0], [0], [1], [0, 0, 1, 1], [], []>} : vector<8x256xbf16>, vector<256x512xbf16>, vector<8x512xf32> -> vector<8x512xf32>
    %c0_46 = arith.constant 0 : index
    %c0_47 = arith.constant 0 : index
    %158 = vector.load %arg3[%c0_46, %c0_47] : memref<1x512xf32, #tpu.memory_space<vmem>>, vector<1x512xf32>
    %159 = vector.broadcast %158 : vector<1x512xf32> to vector<8x512xf32>
    %160 = arith.addf %157, %159 : vector<8x512xf32>
    %161 = vector.extract_strided_slice %160 {offsets = [0, 0], sizes = [8, 384], strides = [1, 1]} : vector<8x512xf32> to vector<8x384xf32>
    %162 = arith.negf %161 : vector<8x384xf32>
    %163 = math.exp %162 : vector<8x384xf32>
    %cst_48 = arith.constant 1.000000e+00 : f32
    %164 = vector.broadcast %cst_48 : f32 to vector<8x384xf32>
    %165 = arith.addf %164, %163 : vector<8x384xf32>
    %166 = arith.divf %164, %165 : vector<8x384xf32>
    %167 = vector.extract_strided_slice %166 {offsets = [0, 0], sizes = [8, 128], strides = [1, 1]} : vector<8x384xf32> to vector<8x128xf32>
    %168 = vector.extract_strided_slice %166 {offsets = [0, 128], sizes = [8, 128], strides = [1, 1]} : vector<8x384xf32> to vector<8x128xf32>
    %169 = vector.extract_strided_slice %166 {offsets = [0, 256], sizes = [8, 128], strides = [1, 1]} : vector<8x384xf32> to vector<8x128xf32>
    %170 = vector.extract_strided_slice %160 {offsets = [0, 384], sizes = [8, 128], strides = [1, 1]} : vector<8x512xf32> to vector<8x128xf32>
    %171 = math.tanh %170 : vector<8x128xf32>
    %172 = arith.mulf %168, %124 : vector<8x128xf32>
    %173 = arith.mulf %167, %171 : vector<8x128xf32>
    %174 = arith.addf %172, %173 : vector<8x128xf32>
    %175 = math.tanh %174 : vector<8x128xf32>
    %176 = arith.mulf %169, %175 : vector<8x128xf32>
    %177 = arith.truncf %176 : vector<8x128xf32> to vector<8x128xbf16>
    %178 = arith.truncf %150 : vector<8x128xf32> to vector<8x128xbf16>
    %179 = tpu.concatenate %177, %178 in 1 : vector<8x128xbf16>, vector<8x128xbf16> -> vector<8x256xbf16>
    %c0_49 = arith.constant 0 : index
    %c0_50 = arith.constant 0 : index
    %180 = vector.load %arg4[%c0_49, %c0_50] : memref<256x512xbf16, #tpu.memory_space<vmem>>, vector<256x512xbf16>
    %cst_51 = arith.constant dense<0.000000e+00> : vector<8x512xf32>
    %181 = tpu.matmul %179, %180, %cst_51 {dimension_numbers = #tpu.dot_dimension_numbers<[1], [0], [0], [1], [0, 0, 1, 1], [], []>} : vector<8x256xbf16>, vector<256x512xbf16>, vector<8x512xf32> -> vector<8x512xf32>
    %c0_52 = arith.constant 0 : index
    %c0_53 = arith.constant 0 : index
    %182 = vector.load %arg5[%c0_52, %c0_53] : memref<1x512xf32, #tpu.memory_space<vmem>>, vector<1x512xf32>
    %183 = vector.broadcast %182 : vector<1x512xf32> to vector<8x512xf32>
    %184 = arith.addf %181, %183 : vector<8x512xf32>
    %185 = vector.extract_strided_slice %184 {offsets = [0, 0], sizes = [8, 384], strides = [1, 1]} : vector<8x512xf32> to vector<8x384xf32>
    %186 = arith.negf %185 : vector<8x384xf32>
    %187 = math.exp %186 : vector<8x384xf32>
    %cst_54 = arith.constant 1.000000e+00 : f32
    %188 = vector.broadcast %cst_54 : f32 to vector<8x384xf32>
    %189 = arith.addf %188, %187 : vector<8x384xf32>
    %190 = arith.divf %188, %189 : vector<8x384xf32>
    %191 = vector.extract_strided_slice %190 {offsets = [0, 0], sizes = [8, 128], strides = [1, 1]} : vector<8x384xf32> to vector<8x128xf32>
    %192 = vector.extract_strided_slice %190 {offsets = [0, 128], sizes = [8, 128], strides = [1, 1]} : vector<8x384xf32> to vector<8x128xf32>
    %193 = vector.extract_strided_slice %190 {offsets = [0, 256], sizes = [8, 128], strides = [1, 1]} : vector<8x384xf32> to vector<8x128xf32>
    %194 = vector.extract_strided_slice %184 {offsets = [0, 384], sizes = [8, 128], strides = [1, 1]} : vector<8x512xf32> to vector<8x128xf32>
    %195 = math.tanh %194 : vector<8x128xf32>
    %196 = arith.mulf %192, %148 : vector<8x128xf32>
    %197 = arith.mulf %191, %195 : vector<8x128xf32>
    %198 = arith.addf %196, %197 : vector<8x128xf32>
    %199 = math.tanh %198 : vector<8x128xf32>
    %200 = arith.mulf %193, %199 : vector<8x128xf32>
    %c4_i32 = arith.constant 4 : i32
    %201 = arith.index_cast %c4_i32 : i32 to index
    %c0_55 = arith.constant 0 : index
    %c0_56 = arith.constant 0 : index
    %202 = vector.load %arg0[%201, %c0_55, %c0_56] : memref<10x8x128xbf16, #tpu.memory_space<vmem>>, vector<1x8x128xbf16>
    %203 = vector.shape_cast %202 : vector<1x8x128xbf16> to vector<8x128xbf16>
    %204 = arith.truncf %176 : vector<8x128xf32> to vector<8x128xbf16>
    %205 = tpu.concatenate %203, %204 in 1 : vector<8x128xbf16>, vector<8x128xbf16> -> vector<8x256xbf16>
    %c0_57 = arith.constant 0 : index
    %c0_58 = arith.constant 0 : index
    %206 = vector.load %arg2[%c0_57, %c0_58] : memref<256x512xbf16, #tpu.memory_space<vmem>>, vector<256x512xbf16>
    %cst_59 = arith.constant dense<0.000000e+00> : vector<8x512xf32>
    %207 = tpu.matmul %205, %206, %cst_59 {dimension_numbers = #tpu.dot_dimension_numbers<[1], [0], [0], [1], [0, 0, 1, 1], [], []>} : vector<8x256xbf16>, vector<256x512xbf16>, vector<8x512xf32> -> vector<8x512xf32>
    %c0_60 = arith.constant 0 : index
    %c0_61 = arith.constant 0 : index
    %208 = vector.load %arg3[%c0_60, %c0_61] : memref<1x512xf32, #tpu.memory_space<vmem>>, vector<1x512xf32>
    %209 = vector.broadcast %208 : vector<1x512xf32> to vector<8x512xf32>
    %210 = arith.addf %207, %209 : vector<8x512xf32>
    %211 = vector.extract_strided_slice %210 {offsets = [0, 0], sizes = [8, 384], strides = [1, 1]} : vector<8x512xf32> to vector<8x384xf32>
    %212 = arith.negf %211 : vector<8x384xf32>
    %213 = math.exp %212 : vector<8x384xf32>
    %cst_62 = arith.constant 1.000000e+00 : f32
    %214 = vector.broadcast %cst_62 : f32 to vector<8x384xf32>
    %215 = arith.addf %214, %213 : vector<8x384xf32>
    %216 = arith.divf %214, %215 : vector<8x384xf32>
    %217 = vector.extract_strided_slice %216 {offsets = [0, 0], sizes = [8, 128], strides = [1, 1]} : vector<8x384xf32> to vector<8x128xf32>
    %218 = vector.extract_strided_slice %216 {offsets = [0, 128], sizes = [8, 128], strides = [1, 1]} : vector<8x384xf32> to vector<8x128xf32>
    %219 = vector.extract_strided_slice %216 {offsets = [0, 256], sizes = [8, 128], strides = [1, 1]} : vector<8x384xf32> to vector<8x128xf32>
    %220 = vector.extract_strided_slice %210 {offsets = [0, 384], sizes = [8, 128], strides = [1, 1]} : vector<8x512xf32> to vector<8x128xf32>
    %221 = math.tanh %220 : vector<8x128xf32>
    %222 = arith.mulf %218, %174 : vector<8x128xf32>
    %223 = arith.mulf %217, %221 : vector<8x128xf32>
    %224 = arith.addf %222, %223 : vector<8x128xf32>
    %225 = math.tanh %224 : vector<8x128xf32>
    %226 = arith.mulf %219, %225 : vector<8x128xf32>
    %227 = arith.truncf %226 : vector<8x128xf32> to vector<8x128xbf16>
    %228 = arith.truncf %200 : vector<8x128xf32> to vector<8x128xbf16>
    %229 = tpu.concatenate %227, %228 in 1 : vector<8x128xbf16>, vector<8x128xbf16> -> vector<8x256xbf16>
    %c0_63 = arith.constant 0 : index
    %c0_64 = arith.constant 0 : index
    %230 = vector.load %arg4[%c0_63, %c0_64] : memref<256x512xbf16, #tpu.memory_space<vmem>>, vector<256x512xbf16>
    %cst_65 = arith.constant dense<0.000000e+00> : vector<8x512xf32>
    %231 = tpu.matmul %229, %230, %cst_65 {dimension_numbers = #tpu.dot_dimension_numbers<[1], [0], [0], [1], [0, 0, 1, 1], [], []>} : vector<8x256xbf16>, vector<256x512xbf16>, vector<8x512xf32> -> vector<8x512xf32>
    %c0_66 = arith.constant 0 : index
    %c0_67 = arith.constant 0 : index
    %232 = vector.load %arg5[%c0_66, %c0_67] : memref<1x512xf32, #tpu.memory_space<vmem>>, vector<1x512xf32>
    %233 = vector.broadcast %232 : vector<1x512xf32> to vector<8x512xf32>
    %234 = arith.addf %231, %233 : vector<8x512xf32>
    %235 = vector.extract_strided_slice %234 {offsets = [0, 0], sizes = [8, 384], strides = [1, 1]} : vector<8x512xf32> to vector<8x384xf32>
    %236 = arith.negf %235 : vector<8x384xf32>
    %237 = math.exp %236 : vector<8x384xf32>
    %cst_68 = arith.constant 1.000000e+00 : f32
    %238 = vector.broadcast %cst_68 : f32 to vector<8x384xf32>
    %239 = arith.addf %238, %237 : vector<8x384xf32>
    %240 = arith.divf %238, %239 : vector<8x384xf32>
    %241 = vector.extract_strided_slice %240 {offsets = [0, 0], sizes = [8, 128], strides = [1, 1]} : vector<8x384xf32> to vector<8x128xf32>
    %242 = vector.extract_strided_slice %240 {offsets = [0, 128], sizes = [8, 128], strides = [1, 1]} : vector<8x384xf32> to vector<8x128xf32>
    %243 = vector.extract_strided_slice %240 {offsets = [0, 256], sizes = [8, 128], strides = [1, 1]} : vector<8x384xf32> to vector<8x128xf32>
    %244 = vector.extract_strided_slice %234 {offsets = [0, 384], sizes = [8, 128], strides = [1, 1]} : vector<8x512xf32> to vector<8x128xf32>
    %245 = math.tanh %244 : vector<8x128xf32>
    %246 = arith.mulf %242, %198 : vector<8x128xf32>
    %247 = arith.mulf %241, %245 : vector<8x128xf32>
    %248 = arith.addf %246, %247 : vector<8x128xf32>
    %249 = math.tanh %248 : vector<8x128xf32>
    %250 = arith.mulf %243, %249 : vector<8x128xf32>
    %c5_i32 = arith.constant 5 : i32
    %251 = arith.index_cast %c5_i32 : i32 to index
    %c0_69 = arith.constant 0 : index
    %c0_70 = arith.constant 0 : index
    %252 = vector.load %arg0[%251, %c0_69, %c0_70] : memref<10x8x128xbf16, #tpu.memory_space<vmem>>, vector<1x8x128xbf16>
    %253 = vector.shape_cast %252 : vector<1x8x128xbf16> to vector<8x128xbf16>
    %254 = arith.truncf %226 : vector<8x128xf32> to vector<8x128xbf16>
    %255 = tpu.concatenate %253, %254 in 1 : vector<8x128xbf16>, vector<8x128xbf16> -> vector<8x256xbf16>
    %c0_71 = arith.constant 0 : index
    %c0_72 = arith.constant 0 : index
    %256 = vector.load %arg2[%c0_71, %c0_72] : memref<256x512xbf16, #tpu.memory_space<vmem>>, vector<256x512xbf16>
    %cst_73 = arith.constant dense<0.000000e+00> : vector<8x512xf32>
    %257 = tpu.matmul %255, %256, %cst_73 {dimension_numbers = #tpu.dot_dimension_numbers<[1], [0], [0], [1], [0, 0, 1, 1], [], []>} : vector<8x256xbf16>, vector<256x512xbf16>, vector<8x512xf32> -> vector<8x512xf32>
    %c0_74 = arith.constant 0 : index
    %c0_75 = arith.constant 0 : index
    %258 = vector.load %arg3[%c0_74, %c0_75] : memref<1x512xf32, #tpu.memory_space<vmem>>, vector<1x512xf32>
    %259 = vector.broadcast %258 : vector<1x512xf32> to vector<8x512xf32>
    %260 = arith.addf %257, %259 : vector<8x512xf32>
    %261 = vector.extract_strided_slice %260 {offsets = [0, 0], sizes = [8, 384], strides = [1, 1]} : vector<8x512xf32> to vector<8x384xf32>
    %262 = arith.negf %261 : vector<8x384xf32>
    %263 = math.exp %262 : vector<8x384xf32>
    %cst_76 = arith.constant 1.000000e+00 : f32
    %264 = vector.broadcast %cst_76 : f32 to vector<8x384xf32>
    %265 = arith.addf %264, %263 : vector<8x384xf32>
    %266 = arith.divf %264, %265 : vector<8x384xf32>
    %267 = vector.extract_strided_slice %266 {offsets = [0, 0], sizes = [8, 128], strides = [1, 1]} : vector<8x384xf32> to vector<8x128xf32>
    %268 = vector.extract_strided_slice %266 {offsets = [0, 128], sizes = [8, 128], strides = [1, 1]} : vector<8x384xf32> to vector<8x128xf32>
    %269 = vector.extract_strided_slice %266 {offsets = [0, 256], sizes = [8, 128], strides = [1, 1]} : vector<8x384xf32> to vector<8x128xf32>
    %270 = vector.extract_strided_slice %260 {offsets = [0, 384], sizes = [8, 128], strides = [1, 1]} : vector<8x512xf32> to vector<8x128xf32>
    %271 = math.tanh %270 : vector<8x128xf32>
    %272 = arith.mulf %268, %224 : vector<8x128xf32>
    %273 = arith.mulf %267, %271 : vector<8x128xf32>
    %274 = arith.addf %272, %273 : vector<8x128xf32>
    %275 = math.tanh %274 : vector<8x128xf32>
    %276 = arith.mulf %269, %275 : vector<8x128xf32>
    %277 = arith.truncf %276 : vector<8x128xf32> to vector<8x128xbf16>
    %278 = arith.truncf %250 : vector<8x128xf32> to vector<8x128xbf16>
    %279 = tpu.concatenate %277, %278 in 1 : vector<8x128xbf16>, vector<8x128xbf16> -> vector<8x256xbf16>
    %c0_77 = arith.constant 0 : index
    %c0_78 = arith.constant 0 : index
    %280 = vector.load %arg4[%c0_77, %c0_78] : memref<256x512xbf16, #tpu.memory_space<vmem>>, vector<256x512xbf16>
    %cst_79 = arith.constant dense<0.000000e+00> : vector<8x512xf32>
    %281 = tpu.matmul %279, %280, %cst_79 {dimension_numbers = #tpu.dot_dimension_numbers<[1], [0], [0], [1], [0, 0, 1, 1], [], []>} : vector<8x256xbf16>, vector<256x512xbf16>, vector<8x512xf32> -> vector<8x512xf32>
    %c0_80 = arith.constant 0 : index
    %c0_81 = arith.constant 0 : index
    %282 = vector.load %arg5[%c0_80, %c0_81] : memref<1x512xf32, #tpu.memory_space<vmem>>, vector<1x512xf32>
    %283 = vector.broadcast %282 : vector<1x512xf32> to vector<8x512xf32>
    %284 = arith.addf %281, %283 : vector<8x512xf32>
    %285 = vector.extract_strided_slice %284 {offsets = [0, 0], sizes = [8, 384], strides = [1, 1]} : vector<8x512xf32> to vector<8x384xf32>
    %286 = arith.negf %285 : vector<8x384xf32>
    %287 = math.exp %286 : vector<8x384xf32>
    %cst_82 = arith.constant 1.000000e+00 : f32
    %288 = vector.broadcast %cst_82 : f32 to vector<8x384xf32>
    %289 = arith.addf %288, %287 : vector<8x384xf32>
    %290 = arith.divf %288, %289 : vector<8x384xf32>
    %291 = vector.extract_strided_slice %290 {offsets = [0, 0], sizes = [8, 128], strides = [1, 1]} : vector<8x384xf32> to vector<8x128xf32>
    %292 = vector.extract_strided_slice %290 {offsets = [0, 128], sizes = [8, 128], strides = [1, 1]} : vector<8x384xf32> to vector<8x128xf32>
    %293 = vector.extract_strided_slice %290 {offsets = [0, 256], sizes = [8, 128], strides = [1, 1]} : vector<8x384xf32> to vector<8x128xf32>
    %294 = vector.extract_strided_slice %284 {offsets = [0, 384], sizes = [8, 128], strides = [1, 1]} : vector<8x512xf32> to vector<8x128xf32>
    %295 = math.tanh %294 : vector<8x128xf32>
    %296 = arith.mulf %292, %248 : vector<8x128xf32>
    %297 = arith.mulf %291, %295 : vector<8x128xf32>
    %298 = arith.addf %296, %297 : vector<8x128xf32>
    %299 = math.tanh %298 : vector<8x128xf32>
    %300 = arith.mulf %293, %299 : vector<8x128xf32>
    %c6_i32 = arith.constant 6 : i32
    %301 = arith.index_cast %c6_i32 : i32 to index
    %c0_83 = arith.constant 0 : index
    %c0_84 = arith.constant 0 : index
    %302 = vector.load %arg0[%301, %c0_83, %c0_84] : memref<10x8x128xbf16, #tpu.memory_space<vmem>>, vector<1x8x128xbf16>
    %303 = vector.shape_cast %302 : vector<1x8x128xbf16> to vector<8x128xbf16>
    %304 = arith.truncf %276 : vector<8x128xf32> to vector<8x128xbf16>
    %305 = tpu.concatenate %303, %304 in 1 : vector<8x128xbf16>, vector<8x128xbf16> -> vector<8x256xbf16>
    %c0_85 = arith.constant 0 : index
    %c0_86 = arith.constant 0 : index
    %306 = vector.load %arg2[%c0_85, %c0_86] : memref<256x512xbf16, #tpu.memory_space<vmem>>, vector<256x512xbf16>
    %cst_87 = arith.constant dense<0.000000e+00> : vector<8x512xf32>
    %307 = tpu.matmul %305, %306, %cst_87 {dimension_numbers = #tpu.dot_dimension_numbers<[1], [0], [0], [1], [0, 0, 1, 1], [], []>} : vector<8x256xbf16>, vector<256x512xbf16>, vector<8x512xf32> -> vector<8x512xf32>
    %c0_88 = arith.constant 0 : index
    %c0_89 = arith.constant 0 : index
    %308 = vector.load %arg3[%c0_88, %c0_89] : memref<1x512xf32, #tpu.memory_space<vmem>>, vector<1x512xf32>
    %309 = vector.broadcast %308 : vector<1x512xf32> to vector<8x512xf32>
    %310 = arith.addf %307, %309 : vector<8x512xf32>
    %311 = vector.extract_strided_slice %310 {offsets = [0, 0], sizes = [8, 384], strides = [1, 1]} : vector<8x512xf32> to vector<8x384xf32>
    %312 = arith.negf %311 : vector<8x384xf32>
    %313 = math.exp %312 : vector<8x384xf32>
    %cst_90 = arith.constant 1.000000e+00 : f32
    %314 = vector.broadcast %cst_90 : f32 to vector<8x384xf32>
    %315 = arith.addf %314, %313 : vector<8x384xf32>
    %316 = arith.divf %314, %315 : vector<8x384xf32>
    %317 = vector.extract_strided_slice %316 {offsets = [0, 0], sizes = [8, 128], strides = [1, 1]} : vector<8x384xf32> to vector<8x128xf32>
    %318 = vector.extract_strided_slice %316 {offsets = [0, 128], sizes = [8, 128], strides = [1, 1]} : vector<8x384xf32> to vector<8x128xf32>
    %319 = vector.extract_strided_slice %316 {offsets = [0, 256], sizes = [8, 128], strides = [1, 1]} : vector<8x384xf32> to vector<8x128xf32>
    %320 = vector.extract_strided_slice %310 {offsets = [0, 384], sizes = [8, 128], strides = [1, 1]} : vector<8x512xf32> to vector<8x128xf32>
    %321 = math.tanh %320 : vector<8x128xf32>
    %322 = arith.mulf %318, %274 : vector<8x128xf32>
    %323 = arith.mulf %317, %321 : vector<8x128xf32>
    %324 = arith.addf %322, %323 : vector<8x128xf32>
    %325 = math.tanh %324 : vector<8x128xf32>
    %326 = arith.mulf %319, %325 : vector<8x128xf32>
    %327 = arith.truncf %326 : vector<8x128xf32> to vector<8x128xbf16>
    %328 = arith.truncf %300 : vector<8x128xf32> to vector<8x128xbf16>
    %329 = tpu.concatenate %327, %328 in 1 : vector<8x128xbf16>, vector<8x128xbf16> -> vector<8x256xbf16>
    %c0_91 = arith.constant 0 : index
    %c0_92 = arith.constant 0 : index
    %330 = vector.load %arg4[%c0_91, %c0_92] : memref<256x512xbf16, #tpu.memory_space<vmem>>, vector<256x512xbf16>
    %cst_93 = arith.constant dense<0.000000e+00> : vector<8x512xf32>
    %331 = tpu.matmul %329, %330, %cst_93 {dimension_numbers = #tpu.dot_dimension_numbers<[1], [0], [0], [1], [0, 0, 1, 1], [], []>} : vector<8x256xbf16>, vector<256x512xbf16>, vector<8x512xf32> -> vector<8x512xf32>
    %c0_94 = arith.constant 0 : index
    %c0_95 = arith.constant 0 : index
    %332 = vector.load %arg5[%c0_94, %c0_95] : memref<1x512xf32, #tpu.memory_space<vmem>>, vector<1x512xf32>
    %333 = vector.broadcast %332 : vector<1x512xf32> to vector<8x512xf32>
    %334 = arith.addf %331, %333 : vector<8x512xf32>
    %335 = vector.extract_strided_slice %334 {offsets = [0, 0], sizes = [8, 384], strides = [1, 1]} : vector<8x512xf32> to vector<8x384xf32>
    %336 = arith.negf %335 : vector<8x384xf32>
    %337 = math.exp %336 : vector<8x384xf32>
    %cst_96 = arith.constant 1.000000e+00 : f32
    %338 = vector.broadcast %cst_96 : f32 to vector<8x384xf32>
    %339 = arith.addf %338, %337 : vector<8x384xf32>
    %340 = arith.divf %338, %339 : vector<8x384xf32>
    %341 = vector.extract_strided_slice %340 {offsets = [0, 0], sizes = [8, 128], strides = [1, 1]} : vector<8x384xf32> to vector<8x128xf32>
    %342 = vector.extract_strided_slice %340 {offsets = [0, 128], sizes = [8, 128], strides = [1, 1]} : vector<8x384xf32> to vector<8x128xf32>
    %343 = vector.extract_strided_slice %340 {offsets = [0, 256], sizes = [8, 128], strides = [1, 1]} : vector<8x384xf32> to vector<8x128xf32>
    %344 = vector.extract_strided_slice %334 {offsets = [0, 384], sizes = [8, 128], strides = [1, 1]} : vector<8x512xf32> to vector<8x128xf32>
    %345 = math.tanh %344 : vector<8x128xf32>
    %346 = arith.mulf %342, %298 : vector<8x128xf32>
    %347 = arith.mulf %341, %345 : vector<8x128xf32>
    %348 = arith.addf %346, %347 : vector<8x128xf32>
    %349 = math.tanh %348 : vector<8x128xf32>
    %350 = arith.mulf %343, %349 : vector<8x128xf32>
    %c7_i32 = arith.constant 7 : i32
    %351 = arith.index_cast %c7_i32 : i32 to index
    %c0_97 = arith.constant 0 : index
    %c0_98 = arith.constant 0 : index
    %352 = vector.load %arg0[%351, %c0_97, %c0_98] : memref<10x8x128xbf16, #tpu.memory_space<vmem>>, vector<1x8x128xbf16>
    %353 = vector.shape_cast %352 : vector<1x8x128xbf16> to vector<8x128xbf16>
    %354 = arith.truncf %326 : vector<8x128xf32> to vector<8x128xbf16>
    %355 = tpu.concatenate %353, %354 in 1 : vector<8x128xbf16>, vector<8x128xbf16> -> vector<8x256xbf16>
    %c0_99 = arith.constant 0 : index
    %c0_100 = arith.constant 0 : index
    %356 = vector.load %arg2[%c0_99, %c0_100] : memref<256x512xbf16, #tpu.memory_space<vmem>>, vector<256x512xbf16>
    %cst_101 = arith.constant dense<0.000000e+00> : vector<8x512xf32>
    %357 = tpu.matmul %355, %356, %cst_101 {dimension_numbers = #tpu.dot_dimension_numbers<[1], [0], [0], [1], [0, 0, 1, 1], [], []>} : vector<8x256xbf16>, vector<256x512xbf16>, vector<8x512xf32> -> vector<8x512xf32>
    %c0_102 = arith.constant 0 : index
    %c0_103 = arith.constant 0 : index
    %358 = vector.load %arg3[%c0_102, %c0_103] : memref<1x512xf32, #tpu.memory_space<vmem>>, vector<1x512xf32>
    %359 = vector.broadcast %358 : vector<1x512xf32> to vector<8x512xf32>
    %360 = arith.addf %357, %359 : vector<8x512xf32>
    %361 = vector.extract_strided_slice %360 {offsets = [0, 0], sizes = [8, 384], strides = [1, 1]} : vector<8x512xf32> to vector<8x384xf32>
    %362 = arith.negf %361 : vector<8x384xf32>
    %363 = math.exp %362 : vector<8x384xf32>
    %cst_104 = arith.constant 1.000000e+00 : f32
    %364 = vector.broadcast %cst_104 : f32 to vector<8x384xf32>
    %365 = arith.addf %364, %363 : vector<8x384xf32>
    %366 = arith.divf %364, %365 : vector<8x384xf32>
    %367 = vector.extract_strided_slice %366 {offsets = [0, 0], sizes = [8, 128], strides = [1, 1]} : vector<8x384xf32> to vector<8x128xf32>
    %368 = vector.extract_strided_slice %366 {offsets = [0, 128], sizes = [8, 128], strides = [1, 1]} : vector<8x384xf32> to vector<8x128xf32>
    %369 = vector.extract_strided_slice %366 {offsets = [0, 256], sizes = [8, 128], strides = [1, 1]} : vector<8x384xf32> to vector<8x128xf32>
    %370 = vector.extract_strided_slice %360 {offsets = [0, 384], sizes = [8, 128], strides = [1, 1]} : vector<8x512xf32> to vector<8x128xf32>
    %371 = math.tanh %370 : vector<8x128xf32>
    %372 = arith.mulf %368, %324 : vector<8x128xf32>
    %373 = arith.mulf %367, %371 : vector<8x128xf32>
    %374 = arith.addf %372, %373 : vector<8x128xf32>
    %375 = math.tanh %374 : vector<8x128xf32>
    %376 = arith.mulf %369, %375 : vector<8x128xf32>
    %377 = arith.truncf %376 : vector<8x128xf32> to vector<8x128xbf16>
    %378 = arith.truncf %350 : vector<8x128xf32> to vector<8x128xbf16>
    %379 = tpu.concatenate %377, %378 in 1 : vector<8x128xbf16>, vector<8x128xbf16> -> vector<8x256xbf16>
    %c0_105 = arith.constant 0 : index
    %c0_106 = arith.constant 0 : index
    %380 = vector.load %arg4[%c0_105, %c0_106] : memref<256x512xbf16, #tpu.memory_space<vmem>>, vector<256x512xbf16>
    %cst_107 = arith.constant dense<0.000000e+00> : vector<8x512xf32>
    %381 = tpu.matmul %379, %380, %cst_107 {dimension_numbers = #tpu.dot_dimension_numbers<[1], [0], [0], [1], [0, 0, 1, 1], [], []>} : vector<8x256xbf16>, vector<256x512xbf16>, vector<8x512xf32> -> vector<8x512xf32>
    %c0_108 = arith.constant 0 : index
    %c0_109 = arith.constant 0 : index
    %382 = vector.load %arg5[%c0_108, %c0_109] : memref<1x512xf32, #tpu.memory_space<vmem>>, vector<1x512xf32>
    %383 = vector.broadcast %382 : vector<1x512xf32> to vector<8x512xf32>
    %384 = arith.addf %381, %383 : vector<8x512xf32>
    %385 = vector.extract_strided_slice %384 {offsets = [0, 0], sizes = [8, 384], strides = [1, 1]} : vector<8x512xf32> to vector<8x384xf32>
    %386 = arith.negf %385 : vector<8x384xf32>
    %387 = math.exp %386 : vector<8x384xf32>
    %cst_110 = arith.constant 1.000000e+00 : f32
    %388 = vector.broadcast %cst_110 : f32 to vector<8x384xf32>
    %389 = arith.addf %388, %387 : vector<8x384xf32>
    %390 = arith.divf %388, %389 : vector<8x384xf32>
    %391 = vector.extract_strided_slice %390 {offsets = [0, 0], sizes = [8, 128], strides = [1, 1]} : vector<8x384xf32> to vector<8x128xf32>
    %392 = vector.extract_strided_slice %390 {offsets = [0, 128], sizes = [8, 128], strides = [1, 1]} : vector<8x384xf32> to vector<8x128xf32>
    %393 = vector.extract_strided_slice %390 {offsets = [0, 256], sizes = [8, 128], strides = [1, 1]} : vector<8x384xf32> to vector<8x128xf32>
    %394 = vector.extract_strided_slice %384 {offsets = [0, 384], sizes = [8, 128], strides = [1, 1]} : vector<8x512xf32> to vector<8x128xf32>
    %395 = math.tanh %394 : vector<8x128xf32>
    %396 = arith.mulf %392, %348 : vector<8x128xf32>
    %397 = arith.mulf %391, %395 : vector<8x128xf32>
    %398 = arith.addf %396, %397 : vector<8x128xf32>
    %399 = math.tanh %398 : vector<8x128xf32>
    %400 = arith.mulf %393, %399 : vector<8x128xf32>
    %c8_i32 = arith.constant 8 : i32
    %401 = arith.index_cast %c8_i32 : i32 to index
    %c0_111 = arith.constant 0 : index
    %c0_112 = arith.constant 0 : index
    %402 = vector.load %arg0[%401, %c0_111, %c0_112] : memref<10x8x128xbf16, #tpu.memory_space<vmem>>, vector<1x8x128xbf16>
    %403 = vector.shape_cast %402 : vector<1x8x128xbf16> to vector<8x128xbf16>
    %404 = arith.truncf %376 : vector<8x128xf32> to vector<8x128xbf16>
    %405 = tpu.concatenate %403, %404 in 1 : vector<8x128xbf16>, vector<8x128xbf16> -> vector<8x256xbf16>
    %c0_113 = arith.constant 0 : index
    %c0_114 = arith.constant 0 : index
    %406 = vector.load %arg2[%c0_113, %c0_114] : memref<256x512xbf16, #tpu.memory_space<vmem>>, vector<256x512xbf16>
    %cst_115 = arith.constant dense<0.000000e+00> : vector<8x512xf32>
    %407 = tpu.matmul %405, %406, %cst_115 {dimension_numbers = #tpu.dot_dimension_numbers<[1], [0], [0], [1], [0, 0, 1, 1], [], []>} : vector<8x256xbf16>, vector<256x512xbf16>, vector<8x512xf32> -> vector<8x512xf32>
    %c0_116 = arith.constant 0 : index
    %c0_117 = arith.constant 0 : index
    %408 = vector.load %arg3[%c0_116, %c0_117] : memref<1x512xf32, #tpu.memory_space<vmem>>, vector<1x512xf32>
    %409 = vector.broadcast %408 : vector<1x512xf32> to vector<8x512xf32>
    %410 = arith.addf %407, %409 : vector<8x512xf32>
    %411 = vector.extract_strided_slice %410 {offsets = [0, 0], sizes = [8, 384], strides = [1, 1]} : vector<8x512xf32> to vector<8x384xf32>
    %412 = arith.negf %411 : vector<8x384xf32>
    %413 = math.exp %412 : vector<8x384xf32>
    %cst_118 = arith.constant 1.000000e+00 : f32
    %414 = vector.broadcast %cst_118 : f32 to vector<8x384xf32>
    %415 = arith.addf %414, %413 : vector<8x384xf32>
    %416 = arith.divf %414, %415 : vector<8x384xf32>
    %417 = vector.extract_strided_slice %416 {offsets = [0, 0], sizes = [8, 128], strides = [1, 1]} : vector<8x384xf32> to vector<8x128xf32>
    %418 = vector.extract_strided_slice %416 {offsets = [0, 128], sizes = [8, 128], strides = [1, 1]} : vector<8x384xf32> to vector<8x128xf32>
    %419 = vector.extract_strided_slice %416 {offsets = [0, 256], sizes = [8, 128], strides = [1, 1]} : vector<8x384xf32> to vector<8x128xf32>
    %420 = vector.extract_strided_slice %410 {offsets = [0, 384], sizes = [8, 128], strides = [1, 1]} : vector<8x512xf32> to vector<8x128xf32>
    %421 = math.tanh %420 : vector<8x128xf32>
    %422 = arith.mulf %418, %374 : vector<8x128xf32>
    %423 = arith.mulf %417, %421 : vector<8x128xf32>
    %424 = arith.addf %422, %423 : vector<8x128xf32>
    %425 = math.tanh %424 : vector<8x128xf32>
    %426 = arith.mulf %419, %425 : vector<8x128xf32>
    %427 = arith.truncf %426 : vector<8x128xf32> to vector<8x128xbf16>
    %428 = arith.truncf %400 : vector<8x128xf32> to vector<8x128xbf16>
    %429 = tpu.concatenate %427, %428 in 1 : vector<8x128xbf16>, vector<8x128xbf16> -> vector<8x256xbf16>
    %c0_119 = arith.constant 0 : index
    %c0_120 = arith.constant 0 : index
    %430 = vector.load %arg4[%c0_119, %c0_120] : memref<256x512xbf16, #tpu.memory_space<vmem>>, vector<256x512xbf16>
    %cst_121 = arith.constant dense<0.000000e+00> : vector<8x512xf32>
    %431 = tpu.matmul %429, %430, %cst_121 {dimension_numbers = #tpu.dot_dimension_numbers<[1], [0], [0], [1], [0, 0, 1, 1], [], []>} : vector<8x256xbf16>, vector<256x512xbf16>, vector<8x512xf32> -> vector<8x512xf32>
    %c0_122 = arith.constant 0 : index
    %c0_123 = arith.constant 0 : index
    %432 = vector.load %arg5[%c0_122, %c0_123] : memref<1x512xf32, #tpu.memory_space<vmem>>, vector<1x512xf32>
    %433 = vector.broadcast %432 : vector<1x512xf32> to vector<8x512xf32>
    %434 = arith.addf %431, %433 : vector<8x512xf32>
    %435 = vector.extract_strided_slice %434 {offsets = [0, 0], sizes = [8, 384], strides = [1, 1]} : vector<8x512xf32> to vector<8x384xf32>
    %436 = arith.negf %435 : vector<8x384xf32>
    %437 = math.exp %436 : vector<8x384xf32>
    %cst_124 = arith.constant 1.000000e+00 : f32
    %438 = vector.broadcast %cst_124 : f32 to vector<8x384xf32>
    %439 = arith.addf %438, %437 : vector<8x384xf32>
    %440 = arith.divf %438, %439 : vector<8x384xf32>
    %441 = vector.extract_strided_slice %440 {offsets = [0, 0], sizes = [8, 128], strides = [1, 1]} : vector<8x384xf32> to vector<8x128xf32>
    %442 = vector.extract_strided_slice %440 {offsets = [0, 128], sizes = [8, 128], strides = [1, 1]} : vector<8x384xf32> to vector<8x128xf32>
    %443 = vector.extract_strided_slice %440 {offsets = [0, 256], sizes = [8, 128], strides = [1, 1]} : vector<8x384xf32> to vector<8x128xf32>
    %444 = vector.extract_strided_slice %434 {offsets = [0, 384], sizes = [8, 128], strides = [1, 1]} : vector<8x512xf32> to vector<8x128xf32>
    %445 = math.tanh %444 : vector<8x128xf32>
    %446 = arith.mulf %442, %398 : vector<8x128xf32>
    %447 = arith.mulf %441, %445 : vector<8x128xf32>
    %448 = arith.addf %446, %447 : vector<8x128xf32>
    %449 = math.tanh %448 : vector<8x128xf32>
    %450 = arith.mulf %443, %449 : vector<8x128xf32>
    %c9_i32 = arith.constant 9 : i32
    %451 = arith.index_cast %c9_i32 : i32 to index
    %c0_125 = arith.constant 0 : index
    %c0_126 = arith.constant 0 : index
    %452 = vector.load %arg0[%451, %c0_125, %c0_126] : memref<10x8x128xbf16, #tpu.memory_space<vmem>>, vector<1x8x128xbf16>
    %453 = vector.shape_cast %452 : vector<1x8x128xbf16> to vector<8x128xbf16>
    %454 = arith.truncf %426 : vector<8x128xf32> to vector<8x128xbf16>
    %455 = tpu.concatenate %453, %454 in 1 : vector<8x128xbf16>, vector<8x128xbf16> -> vector<8x256xbf16>
    %c0_127 = arith.constant 0 : index
    %c0_128 = arith.constant 0 : index
    %456 = vector.load %arg2[%c0_127, %c0_128] : memref<256x512xbf16, #tpu.memory_space<vmem>>, vector<256x512xbf16>
    %cst_129 = arith.constant dense<0.000000e+00> : vector<8x512xf32>
    %457 = tpu.matmul %455, %456, %cst_129 {dimension_numbers = #tpu.dot_dimension_numbers<[1], [0], [0], [1], [0, 0, 1, 1], [], []>} : vector<8x256xbf16>, vector<256x512xbf16>, vector<8x512xf32> -> vector<8x512xf32>
    %c0_130 = arith.constant 0 : index
    %c0_131 = arith.constant 0 : index
    %458 = vector.load %arg3[%c0_130, %c0_131] : memref<1x512xf32, #tpu.memory_space<vmem>>, vector<1x512xf32>
    %459 = vector.broadcast %458 : vector<1x512xf32> to vector<8x512xf32>
    %460 = arith.addf %457, %459 : vector<8x512xf32>
    %461 = vector.extract_strided_slice %460 {offsets = [0, 0], sizes = [8, 384], strides = [1, 1]} : vector<8x512xf32> to vector<8x384xf32>
    %462 = arith.negf %461 : vector<8x384xf32>
    %463 = math.exp %462 : vector<8x384xf32>
    %cst_132 = arith.constant 1.000000e+00 : f32
    %464 = vector.broadcast %cst_132 : f32 to vector<8x384xf32>
    %465 = arith.addf %464, %463 : vector<8x384xf32>
    %466 = arith.divf %464, %465 : vector<8x384xf32>
    %467 = vector.extract_strided_slice %466 {offsets = [0, 0], sizes = [8, 128], strides = [1, 1]} : vector<8x384xf32> to vector<8x128xf32>
    %468 = vector.extract_strided_slice %466 {offsets = [0, 128], sizes = [8, 128], strides = [1, 1]} : vector<8x384xf32> to vector<8x128xf32>
    %469 = vector.extract_strided_slice %466 {offsets = [0, 256], sizes = [8, 128], strides = [1, 1]} : vector<8x384xf32> to vector<8x128xf32>
    %470 = vector.extract_strided_slice %460 {offsets = [0, 384], sizes = [8, 128], strides = [1, 1]} : vector<8x512xf32> to vector<8x128xf32>
    %471 = math.tanh %470 : vector<8x128xf32>
    %472 = arith.mulf %468, %424 : vector<8x128xf32>
    %473 = arith.mulf %467, %471 : vector<8x128xf32>
    %474 = arith.addf %472, %473 : vector<8x128xf32>
    %475 = math.tanh %474 : vector<8x128xf32>
    %476 = arith.mulf %469, %475 : vector<8x128xf32>
    %477 = arith.truncf %476 : vector<8x128xf32> to vector<8x128xbf16>
    %478 = arith.truncf %450 : vector<8x128xf32> to vector<8x128xbf16>
    %479 = tpu.concatenate %477, %478 in 1 : vector<8x128xbf16>, vector<8x128xbf16> -> vector<8x256xbf16>
    %c0_133 = arith.constant 0 : index
    %c0_134 = arith.constant 0 : index
    %480 = vector.load %arg4[%c0_133, %c0_134] : memref<256x512xbf16, #tpu.memory_space<vmem>>, vector<256x512xbf16>
    %cst_135 = arith.constant dense<0.000000e+00> : vector<8x512xf32>
    %481 = tpu.matmul %479, %480, %cst_135 {dimension_numbers = #tpu.dot_dimension_numbers<[1], [0], [0], [1], [0, 0, 1, 1], [], []>} : vector<8x256xbf16>, vector<256x512xbf16>, vector<8x512xf32> -> vector<8x512xf32>
    %c0_136 = arith.constant 0 : index
    %c0_137 = arith.constant 0 : index
    %482 = vector.load %arg5[%c0_136, %c0_137] : memref<1x512xf32, #tpu.memory_space<vmem>>, vector<1x512xf32>
    %483 = vector.broadcast %482 : vector<1x512xf32> to vector<8x512xf32>
    %484 = arith.addf %481, %483 : vector<8x512xf32>
    %485 = vector.extract_strided_slice %484 {offsets = [0, 0], sizes = [8, 384], strides = [1, 1]} : vector<8x512xf32> to vector<8x384xf32>
    %486 = arith.negf %485 : vector<8x384xf32>
    %487 = math.exp %486 : vector<8x384xf32>
    %cst_138 = arith.constant 1.000000e+00 : f32
    %488 = vector.broadcast %cst_138 : f32 to vector<8x384xf32>
    %489 = arith.addf %488, %487 : vector<8x384xf32>
    %490 = arith.divf %488, %489 : vector<8x384xf32>
    %491 = vector.extract_strided_slice %490 {offsets = [0, 0], sizes = [8, 128], strides = [1, 1]} : vector<8x384xf32> to vector<8x128xf32>
    %492 = vector.extract_strided_slice %490 {offsets = [0, 128], sizes = [8, 128], strides = [1, 1]} : vector<8x384xf32> to vector<8x128xf32>
    %493 = vector.extract_strided_slice %490 {offsets = [0, 256], sizes = [8, 128], strides = [1, 1]} : vector<8x384xf32> to vector<8x128xf32>
    %494 = vector.extract_strided_slice %484 {offsets = [0, 384], sizes = [8, 128], strides = [1, 1]} : vector<8x512xf32> to vector<8x128xf32>
    %495 = math.tanh %494 : vector<8x128xf32>
    %496 = arith.mulf %492, %448 : vector<8x128xf32>
    %497 = arith.mulf %491, %495 : vector<8x128xf32>
    %498 = arith.addf %496, %497 : vector<8x128xf32>
    %499 = math.tanh %498 : vector<8x128xf32>
    %500 = arith.mulf %493, %499 : vector<8x128xf32>
    %c10_i32 = arith.constant 10 : i32
    %c0_i32_139 = arith.constant 0 : i32
    %501 = arith.index_cast %c0_i32_139 : i32 to index
    %c0_140 = arith.constant 0 : index
    %c0_141 = arith.constant 0 : index
    %502 = vector.load %arg1[%501, %c0_140, %c0_141] : memref<8x8x128xbf16, #tpu.memory_space<vmem>>, vector<1x8x128xbf16>
    %503 = vector.shape_cast %502 : vector<1x8x128xbf16> to vector<8x128xbf16>
    %504 = arith.truncf %476 : vector<8x128xf32> to vector<8x128xbf16>
    %505 = tpu.concatenate %503, %504 in 1 : vector<8x128xbf16>, vector<8x128xbf16> -> vector<8x256xbf16>
    %c0_142 = arith.constant 0 : index
    %c0_143 = arith.constant 0 : index
    %506 = vector.load %arg6[%c0_142, %c0_143] : memref<256x512xbf16, #tpu.memory_space<vmem>>, vector<256x512xbf16>
    %cst_144 = arith.constant dense<0.000000e+00> : vector<8x512xf32>
    %507 = tpu.matmul %505, %506, %cst_144 {dimension_numbers = #tpu.dot_dimension_numbers<[1], [0], [0], [1], [0, 0, 1, 1], [], []>} : vector<8x256xbf16>, vector<256x512xbf16>, vector<8x512xf32> -> vector<8x512xf32>
    %c0_145 = arith.constant 0 : index
    %c0_146 = arith.constant 0 : index
    %508 = vector.load %arg7[%c0_145, %c0_146] : memref<1x512xf32, #tpu.memory_space<vmem>>, vector<1x512xf32>
    %509 = vector.broadcast %508 : vector<1x512xf32> to vector<8x512xf32>
    %510 = arith.addf %507, %509 : vector<8x512xf32>
    %511 = vector.extract_strided_slice %510 {offsets = [0, 0], sizes = [8, 384], strides = [1, 1]} : vector<8x512xf32> to vector<8x384xf32>
    %512 = arith.negf %511 : vector<8x384xf32>
    %513 = math.exp %512 : vector<8x384xf32>
    %cst_147 = arith.constant 1.000000e+00 : f32
    %514 = vector.broadcast %cst_147 : f32 to vector<8x384xf32>
    %515 = arith.addf %514, %513 : vector<8x384xf32>
    %516 = arith.divf %514, %515 : vector<8x384xf32>
    %517 = vector.extract_strided_slice %516 {offsets = [0, 0], sizes = [8, 128], strides = [1, 1]} : vector<8x384xf32> to vector<8x128xf32>
    %518 = vector.extract_strided_slice %516 {offsets = [0, 128], sizes = [8, 128], strides = [1, 1]} : vector<8x384xf32> to vector<8x128xf32>
    %519 = vector.extract_strided_slice %516 {offsets = [0, 256], sizes = [8, 128], strides = [1, 1]} : vector<8x384xf32> to vector<8x128xf32>
    %520 = vector.extract_strided_slice %510 {offsets = [0, 384], sizes = [8, 128], strides = [1, 1]} : vector<8x512xf32> to vector<8x128xf32>
    %521 = math.tanh %520 : vector<8x128xf32>
    %522 = arith.mulf %518, %474 : vector<8x128xf32>
    %523 = arith.mulf %517, %521 : vector<8x128xf32>
    %524 = arith.addf %522, %523 : vector<8x128xf32>
    %525 = math.tanh %524 : vector<8x128xf32>
    %526 = arith.mulf %519, %525 : vector<8x128xf32>
    %527 = arith.truncf %526 : vector<8x128xf32> to vector<8x128xbf16>
    %528 = arith.truncf %500 : vector<8x128xf32> to vector<8x128xbf16>
    %529 = tpu.concatenate %527, %528 in 1 : vector<8x128xbf16>, vector<8x128xbf16> -> vector<8x256xbf16>
    %c0_148 = arith.constant 0 : index
    %c0_149 = arith.constant 0 : index
    %530 = vector.load %arg8[%c0_148, %c0_149] : memref<256x512xbf16, #tpu.memory_space<vmem>>, vector<256x512xbf16>
    %cst_150 = arith.constant dense<0.000000e+00> : vector<8x512xf32>
    %531 = tpu.matmul %529, %530, %cst_150 {dimension_numbers = #tpu.dot_dimension_numbers<[1], [0], [0], [1], [0, 0, 1, 1], [], []>} : vector<8x256xbf16>, vector<256x512xbf16>, vector<8x512xf32> -> vector<8x512xf32>
    %c0_151 = arith.constant 0 : index
    %c0_152 = arith.constant 0 : index
    %532 = vector.load %arg9[%c0_151, %c0_152] : memref<1x512xf32, #tpu.memory_space<vmem>>, vector<1x512xf32>
    %533 = vector.broadcast %532 : vector<1x512xf32> to vector<8x512xf32>
    %534 = arith.addf %531, %533 : vector<8x512xf32>
    %535 = vector.extract_strided_slice %534 {offsets = [0, 0], sizes = [8, 384], strides = [1, 1]} : vector<8x512xf32> to vector<8x384xf32>
    %536 = arith.negf %535 : vector<8x384xf32>
    %537 = math.exp %536 : vector<8x384xf32>
    %cst_153 = arith.constant 1.000000e+00 : f32
    %538 = vector.broadcast %cst_153 : f32 to vector<8x384xf32>
    %539 = arith.addf %538, %537 : vector<8x384xf32>
    %540 = arith.divf %538, %539 : vector<8x384xf32>
    %541 = vector.extract_strided_slice %540 {offsets = [0, 0], sizes = [8, 128], strides = [1, 1]} : vector<8x384xf32> to vector<8x128xf32>
    %542 = vector.extract_strided_slice %540 {offsets = [0, 128], sizes = [8, 128], strides = [1, 1]} : vector<8x384xf32> to vector<8x128xf32>
    %543 = vector.extract_strided_slice %540 {offsets = [0, 256], sizes = [8, 128], strides = [1, 1]} : vector<8x384xf32> to vector<8x128xf32>
    %544 = vector.extract_strided_slice %534 {offsets = [0, 384], sizes = [8, 128], strides = [1, 1]} : vector<8x512xf32> to vector<8x128xf32>
    %545 = math.tanh %544 : vector<8x128xf32>
    %546 = arith.mulf %542, %498 : vector<8x128xf32>
    %547 = arith.mulf %541, %545 : vector<8x128xf32>
    %548 = arith.addf %546, %547 : vector<8x128xf32>
    %549 = math.tanh %548 : vector<8x128xf32>
    %550 = arith.mulf %543, %549 : vector<8x128xf32>
    %551 = arith.index_cast %c0_i32_139 : i32 to index
    %c0_154 = arith.constant 0 : index
    %c0_155 = arith.constant 0 : index
    %552 = vector.load %arg13[%551, %c0_154, %c0_155] : memref<8x8x128xf32, #tpu.memory_space<vmem>>, vector<1x8x128xf32>
    %553 = vector.shape_cast %552 : vector<1x8x128xf32> to vector<8x128xf32>
    %554 = vector.shape_cast %550 : vector<8x128xf32> to vector<1x8x128xf32>
    tpu.vector_store %arg13[%551, %c0_154, %c0_155], %554 {strides = array<i32>} : memref<8x8x128xf32, #tpu.memory_space<vmem>>, vector<1x8x128xf32>,
    %c1_i32_156 = arith.constant 1 : i32
    %555 = arith.index_cast %c1_i32_156 : i32 to index
    %c0_157 = arith.constant 0 : index
    %c0_158 = arith.constant 0 : index
    %556 = vector.load %arg1[%555, %c0_157, %c0_158] : memref<8x8x128xbf16, #tpu.memory_space<vmem>>, vector<1x8x128xbf16>
    %557 = vector.shape_cast %556 : vector<1x8x128xbf16> to vector<8x128xbf16>
    %558 = arith.truncf %526 : vector<8x128xf32> to vector<8x128xbf16>
    %559 = tpu.concatenate %557, %558 in 1 : vector<8x128xbf16>, vector<8x128xbf16> -> vector<8x256xbf16>
    %c0_159 = arith.constant 0 : index
    %c0_160 = arith.constant 0 : index
    %560 = vector.load %arg6[%c0_159, %c0_160] : memref<256x512xbf16, #tpu.memory_space<vmem>>, vector<256x512xbf16>
    %cst_161 = arith.constant dense<0.000000e+00> : vector<8x512xf32>
    %561 = tpu.matmul %559, %560, %cst_161 {dimension_numbers = #tpu.dot_dimension_numbers<[1], [0], [0], [1], [0, 0, 1, 1], [], []>} : vector<8x256xbf16>, vector<256x512xbf16>, vector<8x512xf32> -> vector<8x512xf32>
    %c0_162 = arith.constant 0 : index
    %c0_163 = arith.constant 0 : index
    %562 = vector.load %arg7[%c0_162, %c0_163] : memref<1x512xf32, #tpu.memory_space<vmem>>, vector<1x512xf32>
    %563 = vector.broadcast %562 : vector<1x512xf32> to vector<8x512xf32>
    %564 = arith.addf %561, %563 : vector<8x512xf32>
    %565 = vector.extract_strided_slice %564 {offsets = [0, 0], sizes = [8, 384], strides = [1, 1]} : vector<8x512xf32> to vector<8x384xf32>
    %566 = arith.negf %565 : vector<8x384xf32>
    %567 = math.exp %566 : vector<8x384xf32>
    %cst_164 = arith.constant 1.000000e+00 : f32
    %568 = vector.broadcast %cst_164 : f32 to vector<8x384xf32>
    %569 = arith.addf %568, %567 : vector<8x384xf32>
    %570 = arith.divf %568, %569 : vector<8x384xf32>
    %571 = vector.extract_strided_slice %570 {offsets = [0, 0], sizes = [8, 128], strides = [1, 1]} : vector<8x384xf32> to vector<8x128xf32>
    %572 = vector.extract_strided_slice %570 {offsets = [0, 128], sizes = [8, 128], strides = [1, 1]} : vector<8x384xf32> to vector<8x128xf32>
    %573 = vector.extract_strided_slice %570 {offsets = [0, 256], sizes = [8, 128], strides = [1, 1]} : vector<8x384xf32> to vector<8x128xf32>
    %574 = vector.extract_strided_slice %564 {offsets = [0, 384], sizes = [8, 128], strides = [1, 1]} : vector<8x512xf32> to vector<8x128xf32>
    %575 = math.tanh %574 : vector<8x128xf32>
    %576 = arith.mulf %572, %524 : vector<8x128xf32>
    %577 = arith.mulf %571, %575 : vector<8x128xf32>
    %578 = arith.addf %576, %577 : vector<8x128xf32>
    %579 = math.tanh %578 : vector<8x128xf32>
    %580 = arith.mulf %573, %579 : vector<8x128xf32>
    %581 = arith.truncf %580 : vector<8x128xf32> to vector<8x128xbf16>
    %582 = arith.truncf %550 : vector<8x128xf32> to vector<8x128xbf16>
    %583 = tpu.concatenate %581, %582 in 1 : vector<8x128xbf16>, vector<8x128xbf16> -> vector<8x256xbf16>
    %c0_165 = arith.constant 0 : index
    %c0_166 = arith.constant 0 : index
    %584 = vector.load %arg8[%c0_165, %c0_166] : memref<256x512xbf16, #tpu.memory_space<vmem>>, vector<256x512xbf16>
    %cst_167 = arith.constant dense<0.000000e+00> : vector<8x512xf32>
    %585 = tpu.matmul %583, %584, %cst_167 {dimension_numbers = #tpu.dot_dimension_numbers<[1], [0], [0], [1], [0, 0, 1, 1], [], []>} : vector<8x256xbf16>, vector<256x512xbf16>, vector<8x512xf32> -> vector<8x512xf32>
    %c0_168 = arith.constant 0 : index
    %c0_169 = arith.constant 0 : index
    %586 = vector.load %arg9[%c0_168, %c0_169] : memref<1x512xf32, #tpu.memory_space<vmem>>, vector<1x512xf32>
    %587 = vector.broadcast %586 : vector<1x512xf32> to vector<8x512xf32>
    %588 = arith.addf %585, %587 : vector<8x512xf32>
    %589 = vector.extract_strided_slice %588 {offsets = [0, 0], sizes = [8, 384], strides = [1, 1]} : vector<8x512xf32> to vector<8x384xf32>
    %590 = arith.negf %589 : vector<8x384xf32>
    %591 = math.exp %590 : vector<8x384xf32>
    %cst_170 = arith.constant 1.000000e+00 : f32
    %592 = vector.broadcast %cst_170 : f32 to vector<8x384xf32>
    %593 = arith.addf %592, %591 : vector<8x384xf32>
    %594 = arith.divf %592, %593 : vector<8x384xf32>
    %595 = vector.extract_strided_slice %594 {offsets = [0, 0], sizes = [8, 128], strides = [1, 1]} : vector<8x384xf32> to vector<8x128xf32>
    %596 = vector.extract_strided_slice %594 {offsets = [0, 128], sizes = [8, 128], strides = [1, 1]} : vector<8x384xf32> to vector<8x128xf32>
    %597 = vector.extract_strided_slice %594 {offsets = [0, 256], sizes = [8, 128], strides = [1, 1]} : vector<8x384xf32> to vector<8x128xf32>
    %598 = vector.extract_strided_slice %588 {offsets = [0, 384], sizes = [8, 128], strides = [1, 1]} : vector<8x512xf32> to vector<8x128xf32>
    %599 = math.tanh %598 : vector<8x128xf32>
    %600 = arith.mulf %596, %548 : vector<8x128xf32>
    %601 = arith.mulf %595, %599 : vector<8x128xf32>
    %602 = arith.addf %600, %601 : vector<8x128xf32>
    %603 = math.tanh %602 : vector<8x128xf32>
    %604 = arith.mulf %597, %603 : vector<8x128xf32>
    %605 = arith.index_cast %c1_i32_156 : i32 to index
    %c0_171 = arith.constant 0 : index
    %c0_172 = arith.constant 0 : index
    %606 = vector.load %arg13[%605, %c0_171, %c0_172] : memref<8x8x128xf32, #tpu.memory_space<vmem>>, vector<1x8x128xf32>
    %607 = vector.shape_cast %606 : vector<1x8x128xf32> to vector<8x128xf32>
    %608 = vector.shape_cast %604 : vector<8x128xf32> to vector<1x8x128xf32>
    tpu.vector_store %arg13[%605, %c0_171, %c0_172], %608 {strides = array<i32>} : memref<8x8x128xf32, #tpu.memory_space<vmem>>, vector<1x8x128xf32>,
    %c2_i32_173 = arith.constant 2 : i32
    %609 = arith.index_cast %c2_i32_173 : i32 to index
    %c0_174 = arith.constant 0 : index
    %c0_175 = arith.constant 0 : index
    %610 = vector.load %arg1[%609, %c0_174, %c0_175] : memref<8x8x128xbf16, #tpu.memory_space<vmem>>, vector<1x8x128xbf16>
    %611 = vector.shape_cast %610 : vector<1x8x128xbf16> to vector<8x128xbf16>
    %612 = arith.truncf %580 : vector<8x128xf32> to vector<8x128xbf16>
    %613 = tpu.concatenate %611, %612 in 1 : vector<8x128xbf16>, vector<8x128xbf16> -> vector<8x256xbf16>
    %c0_176 = arith.constant 0 : index
    %c0_177 = arith.constant 0 : index
    %614 = vector.load %arg6[%c0_176, %c0_177] : memref<256x512xbf16, #tpu.memory_space<vmem>>, vector<256x512xbf16>
    %cst_178 = arith.constant dense<0.000000e+00> : vector<8x512xf32>
    %615 = tpu.matmul %613, %614, %cst_178 {dimension_numbers = #tpu.dot_dimension_numbers<[1], [0], [0], [1], [0, 0, 1, 1], [], []>} : vector<8x256xbf16>, vector<256x512xbf16>, vector<8x512xf32> -> vector<8x512xf32>
    %c0_179 = arith.constant 0 : index
    %c0_180 = arith.constant 0 : index
    %616 = vector.load %arg7[%c0_179, %c0_180] : memref<1x512xf32, #tpu.memory_space<vmem>>, vector<1x512xf32>
    %617 = vector.broadcast %616 : vector<1x512xf32> to vector<8x512xf32>
    %618 = arith.addf %615, %617 : vector<8x512xf32>
    %619 = vector.extract_strided_slice %618 {offsets = [0, 0], sizes = [8, 384], strides = [1, 1]} : vector<8x512xf32> to vector<8x384xf32>
    %620 = arith.negf %619 : vector<8x384xf32>
    %621 = math.exp %620 : vector<8x384xf32>
    %cst_181 = arith.constant 1.000000e+00 : f32
    %622 = vector.broadcast %cst_181 : f32 to vector<8x384xf32>
    %623 = arith.addf %622, %621 : vector<8x384xf32>
    %624 = arith.divf %622, %623 : vector<8x384xf32>
    %625 = vector.extract_strided_slice %624 {offsets = [0, 0], sizes = [8, 128], strides = [1, 1]} : vector<8x384xf32> to vector<8x128xf32>
    %626 = vector.extract_strided_slice %624 {offsets = [0, 128], sizes = [8, 128], strides = [1, 1]} : vector<8x384xf32> to vector<8x128xf32>
    %627 = vector.extract_strided_slice %624 {offsets = [0, 256], sizes = [8, 128], strides = [1, 1]} : vector<8x384xf32> to vector<8x128xf32>
    %628 = vector.extract_strided_slice %618 {offsets = [0, 384], sizes = [8, 128], strides = [1, 1]} : vector<8x512xf32> to vector<8x128xf32>
    %629 = math.tanh %628 : vector<8x128xf32>
    %630 = arith.mulf %626, %578 : vector<8x128xf32>
    %631 = arith.mulf %625, %629 : vector<8x128xf32>
    %632 = arith.addf %630, %631 : vector<8x128xf32>
    %633 = math.tanh %632 : vector<8x128xf32>
    %634 = arith.mulf %627, %633 : vector<8x128xf32>
    %635 = arith.truncf %634 : vector<8x128xf32> to vector<8x128xbf16>
    %636 = arith.truncf %604 : vector<8x128xf32> to vector<8x128xbf16>
    %637 = tpu.concatenate %635, %636 in 1 : vector<8x128xbf16>, vector<8x128xbf16> -> vector<8x256xbf16>
    %c0_182 = arith.constant 0 : index
    %c0_183 = arith.constant 0 : index
    %638 = vector.load %arg8[%c0_182, %c0_183] : memref<256x512xbf16, #tpu.memory_space<vmem>>, vector<256x512xbf16>
    %cst_184 = arith.constant dense<0.000000e+00> : vector<8x512xf32>
    %639 = tpu.matmul %637, %638, %cst_184 {dimension_numbers = #tpu.dot_dimension_numbers<[1], [0], [0], [1], [0, 0, 1, 1], [], []>} : vector<8x256xbf16>, vector<256x512xbf16>, vector<8x512xf32> -> vector<8x512xf32>
    %c0_185 = arith.constant 0 : index
    %c0_186 = arith.constant 0 : index
    %640 = vector.load %arg9[%c0_185, %c0_186] : memref<1x512xf32, #tpu.memory_space<vmem>>, vector<1x512xf32>
    %641 = vector.broadcast %640 : vector<1x512xf32> to vector<8x512xf32>
    %642 = arith.addf %639, %641 : vector<8x512xf32>
    %643 = vector.extract_strided_slice %642 {offsets = [0, 0], sizes = [8, 384], strides = [1, 1]} : vector<8x512xf32> to vector<8x384xf32>
    %644 = arith.negf %643 : vector<8x384xf32>
    %645 = math.exp %644 : vector<8x384xf32>
    %cst_187 = arith.constant 1.000000e+00 : f32
    %646 = vector.broadcast %cst_187 : f32 to vector<8x384xf32>
    %647 = arith.addf %646, %645 : vector<8x384xf32>
    %648 = arith.divf %646, %647 : vector<8x384xf32>
    %649 = vector.extract_strided_slice %648 {offsets = [0, 0], sizes = [8, 128], strides = [1, 1]} : vector<8x384xf32> to vector<8x128xf32>
    %650 = vector.extract_strided_slice %648 {offsets = [0, 128], sizes = [8, 128], strides = [1, 1]} : vector<8x384xf32> to vector<8x128xf32>
    %651 = vector.extract_strided_slice %648 {offsets = [0, 256], sizes = [8, 128], strides = [1, 1]} : vector<8x384xf32> to vector<8x128xf32>
    %652 = vector.extract_strided_slice %642 {offsets = [0, 384], sizes = [8, 128], strides = [1, 1]} : vector<8x512xf32> to vector<8x128xf32>
    %653 = math.tanh %652 : vector<8x128xf32>
    %654 = arith.mulf %650, %602 : vector<8x128xf32>
    %655 = arith.mulf %649, %653 : vector<8x128xf32>
    %656 = arith.addf %654, %655 : vector<8x128xf32>
    %657 = math.tanh %656 : vector<8x128xf32>
    %658 = arith.mulf %651, %657 : vector<8x128xf32>
    %659 = arith.index_cast %c2_i32_173 : i32 to index
    %c0_188 = arith.constant 0 : index
    %c0_189 = arith.constant 0 : index
    %660 = vector.load %arg13[%659, %c0_188, %c0_189] : memref<8x8x128xf32, #tpu.memory_space<vmem>>, vector<1x8x128xf32>
    %661 = vector.shape_cast %660 : vector<1x8x128xf32> to vector<8x128xf32>
    %662 = vector.shape_cast %658 : vector<8x128xf32> to vector<1x8x128xf32>
    tpu.vector_store %arg13[%659, %c0_188, %c0_189], %662 {strides = array<i32>} : memref<8x8x128xf32, #tpu.memory_space<vmem>>, vector<1x8x128xf32>,
    %c3_i32_190 = arith.constant 3 : i32
    %663 = arith.index_cast %c3_i32_190 : i32 to index
    %c0_191 = arith.constant 0 : index
    %c0_192 = arith.constant 0 : index
    %664 = vector.load %arg1[%663, %c0_191, %c0_192] : memref<8x8x128xbf16, #tpu.memory_space<vmem>>, vector<1x8x128xbf16>
    %665 = vector.shape_cast %664 : vector<1x8x128xbf16> to vector<8x128xbf16>
    %666 = arith.truncf %634 : vector<8x128xf32> to vector<8x128xbf16>
    %667 = tpu.concatenate %665, %666 in 1 : vector<8x128xbf16>, vector<8x128xbf16> -> vector<8x256xbf16>
    %c0_193 = arith.constant 0 : index
    %c0_194 = arith.constant 0 : index
    %668 = vector.load %arg6[%c0_193, %c0_194] : memref<256x512xbf16, #tpu.memory_space<vmem>>, vector<256x512xbf16>
    %cst_195 = arith.constant dense<0.000000e+00> : vector<8x512xf32>
    %669 = tpu.matmul %667, %668, %cst_195 {dimension_numbers = #tpu.dot_dimension_numbers<[1], [0], [0], [1], [0, 0, 1, 1], [], []>} : vector<8x256xbf16>, vector<256x512xbf16>, vector<8x512xf32> -> vector<8x512xf32>
    %c0_196 = arith.constant 0 : index
    %c0_197 = arith.constant 0 : index
    %670 = vector.load %arg7[%c0_196, %c0_197] : memref<1x512xf32, #tpu.memory_space<vmem>>, vector<1x512xf32>
    %671 = vector.broadcast %670 : vector<1x512xf32> to vector<8x512xf32>
    %672 = arith.addf %669, %671 : vector<8x512xf32>
    %673 = vector.extract_strided_slice %672 {offsets = [0, 0], sizes = [8, 384], strides = [1, 1]} : vector<8x512xf32> to vector<8x384xf32>
    %674 = arith.negf %673 : vector<8x384xf32>
    %675 = math.exp %674 : vector<8x384xf32>
    %cst_198 = arith.constant 1.000000e+00 : f32
    %676 = vector.broadcast %cst_198 : f32 to vector<8x384xf32>
    %677 = arith.addf %676, %675 : vector<8x384xf32>
    %678 = arith.divf %676, %677 : vector<8x384xf32>
    %679 = vector.extract_strided_slice %678 {offsets = [0, 0], sizes = [8, 128], strides = [1, 1]} : vector<8x384xf32> to vector<8x128xf32>
    %680 = vector.extract_strided_slice %678 {offsets = [0, 128], sizes = [8, 128], strides = [1, 1]} : vector<8x384xf32> to vector<8x128xf32>
    %681 = vector.extract_strided_slice %678 {offsets = [0, 256], sizes = [8, 128], strides = [1, 1]} : vector<8x384xf32> to vector<8x128xf32>
    %682 = vector.extract_strided_slice %672 {offsets = [0, 384], sizes = [8, 128], strides = [1, 1]} : vector<8x512xf32> to vector<8x128xf32>
    %683 = math.tanh %682 : vector<8x128xf32>
    %684 = arith.mulf %680, %632 : vector<8x128xf32>
    %685 = arith.mulf %679, %683 : vector<8x128xf32>
    %686 = arith.addf %684, %685 : vector<8x128xf32>
    %687 = math.tanh %686 : vector<8x128xf32>
    %688 = arith.mulf %681, %687 : vector<8x128xf32>
    %689 = arith.truncf %688 : vector<8x128xf32> to vector<8x128xbf16>
    %690 = arith.truncf %658 : vector<8x128xf32> to vector<8x128xbf16>
    %691 = tpu.concatenate %689, %690 in 1 : vector<8x128xbf16>, vector<8x128xbf16> -> vector<8x256xbf16>
    %c0_199 = arith.constant 0 : index
    %c0_200 = arith.constant 0 : index
    %692 = vector.load %arg8[%c0_199, %c0_200] : memref<256x512xbf16, #tpu.memory_space<vmem>>, vector<256x512xbf16>
    %cst_201 = arith.constant dense<0.000000e+00> : vector<8x512xf32>
    %693 = tpu.matmul %691, %692, %cst_201 {dimension_numbers = #tpu.dot_dimension_numbers<[1], [0], [0], [1], [0, 0, 1, 1], [], []>} : vector<8x256xbf16>, vector<256x512xbf16>, vector<8x512xf32> -> vector<8x512xf32>
    %c0_202 = arith.constant 0 : index
    %c0_203 = arith.constant 0 : index
    %694 = vector.load %arg9[%c0_202, %c0_203] : memref<1x512xf32, #tpu.memory_space<vmem>>, vector<1x512xf32>
    %695 = vector.broadcast %694 : vector<1x512xf32> to vector<8x512xf32>
    %696 = arith.addf %693, %695 : vector<8x512xf32>
    %697 = vector.extract_strided_slice %696 {offsets = [0, 0], sizes = [8, 384], strides = [1, 1]} : vector<8x512xf32> to vector<8x384xf32>
    %698 = arith.negf %697 : vector<8x384xf32>
    %699 = math.exp %698 : vector<8x384xf32>
    %cst_204 = arith.constant 1.000000e+00 : f32
    %700 = vector.broadcast %cst_204 : f32 to vector<8x384xf32>
    %701 = arith.addf %700, %699 : vector<8x384xf32>
    %702 = arith.divf %700, %701 : vector<8x384xf32>
    %703 = vector.extract_strided_slice %702 {offsets = [0, 0], sizes = [8, 128], strides = [1, 1]} : vector<8x384xf32> to vector<8x128xf32>
    %704 = vector.extract_strided_slice %702 {offsets = [0, 128], sizes = [8, 128], strides = [1, 1]} : vector<8x384xf32> to vector<8x128xf32>
    %705 = vector.extract_strided_slice %702 {offsets = [0, 256], sizes = [8, 128], strides = [1, 1]} : vector<8x384xf32> to vector<8x128xf32>
    %706 = vector.extract_strided_slice %696 {offsets = [0, 384], sizes = [8, 128], strides = [1, 1]} : vector<8x512xf32> to vector<8x128xf32>
    %707 = math.tanh %706 : vector<8x128xf32>
    %708 = arith.mulf %704, %656 : vector<8x128xf32>
    %709 = arith.mulf %703, %707 : vector<8x128xf32>
    %710 = arith.addf %708, %709 : vector<8x128xf32>
    %711 = math.tanh %710 : vector<8x128xf32>
    %712 = arith.mulf %705, %711 : vector<8x128xf32>
    %713 = arith.index_cast %c3_i32_190 : i32 to index
    %c0_205 = arith.constant 0 : index
    %c0_206 = arith.constant 0 : index
    %714 = vector.load %arg13[%713, %c0_205, %c0_206] : memref<8x8x128xf32, #tpu.memory_space<vmem>>, vector<1x8x128xf32>
    %715 = vector.shape_cast %714 : vector<1x8x128xf32> to vector<8x128xf32>
    %716 = vector.shape_cast %712 : vector<8x128xf32> to vector<1x8x128xf32>
    tpu.vector_store %arg13[%713, %c0_205, %c0_206], %716 {strides = array<i32>} : memref<8x8x128xf32, #tpu.memory_space<vmem>>, vector<1x8x128xf32>,
    %c4_i32_207 = arith.constant 4 : i32
    %717 = arith.index_cast %c4_i32_207 : i32 to index
    %c0_208 = arith.constant 0 : index
    %c0_209 = arith.constant 0 : index
    %718 = vector.load %arg1[%717, %c0_208, %c0_209] : memref<8x8x128xbf16, #tpu.memory_space<vmem>>, vector<1x8x128xbf16>
    %719 = vector.shape_cast %718 : vector<1x8x128xbf16> to vector<8x128xbf16>
    %720 = arith.truncf %688 : vector<8x128xf32> to vector<8x128xbf16>
    %721 = tpu.concatenate %719, %720 in 1 : vector<8x128xbf16>, vector<8x128xbf16> -> vector<8x256xbf16>
    %c0_210 = arith.constant 0 : index
    %c0_211 = arith.constant 0 : index
    %722 = vector.load %arg6[%c0_210, %c0_211] : memref<256x512xbf16, #tpu.memory_space<vmem>>, vector<256x512xbf16>
    %cst_212 = arith.constant dense<0.000000e+00> : vector<8x512xf32>
    %723 = tpu.matmul %721, %722, %cst_212 {dimension_numbers = #tpu.dot_dimension_numbers<[1], [0], [0], [1], [0, 0, 1, 1], [], []>} : vector<8x256xbf16>, vector<256x512xbf16>, vector<8x512xf32> -> vector<8x512xf32>
    %c0_213 = arith.constant 0 : index
    %c0_214 = arith.constant 0 : index
    %724 = vector.load %arg7[%c0_213, %c0_214] : memref<1x512xf32, #tpu.memory_space<vmem>>, vector<1x512xf32>
    %725 = vector.broadcast %724 : vector<1x512xf32> to vector<8x512xf32>
    %726 = arith.addf %723, %725 : vector<8x512xf32>
    %727 = vector.extract_strided_slice %726 {offsets = [0, 0], sizes = [8, 384], strides = [1, 1]} : vector<8x512xf32> to vector<8x384xf32>
    %728 = arith.negf %727 : vector<8x384xf32>
    %729 = math.exp %728 : vector<8x384xf32>
    %cst_215 = arith.constant 1.000000e+00 : f32
    %730 = vector.broadcast %cst_215 : f32 to vector<8x384xf32>
    %731 = arith.addf %730, %729 : vector<8x384xf32>
    %732 = arith.divf %730, %731 : vector<8x384xf32>
    %733 = vector.extract_strided_slice %732 {offsets = [0, 0], sizes = [8, 128], strides = [1, 1]} : vector<8x384xf32> to vector<8x128xf32>
    %734 = vector.extract_strided_slice %732 {offsets = [0, 128], sizes = [8, 128], strides = [1, 1]} : vector<8x384xf32> to vector<8x128xf32>
    %735 = vector.extract_strided_slice %732 {offsets = [0, 256], sizes = [8, 128], strides = [1, 1]} : vector<8x384xf32> to vector<8x128xf32>
    %736 = vector.extract_strided_slice %726 {offsets = [0, 384], sizes = [8, 128], strides = [1, 1]} : vector<8x512xf32> to vector<8x128xf32>
    %737 = math.tanh %736 : vector<8x128xf32>
    %738 = arith.mulf %734, %686 : vector<8x128xf32>
    %739 = arith.mulf %733, %737 : vector<8x128xf32>
    %740 = arith.addf %738, %739 : vector<8x128xf32>
    %741 = math.tanh %740 : vector<8x128xf32>
    %742 = arith.mulf %735, %741 : vector<8x128xf32>
    %743 = arith.truncf %742 : vector<8x128xf32> to vector<8x128xbf16>
    %744 = arith.truncf %712 : vector<8x128xf32> to vector<8x128xbf16>
    %745 = tpu.concatenate %743, %744 in 1 : vector<8x128xbf16>, vector<8x128xbf16> -> vector<8x256xbf16>
    %c0_216 = arith.constant 0 : index
    %c0_217 = arith.constant 0 : index
    %746 = vector.load %arg8[%c0_216, %c0_217] : memref<256x512xbf16, #tpu.memory_space<vmem>>, vector<256x512xbf16>
    %cst_218 = arith.constant dense<0.000000e+00> : vector<8x512xf32>
    %747 = tpu.matmul %745, %746, %cst_218 {dimension_numbers = #tpu.dot_dimension_numbers<[1], [0], [0], [1], [0, 0, 1, 1], [], []>} : vector<8x256xbf16>, vector<256x512xbf16>, vector<8x512xf32> -> vector<8x512xf32>
    %c0_219 = arith.constant 0 : index
    %c0_220 = arith.constant 0 : index
    %748 = vector.load %arg9[%c0_219, %c0_220] : memref<1x512xf32, #tpu.memory_space<vmem>>, vector<1x512xf32>
    %749 = vector.broadcast %748 : vector<1x512xf32> to vector<8x512xf32>
    %750 = arith.addf %747, %749 : vector<8x512xf32>
    %751 = vector.extract_strided_slice %750 {offsets = [0, 0], sizes = [8, 384], strides = [1, 1]} : vector<8x512xf32> to vector<8x384xf32>
    %752 = arith.negf %751 : vector<8x384xf32>
    %753 = math.exp %752 : vector<8x384xf32>
    %cst_221 = arith.constant 1.000000e+00 : f32
    %754 = vector.broadcast %cst_221 : f32 to vector<8x384xf32>
    %755 = arith.addf %754, %753 : vector<8x384xf32>
    %756 = arith.divf %754, %755 : vector<8x384xf32>
    %757 = vector.extract_strided_slice %756 {offsets = [0, 0], sizes = [8, 128], strides = [1, 1]} : vector<8x384xf32> to vector<8x128xf32>
    %758 = vector.extract_strided_slice %756 {offsets = [0, 128], sizes = [8, 128], strides = [1, 1]} : vector<8x384xf32> to vector<8x128xf32>
    %759 = vector.extract_strided_slice %756 {offsets = [0, 256], sizes = [8, 128], strides = [1, 1]} : vector<8x384xf32> to vector<8x128xf32>
    %760 = vector.extract_strided_slice %750 {offsets = [0, 384], sizes = [8, 128], strides = [1, 1]} : vector<8x512xf32> to vector<8x128xf32>
    %761 = math.tanh %760 : vector<8x128xf32>
    %762 = arith.mulf %758, %710 : vector<8x128xf32>
    %763 = arith.mulf %757, %761 : vector<8x128xf32>
    %764 = arith.addf %762, %763 : vector<8x128xf32>
    %765 = math.tanh %764 : vector<8x128xf32>
    %766 = arith.mulf %759, %765 : vector<8x128xf32>
    %767 = arith.index_cast %c4_i32_207 : i32 to index
    %c0_222 = arith.constant 0 : index
    %c0_223 = arith.constant 0 : index
    %768 = vector.load %arg13[%767, %c0_222, %c0_223] : memref<8x8x128xf32, #tpu.memory_space<vmem>>, vector<1x8x128xf32>
    %769 = vector.shape_cast %768 : vector<1x8x128xf32> to vector<8x128xf32>
    %770 = vector.shape_cast %766 : vector<8x128xf32> to vector<1x8x128xf32>
    tpu.vector_store %arg13[%767, %c0_222, %c0_223], %770 {strides = array<i32>} : memref<8x8x128xf32, #tpu.memory_space<vmem>>, vector<1x8x128xf32>,
    %c5_i32_224 = arith.constant 5 : i32
    %771 = arith.index_cast %c5_i32_224 : i32 to index
    %c0_225 = arith.constant 0 : index
    %c0_226 = arith.constant 0 : index
    %772 = vector.load %arg1[%771, %c0_225, %c0_226] : memref<8x8x128xbf16, #tpu.memory_space<vmem>>, vector<1x8x128xbf16>
    %773 = vector.shape_cast %772 : vector<1x8x128xbf16> to vector<8x128xbf16>
    %774 = arith.truncf %742 : vector<8x128xf32> to vector<8x128xbf16>
    %775 = tpu.concatenate %773, %774 in 1 : vector<8x128xbf16>, vector<8x128xbf16> -> vector<8x256xbf16>
    %c0_227 = arith.constant 0 : index
    %c0_228 = arith.constant 0 : index
    %776 = vector.load %arg6[%c0_227, %c0_228] : memref<256x512xbf16, #tpu.memory_space<vmem>>, vector<256x512xbf16>
    %cst_229 = arith.constant dense<0.000000e+00> : vector<8x512xf32>
    %777 = tpu.matmul %775, %776, %cst_229 {dimension_numbers = #tpu.dot_dimension_numbers<[1], [0], [0], [1], [0, 0, 1, 1], [], []>} : vector<8x256xbf16>, vector<256x512xbf16>, vector<8x512xf32> -> vector<8x512xf32>
    %c0_230 = arith.constant 0 : index
    %c0_231 = arith.constant 0 : index
    %778 = vector.load %arg7[%c0_230, %c0_231] : memref<1x512xf32, #tpu.memory_space<vmem>>, vector<1x512xf32>
    %779 = vector.broadcast %778 : vector<1x512xf32> to vector<8x512xf32>
    %780 = arith.addf %777, %779 : vector<8x512xf32>
    %781 = vector.extract_strided_slice %780 {offsets = [0, 0], sizes = [8, 384], strides = [1, 1]} : vector<8x512xf32> to vector<8x384xf32>
    %782 = arith.negf %781 : vector<8x384xf32>
    %783 = math.exp %782 : vector<8x384xf32>
    %cst_232 = arith.constant 1.000000e+00 : f32
    %784 = vector.broadcast %cst_232 : f32 to vector<8x384xf32>
    %785 = arith.addf %784, %783 : vector<8x384xf32>
    %786 = arith.divf %784, %785 : vector<8x384xf32>
    %787 = vector.extract_strided_slice %786 {offsets = [0, 0], sizes = [8, 128], strides = [1, 1]} : vector<8x384xf32> to vector<8x128xf32>
    %788 = vector.extract_strided_slice %786 {offsets = [0, 128], sizes = [8, 128], strides = [1, 1]} : vector<8x384xf32> to vector<8x128xf32>
    %789 = vector.extract_strided_slice %786 {offsets = [0, 256], sizes = [8, 128], strides = [1, 1]} : vector<8x384xf32> to vector<8x128xf32>
    %790 = vector.extract_strided_slice %780 {offsets = [0, 384], sizes = [8, 128], strides = [1, 1]} : vector<8x512xf32> to vector<8x128xf32>
    %791 = math.tanh %790 : vector<8x128xf32>
    %792 = arith.mulf %788, %740 : vector<8x128xf32>
    %793 = arith.mulf %787, %791 : vector<8x128xf32>
    %794 = arith.addf %792, %793 : vector<8x128xf32>
    %795 = math.tanh %794 : vector<8x128xf32>
    %796 = arith.mulf %789, %795 : vector<8x128xf32>
    %797 = arith.truncf %796 : vector<8x128xf32> to vector<8x128xbf16>
    %798 = arith.truncf %766 : vector<8x128xf32> to vector<8x128xbf16>
    %799 = tpu.concatenate %797, %798 in 1 : vector<8x128xbf16>, vector<8x128xbf16> -> vector<8x256xbf16>
    %c0_233 = arith.constant 0 : index
    %c0_234 = arith.constant 0 : index
    %800 = vector.load %arg8[%c0_233, %c0_234] : memref<256x512xbf16, #tpu.memory_space<vmem>>, vector<256x512xbf16>
    %cst_235 = arith.constant dense<0.000000e+00> : vector<8x512xf32>
    %801 = tpu.matmul %799, %800, %cst_235 {dimension_numbers = #tpu.dot_dimension_numbers<[1], [0], [0], [1], [0, 0, 1, 1], [], []>} : vector<8x256xbf16>, vector<256x512xbf16>, vector<8x512xf32> -> vector<8x512xf32>
    %c0_236 = arith.constant 0 : index
    %c0_237 = arith.constant 0 : index
    %802 = vector.load %arg9[%c0_236, %c0_237] : memref<1x512xf32, #tpu.memory_space<vmem>>, vector<1x512xf32>
    %803 = vector.broadcast %802 : vector<1x512xf32> to vector<8x512xf32>
    %804 = arith.addf %801, %803 : vector<8x512xf32>
    %805 = vector.extract_strided_slice %804 {offsets = [0, 0], sizes = [8, 384], strides = [1, 1]} : vector<8x512xf32> to vector<8x384xf32>
    %806 = arith.negf %805 : vector<8x384xf32>
    %807 = math.exp %806 : vector<8x384xf32>
    %cst_238 = arith.constant 1.000000e+00 : f32
    %808 = vector.broadcast %cst_238 : f32 to vector<8x384xf32>
    %809 = arith.addf %808, %807 : vector<8x384xf32>
    %810 = arith.divf %808, %809 : vector<8x384xf32>
    %811 = vector.extract_strided_slice %810 {offsets = [0, 0], sizes = [8, 128], strides = [1, 1]} : vector<8x384xf32> to vector<8x128xf32>
    %812 = vector.extract_strided_slice %810 {offsets = [0, 128], sizes = [8, 128], strides = [1, 1]} : vector<8x384xf32> to vector<8x128xf32>
    %813 = vector.extract_strided_slice %810 {offsets = [0, 256], sizes = [8, 128], strides = [1, 1]} : vector<8x384xf32> to vector<8x128xf32>
    %814 = vector.extract_strided_slice %804 {offsets = [0, 384], sizes = [8, 128], strides = [1, 1]} : vector<8x512xf32> to vector<8x128xf32>
    %815 = math.tanh %814 : vector<8x128xf32>
    %816 = arith.mulf %812, %764 : vector<8x128xf32>
    %817 = arith.mulf %811, %815 : vector<8x128xf32>
    %818 = arith.addf %816, %817 : vector<8x128xf32>
    %819 = math.tanh %818 : vector<8x128xf32>
    %820 = arith.mulf %813, %819 : vector<8x128xf32>
    %821 = arith.index_cast %c5_i32_224 : i32 to index
    %c0_239 = arith.constant 0 : index
    %c0_240 = arith.constant 0 : index
    %822 = vector.load %arg13[%821, %c0_239, %c0_240] : memref<8x8x128xf32, #tpu.memory_space<vmem>>, vector<1x8x128xf32>
    %823 = vector.shape_cast %822 : vector<1x8x128xf32> to vector<8x128xf32>
    %824 = vector.shape_cast %820 : vector<8x128xf32> to vector<1x8x128xf32>
    tpu.vector_store %arg13[%821, %c0_239, %c0_240], %824 {strides = array<i32>} : memref<8x8x128xf32, #tpu.memory_space<vmem>>, vector<1x8x128xf32>,
    %c6_i32_241 = arith.constant 6 : i32
    %825 = arith.index_cast %c6_i32_241 : i32 to index
    %c0_242 = arith.constant 0 : index
    %c0_243 = arith.constant 0 : index
    %826 = vector.load %arg1[%825, %c0_242, %c0_243] : memref<8x8x128xbf16, #tpu.memory_space<vmem>>, vector<1x8x128xbf16>
    %827 = vector.shape_cast %826 : vector<1x8x128xbf16> to vector<8x128xbf16>
    %828 = arith.truncf %796 : vector<8x128xf32> to vector<8x128xbf16>
    %829 = tpu.concatenate %827, %828 in 1 : vector<8x128xbf16>, vector<8x128xbf16> -> vector<8x256xbf16>
    %c0_244 = arith.constant 0 : index
    %c0_245 = arith.constant 0 : index
    %830 = vector.load %arg6[%c0_244, %c0_245] : memref<256x512xbf16, #tpu.memory_space<vmem>>, vector<256x512xbf16>
    %cst_246 = arith.constant dense<0.000000e+00> : vector<8x512xf32>
    %831 = tpu.matmul %829, %830, %cst_246 {dimension_numbers = #tpu.dot_dimension_numbers<[1], [0], [0], [1], [0, 0, 1, 1], [], []>} : vector<8x256xbf16>, vector<256x512xbf16>, vector<8x512xf32> -> vector<8x512xf32>
    %c0_247 = arith.constant 0 : index
    %c0_248 = arith.constant 0 : index
    %832 = vector.load %arg7[%c0_247, %c0_248] : memref<1x512xf32, #tpu.memory_space<vmem>>, vector<1x512xf32>
    %833 = vector.broadcast %832 : vector<1x512xf32> to vector<8x512xf32>
    %834 = arith.addf %831, %833 : vector<8x512xf32>
    %835 = vector.extract_strided_slice %834 {offsets = [0, 0], sizes = [8, 384], strides = [1, 1]} : vector<8x512xf32> to vector<8x384xf32>
    %836 = arith.negf %835 : vector<8x384xf32>
    %837 = math.exp %836 : vector<8x384xf32>
    %cst_249 = arith.constant 1.000000e+00 : f32
    %838 = vector.broadcast %cst_249 : f32 to vector<8x384xf32>
    %839 = arith.addf %838, %837 : vector<8x384xf32>
    %840 = arith.divf %838, %839 : vector<8x384xf32>
    %841 = vector.extract_strided_slice %840 {offsets = [0, 0], sizes = [8, 128], strides = [1, 1]} : vector<8x384xf32> to vector<8x128xf32>
    %842 = vector.extract_strided_slice %840 {offsets = [0, 128], sizes = [8, 128], strides = [1, 1]} : vector<8x384xf32> to vector<8x128xf32>
    %843 = vector.extract_strided_slice %840 {offsets = [0, 256], sizes = [8, 128], strides = [1, 1]} : vector<8x384xf32> to vector<8x128xf32>
    %844 = vector.extract_strided_slice %834 {offsets = [0, 384], sizes = [8, 128], strides = [1, 1]} : vector<8x512xf32> to vector<8x128xf32>
    %845 = math.tanh %844 : vector<8x128xf32>
    %846 = arith.mulf %842, %794 : vector<8x128xf32>
    %847 = arith.mulf %841, %845 : vector<8x128xf32>
    %848 = arith.addf %846, %847 : vector<8x128xf32>
    %849 = math.tanh %848 : vector<8x128xf32>
    %850 = arith.mulf %843, %849 : vector<8x128xf32>
    %851 = arith.truncf %850 : vector<8x128xf32> to vector<8x128xbf16>
    %852 = arith.truncf %820 : vector<8x128xf32> to vector<8x128xbf16>
    %853 = tpu.concatenate %851, %852 in 1 : vector<8x128xbf16>, vector<8x128xbf16> -> vector<8x256xbf16>
    %c0_250 = arith.constant 0 : index
    %c0_251 = arith.constant 0 : index
    %854 = vector.load %arg8[%c0_250, %c0_251] : memref<256x512xbf16, #tpu.memory_space<vmem>>, vector<256x512xbf16>
    %cst_252 = arith.constant dense<0.000000e+00> : vector<8x512xf32>
    %855 = tpu.matmul %853, %854, %cst_252 {dimension_numbers = #tpu.dot_dimension_numbers<[1], [0], [0], [1], [0, 0, 1, 1], [], []>} : vector<8x256xbf16>, vector<256x512xbf16>, vector<8x512xf32> -> vector<8x512xf32>
    %c0_253 = arith.constant 0 : index
    %c0_254 = arith.constant 0 : index
    %856 = vector.load %arg9[%c0_253, %c0_254] : memref<1x512xf32, #tpu.memory_space<vmem>>, vector<1x512xf32>
    %857 = vector.broadcast %856 : vector<1x512xf32> to vector<8x512xf32>
    %858 = arith.addf %855, %857 : vector<8x512xf32>
    %859 = vector.extract_strided_slice %858 {offsets = [0, 0], sizes = [8, 384], strides = [1, 1]} : vector<8x512xf32> to vector<8x384xf32>
    %860 = arith.negf %859 : vector<8x384xf32>
    %861 = math.exp %860 : vector<8x384xf32>
    %cst_255 = arith.constant 1.000000e+00 : f32
    %862 = vector.broadcast %cst_255 : f32 to vector<8x384xf32>
    %863 = arith.addf %862, %861 : vector<8x384xf32>
    %864 = arith.divf %862, %863 : vector<8x384xf32>
    %865 = vector.extract_strided_slice %864 {offsets = [0, 0], sizes = [8, 128], strides = [1, 1]} : vector<8x384xf32> to vector<8x128xf32>
    %866 = vector.extract_strided_slice %864 {offsets = [0, 128], sizes = [8, 128], strides = [1, 1]} : vector<8x384xf32> to vector<8x128xf32>
    %867 = vector.extract_strided_slice %864 {offsets = [0, 256], sizes = [8, 128], strides = [1, 1]} : vector<8x384xf32> to vector<8x128xf32>
    %868 = vector.extract_strided_slice %858 {offsets = [0, 384], sizes = [8, 128], strides = [1, 1]} : vector<8x512xf32> to vector<8x128xf32>
    %869 = math.tanh %868 : vector<8x128xf32>
    %870 = arith.mulf %866, %818 : vector<8x128xf32>
    %871 = arith.mulf %865, %869 : vector<8x128xf32>
    %872 = arith.addf %870, %871 : vector<8x128xf32>
    %873 = math.tanh %872 : vector<8x128xf32>
    %874 = arith.mulf %867, %873 : vector<8x128xf32>
    %875 = arith.index_cast %c6_i32_241 : i32 to index
    %c0_256 = arith.constant 0 : index
    %c0_257 = arith.constant 0 : index
    %876 = vector.load %arg13[%875, %c0_256, %c0_257] : memref<8x8x128xf32, #tpu.memory_space<vmem>>, vector<1x8x128xf32>
    %877 = vector.shape_cast %876 : vector<1x8x128xf32> to vector<8x128xf32>
    %878 = vector.shape_cast %874 : vector<8x128xf32> to vector<1x8x128xf32>
    tpu.vector_store %arg13[%875, %c0_256, %c0_257], %878 {strides = array<i32>} : memref<8x8x128xf32, #tpu.memory_space<vmem>>, vector<1x8x128xf32>,
    %c7_i32_258 = arith.constant 7 : i32
    %879 = arith.index_cast %c7_i32_258 : i32 to index
    %c0_259 = arith.constant 0 : index
    %c0_260 = arith.constant 0 : index
    %880 = vector.load %arg1[%879, %c0_259, %c0_260] : memref<8x8x128xbf16, #tpu.memory_space<vmem>>, vector<1x8x128xbf16>
    %881 = vector.shape_cast %880 : vector<1x8x128xbf16> to vector<8x128xbf16>
    %882 = arith.truncf %850 : vector<8x128xf32> to vector<8x128xbf16>
    %883 = tpu.concatenate %881, %882 in 1 : vector<8x128xbf16>, vector<8x128xbf16> -> vector<8x256xbf16>
    %c0_261 = arith.constant 0 : index
    %c0_262 = arith.constant 0 : index
    %884 = vector.load %arg6[%c0_261, %c0_262] : memref<256x512xbf16, #tpu.memory_space<vmem>>, vector<256x512xbf16>
    %cst_263 = arith.constant dense<0.000000e+00> : vector<8x512xf32>
    %885 = tpu.matmul %883, %884, %cst_263 {dimension_numbers = #tpu.dot_dimension_numbers<[1], [0], [0], [1], [0, 0, 1, 1], [], []>} : vector<8x256xbf16>, vector<256x512xbf16>, vector<8x512xf32> -> vector<8x512xf32>
    %c0_264 = arith.constant 0 : index
    %c0_265 = arith.constant 0 : index
    %886 = vector.load %arg7[%c0_264, %c0_265] : memref<1x512xf32, #tpu.memory_space<vmem>>, vector<1x512xf32>
    %887 = vector.broadcast %886 : vector<1x512xf32> to vector<8x512xf32>
    %888 = arith.addf %885, %887 : vector<8x512xf32>
    %889 = vector.extract_strided_slice %888 {offsets = [0, 0], sizes = [8, 384], strides = [1, 1]} : vector<8x512xf32> to vector<8x384xf32>
    %890 = arith.negf %889 : vector<8x384xf32>
    %891 = math.exp %890 : vector<8x384xf32>
    %cst_266 = arith.constant 1.000000e+00 : f32
    %892 = vector.broadcast %cst_266 : f32 to vector<8x384xf32>
    %893 = arith.addf %892, %891 : vector<8x384xf32>
    %894 = arith.divf %892, %893 : vector<8x384xf32>
    %895 = vector.extract_strided_slice %894 {offsets = [0, 0], sizes = [8, 128], strides = [1, 1]} : vector<8x384xf32> to vector<8x128xf32>
    %896 = vector.extract_strided_slice %894 {offsets = [0, 128], sizes = [8, 128], strides = [1, 1]} : vector<8x384xf32> to vector<8x128xf32>
    %897 = vector.extract_strided_slice %894 {offsets = [0, 256], sizes = [8, 128], strides = [1, 1]} : vector<8x384xf32> to vector<8x128xf32>
    %898 = vector.extract_strided_slice %888 {offsets = [0, 384], sizes = [8, 128], strides = [1, 1]} : vector<8x512xf32> to vector<8x128xf32>
    %899 = math.tanh %898 : vector<8x128xf32>
    %900 = arith.mulf %896, %848 : vector<8x128xf32>
    %901 = arith.mulf %895, %899 : vector<8x128xf32>
    %902 = arith.addf %900, %901 : vector<8x128xf32>
    %903 = math.tanh %902 : vector<8x128xf32>
    %904 = arith.mulf %897, %903 : vector<8x128xf32>
    %905 = arith.truncf %904 : vector<8x128xf32> to vector<8x128xbf16>
    %906 = arith.truncf %874 : vector<8x128xf32> to vector<8x128xbf16>
    %907 = tpu.concatenate %905, %906 in 1 : vector<8x128xbf16>, vector<8x128xbf16> -> vector<8x256xbf16>
    %c0_267 = arith.constant 0 : index
    %c0_268 = arith.constant 0 : index
    %908 = vector.load %arg8[%c0_267, %c0_268] : memref<256x512xbf16, #tpu.memory_space<vmem>>, vector<256x512xbf16>
    %cst_269 = arith.constant dense<0.000000e+00> : vector<8x512xf32>
    %909 = tpu.matmul %907, %908, %cst_269 {dimension_numbers = #tpu.dot_dimension_numbers<[1], [0], [0], [1], [0, 0, 1, 1], [], []>} : vector<8x256xbf16>, vector<256x512xbf16>, vector<8x512xf32> -> vector<8x512xf32>
    %c0_270 = arith.constant 0 : index
    %c0_271 = arith.constant 0 : index
    %910 = vector.load %arg9[%c0_270, %c0_271] : memref<1x512xf32, #tpu.memory_space<vmem>>, vector<1x512xf32>
    %911 = vector.broadcast %910 : vector<1x512xf32> to vector<8x512xf32>
    %912 = arith.addf %909, %911 : vector<8x512xf32>
    %913 = vector.extract_strided_slice %912 {offsets = [0, 0], sizes = [8, 384], strides = [1, 1]} : vector<8x512xf32> to vector<8x384xf32>
    %914 = arith.negf %913 : vector<8x384xf32>
    %915 = math.exp %914 : vector<8x384xf32>
    %cst_272 = arith.constant 1.000000e+00 : f32
    %916 = vector.broadcast %cst_272 : f32 to vector<8x384xf32>
    %917 = arith.addf %916, %915 : vector<8x384xf32>
    %918 = arith.divf %916, %917 : vector<8x384xf32>
    %919 = vector.extract_strided_slice %918 {offsets = [0, 0], sizes = [8, 128], strides = [1, 1]} : vector<8x384xf32> to vector<8x128xf32>
    %920 = vector.extract_strided_slice %918 {offsets = [0, 128], sizes = [8, 128], strides = [1, 1]} : vector<8x384xf32> to vector<8x128xf32>
    %921 = vector.extract_strided_slice %918 {offsets = [0, 256], sizes = [8, 128], strides = [1, 1]} : vector<8x384xf32> to vector<8x128xf32>
    %922 = vector.extract_strided_slice %912 {offsets = [0, 384], sizes = [8, 128], strides = [1, 1]} : vector<8x512xf32> to vector<8x128xf32>
    %923 = math.tanh %922 : vector<8x128xf32>
    %924 = arith.mulf %920, %872 : vector<8x128xf32>
    %925 = arith.mulf %919, %923 : vector<8x128xf32>
    %926 = arith.addf %924, %925 : vector<8x128xf32>
    %927 = math.tanh %926 : vector<8x128xf32>
    %928 = arith.mulf %921, %927 : vector<8x128xf32>
    %929 = arith.index_cast %c7_i32_258 : i32 to index
    %c0_273 = arith.constant 0 : index
    %c0_274 = arith.constant 0 : index
    %930 = vector.load %arg13[%929, %c0_273, %c0_274] : memref<8x8x128xf32, #tpu.memory_space<vmem>>, vector<1x8x128xf32>
    %931 = vector.shape_cast %930 : vector<1x8x128xf32> to vector<8x128xf32>
    %932 = vector.shape_cast %928 : vector<8x128xf32> to vector<1x8x128xf32>
    tpu.vector_store %arg13[%929, %c0_273, %c0_274], %932 {strides = array<i32>} : memref<8x8x128xf32, #tpu.memory_space<vmem>>, vector<1x8x128xf32>,
    %c8_i32_275 = arith.constant 8 : i32
    %c0_276 = arith.constant 0 : index
    %c0_277 = arith.constant 0 : index
    %c0_278 = arith.constant 0 : index
    %933 = vector.load %arg13[%c0_276, %c0_277, %c0_278] : memref<8x8x128xf32, #tpu.memory_space<vmem>>, vector<8x8x128xf32>
    %934 = vector.shape_cast %933 : vector<8x8x128xf32> to vector<64x128xf32>
    %935 = arith.truncf %934 : vector<64x128xf32> to vector<64x128xbf16>
    %c0_279 = arith.constant 0 : index
    %c0_280 = arith.constant 0 : index
    %936 = vector.load %arg10[%c0_279, %c0_280] : memref<128x512xbf16, #tpu.memory_space<vmem>>, vector<128x512xbf16>
    %cst_281 = arith.constant dense<0.000000e+00> : vector<64x512xf32>
    %937 = tpu.matmul %935, %936, %cst_281 {dimension_numbers = #tpu.dot_dimension_numbers<[1], [0], [0], [1], [0, 0, 1, 1], [], []>} : vector<64x128xbf16>, vector<128x512xbf16>, vector<64x512xf32> -> vector<64x512xf32>
    %c0_282 = arith.constant 0 : index
    %c0_283 = arith.constant 0 : index
    %938 = vector.load %arg11[%c0_282, %c0_283] : memref<1x512xf32, #tpu.memory_space<vmem>>, vector<1x512xf32>
    %939 = vector.broadcast %938 : vector<1x512xf32> to vector<64x512xf32>
    %940 = arith.addf %937, %939 : vector<64x512xf32>
    %941 = vector.shape_cast %940 : vector<64x512xf32> to vector<8x8x512xf32>
    %c0_284 = arith.constant 0 : index
    %c0_285 = arith.constant 0 : index
    %c0_286 = arith.constant 0 : index
    %942 = vector.load %arg12[%c0_284, %c0_285, %c0_286] : memref<8x8x512xf32, #tpu.memory_space<vmem>>, vector<8x8x512xf32>
    tpu.vector_store %arg12[%c0_284, %c0_285, %c0_286], %941 {strides = array<i32>} : memref<8x8x512xf32, #tpu.memory_space<vmem>>, vector<8x8x512xf32>,
    return
  }
}

</mosaic_0001>

<llo_original>
// kernel: seq2seq_forward.1
$region0: #{seq2seq_forward.1}
  #allocation0 [shape = 'u32[]', space=smem, size = 0x4, offset = 0x4, fixed_abs, tag = 'smem constant byte address 0x4 - core index']
  #allocation1 [shape = 'u32[144,128]{1,0:T(1,128)}', space=vmem, size = 0x12000, scoped, tag = 'internal scratch']
  #allocation2 [shape = 'f32[8,8,128]{2,1,0:T(8,128)}', space=vmem, size = 0x8000, scoped, tag = 'scratch operand']
  %s0 = inlined_call_operand.vmem [shape: bf16[10,8,128], index: 0, kind: input, shape index: {}]
  %s1 = inlined_call_operand.vmem [shape: bf16[8,8,128], index: 1, kind: input, shape index: {}]
  %s2 = inlined_call_operand.vmem [shape: bf16[256,512], index: 2, kind: input, shape index: {}]
  %s3 = inlined_call_operand.vmem [shape: f32[1,512], index: 3, kind: input, shape index: {}]
  %s4 = inlined_call_operand.hbm [shape: bf16[256,512], index: 4, kind: input, shape index: {}]
  %s5 = inlined_call_operand.vmem [shape: f32[1,512], index: 5, kind: input, shape index: {}]
  %s6 = inlined_call_operand.hbm [shape: bf16[256,512], index: 6, kind: input, shape index: {}]
  %s7 = inlined_call_operand.vmem [shape: f32[1,512], index: 7, kind: input, shape index: {}]
  %s8 = inlined_call_operand.hbm [shape: bf16[256,512], index: 8, kind: input, shape index: {}]
  %s9 = inlined_call_operand.vmem [shape: f32[1,512], index: 9, kind: input, shape index: {}]
  %s10 = inlined_call_operand.hbm [shape: bf16[128,512], index: 10, kind: input, shape index: {}]
  %s11 = inlined_call_operand.vmem [shape: f32[1,512], index: 11, kind: input, shape index: {}]
  %s12 = inlined_call_operand.vmem [shape: f32[8,8,512], index: 12, kind: output, shape index: {}]
  %s13 = sld [smem:[#allocation0]]
  $region74: #{seq2seq_forward.1} parent=0
    _
  %s15 = ssub.s32 1, %s13
  %s16 = scalar_select 0, %s15, %s13
  $region1: #{seq2seq_forward.1} parent=0
    #allocation3 [shape = 'u8[262144]{0}', space=vmem, size = 0x40000, scoped, tag = 'input window, operand 4, single buffered']
    #allocation4 [shape = 's32[1]{0}', space=sflag, size = 0x4, scoped, tag = 'scoped memory for seq2seq_forward.1']
    #allocation5 [shape = 'u8[262144]{0}', space=vmem, size = 0x40000, scoped, tag = 'input window, operand 6, single buffered']
    #allocation6 [shape = 's32[1]{0}', space=sflag, size = 0x4, scoped, tag = 'scoped memory for seq2seq_forward.1']
    #allocation7 [shape = 'u8[262144]{0}', space=vmem, size = 0x40000, scoped, tag = 'input window, operand 8, single buffered']
    #allocation8 [shape = 'u8[131072]{0}', space=vmem, size = 0x20000, scoped, tag = 'input window, operand 10, single buffered']
    #allocation9 [shape = 's32[1]{0}', space=sflag, size = 0x4, scoped, tag = 'scoped memory for seq2seq_forward.1']
    %17 = vsyncpa [#allocation4], 0
    %18 = vsyncpa [#allocation6], 0
    %19 = vsyncpa [#allocation9], 0
    // Predicated region
    $region2: #{seq2seq_forward.1} parent=1 // pred_check
      _
    $region3: #{seq2seq_forward.1} parent=1 // pred_check_branch
      %21 = sbr.rel (0) target = $region5
    $region4: #{seq2seq_forward.1} parent=1 // pred_region
      _
    $region5: #{seq2seq_forward.1} parent=1 // pred_fallthru
      _
    // Predicated region
    $region6: #{seq2seq_forward.1} parent=1 // pred_check
      _
    $region7: #{seq2seq_forward.1} parent=1 // pred_check_branch
      %23 = sbr.rel (0) target = $region9
    $region8: #{seq2seq_forward.1} parent=1 // pred_region
      _
    $region9: #{seq2seq_forward.1} parent=1 // pred_fallthru
      _
    // Predicated region
    $region10: #{seq2seq_forward.1} parent=1 // pred_check
      _
    $region11: #{seq2seq_forward.1} parent=1 // pred_check_branch
      %25 = sbr.rel (0) target = $region13
    $region12: #{seq2seq_forward.1} parent=1 // pred_region
      _
    $region13: #{seq2seq_forward.1} parent=1 // pred_fallthru
      _
    // Predicated region
    $region14: #{seq2seq_forward.1} parent=1 // pred_check
      _
    $region15: #{seq2seq_forward.1} parent=1 // pred_check_branch
      %27 = sbr.rel (0) target = $region17
    $region16: #{seq2seq_forward.1} parent=1 // pred_region
      _
    $region17: #{seq2seq_forward.1} parent=1 // pred_fallthru
      _
    // Predicated region
    $region18: #{seq2seq_forward.1} parent=1 // pred_check
      _
    $region19: #{seq2seq_forward.1} parent=1 // pred_check_branch
      %29 = sbr.rel (0) target = $region21
    $region20: #{seq2seq_forward.1} parent=1 // pred_region
      %s31 = ssub.s32 8192, 8192
      %32 = vsyncadd [#allocation4], %s31
      %s33 = sshll.u32 [#allocation3], 4
      %s34 = int_to_ptr.vmem [resolvable:$true] %s33
      %39 = dma.hbm_to_vmem [thread:$0]  %s4, 8192, %s34, [#allocation4], 256, 256, 16
    $region21: #{seq2seq_forward.1} parent=1 // pred_fallthru
      _
    // Predicated region
    $region22: #{seq2seq_forward.1} parent=1 // pred_check
      _
    $region23: #{seq2seq_forward.1} parent=1 // pred_check_branch
      %41 = sbr.rel (0) target = $region25
    $region24: #{seq2seq_forward.1} parent=1 // pred_region
      _
    $region25: #{seq2seq_forward.1} parent=1 // pred_fallthru
      _
    // Predicated region
    $region26: #{seq2seq_forward.1} parent=1 // pred_check
      _
    $region27: #{seq2seq_forward.1} parent=1 // pred_check_branch
      %43 = sbr.rel (0) target = $region29
    $region28: #{seq2seq_forward.1} parent=1 // pred_region
      %s45 = ssub.s32 8192, 8192
      %46 = vsyncadd [#allocation6], %s45
      %s47 = sshll.u32 [#allocation5], 4
      %s48 = int_to_ptr.vmem [resolvable:$true] %s47
      %53 = dma.hbm_to_vmem [thread:$0]  %s6, 8192, %s48, [#allocation6], 256, 256, 16
    $region29: #{seq2seq_forward.1} parent=1 // pred_fallthru
      _
    // Predicated region
    $region30: #{seq2seq_forward.1} parent=1 // pred_check
      _
    $region31: #{seq2seq_forward.1} parent=1 // pred_check_branch
      %55 = sbr.rel (0) target = $region33
    $region32: #{seq2seq_forward.1} parent=1 // pred_region
      _
    $region33: #{seq2seq_forward.1} parent=1 // pred_fallthru
      _
    // Predicated region
    $region34: #{seq2seq_forward.1} parent=1 // pred_check
      _
    $region35: #{seq2seq_forward.1} parent=1 // pred_check_branch
      %57 = sbr.rel (0) target = $region37
    $region36: #{seq2seq_forward.1} parent=1 // pred_region
      %s59 = ssub.s32 8192, 8192
      %60 = vsyncadd [#allocation6], %s59
      %s61 = sshll.u32 [#allocation7], 4
      %s62 = int_to_ptr.vmem [resolvable:$true] %s61
      %67 = dma.hbm_to_vmem [thread:$0]  %s8, 8192, %s62, [#allocation6], 256, 256, 16
    $region37: #{seq2seq_forward.1} parent=1 // pred_fallthru
      _
    // Predicated region
    $region38: #{seq2seq_forward.1} parent=1 // pred_check
      _
    $region39: #{seq2seq_forward.1} parent=1 // pred_check_branch
      %69 = sbr.rel (0) target = $region41
    $region40: #{seq2seq_forward.1} parent=1 // pred_region
      _
    $region41: #{seq2seq_forward.1} parent=1 // pred_fallthru
      _
    // Predicated region
    $region42: #{seq2seq_forward.1} parent=1 // pred_check
      _
    $region43: #{seq2seq_forward.1} parent=1 // pred_check_branch
      %71 = sbr.rel (0) target = $region45
    $region44: #{seq2seq_forward.1} parent=1 // pred_region
      %s73 = ssub.s32 4096, 4096
      %74 = vsyncadd [#allocation9], %s73
      %s75 = sshll.u32 [#allocation8], 4
      %s76 = int_to_ptr.vmem [resolvable:$true] %s75
      %81 = dma.hbm_to_vmem [thread:$0]  %s10, 4096, %s76, [#allocation9], 256, 256, 16
    $region45: #{seq2seq_forward.1} parent=1 // pred_fallthru
      _
    // Predicated region
    $region46: #{seq2seq_forward.1} parent=1 // pred_check
      _
    $region47: #{seq2seq_forward.1} parent=1 // pred_check_branch
      %83 = sbr.rel (0) target = $region49
    $region48: #{seq2seq_forward.1} parent=1 // pred_region
      _
    $region49: #{seq2seq_forward.1} parent=1 // pred_fallthru
      _
    // Predicated region
    $region50: #{seq2seq_forward.1} parent=1 // pred_check
      _
    $region51: #{seq2seq_forward.1} parent=1 // pred_check_branch
      %85 = sbr.rel (0) target = $region53
    $region52: #{seq2seq_forward.1} parent=1 // pred_region
      %86 = dma.done [#allocation4], 8192
    $region53: #{seq2seq_forward.1} parent=1 // pred_fallthru
      _
    // Predicated region
    $region54: #{seq2seq_forward.1} parent=1 // pred_check
      _
    $region55: #{seq2seq_forward.1} parent=1 // pred_check_branch
      %88 = sbr.rel (0) target = $region57
    $region56: #{seq2seq_forward.1} parent=1 // pred_region
      %89 = dma.done [#allocation6], 8192
    $region57: #{seq2seq_forward.1} parent=1 // pred_fallthru
      _
    // Predicated region
    $region58: #{seq2seq_forward.1} parent=1 // pred_check
      _
    $region59: #{seq2seq_forward.1} parent=1 // pred_check_branch
      %91 = sbr.rel (0) target = $region61
    $region60: #{seq2seq_forward.1} parent=1 // pred_region
      %92 = dma.done [#allocation6], 8192
    $region61: #{seq2seq_forward.1} parent=1 // pred_fallthru
      _
    // Predicated region
    $region62: #{seq2seq_forward.1} parent=1 // pred_check
      _
    $region63: #{seq2seq_forward.1} parent=1 // pred_check_branch
      %94 = sbr.rel (0) target = $region65
    $region64: #{seq2seq_forward.1} parent=1 // pred_region
      %95 = dma.done [#allocation9], 4096
    $region65: #{seq2seq_forward.1} parent=1 // pred_fallthru
      _
    %v97 = vld [vmem:[%s0] sm:$0xf]
    %v98 = vld [vmem:[%s2] sm:$0xff]
    %v99 = vld [vmem:[%s2 + $0x8] sm:$0xff]
    %v100 = vld [vmem:[%s2 + $0x10] sm:$0xff]
    %v101 = vld [vmem:[%s2 + $0x18] sm:$0xff]
    %v102 = vld [vmem:[%s2 + $0x20] sm:$0xff]
    %v103 = vld [vmem:[%s2 + $0x28] sm:$0xff]
    %v104 = vld [vmem:[%s2 + $0x30] sm:$0xff]
    %v105 = vld [vmem:[%s2 + $0x38] sm:$0xff]
    %v106 = vld [vmem:[%s2 + $0x40] sm:$0xff]
    %v107 = vld [vmem:[%s2 + $0x48] sm:$0xff]
    %v108 = vld [vmem:[%s2 + $0x50] sm:$0xff]
    %v109 = vld [vmem:[%s2 + $0x58] sm:$0xff]
    %v110 = vld [vmem:[%s2 + $0x60] sm:$0xff]
    %v111 = vld [vmem:[%s2 + $0x68] sm:$0xff]
    %v112 = vld [vmem:[%s2 + $0x70] sm:$0xff]
    %v113 = vld [vmem:[%s2 + $0x78] sm:$0xff]
    %v114 = vld [vmem:[%s2 + $0x80] sm:$0xff]
    %v115 = vld [vmem:[%s2 + $0x88] sm:$0xff]
    %v116 = vld [vmem:[%s2 + $0x90] sm:$0xff]
    %v117 = vld [vmem:[%s2 + $0x98] sm:$0xff]
    %v118 = vld [vmem:[%s2 + $0xa0] sm:$0xff]
    %v119 = vld [vmem:[%s2 + $0xa8] sm:$0xff]
    %v120 = vld [vmem:[%s2 + $0xb0] sm:$0xff]
    %v121 = vld [vmem:[%s2 + $0xb8] sm:$0xff]
    %v122 = vld [vmem:[%s2 + $0xc0] sm:$0xff]
    %v123 = vld [vmem:[%s2 + $0xc8] sm:$0xff]
    %v124 = vld [vmem:[%s2 + $0xd0] sm:$0xff]
    %v125 = vld [vmem:[%s2 + $0xd8] sm:$0xff]
    %v126 = vld [vmem:[%s2 + $0xe0] sm:$0xff]
    %v127 = vld [vmem:[%s2 + $0xe8] sm:$0xff]
    %v128 = vld [vmem:[%s2 + $0xf0] sm:$0xff]
    %v129 = vld [vmem:[%s2 + $0xf8] sm:$0xff]
    %v130 = vld [vmem:[%s2 + $0x100] sm:$0xff]
    %v131 = vld [vmem:[%s2 + $0x108] sm:$0xff]
    %v132 = vld [vmem:[%s2 + $0x110] sm:$0xff]
    %v133 = vld [vmem:[%s2 + $0x118] sm:$0xff]
    %v134 = vld [vmem:[%s2 + $0x120] sm:$0xff]
    %v135 = vld [vmem:[%s2 + $0x128] sm:$0xff]
    %v136 = vld [vmem:[%s2 + $0x130] sm:$0xff]
    %v137 = vld [vmem:[%s2 + $0x138] sm:$0xff]
    %v138 = vld [vmem:[%s2 + $0x140] sm:$0xff]
    %v139 = vld [vmem:[%s2 + $0x148] sm:$0xff]
    %v140 = vld [vmem:[%s2 + $0x150] sm:$0xff]
    %v141 = vld [vmem:[%s2 + $0x158] sm:$0xff]
    %v142 = vld [vmem:[%s2 + $0x160] sm:$0xff]
    %v143 = vld [vmem:[%s2 + $0x168] sm:$0xff]
    %v144 = vld [vmem:[%s2 + $0x170] sm:$0xff]
    %v145 = vld [vmem:[%s2 + $0x178] sm:$0xff]
    %v146 = vld [vmem:[%s2 + $0x180] sm:$0xff]
    %v147 = vld [vmem:[%s2 + $0x188] sm:$0xff]
    %v148 = vld [vmem:[%s2 + $0x190] sm:$0xff]
    %v149 = vld [vmem:[%s2 + $0x198] sm:$0xff]
    %v150 = vld [vmem:[%s2 + $0x1a0] sm:$0xff]
    %v151 = vld [vmem:[%s2 + $0x1a8] sm:$0xff]
    %v152 = vld [vmem:[%s2 + $0x1b0] sm:$0xff]
    %v153 = vld [vmem:[%s2 + $0x1b8] sm:$0xff]
    %v154 = vld [vmem:[%s2 + $0x1c0] sm:$0xff]
    %v155 = vld [vmem:[%s2 + $0x1c8] sm:$0xff]
    %v156 = vld [vmem:[%s2 + $0x1d0] sm:$0xff]
    %v157 = vld [vmem:[%s2 + $0x1d8] sm:$0xff]
    %v158 = vld [vmem:[%s2 + $0x1e0] sm:$0xff]
    %v159 = vld [vmem:[%s2 + $0x1e8] sm:$0xff]
    %v160 = vld [vmem:[%s2 + $0x1f0] sm:$0xff]
    %v161 = vld [vmem:[%s2 + $0x1f8] sm:$0xff]
    %v162 = vld [vmem:[%s3] sm:$0xf]
    %v164 = vlaneseq
    %v165 = vshrl.u32 %v164, 7
    %v166 = vsub.s32 0, %v165
    %v167 = vrot.slane %v162, %v166
    %v168 = vlaneseq
    %v169 = vshrl.u32 %v168, 7
    %v170 = vsub.s32 1, %v169
    %v171 = vrot.slane %v162, %v170
    %v172 = vlaneseq
    %v173 = vshrl.u32 %v172, 7
    %v174 = vsub.s32 2, %v173
    %v175 = vrot.slane %v162, %v174
    %v176 = vlaneseq
    %v177 = vshrl.u32 %v176, 7
    %v178 = vsub.s32 3, %v177
    %v179 = vrot.slane %v162, %v178
    %v248 = vunpack.c.l.b16 %v98
    %v249 = vunpack.c.h.b16 %v98
    %v250 = vunpack.c.l.b16 %v99
    %v251 = vunpack.c.h.b16 %v99
    %v252 = vunpack.c.l.b16 %v100
    %v253 = vunpack.c.h.b16 %v100
    %v254 = vunpack.c.l.b16 %v101
    %v255 = vunpack.c.h.b16 %v101
    %v256 = vunpack.c.l.b16 %v102
    %v257 = vunpack.c.h.b16 %v102
    %v258 = vunpack.c.l.b16 %v103
    %v259 = vunpack.c.h.b16 %v103
    %v260 = vunpack.c.l.b16 %v104
    %v261 = vunpack.c.h.b16 %v104
    %v262 = vunpack.c.l.b16 %v105
    %v263 = vunpack.c.h.b16 %v105
    %v264 = vunpack.c.l.b16 %v106
    %v265 = vunpack.c.h.b16 %v106
    %v266 = vunpack.c.l.b16 %v107
    %v267 = vunpack.c.h.b16 %v107
    %v268 = vunpack.c.l.b16 %v108
    %v269 = vunpack.c.h.b16 %v108
    %v270 = vunpack.c.l.b16 %v109
    %v271 = vunpack.c.h.b16 %v109
    %v272 = vunpack.c.l.b16 %v110
    %v273 = vunpack.c.h.b16 %v110
    %v274 = vunpack.c.l.b16 %v111
    %v275 = vunpack.c.h.b16 %v111
    %v276 = vunpack.c.l.b16 %v112
    %v277 = vunpack.c.h.b16 %v112
    %v278 = vunpack.c.l.b16 %v113
    %v279 = vunpack.c.h.b16 %v113
    %v280 = vunpack.c.l.b16 %v114
    %v281 = vunpack.c.h.b16 %v114
    %v282 = vunpack.c.l.b16 %v115
    %v283 = vunpack.c.h.b16 %v115
    %v284 = vunpack.c.l.b16 %v116
    %v285 = vunpack.c.h.b16 %v116
    %v286 = vunpack.c.l.b16 %v117
    %v287 = vunpack.c.h.b16 %v117
    %v288 = vunpack.c.l.b16 %v118
    %v289 = vunpack.c.h.b16 %v118
    %v290 = vunpack.c.l.b16 %v119
    %v291 = vunpack.c.h.b16 %v119
    %v292 = vunpack.c.l.b16 %v120
    %v293 = vunpack.c.h.b16 %v120
    %v294 = vunpack.c.l.b16 %v121
    %v295 = vunpack.c.h.b16 %v121
    %v296 = vunpack.c.l.b16 %v122
    %v297 = vunpack.c.h.b16 %v122
    %v298 = vunpack.c.l.b16 %v123
    %v299 = vunpack.c.h.b16 %v123
    %v300 = vunpack.c.l.b16 %v124
    %v301 = vunpack.c.h.b16 %v124
    %v302 = vunpack.c.l.b16 %v125
    %v303 = vunpack.c.h.b16 %v125
    %v304 = vunpack.c.l.b16 %v126
    %v305 = vunpack.c.h.b16 %v126
    %v306 = vunpack.c.l.b16 %v127
    %v307 = vunpack.c.h.b16 %v127
    %v308 = vunpack.c.l.b16 %v128
    %v309 = vunpack.c.h.b16 %v128
    %v310 = vunpack.c.l.b16 %v129
    %v311 = vunpack.c.h.b16 %v129
    %v312 = vunpack.c.l.b16 %v130
    %v313 = vunpack.c.h.b16 %v130
    %v314 = vunpack.c.l.b16 %v131
    %v315 = vunpack.c.h.b16 %v131
    %v316 = vunpack.c.l.b16 %v132
    %v317 = vunpack.c.h.b16 %v132
    %v318 = vunpack.c.l.b16 %v133
    %v319 = vunpack.c.h.b16 %v133
    %v320 = vunpack.c.l.b16 %v134
    %v321 = vunpack.c.h.b16 %v134
    %v322 = vunpack.c.l.b16 %v135
    %v323 = vunpack.c.h.b16 %v135
    %v324 = vunpack.c.l.b16 %v136
    %v325 = vunpack.c.h.b16 %v136
    %v326 = vunpack.c.l.b16 %v137
    %v327 = vunpack.c.h.b16 %v137
    %v328 = vunpack.c.l.b16 %v138
    %v329 = vunpack.c.h.b16 %v138
    %v330 = vunpack.c.l.b16 %v139
    %v331 = vunpack.c.h.b16 %v139
    %v332 = vunpack.c.l.b16 %v140
    %v333 = vunpack.c.h.b16 %v140
    %v334 = vunpack.c.l.b16 %v141
    %v335 = vunpack.c.h.b16 %v141
    %v336 = vunpack.c.l.b16 %v142
    %v337 = vunpack.c.h.b16 %v142
    %v338 = vunpack.c.l.b16 %v143
    %v339 = vunpack.c.h.b16 %v143
    %v340 = vunpack.c.l.b16 %v144
    %v341 = vunpack.c.h.b16 %v144
    %v342 = vunpack.c.l.b16 %v145
    %v343 = vunpack.c.h.b16 %v145
    %v344 = vunpack.c.l.b16 %v146
    %v345 = vunpack.c.h.b16 %v146
    %v346 = vunpack.c.l.b16 %v147
    %v347 = vunpack.c.h.b16 %v147
    %v348 = vunpack.c.l.b16 %v148
    %v349 = vunpack.c.h.b16 %v148
    %v350 = vunpack.c.l.b16 %v149
    %v351 = vunpack.c.h.b16 %v149
    %v352 = vunpack.c.l.b16 %v150
    %v353 = vunpack.c.h.b16 %v150
    %v354 = vunpack.c.l.b16 %v151
    %v355 = vunpack.c.h.b16 %v151
    %v356 = vunpack.c.l.b16 %v152
    %v357 = vunpack.c.h.b16 %v152
    %v358 = vunpack.c.l.b16 %v153
    %v359 = vunpack.c.h.b16 %v153
    %v360 = vunpack.c.l.b16 %v154
    %v361 = vunpack.c.h.b16 %v154
    %v362 = vunpack.c.l.b16 %v155
    %v363 = vunpack.c.h.b16 %v155
    %v364 = vunpack.c.l.b16 %v156
    %v365 = vunpack.c.h.b16 %v156
    %v366 = vunpack.c.l.b16 %v157
    %v367 = vunpack.c.h.b16 %v157
    %v368 = vunpack.c.l.b16 %v158
    %v369 = vunpack.c.h.b16 %v158
    %v370 = vunpack.c.l.b16 %v159
    %v371 = vunpack.c.h.b16 %v159
    %v372 = vunpack.c.l.b16 %v160
    %v373 = vunpack.c.h.b16 %v160
    %v374 = vunpack.c.l.b16 %v161
    %v375 = vunpack.c.h.b16 %v161
    %v376 = vpack.c.b16 %v252, %v248
    %v377 = vpack.c.b16 %v253, %v249
    %v378 = vpack.c.b16 %v254, %v250
    %v379 = vpack.c.b16 %v255, %v251
    %v380 = vpack.c.b16 %v260, %v256
    %v381 = vpack.c.b16 %v261, %v257
    %v382 = vpack.c.b16 %v262, %v258
    %v383 = vpack.c.b16 %v263, %v259
    %v384 = vpack.c.b16 %v268, %v264
    %v385 = vpack.c.b16 %v269, %v265
    %v386 = vpack.c.b16 %v270, %v266
    %v387 = vpack.c.b16 %v271, %v267
    %v388 = vpack.c.b16 %v276, %v272
    %v389 = vpack.c.b16 %v277, %v273
    %v390 = vpack.c.b16 %v278, %v274
    %v391 = vpack.c.b16 %v279, %v275
    %v392 = vpack.c.b16 %v284, %v280
    %v393 = vpack.c.b16 %v285, %v281
    %v394 = vpack.c.b16 %v286, %v282
    %v395 = vpack.c.b16 %v287, %v283
    %v396 = vpack.c.b16 %v292, %v288
    %v397 = vpack.c.b16 %v293, %v289
    %v398 = vpack.c.b16 %v294, %v290
    %v399 = vpack.c.b16 %v295, %v291
    %v400 = vpack.c.b16 %v300, %v296
    %v401 = vpack.c.b16 %v301, %v297
    %v402 = vpack.c.b16 %v302, %v298
    %v403 = vpack.c.b16 %v303, %v299
    %v404 = vpack.c.b16 %v308, %v304
    %v405 = vpack.c.b16 %v309, %v305
    %v406 = vpack.c.b16 %v310, %v306
    %v407 = vpack.c.b16 %v311, %v307
    %v408 = vpack.c.b16 %v316, %v312
    %v409 = vpack.c.b16 %v317, %v313
    %v410 = vpack.c.b16 %v318, %v314
    %v411 = vpack.c.b16 %v319, %v315
    %v412 = vpack.c.b16 %v324, %v320
    %v413 = vpack.c.b16 %v325, %v321
    %v414 = vpack.c.b16 %v326, %v322
    %v415 = vpack.c.b16 %v327, %v323
    %v416 = vpack.c.b16 %v332, %v328
    %v417 = vpack.c.b16 %v333, %v329
    %v418 = vpack.c.b16 %v334, %v330
    %v419 = vpack.c.b16 %v335, %v331
    %v420 = vpack.c.b16 %v340, %v336
    %v421 = vpack.c.b16 %v341, %v337
    %v422 = vpack.c.b16 %v342, %v338
    %v423 = vpack.c.b16 %v343, %v339
    %v424 = vpack.c.b16 %v348, %v344
    %v425 = vpack.c.b16 %v349, %v345
    %v426 = vpack.c.b16 %v350, %v346
    %v427 = vpack.c.b16 %v351, %v347
    %v428 = vpack.c.b16 %v356, %v352
    %v429 = vpack.c.b16 %v357, %v353
    %v430 = vpack.c.b16 %v358, %v354
    %v431 = vpack.c.b16 %v359, %v355
    %v432 = vpack.c.b16 %v364, %v360
    %v433 = vpack.c.b16 %v365, %v361
    %v434 = vpack.c.b16 %v366, %v362
    %v435 = vpack.c.b16 %v367, %v363
    %v436 = vpack.c.b16 %v372, %v368
    %v437 = vpack.c.b16 %v373, %v369
    %v438 = vpack.c.b16 %v374, %v370
    %v439 = vpack.c.b16 %v375, %v371
    %504 = vmatprep.subr.bf16.mxu0 %v405
    %505 = vmatpush1.bf16.msra.mxu0 %v404
    %506 = vmatprep.subr.bf16.mxu0 %v401
    %507 = vmatpush1.bf16.msra.mxu0 %v400
    %508 = vmatprep.subr.bf16.mxu0 %v397
    %509 = vmatpush1.bf16.msra.mxu0 %v396
    %510 = vmatprep.subr.bf16.mxu0 %v393
    %511 = vmatpush1.bf16.msra.mxu0 %v392
    %512 = vmatprep.subr.bf16.mxu0 %v389
    %513 = vmatpush1.bf16.msra.mxu0 %v388
    %514 = vmatprep.subr.bf16.mxu0 %v385
    %515 = vmatpush1.bf16.msra.mxu0 %v384
    %516 = vmatprep.subr.bf16.mxu0 %v381
    %517 = vmatpush1.bf16.msra.mxu0 %v380
    %518 = vmatprep.subr.bf16.mxu0 %v377
    %519 = vmatpush1.bf16.msra.mxu0 %v376
    %520 = vmatprep.subr.bf16.mxu0 %v437
    %521 = vmatpush2.bf16.msra.mxu0 %v436
    %522 = vmatprep.subr.bf16.mxu0 %v433
    %523 = vmatpush2.bf16.msra.mxu0 %v432
    %524 = vmatprep.subr.bf16.mxu0 %v429
    %525 = vmatpush2.bf16.msra.mxu0 %v428
    %526 = vmatprep.subr.bf16.mxu0 %v425
    %527 = vmatpush2.bf16.msra.mxu0 %v424
    %528 = vmatprep.subr.bf16.mxu0 %v421
    %529 = vmatpush2.bf16.msra.mxu0 %v420
    %530 = vmatprep.subr.bf16.mxu0 %v417
    %531 = vmatpush2.bf16.msra.mxu0 %v416
    %532 = vmatprep.subr.bf16.mxu0 %v413
    %533 = vmatpush2.bf16.msra.mxu0 %v412
    %534 = vmatprep.subr.bf16.mxu0 %v409
    %535 = vmatpush2.bf16.msra.mxu0 %v408
    %536 = vmatprep.mubr.bf16.mxu0 0
    %537 = vmatmul.mubr.bf16.gmra.mxu0 %v97
    %v538 = vpop.f32.mrf.mxu0
    %v539 = vadd.f32 %v167, %v538
    %v540 = vpop.f32.mrf.mxu0
    %v541 = vadd.f32 %v171, %v540
    %v542 = vpop.f32.mrf.mxu0
    %v543 = vpop.f32.mrf.mxu0
    %544 = vdwg.mxu0
    %545 = vmatprep.subr.bf16.mxu0 %v407
    %546 = vmatpush1.bf16.msra.mxu0 %v406
    %547 = vmatprep.subr.bf16.mxu0 %v403
    %548 = vmatpush1.bf16.msra.mxu0 %v402
    %549 = vmatprep.subr.bf16.mxu0 %v399
    %550 = vmatpush1.bf16.msra.mxu0 %v398
    %551 = vmatprep.subr.bf16.mxu0 %v395
    %552 = vmatpush1.bf16.msra.mxu0 %v394
    %553 = vmatprep.subr.bf16.mxu0 %v391
    %554 = vmatpush1.bf16.msra.mxu0 %v390
    %555 = vmatprep.subr.bf16.mxu0 %v387
    %556 = vmatpush1.bf16.msra.mxu0 %v386
    %557 = vmatprep.subr.bf16.mxu0 %v383
    %558 = vmatpush1.bf16.msra.mxu0 %v382
    %559 = vmatprep.subr.bf16.mxu0 %v379
    %560 = vmatpush1.bf16.msra.mxu0 %v378
    %561 = vmatprep.subr.bf16.mxu0 %v439
    %562 = vmatpush2.bf16.msra.mxu0 %v438
    %563 = vmatprep.subr.bf16.mxu0 %v435
    %564 = vmatpush2.bf16.msra.mxu0 %v434
    %565 = vmatprep.subr.bf16.mxu0 %v431
    %566 = vmatpush2.bf16.msra.mxu0 %v430
    %567 = vmatprep.subr.bf16.mxu0 %v427
    %568 = vmatpush2.bf16.msra.mxu0 %v426
    %569 = vmatprep.subr.bf16.mxu0 %v423
    %570 = vmatpush2.bf16.msra.mxu0 %v422
    %571 = vmatprep.subr.bf16.mxu0 %v419
    %572 = vmatpush2.bf16.msra.mxu0 %v418
    %573 = vmatprep.subr.bf16.mxu0 %v415
    %574 = vmatpush2.bf16.msra.mxu0 %v414
    %575 = vmatprep.subr.bf16.mxu0 %v411
    %576 = vmatpush2.bf16.msra.mxu0 %v410
    %577 = vmatprep.mubr.bf16.mxu0 0
    %578 = vmatmul.mubr.bf16.gmra.mxu0 %v97
    %v579 = vpop.f32.mrf.mxu0
    %v580 = vadd.f32 %v175, %v579
    %v581 = vpop.f32.mrf.mxu0
    %v582 = vadd.f32 %v179, %v581
    %v583 = vpop.f32.mrf.mxu0
    %v584 = vpop.f32.mrf.mxu0
    %585 = vdwg.mxu0
    %v586 = vxor.u32 %v539, 2147483648
    %v587 = vxor.u32 %v541, 2147483648
    %v588 = vxor.u32 %v580, 2147483648
    %v589 = vmul.f32 %v586, 1.442695
    %v590 = vpow.pop %v589
    %v591 = vmul.f32 %v587, 1.442695
    %v592 = vpow.pop %v591
    %v593 = vmul.f32 %v588, 1.442695
    %v594 = vpow.pop %v593
    %v595 = vadd.f32 %v590, 1.0
    %v596 = vadd.f32 %v592, 1.0
    %v597 = vadd.f32 %v594, 1.0
    %v598 = vrcp.pop %v595
    %v599 = vmul.f32 1.0, %v598
    %v600 = vrcp.pop %v596
    %v601 = vmul.f32 1.0, %v600
    %v602 = vrcp.pop %v597
    %v603 = vmul.f32 1.0, %v602
    %v604 = vtanh.pop %v582
    %v605 = vmul.f32 %v601, 0.0
    %v606 = vmul.f32 %v599, %v604
    %v607 = vadd.f32 %v605, %v606
    %v608 = vtanh.pop %v607
    %v609 = vmul.f32 %v603, %v608
    %v610 = vpack.c.bf16 %v609, %v609
    %v611 = vld [vmem:[#allocation3] sm:$0xff]
    %v612 = vld [vmem:[#allocation3 + $0x8] sm:$0xff]
    %v613 = vld [vmem:[#allocation3 + $0x10] sm:$0xff]
    %v614 = vld [vmem:[#allocation3 + $0x18] sm:$0xff]
    %v615 = vld [vmem:[#allocation3 + $0x20] sm:$0xff]
    %v616 = vld [vmem:[#allocation3 + $0x28] sm:$0xff]
    %v617 = vld [vmem:[#allocation3 + $0x30] sm:$0xff]
    %v618 = vld [vmem:[#allocation3 + $0x38] sm:$0xff]
    %v619 = vld [vmem:[#allocation3 + $0x40] sm:$0xff]
    %v620 = vld [vmem:[#allocation3 + $0x48] sm:$0xff]
    %v621 = vld [vmem:[#allocation3 + $0x50] sm:$0xff]
    %v622 = vld [vmem:[#allocation3 + $0x58] sm:$0xff]
    %v623 = vld [vmem:[#allocation3 + $0x60] sm:$0xff]
    %v624 = vld [vmem:[#allocation3 + $0x68] sm:$0xff]
    %v625 = vld [vmem:[#allocation3 + $0x70] sm:$0xff]
    %v626 = vld [vmem:[#allocation3 + $0x78] sm:$0xff]
    %v627 = vld [vmem:[#allocation3 + $0x80] sm:$0xff]
    %v628 = vld [vmem:[#allocation3 + $0x88] sm:$0xff]
    %v629 = vld [vmem:[#allocation3 + $0x90] sm:$0xff]
    %v630 = vld [vmem:[#allocation3 + $0x98] sm:$0xff]
    %v631 = vld [vmem:[#allocation3 + $0xa0] sm:$0xff]
    %v632 = vld [vmem:[#allocation3 + $0xa8] sm:$0xff]
    %v633 = vld [vmem:[#allocation3 + $0xb0] sm:$0xff]
    %v634 = vld [vmem:[#allocation3 + $0xb8] sm:$0xff]
    %v635 = vld [vmem:[#allocation3 + $0xc0] sm:$0xff]
    %v636 = vld [vmem:[#allocation3 + $0xc8] sm:$0xff]
    %v637 = vld [vmem:[#allocation3 + $0xd0] sm:$0xff]
    %v638 = vld [vmem:[#allocation3 + $0xd8] sm:$0xff]
    %v639 = vld [vmem:[#allocation3 + $0xe0] sm:$0xff]
    %v640 = vld [vmem:[#allocation3 + $0xe8] sm:$0xff]
    %v641 = vld [vmem:[#allocation3 + $0xf0] sm:$0xff]
    %v642 = vld [vmem:[#allocation3 + $0xf8] sm:$0xff]
    %v643 = vld [vmem:[#allocation3 + $0x100] sm:$0xff]
    %v644 = vld [vmem:[#allocation3 + $0x108] sm:$0xff]
    %v645 = vld [vmem:[#allocation3 + $0x110] sm:$0xff]
    %v646 = vld [vmem:[#allocation3 + $0x118] sm:$0xff]
    %v647 = vld [vmem:[#allocation3 + $0x120] sm:$0xff]
    %v648 = vld [vmem:[#allocation3 + $0x128] sm:$0xff]
    %v649 = vld [vmem:[#allocation3 + $0x130] sm:$0xff]
    %v650 = vld [vmem:[#allocation3 + $0x138] sm:$0xff]
    %v651 = vld [vmem:[#allocation3 + $0x140] sm:$0xff]
    %v652 = vld [vmem:[#allocation3 + $0x148] sm:$0xff]
    %v653 = vld [vmem:[#allocation3 + $0x150] sm:$0xff]
    %v654 = vld [vmem:[#allocation3 + $0x158] sm:$0xff]
    %v655 = vld [vmem:[#allocation3 + $0x160] sm:$0xff]
    %v656 = vld [vmem:[#allocation3 + $0x168] sm:$0xff]
    %v657 = vld [vmem:[#allocation3 + $0x170] sm:$0xff]
    %v658 = vld [vmem:[#allocation3 + $0x178] sm:$0xff]
    %v659 = vld [vmem:[#allocation3 + $0x180] sm:$0xff]
    %v660 = vld [vmem:[#allocation3 + $0x188] sm:$0xff]
    %v661 = vld [vmem:[#allocation3 + $0x190] sm:$0xff]
    %v662 = vld [vmem:[#allocation3 + $0x198] sm:$0xff]
    %v663 = vld [vmem:[#allocation3 + $0x1a0] sm:$0xff]
    %v664 = vld [vmem:[#allocation3 + $0x1a8] sm:$0xff]
    %v665 = vld [vmem:[#allocation3 + $0x1b0] sm:$0xff]
    %v666 = vld [vmem:[#allocation3 + $0x1b8] sm:$0xff]
    %v667 = vld [vmem:[#allocation3 + $0x1c0] sm:$0xff]
    %v668 = vld [vmem:[#allocation3 + $0x1c8] sm:$0xff]
    %v669 = vld [vmem:[#allocation3 + $0x1d0] sm:$0xff]
    %v670 = vld [vmem:[#allocation3 + $0x1d8] sm:$0xff]
    %v671 = vld [vmem:[#allocation3 + $0x1e0] sm:$0xff]
    %v672 = vld [vmem:[#allocation3 + $0x1e8] sm:$0xff]
    %v673 = vld [vmem:[#allocation3 + $0x1f0] sm:$0xff]
    %v674 = vld [vmem:[#allocation3 + $0x1f8] sm:$0xff]
    %v675 = vld [vmem:[%s5] sm:$0xf]
    %v677 = vlaneseq
    %v678 = vshrl.u32 %v677, 7
    %v679 = vsub.s32 0, %v678
    %v680 = vrot.slane %v675, %v679
    %v681 = vlaneseq
    %v682 = vshrl.u32 %v681, 7
    %v683 = vsub.s32 1, %v682
    %v684 = vrot.slane %v675, %v683
    %v685 = vlaneseq
    %v686 = vshrl.u32 %v685, 7
    %v687 = vsub.s32 2, %v686
    %v688 = vrot.slane %v675, %v687
    %v689 = vlaneseq
    %v690 = vshrl.u32 %v689, 7
    %v691 = vsub.s32 3, %v690
    %v692 = vrot.slane %v675, %v691
    %v761 = vunpack.c.l.b16 %v611
    %v762 = vunpack.c.h.b16 %v611
    %v763 = vunpack.c.l.b16 %v612
    %v764 = vunpack.c.h.b16 %v612
    %v765 = vunpack.c.l.b16 %v613
    %v766 = vunpack.c.h.b16 %v613
    %v767 = vunpack.c.l.b16 %v614
    %v768 = vunpack.c.h.b16 %v614
    %v769 = vunpack.c.l.b16 %v615
    %v770 = vunpack.c.h.b16 %v615
    %v771 = vunpack.c.l.b16 %v616
    %v772 = vunpack.c.h.b16 %v616
    %v773 = vunpack.c.l.b16 %v617
    %v774 = vunpack.c.h.b16 %v617
    %v775 = vunpack.c.l.b16 %v618
    %v776 = vunpack.c.h.b16 %v618
    %v777 = vunpack.c.l.b16 %v619
    %v778 = vunpack.c.h.b16 %v619
    %v779 = vunpack.c.l.b16 %v620
    %v780 = vunpack.c.h.b16 %v620
    %v781 = vunpack.c.l.b16 %v621
    %v782 = vunpack.c.h.b16 %v621
    %v783 = vunpack.c.l.b16 %v622
    %v784 = vunpack.c.h.b16 %v622
    %v785 = vunpack.c.l.b16 %v623
    %v786 = vunpack.c.h.b16 %v623
    %v787 = vunpack.c.l.b16 %v624
    %v788 = vunpack.c.h.b16 %v624
    %v789 = vunpack.c.l.b16 %v625
    %v790 = vunpack.c.h.b16 %v625
    %v791 = vunpack.c.l.b16 %v626
    %v792 = vunpack.c.h.b16 %v626
    %v793 = vunpack.c.l.b16 %v627
    %v794 = vunpack.c.h.b16 %v627
    %v795 = vunpack.c.l.b16 %v628
    %v796 = vunpack.c.h.b16 %v628
    %v797 = vunpack.c.l.b16 %v629
    %v798 = vunpack.c.h.b16 %v629
    %v799 = vunpack.c.l.b16 %v630
    %v800 = vunpack.c.h.b16 %v630
    %v801 = vunpack.c.l.b16 %v631
    %v802 = vunpack.c.h.b16 %v631
    %v803 = vunpack.c.l.b16 %v632
    %v804 = vunpack.c.h.b16 %v632
    %v805 = vunpack.c.l.b16 %v633
    %v806 = vunpack.c.h.b16 %v633
    %v807 = vunpack.c.l.b16 %v634
    %v808 = vunpack.c.h.b16 %v634
    %v809 = vunpack.c.l.b16 %v635
    %v810 = vunpack.c.h.b16 %v635
    %v811 = vunpack.c.l.b16 %v636
    %v812 = vunpack.c.h.b16 %v636
    %v813 = vunpack.c.l.b16 %v637
    %v814 = vunpack.c.h.b16 %v637
    %v815 = vunpack.c.l.b16 %v638
    %v816 = vunpack.c.h.b16 %v638
    %v817 = vunpack.c.l.b16 %v639
    %v818 = vunpack.c.h.b16 %v639
    %v819 = vunpack.c.l.b16 %v640
    %v820 = vunpack.c.h.b16 %v640
    %v821 = vunpack.c.l.b16 %v641
    %v822 = vunpack.c.h.b16 %v641
    %v823 = vunpack.c.l.b16 %v642
    %v824 = vunpack.c.h.b16 %v642
    %v825 = vunpack.c.l.b16 %v643
    %v826 = vunpack.c.h.b16 %v643
    %v827 = vunpack.c.l.b16 %v644
    %v828 = vunpack.c.h.b16 %v644
    %v829 = vunpack.c.l.b16 %v645
    %v830 = vunpack.c.h.b16 %v645
    %v831 = vunpack.c.l.b16 %v646
    %v832 = vunpack.c.h.b16 %v646
    %v833 = vunpack.c.l.b16 %v647
    %v834 = vunpack.c.h.b16 %v647
    %v835 = vunpack.c.l.b16 %v648
    %v836 = vunpack.c.h.b16 %v648
    %v837 = vunpack.c.l.b16 %v649
    %v838 = vunpack.c.h.b16 %v649
    %v839 = vunpack.c.l.b16 %v650
    %v840 = vunpack.c.h.b16 %v650
    %v841 = vunpack.c.l.b16 %v651
    %v842 = vunpack.c.h.b16 %v651
    %v843 = vunpack.c.l.b16 %v652
    %v844 = vunpack.c.h.b16 %v652
    %v845 = vunpack.c.l.b16 %v653
    %v846 = vunpack.c.h.b16 %v653
    %v847 = vunpack.c.l.b16 %v654
    %v848 = vunpack.c.h.b16 %v654
    %v849 = vunpack.c.l.b16 %v655
    %v850 = vunpack.c.h.b16 %v655
    %v851 = vunpack.c.l.b16 %v656
    %v852 = vunpack.c.h.b16 %v656
    %v853 = vunpack.c.l.b16 %v657
    %v854 = vunpack.c.h.b16 %v657
    %v855 = vunpack.c.l.b16 %v658
    %v856 = vunpack.c.h.b16 %v658
    %v857 = vunpack.c.l.b16 %v659
    %v858 = vunpack.c.h.b16 %v659
    %v859 = vunpack.c.l.b16 %v660
    %v860 = vunpack.c.h.b16 %v660
    %v861 = vunpack.c.l.b16 %v661
    %v862 = vunpack.c.h.b16 %v661
    %v863 = vunpack.c.l.b16 %v662
    %v864 = vunpack.c.h.b16 %v662
    %v865 = vunpack.c.l.b16 %v663
    %v866 = vunpack.c.h.b16 %v663
    %v867 = vunpack.c.l.b16 %v664
    %v868 = vunpack.c.h.b16 %v664
    %v869 = vunpack.c.l.b16 %v665
    %v870 = vunpack.c.h.b16 %v665
    %v871 = vunpack.c.l.b16 %v666
    %v872 = vunpack.c.h.b16 %v666
    %v873 = vunpack.c.l.b16 %v667
    %v874 = vunpack.c.h.b16 %v667
    %v875 = vunpack.c.l.b16 %v668
    %v876 = vunpack.c.h.b16 %v668
    %v877 = vunpack.c.l.b16 %v669
    %v878 = vunpack.c.h.b16 %v669
    %v879 = vunpack.c.l.b16 %v670
    %v880 = vunpack.c.h.b16 %v670
    %v881 = vunpack.c.l.b16 %v671
    %v882 = vunpack.c.h.b16 %v671
    %v883 = vunpack.c.l.b16 %v672
    %v884 = vunpack.c.h.b16 %v672
    %v885 = vunpack.c.l.b16 %v673
    %v886 = vunpack.c.h.b16 %v673
    %v887 = vunpack.c.l.b16 %v674
    %v888 = vunpack.c.h.b16 %v674
    %v889 = vpack.c.b16 %v765, %v761
    %v890 = vpack.c.b16 %v766, %v762
    %v891 = vpack.c.b16 %v767, %v763
    %v892 = vpack.c.b16 %v768, %v764
    %v893 = vpack.c.b16 %v773, %v769
    %v894 = vpack.c.b16 %v774, %v770
    %v895 = vpack.c.b16 %v775, %v771
    %v896 = vpack.c.b16 %v776, %v772
    %v897 = vpack.c.b16 %v781, %v777
    %v898 = vpack.c.b16 %v782, %v778
    %v899 = vpack.c.b16 %v783, %v779
    %v900 = vpack.c.b16 %v784, %v780
    %v901 = vpack.c.b16 %v789, %v785
    %v902 = vpack.c.b16 %v790, %v786
    %v903 = vpack.c.b16 %v791, %v787
    %v904 = vpack.c.b16 %v792, %v788
    %v905 = vpack.c.b16 %v797, %v793
    %v906 = vpack.c.b16 %v798, %v794
    %v907 = vpack.c.b16 %v799, %v795
    %v908 = vpack.c.b16 %v800, %v796
    %v909 = vpack.c.b16 %v805, %v801
    %v910 = vpack.c.b16 %v806, %v802
    %v911 = vpack.c.b16 %v807, %v803
    %v912 = vpack.c.b16 %v808, %v804
    %v913 = vpack.c.b16 %v813, %v809
    %v914 = vpack.c.b16 %v814, %v810
    %v915 = vpack.c.b16 %v815, %v811
    %v916 = vpack.c.b16 %v816, %v812
    %v917 = vpack.c.b16 %v821, %v817
    %v918 = vpack.c.b16 %v822, %v818
    %v919 = vpack.c.b16 %v823, %v819
    %v920 = vpack.c.b16 %v824, %v820
    %v921 = vpack.c.b16 %v829, %v825
    %v922 = vpack.c.b16 %v830, %v826
    %v923 = vpack.c.b16 %v831, %v827
    %v924 = vpack.c.b16 %v832, %v828
    %v925 = vpack.c.b16 %v837, %v833
    %v926 = vpack.c.b16 %v838, %v834
    %v927 = vpack.c.b16 %v839, %v835
    %v928 = vpack.c.b16 %v840, %v836
    %v929 = vpack.c.b16 %v845, %v841
    %v930 = vpack.c.b16 %v846, %v842
    %v931 = vpack.c.b16 %v847, %v843
    %v932 = vpack.c.b16 %v848, %v844
    %v933 = vpack.c.b16 %v853, %v849
    %v934 = vpack.c.b16 %v854, %v850
    %v935 = vpack.c.b16 %v855, %v851
    %v936 = vpack.c.b16 %v856, %v852
    %v937 = vpack.c.b16 %v861, %v857
    %v938 = vpack.c.b16 %v862, %v858
    %v939 = vpack.c.b16 %v863, %v859
    %v940 = vpack.c.b16 %v864, %v860
    %v941 = vpack.c.b16 %v869, %v865
    %v942 = vpack.c.b16 %v870, %v866
    %v943 = vpack.c.b16 %v871, %v867
    %v944 = vpack.c.b16 %v872, %v868
    %v945 = vpack.c.b16 %v877, %v873
    %v946 = vpack.c.b16 %v878, %v874
    %v947 = vpack.c.b16 %v879, %v875
    %v948 = vpack.c.b16 %v880, %v876
    %v949 = vpack.c.b16 %v885, %v881
    %v950 = vpack.c.b16 %v886, %v882
    %v951 = vpack.c.b16 %v887, %v883
    %v952 = vpack.c.b16 %v888, %v884
    %1017 = vmatprep.subr.bf16.mxu0 %v918
    %1018 = vmatpush1.bf16.msra.mxu0 %v917
    %1019 = vmatprep.subr.bf16.mxu0 %v914
    %1020 = vmatpush1.bf16.msra.mxu0 %v913
    %1021 = vmatprep.subr.bf16.mxu0 %v910
    %1022 = vmatpush1.bf16.msra.mxu0 %v909
    %1023 = vmatprep.subr.bf16.mxu0 %v906
    %1024 = vmatpush1.bf16.msra.mxu0 %v905
    %1025 = vmatprep.subr.bf16.mxu0 %v902
    %1026 = vmatpush1.bf16.msra.mxu0 %v901
    %1027 = vmatprep.subr.bf16.mxu0 %v898
    %1028 = vmatpush1.bf16.msra.mxu0 %v897
    %1029 = vmatprep.subr.bf16.mxu0 %v894
    %1030 = vmatpush1.bf16.msra.mxu0 %v893
    %1031 = vmatprep.subr.bf16.mxu0 %v890
    %1032 = vmatpush1.bf16.msra.mxu0 %v889
    %1033 = vmatprep.subr.bf16.mxu0 %v950
    %1034 = vmatpush2.bf16.msra.mxu0 %v949
    %1035 = vmatprep.subr.bf16.mxu0 %v946
    %1036 = vmatpush2.bf16.msra.mxu0 %v945
    %1037 = vmatprep.subr.bf16.mxu0 %v942
    %1038 = vmatpush2.bf16.msra.mxu0 %v941
    %1039 = vmatprep.subr.bf16.mxu0 %v938
    %1040 = vmatpush2.bf16.msra.mxu0 %v937
    %1041 = vmatprep.subr.bf16.mxu0 %v934
    %1042 = vmatpush2.bf16.msra.mxu0 %v933
    %1043 = vmatprep.subr.bf16.mxu0 %v930
    %1044 = vmatpush2.bf16.msra.mxu0 %v929
    %1045 = vmatprep.subr.bf16.mxu0 %v926
    %1046 = vmatpush2.bf16.msra.mxu0 %v925
    %1047 = vmatprep.subr.bf16.mxu0 %v922
    %1048 = vmatpush2.bf16.msra.mxu0 %v921
    %1049 = vmatprep.mubr.bf16.mxu0 0
    %1050 = vmatmul.mubr.bf16.gmra.mxu0 %v610
    %v1051 = vpop.f32.mrf.mxu0
    %v1052 = vadd.f32 %v680, %v1051
    %v1053 = vpop.f32.mrf.mxu0
    %v1054 = vadd.f32 %v684, %v1053
    %v1055 = vpop.f32.mrf.mxu0
    %v1056 = vpop.f32.mrf.mxu0
    %1057 = vdwg.mxu0
    %1058 = vmatprep.subr.bf16.mxu0 %v920
    %1059 = vmatpush1.bf16.msra.mxu0 %v919
    %1060 = vmatprep.subr.bf16.mxu0 %v916
    %1061 = vmatpush1.bf16.msra.mxu0 %v915
    %1062 = vmatprep.subr.bf16.mxu0 %v912
    %1063 = vmatpush1.bf16.msra.mxu0 %v911
    %1064 = vmatprep.subr.bf16.mxu0 %v908
    %1065 = vmatpush1.bf16.msra.mxu0 %v907
    %1066 = vmatprep.subr.bf16.mxu0 %v904
    %1067 = vmatpush1.bf16.msra.mxu0 %v903
    %1068 = vmatprep.subr.bf16.mxu0 %v900
    %1069 = vmatpush1.bf16.msra.mxu0 %v899
    %1070 = vmatprep.subr.bf16.mxu0 %v896
    %1071 = vmatpush1.bf16.msra.mxu0 %v895
    %1072 = vmatprep.subr.bf16.mxu0 %v892
    %1073 = vmatpush1.bf16.msra.mxu0 %v891
    %1074 = vmatprep.subr.bf16.mxu0 %v952
    %1075 = vmatpush2.bf16.msra.mxu0 %v951
    %1076 = vmatprep.subr.bf16.mxu0 %v948
    %1077 = vmatpush2.bf16.msra.mxu0 %v947
    %1078 = vmatprep.subr.bf16.mxu0 %v944
    %1079 = vmatpush2.bf16.msra.mxu0 %v943
    %1080 = vmatprep.subr.bf16.mxu0 %v940
    %1081 = vmatpush2.bf16.msra.mxu0 %v939
    %1082 = vmatprep.subr.bf16.mxu0 %v936
    %1083 = vmatpush2.bf16.msra.mxu0 %v935
    %1084 = vmatprep.subr.bf16.mxu0 %v932
    %1085 = vmatpush2.bf16.msra.mxu0 %v931
    %1086 = vmatprep.subr.bf16.mxu0 %v928
    %1087 = vmatpush2.bf16.msra.mxu0 %v927
    %1088 = vmatprep.subr.bf16.mxu0 %v924
    %1089 = vmatpush2.bf16.msra.mxu0 %v923
    %1090 = vmatprep.mubr.bf16.mxu0 0
    %1091 = vmatmul.mubr.bf16.gmra.mxu0 %v610
    %v1092 = vpop.f32.mrf.mxu0
    %v1093 = vadd.f32 %v688, %v1092
    %v1094 = vpop.f32.mrf.mxu0
    %v1095 = vadd.f32 %v692, %v1094
    %v1096 = vpop.f32.mrf.mxu0
    %v1097 = vpop.f32.mrf.mxu0
    %1098 = vdwg.mxu0
    %v1099 = vxor.u32 %v1052, 2147483648
    %v1100 = vxor.u32 %v1054, 2147483648
    %v1101 = vxor.u32 %v1093, 2147483648
    %v1102 = vmul.f32 %v1099, 1.442695
    %v1103 = vpow.pop %v1102
    %v1104 = vmul.f32 %v1100, 1.442695
    %v1105 = vpow.pop %v1104
    %v1106 = vmul.f32 %v1101, 1.442695
    %v1107 = vpow.pop %v1106
    %v1108 = vadd.f32 %v1103, 1.0
    %v1109 = vadd.f32 %v1105, 1.0
    %v1110 = vadd.f32 %v1107, 1.0
    %v1111 = vrcp.pop %v1108
    %v1112 = vmul.f32 1.0, %v1111
    %v1113 = vrcp.pop %v1109
    %v1114 = vmul.f32 1.0, %v1113
    %v1115 = vrcp.pop %v1110
    %v1116 = vmul.f32 1.0, %v1115
    %v1117 = vtanh.pop %v1095
    %v1118 = vmul.f32 %v1114, 0.0
    %v1119 = vmul.f32 %v1112, %v1117
    %v1120 = vadd.f32 %v1118, %v1119
    %v1121 = vtanh.pop %v1120
    %v1122 = vmul.f32 %v1116, %v1121
    %s1123 = scalar_lea.vmem %s0, 4
    %v1124 = vld [vmem:[%s1123] sm:$0xf]
    %1125 = vmatprep.subr.bf16.mxu0 %v405
    %1126 = vmatpush1.bf16.msra.mxu0 %v404
    %1127 = vmatprep.subr.bf16.mxu0 %v401
    %1128 = vmatpush1.bf16.msra.mxu0 %v400
    %1129 = vmatprep.subr.bf16.mxu0 %v397
    %1130 = vmatpush1.bf16.msra.mxu0 %v396
    %1131 = vmatprep.subr.bf16.mxu0 %v393
    %1132 = vmatpush1.bf16.msra.mxu0 %v392
    %1133 = vmatprep.subr.bf16.mxu0 %v389
    %1134 = vmatpush1.bf16.msra.mxu0 %v388
    %1135 = vmatprep.subr.bf16.mxu0 %v385
    %1136 = vmatpush1.bf16.msra.mxu0 %v384
    %1137 = vmatprep.subr.bf16.mxu0 %v381
    %1138 = vmatpush1.bf16.msra.mxu0 %v380
    %1139 = vmatprep.subr.bf16.mxu0 %v377
    %1140 = vmatpush1.bf16.msra.mxu0 %v376
    %1141 = vmatprep.subr.bf16.mxu0 %v437
    %1142 = vmatpush2.bf16.msra.mxu0 %v436
    %1143 = vmatprep.subr.bf16.mxu0 %v433
    %1144 = vmatpush2.bf16.msra.mxu0 %v432
    %1145 = vmatprep.subr.bf16.mxu0 %v429
    %1146 = vmatpush2.bf16.msra.mxu0 %v428
    %1147 = vmatprep.subr.bf16.mxu0 %v425
    %1148 = vmatpush2.bf16.msra.mxu0 %v424
    %1149 = vmatprep.subr.bf16.mxu0 %v421
    %1150 = vmatpush2.bf16.msra.mxu0 %v420
    %1151 = vmatprep.subr.bf16.mxu0 %v417
    %1152 = vmatpush2.bf16.msra.mxu0 %v416
    %1153 = vmatprep.subr.bf16.mxu0 %v413
    %1154 = vmatpush2.bf16.msra.mxu0 %v412
    %1155 = vmatprep.subr.bf16.mxu0 %v409
    %1156 = vmatpush2.bf16.msra.mxu0 %v408
    %1157 = vmatprep.mubr.bf16.mxu0 %v610
    %1158 = vmatmul.mubr.bf16.gmra.mxu0 %v1124
    %v1159 = vpop.f32.mrf.mxu0
    %v1160 = vadd.f32 %v167, %v1159
    %v1161 = vpop.f32.mrf.mxu0
    %v1162 = vadd.f32 %v171, %v1161
    %v1163 = vpop.f32.mrf.mxu0
    %v1164 = vpop.f32.mrf.mxu0
    %1165 = vdwg.mxu0
    %1166 = vmatprep.subr.bf16.mxu0 %v407
    %1167 = vmatpush1.bf16.msra.mxu0 %v406
    %1168 = vmatprep.subr.bf16.mxu0 %v403
    %1169 = vmatpush1.bf16.msra.mxu0 %v402
    %1170 = vmatprep.subr.bf16.mxu0 %v399
    %1171 = vmatpush1.bf16.msra.mxu0 %v398
    %1172 = vmatprep.subr.bf16.mxu0 %v395
    %1173 = vmatpush1.bf16.msra.mxu0 %v394
    %1174 = vmatprep.subr.bf16.mxu0 %v391
    %1175 = vmatpush1.bf16.msra.mxu0 %v390
    %1176 = vmatprep.subr.bf16.mxu0 %v387
    %1177 = vmatpush1.bf16.msra.mxu0 %v386
    %1178 = vmatprep.subr.bf16.mxu0 %v383
    %1179 = vmatpush1.bf16.msra.mxu0 %v382
    %1180 = vmatprep.subr.bf16.mxu0 %v379
    %1181 = vmatpush1.bf16.msra.mxu0 %v378
    %1182 = vmatprep.subr.bf16.mxu0 %v439
    %1183 = vmatpush2.bf16.msra.mxu0 %v438
    %1184 = vmatprep.subr.bf16.mxu0 %v435
    %1185 = vmatpush2.bf16.msra.mxu0 %v434
    %1186 = vmatprep.subr.bf16.mxu0 %v431
    %1187 = vmatpush2.bf16.msra.mxu0 %v430
    %1188 = vmatprep.subr.bf16.mxu0 %v427
    %1189 = vmatpush2.bf16.msra.mxu0 %v426
    %1190 = vmatprep.subr.bf16.mxu0 %v423
    %1191 = vmatpush2.bf16.msra.mxu0 %v422
    %1192 = vmatprep.subr.bf16.mxu0 %v419
    %1193 = vmatpush2.bf16.msra.mxu0 %v418
    %1194 = vmatprep.subr.bf16.mxu0 %v415
    %1195 = vmatpush2.bf16.msra.mxu0 %v414
    %1196 = vmatprep.subr.bf16.mxu0 %v411
    %1197 = vmatpush2.bf16.msra.mxu0 %v410
    %1198 = vmatprep.mubr.bf16.mxu0 %v610
    %1199 = vmatmul.mubr.bf16.gmra.mxu0 %v1124
    %v1200 = vpop.f32.mrf.mxu0
    %v1201 = vadd.f32 %v175, %v1200
    %v1202 = vpop.f32.mrf.mxu0
    %v1203 = vadd.f32 %v179, %v1202
    %v1204 = vpop.f32.mrf.mxu0
    %v1205 = vpop.f32.mrf.mxu0
    %1206 = vdwg.mxu0
    %v1207 = vxor.u32 %v1160, 2147483648
    %v1208 = vxor.u32 %v1162, 2147483648
    %v1209 = vxor.u32 %v1201, 2147483648
    %v1210 = vmul.f32 %v1207, 1.442695
    %v1211 = vpow.pop %v1210
    %v1212 = vmul.f32 %v1208, 1.442695
    %v1213 = vpow.pop %v1212
    %v1214 = vmul.f32 %v1209, 1.442695
    %v1215 = vpow.pop %v1214
    %v1216 = vadd.f32 %v1211, 1.0
    %v1217 = vadd.f32 %v1213, 1.0
    %v1218 = vadd.f32 %v1215, 1.0
    %v1219 = vrcp.pop %v1216
    %v1220 = vmul.f32 1.0, %v1219
    %v1221 = vrcp.pop %v1217
    %v1222 = vmul.f32 1.0, %v1221
    %v1223 = vrcp.pop %v1218
    %v1224 = vmul.f32 1.0, %v1223
    %v1225 = vtanh.pop %v1203
    %v1226 = vmul.f32 %v1222, %v607
    %v1227 = vmul.f32 %v1220, %v1225
    %v1228 = vadd.f32 %v1226, %v1227
    %v1229 = vtanh.pop %v1228
    %v1230 = vmul.f32 %v1224, %v1229
    %v1231 = vpack.c.bf16 %v1230, %v1230
    %v1232 = vpack.c.bf16 %v1122, %v1122
    %1233 = vmatprep.subr.bf16.mxu0 %v918
    %1234 = vmatpush1.bf16.msra.mxu0 %v917
    %1235 = vmatprep.subr.bf16.mxu0 %v914
    %1236 = vmatpush1.bf16.msra.mxu0 %v913
    %1237 = vmatprep.subr.bf16.mxu0 %v910
    %1238 = vmatpush1.bf16.msra.mxu0 %v909
    %1239 = vmatprep.subr.bf16.mxu0 %v906
    %1240 = vmatpush1.bf16.msra.mxu0 %v905
    %1241 = vmatprep.subr.bf16.mxu0 %v902
    %1242 = vmatpush1.bf16.msra.mxu0 %v901
    %1243 = vmatprep.subr.bf16.mxu0 %v898
    %1244 = vmatpush1.bf16.msra.mxu0 %v897
    %1245 = vmatprep.subr.bf16.mxu0 %v894
    %1246 = vmatpush1.bf16.msra.mxu0 %v893
    %1247 = vmatprep.subr.bf16.mxu0 %v890
    %1248 = vmatpush1.bf16.msra.mxu0 %v889
    %1249 = vmatprep.subr.bf16.mxu0 %v950
    %1250 = vmatpush2.bf16.msra.mxu0 %v949
    %1251 = vmatprep.subr.bf16.mxu0 %v946
    %1252 = vmatpush2.bf16.msra.mxu0 %v945
    %1253 = vmatprep.subr.bf16.mxu0 %v942
    %1254 = vmatpush2.bf16.msra.mxu0 %v941
    %1255 = vmatprep.subr.bf16.mxu0 %v938
    %1256 = vmatpush2.bf16.msra.mxu0 %v937
    %1257 = vmatprep.subr.bf16.mxu0 %v934
    %1258 = vmatpush2.bf16.msra.mxu0 %v933
    %1259 = vmatprep.subr.bf16.mxu0 %v930
    %1260 = vmatpush2.bf16.msra.mxu0 %v929
    %1261 = vmatprep.subr.bf16.mxu0 %v926
    %1262 = vmatpush2.bf16.msra.mxu0 %v925
    %1263 = vmatprep.subr.bf16.mxu0 %v922
    %1264 = vmatpush2.bf16.msra.mxu0 %v921
    %1265 = vmatprep.mubr.bf16.mxu0 %v1232
    %1266 = vmatmul.mubr.bf16.gmra.mxu0 %v1231
    %v1267 = vpop.f32.mrf.mxu0
    %v1268 = vadd.f32 %v680, %v1267
    %v1269 = vpop.f32.mrf.mxu0
    %v1270 = vadd.f32 %v684, %v1269
    %v1271 = vpop.f32.mrf.mxu0
    %v1272 = vpop.f32.mrf.mxu0
    %1273 = vdwg.mxu0
    %1274 = vmatprep.subr.bf16.mxu0 %v920
    %1275 = vmatpush1.bf16.msra.mxu0 %v919
    %1276 = vmatprep.subr.bf16.mxu0 %v916
    %1277 = vmatpush1.bf16.msra.mxu0 %v915
    %1278 = vmatprep.subr.bf16.mxu0 %v912
    %1279 = vmatpush1.bf16.msra.mxu0 %v911
    %1280 = vmatprep.subr.bf16.mxu0 %v908
    %1281 = vmatpush1.bf16.msra.mxu0 %v907
    %1282 = vmatprep.subr.bf16.mxu0 %v904
    %1283 = vmatpush1.bf16.msra.mxu0 %v903
    %1284 = vmatprep.subr.bf16.mxu0 %v900
    %1285 = vmatpush1.bf16.msra.mxu0 %v899
    %1286 = vmatprep.subr.bf16.mxu0 %v896
    %1287 = vmatpush1.bf16.msra.mxu0 %v895
    %1288 = vmatprep.subr.bf16.mxu0 %v892
    %1289 = vmatpush1.bf16.msra.mxu0 %v891
    %1290 = vmatprep.subr.bf16.mxu0 %v952
    %1291 = vmatpush2.bf16.msra.mxu0 %v951
    %1292 = vmatprep.subr.bf16.mxu0 %v948
    %1293 = vmatpush2.bf16.msra.mxu0 %v947
    %1294 = vmatprep.subr.bf16.mxu0 %v944
    %1295 = vmatpush2.bf16.msra.mxu0 %v943
    %1296 = vmatprep.subr.bf16.mxu0 %v940
    %1297 = vmatpush2.bf16.msra.mxu0 %v939
    %1298 = vmatprep.subr.bf16.mxu0 %v936
    %1299 = vmatpush2.bf16.msra.mxu0 %v935
    %1300 = vmatprep.subr.bf16.mxu0 %v932
    %1301 = vmatpush2.bf16.msra.mxu0 %v931
    %1302 = vmatprep.subr.bf16.mxu0 %v928
    %1303 = vmatpush2.bf16.msra.mxu0 %v927
    %1304 = vmatprep.subr.bf16.mxu0 %v924
    %1305 = vmatpush2.bf16.msra.mxu0 %v923
    %1306 = vmatprep.mubr.bf16.mxu0 %v1232
    %1307 = vmatmul.mubr.bf16.gmra.mxu0 %v1231
    %v1308 = vpop.f32.mrf.mxu0
    %v1309 = vadd.f32 %v688, %v1308
    %v1310 = vpop.f32.mrf.mxu0
    %v1311 = vadd.f32 %v692, %v1310
    %v1312 = vpop.f32.mrf.mxu0
    %v1313 = vpop.f32.mrf.mxu0
    %1314 = vdwg.mxu0
    %v1315 = vxor.u32 %v1268, 2147483648
    %v1316 = vxor.u32 %v1270, 2147483648
    %v1317 = vxor.u32 %v1309, 2147483648
    %v1318 = vmul.f32 %v1315, 1.442695
    %v1319 = vpow.pop %v1318
    %v1320 = vmul.f32 %v1316, 1.442695
    %v1321 = vpow.pop %v1320
    %v1322 = vmul.f32 %v1317, 1.442695
    %v1323 = vpow.pop %v1322
    %v1324 = vadd.f32 %v1319, 1.0
    %v1325 = vadd.f32 %v1321, 1.0
    %v1326 = vadd.f32 %v1323, 1.0
    %v1327 = vrcp.pop %v1324
    %v1328 = vmul.f32 1.0, %v1327
    %v1329 = vrcp.pop %v1325
    %v1330 = vmul.f32 1.0, %v1329
    %v1331 = vrcp.pop %v1326
    %v1332 = vmul.f32 1.0, %v1331
    %v1333 = vtanh.pop %v1311
    %v1334 = vmul.f32 %v1330, %v1120
    %v1335 = vmul.f32 %v1328, %v1333
    %v1336 = vadd.f32 %v1334, %v1335
    %v1337 = vtanh.pop %v1336
    %v1338 = vmul.f32 %v1332, %v1337
    %s1339 = scalar_lea.vmem %s0, 8
    %v1340 = vld [vmem:[%s1339] sm:$0xf]
    %1341 = vmatprep.subr.bf16.mxu0 %v405
    %1342 = vmatpush1.bf16.msra.mxu0 %v404
    %1343 = vmatprep.subr.bf16.mxu0 %v401
    %1344 = vmatpush1.bf16.msra.mxu0 %v400
    %1345 = vmatprep.subr.bf16.mxu0 %v397
    %1346 = vmatpush1.bf16.msra.mxu0 %v396
    %1347 = vmatprep.subr.bf16.mxu0 %v393
    %1348 = vmatpush1.bf16.msra.mxu0 %v392
    %1349 = vmatprep.subr.bf16.mxu0 %v389
    %1350 = vmatpush1.bf16.msra.mxu0 %v388
    %1351 = vmatprep.subr.bf16.mxu0 %v385
    %1352 = vmatpush1.bf16.msra.mxu0 %v384
    %1353 = vmatprep.subr.bf16.mxu0 %v381
    %1354 = vmatpush1.bf16.msra.mxu0 %v380
    %1355 = vmatprep.subr.bf16.mxu0 %v377
    %1356 = vmatpush1.bf16.msra.mxu0 %v376
    %1357 = vmatprep.subr.bf16.mxu0 %v437
    %1358 = vmatpush2.bf16.msra.mxu0 %v436
    %1359 = vmatprep.subr.bf16.mxu0 %v433
    %1360 = vmatpush2.bf16.msra.mxu0 %v432
    %1361 = vmatprep.subr.bf16.mxu0 %v429
    %1362 = vmatpush2.bf16.msra.mxu0 %v428
    %1363 = vmatprep.subr.bf16.mxu0 %v425
    %1364 = vmatpush2.bf16.msra.mxu0 %v424
    %1365 = vmatprep.subr.bf16.mxu0 %v421
    %1366 = vmatpush2.bf16.msra.mxu0 %v420
    %1367 = vmatprep.subr.bf16.mxu0 %v417
    %1368 = vmatpush2.bf16.msra.mxu0 %v416
    %1369 = vmatprep.subr.bf16.mxu0 %v413
    %1370 = vmatpush2.bf16.msra.mxu0 %v412
    %1371 = vmatprep.subr.bf16.mxu0 %v409
    %1372 = vmatpush2.bf16.msra.mxu0 %v408
    %1373 = vmatprep.mubr.bf16.mxu0 %v1231
    %1374 = vmatmul.mubr.bf16.gmra.mxu0 %v1340
    %v1375 = vpop.f32.mrf.mxu0
    %v1376 = vadd.f32 %v167, %v1375
    %v1377 = vpop.f32.mrf.mxu0
    %v1378 = vadd.f32 %v171, %v1377
    %v1379 = vpop.f32.mrf.mxu0
    %v1380 = vpop.f32.mrf.mxu0
    %1381 = vdwg.mxu0
    %1382 = vmatprep.subr.bf16.mxu0 %v407
    %1383 = vmatpush1.bf16.msra.mxu0 %v406
    %1384 = vmatprep.subr.bf16.mxu0 %v403
    %1385 = vmatpush1.bf16.msra.mxu0 %v402
    %1386 = vmatprep.subr.bf16.mxu0 %v399
    %1387 = vmatpush1.bf16.msra.mxu0 %v398
    %1388 = vmatprep.subr.bf16.mxu0 %v395
    %1389 = vmatpush1.bf16.msra.mxu0 %v394
    %1390 = vmatprep.subr.bf16.mxu0 %v391
    %1391 = vmatpush1.bf16.msra.mxu0 %v390
    %1392 = vmatprep.subr.bf16.mxu0 %v387
    %1393 = vmatpush1.bf16.msra.mxu0 %v386
    %1394 = vmatprep.subr.bf16.mxu0 %v383
    %1395 = vmatpush1.bf16.msra.mxu0 %v382
    %1396 = vmatprep.subr.bf16.mxu0 %v379
    %1397 = vmatpush1.bf16.msra.mxu0 %v378
    %1398 = vmatprep.subr.bf16.mxu0 %v439
    %1399 = vmatpush2.bf16.msra.mxu0 %v438
    %1400 = vmatprep.subr.bf16.mxu0 %v435
    %1401 = vmatpush2.bf16.msra.mxu0 %v434
    %1402 = vmatprep.subr.bf16.mxu0 %v431
    %1403 = vmatpush2.bf16.msra.mxu0 %v430
    %1404 = vmatprep.subr.bf16.mxu0 %v427
    %1405 = vmatpush2.bf16.msra.mxu0 %v426
    %1406 = vmatprep.subr.bf16.mxu0 %v423
    %1407 = vmatpush2.bf16.msra.mxu0 %v422
    %1408 = vmatprep.subr.bf16.mxu0 %v419
    %1409 = vmatpush2.bf16.msra.mxu0 %v418
    %1410 = vmatprep.subr.bf16.mxu0 %v415
    %1411 = vmatpush2.bf16.msra.mxu0 %v414
    %1412 = vmatprep.subr.bf16.mxu0 %v411
    %1413 = vmatpush2.bf16.msra.mxu0 %v410
    %1414 = vmatprep.mubr.bf16.mxu0 %v1231
    %1415 = vmatmul.mubr.bf16.gmra.mxu0 %v1340
    %v1416 = vpop.f32.mrf.mxu0
    %v1417 = vadd.f32 %v175, %v1416
    %v1418 = vpop.f32.mrf.mxu0
    %v1419 = vadd.f32 %v179, %v1418
    %v1420 = vpop.f32.mrf.mxu0
    %v1421 = vpop.f32.mrf.mxu0
    %1422 = vdwg.mxu0
    %v1423 = vxor.u32 %v1376, 2147483648
    %v1424 = vxor.u32 %v1378, 2147483648
    %v1425 = vxor.u32 %v1417, 2147483648
    %v1426 = vmul.f32 %v1423, 1.442695
    %v1427 = vpow.pop %v1426
    %v1428 = vmul.f32 %v1424, 1.442695
    %v1429 = vpow.pop %v1428
    %v1430 = vmul.f32 %v1425, 1.442695
    %v1431 = vpow.pop %v1430
    %v1432 = vadd.f32 %v1427, 1.0
    %v1433 = vadd.f32 %v1429, 1.0
    %v1434 = vadd.f32 %v1431, 1.0
    %v1435 = vrcp.pop %v1432
    %v1436 = vmul.f32 1.0, %v1435
    %v1437 = vrcp.pop %v1433
    %v1438 = vmul.f32 1.0, %v1437
    %v1439 = vrcp.pop %v1434
    %v1440 = vmul.f32 1.0, %v1439
    %v1441 = vtanh.pop %v1419
    %v1442 = vmul.f32 %v1438, %v1228
    %v1443 = vmul.f32 %v1436, %v1441
    %v1444 = vadd.f32 %v1442, %v1443
    %v1445 = vtanh.pop %v1444
    %v1446 = vmul.f32 %v1440, %v1445
    %v1447 = vpack.c.bf16 %v1446, %v1446
    %v1448 = vpack.c.bf16 %v1338, %v1338
    %1449 = vmatprep.subr.bf16.mxu0 %v918
    %1450 = vmatpush1.bf16.msra.mxu0 %v917
    %1451 = vmatprep.subr.bf16.mxu0 %v914
    %1452 = vmatpush1.bf16.msra.mxu0 %v913
    %1453 = vmatprep.subr.bf16.mxu0 %v910
    %1454 = vmatpush1.bf16.msra.mxu0 %v909
    %1455 = vmatprep.subr.bf16.mxu0 %v906
    %1456 = vmatpush1.bf16.msra.mxu0 %v905
    %1457 = vmatprep.subr.bf16.mxu0 %v902
    %1458 = vmatpush1.bf16.msra.mxu0 %v901
    %1459 = vmatprep.subr.bf16.mxu0 %v898
    %1460 = vmatpush1.bf16.msra.mxu0 %v897
    %1461 = vmatprep.subr.bf16.mxu0 %v894
    %1462 = vmatpush1.bf16.msra.mxu0 %v893
    %1463 = vmatprep.subr.bf16.mxu0 %v890
    %1464 = vmatpush1.bf16.msra.mxu0 %v889
    %1465 = vmatprep.subr.bf16.mxu0 %v950
    %1466 = vmatpush2.bf16.msra.mxu0 %v949
    %1467 = vmatprep.subr.bf16.mxu0 %v946
    %1468 = vmatpush2.bf16.msra.mxu0 %v945
    %1469 = vmatprep.subr.bf16.mxu0 %v942
    %1470 = vmatpush2.bf16.msra.mxu0 %v941
    %1471 = vmatprep.subr.bf16.mxu0 %v938
    %1472 = vmatpush2.bf16.msra.mxu0 %v937
    %1473 = vmatprep.subr.bf16.mxu0 %v934
    %1474 = vmatpush2.bf16.msra.mxu0 %v933
    %1475 = vmatprep.subr.bf16.mxu0 %v930
    %1476 = vmatpush2.bf16.msra.mxu0 %v929
    %1477 = vmatprep.subr.bf16.mxu0 %v926
    %1478 = vmatpush2.bf16.msra.mxu0 %v925
    %1479 = vmatprep.subr.bf16.mxu0 %v922
    %1480 = vmatpush2.bf16.msra.mxu0 %v921
    %1481 = vmatprep.mubr.bf16.mxu0 %v1448
    %1482 = vmatmul.mubr.bf16.gmra.mxu0 %v1447
    %v1483 = vpop.f32.mrf.mxu0
    %v1484 = vadd.f32 %v680, %v1483
    %v1485 = vpop.f32.mrf.mxu0
    %v1486 = vadd.f32 %v684, %v1485
    %v1487 = vpop.f32.mrf.mxu0
    %v1488 = vpop.f32.mrf.mxu0
    %1489 = vdwg.mxu0
    %1490 = vmatprep.subr.bf16.mxu0 %v920
    %1491 = vmatpush1.bf16.msra.mxu0 %v919
    %1492 = vmatprep.subr.bf16.mxu0 %v916
    %1493 = vmatpush1.bf16.msra.mxu0 %v915
    %1494 = vmatprep.subr.bf16.mxu0 %v912
    %1495 = vmatpush1.bf16.msra.mxu0 %v911
    %1496 = vmatprep.subr.bf16.mxu0 %v908
    %1497 = vmatpush1.bf16.msra.mxu0 %v907
    %1498 = vmatprep.subr.bf16.mxu0 %v904
    %1499 = vmatpush1.bf16.msra.mxu0 %v903
    %1500 = vmatprep.subr.bf16.mxu0 %v900
    %1501 = vmatpush1.bf16.msra.mxu0 %v899
    %1502 = vmatprep.subr.bf16.mxu0 %v896
    %1503 = vmatpush1.bf16.msra.mxu0 %v895
    %1504 = vmatprep.subr.bf16.mxu0 %v892
    %1505 = vmatpush1.bf16.msra.mxu0 %v891
    %1506 = vmatprep.subr.bf16.mxu0 %v952
    %1507 = vmatpush2.bf16.msra.mxu0 %v951
    %1508 = vmatprep.subr.bf16.mxu0 %v948
    %1509 = vmatpush2.bf16.msra.mxu0 %v947
    %1510 = vmatprep.subr.bf16.mxu0 %v944
    %1511 = vmatpush2.bf16.msra.mxu0 %v943
    %1512 = vmatprep.subr.bf16.mxu0 %v940
    %1513 = vmatpush2.bf16.msra.mxu0 %v939
    %1514 = vmatprep.subr.bf16.mxu0 %v936
    %1515 = vmatpush2.bf16.msra.mxu0 %v935
    %1516 = vmatprep.subr.bf16.mxu0 %v932
    %1517 = vmatpush2.bf16.msra.mxu0 %v931
    %1518 = vmatprep.subr.bf16.mxu0 %v928
    %1519 = vmatpush2.bf16.msra.mxu0 %v927
    %1520 = vmatprep.subr.bf16.mxu0 %v924
    %1521 = vmatpush2.bf16.msra.mxu0 %v923
    %1522 = vmatprep.mubr.bf16.mxu0 %v1448
    %1523 = vmatmul.mubr.bf16.gmra.mxu0 %v1447
    %v1524 = vpop.f32.mrf.mxu0
    %v1525 = vadd.f32 %v688, %v1524
    %v1526 = vpop.f32.mrf.mxu0
    %v1527 = vadd.f32 %v692, %v1526
    %v1528 = vpop.f32.mrf.mxu0
    %v1529 = vpop.f32.mrf.mxu0
    %1530 = vdwg.mxu0
    %v1531 = vxor.u32 %v1484, 2147483648
    %v1532 = vxor.u32 %v1486, 2147483648
    %v1533 = vxor.u32 %v1525, 2147483648
    %v1534 = vmul.f32 %v1531, 1.442695
    %v1535 = vpow.pop %v1534
    %v1536 = vmul.f32 %v1532, 1.442695
    %v1537 = vpow.pop %v1536
    %v1538 = vmul.f32 %v1533, 1.442695
    %v1539 = vpow.pop %v1538
    %v1540 = vadd.f32 %v1535, 1.0
    %v1541 = vadd.f32 %v1537, 1.0
    %v1542 = vadd.f32 %v1539, 1.0
    %v1543 = vrcp.pop %v1540
    %v1544 = vmul.f32 1.0, %v1543
    %v1545 = vrcp.pop %v1541
    %v1546 = vmul.f32 1.0, %v1545
    %v1547 = vrcp.pop %v1542
    %v1548 = vmul.f32 1.0, %v1547
    %v1549 = vtanh.pop %v1527
    %v1550 = vmul.f32 %v1546, %v1336
    %v1551 = vmul.f32 %v1544, %v1549
    %v1552 = vadd.f32 %v1550, %v1551
    %v1553 = vtanh.pop %v1552
    %v1554 = vmul.f32 %v1548, %v1553
    %s1555 = scalar_lea.vmem %s0, 12
    %v1556 = vld [vmem:[%s1555] sm:$0xf]
    %1557 = vmatprep.subr.bf16.mxu0 %v405
    %1558 = vmatpush1.bf16.msra.mxu0 %v404
    %1559 = vmatprep.subr.bf16.mxu0 %v401
    %1560 = vmatpush1.bf16.msra.mxu0 %v400
    %1561 = vmatprep.subr.bf16.mxu0 %v397
    %1562 = vmatpush1.bf16.msra.mxu0 %v396
    %1563 = vmatprep.subr.bf16.mxu0 %v393
    %1564 = vmatpush1.bf16.msra.mxu0 %v392
    %1565 = vmatprep.subr.bf16.mxu0 %v389
    %1566 = vmatpush1.bf16.msra.mxu0 %v388
    %1567 = vmatprep.subr.bf16.mxu0 %v385
    %1568 = vmatpush1.bf16.msra.mxu0 %v384
    %1569 = vmatprep.subr.bf16.mxu0 %v381
    %1570 = vmatpush1.bf16.msra.mxu0 %v380
    %1571 = vmatprep.subr.bf16.mxu0 %v377
    %1572 = vmatpush1.bf16.msra.mxu0 %v376
    %1573 = vmatprep.subr.bf16.mxu0 %v437
    %1574 = vmatpush2.bf16.msra.mxu0 %v436
    %1575 = vmatprep.subr.bf16.mxu0 %v433
    %1576 = vmatpush2.bf16.msra.mxu0 %v432
    %1577 = vmatprep.subr.bf16.mxu0 %v429
    %1578 = vmatpush2.bf16.msra.mxu0 %v428
    %1579 = vmatprep.subr.bf16.mxu0 %v425
    %1580 = vmatpush2.bf16.msra.mxu0 %v424
    %1581 = vmatprep.subr.bf16.mxu0 %v421
    %1582 = vmatpush2.bf16.msra.mxu0 %v420
    %1583 = vmatprep.subr.bf16.mxu0 %v417
    %1584 = vmatpush2.bf16.msra.mxu0 %v416
    %1585 = vmatprep.subr.bf16.mxu0 %v413
    %1586 = vmatpush2.bf16.msra.mxu0 %v412
    %1587 = vmatprep.subr.bf16.mxu0 %v409
    %1588 = vmatpush2.bf16.msra.mxu0 %v408
    %1589 = vmatprep.mubr.bf16.mxu0 %v1447
    %1590 = vmatmul.mubr.bf16.gmra.mxu0 %v1556
    %v1591 = vpop.f32.mrf.mxu0
    %v1592 = vadd.f32 %v167, %v1591
    %v1593 = vpop.f32.mrf.mxu0
    %v1594 = vadd.f32 %v171, %v1593
    %v1595 = vpop.f32.mrf.mxu0
    %v1596 = vpop.f32.mrf.mxu0
    %1597 = vdwg.mxu0
    %1598 = vmatprep.subr.bf16.mxu0 %v407
    %1599 = vmatpush1.bf16.msra.mxu0 %v406
    %1600 = vmatprep.subr.bf16.mxu0 %v403
    %1601 = vmatpush1.bf16.msra.mxu0 %v402
    %1602 = vmatprep.subr.bf16.mxu0 %v399
    %1603 = vmatpush1.bf16.msra.mxu0 %v398
    %1604 = vmatprep.subr.bf16.mxu0 %v395
    %1605 = vmatpush1.bf16.msra.mxu0 %v394
    %1606 = vmatprep.subr.bf16.mxu0 %v391
    %1607 = vmatpush1.bf16.msra.mxu0 %v390
    %1608 = vmatprep.subr.bf16.mxu0 %v387
    %1609 = vmatpush1.bf16.msra.mxu0 %v386
    %1610 = vmatprep.subr.bf16.mxu0 %v383
    %1611 = vmatpush1.bf16.msra.mxu0 %v382
    %1612 = vmatprep.subr.bf16.mxu0 %v379
    %1613 = vmatpush1.bf16.msra.mxu0 %v378
    %1614 = vmatprep.subr.bf16.mxu0 %v439
    %1615 = vmatpush2.bf16.msra.mxu0 %v438
    %1616 = vmatprep.subr.bf16.mxu0 %v435
    %1617 = vmatpush2.bf16.msra.mxu0 %v434
    %1618 = vmatprep.subr.bf16.mxu0 %v431
    %1619 = vmatpush2.bf16.msra.mxu0 %v430
    %1620 = vmatprep.subr.bf16.mxu0 %v427
    %1621 = vmatpush2.bf16.msra.mxu0 %v426
    %1622 = vmatprep.subr.bf16.mxu0 %v423
    %1623 = vmatpush2.bf16.msra.mxu0 %v422
    %1624 = vmatprep.subr.bf16.mxu0 %v419
    %1625 = vmatpush2.bf16.msra.mxu0 %v418
    %1626 = vmatprep.subr.bf16.mxu0 %v415
    %1627 = vmatpush2.bf16.msra.mxu0 %v414
    %1628 = vmatprep.subr.bf16.mxu0 %v411
    %1629 = vmatpush2.bf16.msra.mxu0 %v410
    %1630 = vmatprep.mubr.bf16.mxu0 %v1447
    %1631 = vmatmul.mubr.bf16.gmra.mxu0 %v1556
    %v1632 = vpop.f32.mrf.mxu0
    %v1633 = vadd.f32 %v175, %v1632
    %v1634 = vpop.f32.mrf.mxu0
    %v1635 = vadd.f32 %v179, %v1634
    %v1636 = vpop.f32.mrf.mxu0
    %v1637 = vpop.f32.mrf.mxu0
    %1638 = vdwg.mxu0
    %v1639 = vxor.u32 %v1592, 2147483648
    %v1640 = vxor.u32 %v1594, 2147483648
    %v1641 = vxor.u32 %v1633, 2147483648
    %v1642 = vmul.f32 %v1639, 1.442695
    %v1643 = vpow.pop %v1642
    %v1644 = vmul.f32 %v1640, 1.442695
    %v1645 = vpow.pop %v1644
    %v1646 = vmul.f32 %v1641, 1.442695
    %v1647 = vpow.pop %v1646
    %v1648 = vadd.f32 %v1643, 1.0
    %v1649 = vadd.f32 %v1645, 1.0
    %v1650 = vadd.f32 %v1647, 1.0
    %v1651 = vrcp.pop %v1648
    %v1652 = vmul.f32 1.0, %v1651
    %v1653 = vrcp.pop %v1649
    %v1654 = vmul.f32 1.0, %v1653
    %v1655 = vrcp.pop %v1650
    %v1656 = vmul.f32 1.0, %v1655
    %v1657 = vtanh.pop %v1635
    %v1658 = vmul.f32 %v1654, %v1444
    %v1659 = vmul.f32 %v1652, %v1657
    %v1660 = vadd.f32 %v1658, %v1659
    %v1661 = vtanh.pop %v1660
    %v1662 = vmul.f32 %v1656, %v1661
    %v1663 = vpack.c.bf16 %v1662, %v1662
    %v1664 = vpack.c.bf16 %v1554, %v1554
    %1665 = vmatprep.subr.bf16.mxu0 %v918
    %1666 = vmatpush1.bf16.msra.mxu0 %v917
    %1667 = vmatprep.subr.bf16.mxu0 %v914
    %1668 = vmatpush1.bf16.msra.mxu0 %v913
    %1669 = vmatprep.subr.bf16.mxu0 %v910
    %1670 = vmatpush1.bf16.msra.mxu0 %v909
    %1671 = vmatprep.subr.bf16.mxu0 %v906
    %1672 = vmatpush1.bf16.msra.mxu0 %v905
    %1673 = vmatprep.subr.bf16.mxu0 %v902
    %1674 = vmatpush1.bf16.msra.mxu0 %v901
    %1675 = vmatprep.subr.bf16.mxu0 %v898
    %1676 = vmatpush1.bf16.msra.mxu0 %v897
    %1677 = vmatprep.subr.bf16.mxu0 %v894
    %1678 = vmatpush1.bf16.msra.mxu0 %v893
    %1679 = vmatprep.subr.bf16.mxu0 %v890
    %1680 = vmatpush1.bf16.msra.mxu0 %v889
    %1681 = vmatprep.subr.bf16.mxu0 %v950
    %1682 = vmatpush2.bf16.msra.mxu0 %v949
    %1683 = vmatprep.subr.bf16.mxu0 %v946
    %1684 = vmatpush2.bf16.msra.mxu0 %v945
    %1685 = vmatprep.subr.bf16.mxu0 %v942
    %1686 = vmatpush2.bf16.msra.mxu0 %v941
    %1687 = vmatprep.subr.bf16.mxu0 %v938
    %1688 = vmatpush2.bf16.msra.mxu0 %v937
    %1689 = vmatprep.subr.bf16.mxu0 %v934
    %1690 = vmatpush2.bf16.msra.mxu0 %v933
    %1691 = vmatprep.subr.bf16.mxu0 %v930
    %1692 = vmatpush2.bf16.msra.mxu0 %v929
    %1693 = vmatprep.subr.bf16.mxu0 %v926
    %1694 = vmatpush2.bf16.msra.mxu0 %v925
    %1695 = vmatprep.subr.bf16.mxu0 %v922
    %1696 = vmatpush2.bf16.msra.mxu0 %v921
    %1697 = vmatprep.mubr.bf16.mxu0 %v1664
    %1698 = vmatmul.mubr.bf16.gmra.mxu0 %v1663
    %v1699 = vpop.f32.mrf.mxu0
    %v1700 = vadd.f32 %v680, %v1699
    %v1701 = vpop.f32.mrf.mxu0
    %v1702 = vadd.f32 %v684, %v1701
    %v1703 = vpop.f32.mrf.mxu0
    %v1704 = vpop.f32.mrf.mxu0
    %1705 = vdwg.mxu0
    %1706 = vmatprep.subr.bf16.mxu0 %v920
    %1707 = vmatpush1.bf16.msra.mxu0 %v919
    %1708 = vmatprep.subr.bf16.mxu0 %v916
    %1709 = vmatpush1.bf16.msra.mxu0 %v915
    %1710 = vmatprep.subr.bf16.mxu0 %v912
    %1711 = vmatpush1.bf16.msra.mxu0 %v911
    %1712 = vmatprep.subr.bf16.mxu0 %v908
    %1713 = vmatpush1.bf16.msra.mxu0 %v907
    %1714 = vmatprep.subr.bf16.mxu0 %v904
    %1715 = vmatpush1.bf16.msra.mxu0 %v903
    %1716 = vmatprep.subr.bf16.mxu0 %v900
    %1717 = vmatpush1.bf16.msra.mxu0 %v899
    %1718 = vmatprep.subr.bf16.mxu0 %v896
    %1719 = vmatpush1.bf16.msra.mxu0 %v895
    %1720 = vmatprep.subr.bf16.mxu0 %v892
    %1721 = vmatpush1.bf16.msra.mxu0 %v891
    %1722 = vmatprep.subr.bf16.mxu0 %v952
    %1723 = vmatpush2.bf16.msra.mxu0 %v951
    %1724 = vmatprep.subr.bf16.mxu0 %v948
    %1725 = vmatpush2.bf16.msra.mxu0 %v947
    %1726 = vmatprep.subr.bf16.mxu0 %v944
    %1727 = vmatpush2.bf16.msra.mxu0 %v943
    %1728 = vmatprep.subr.bf16.mxu0 %v940
    %1729 = vmatpush2.bf16.msra.mxu0 %v939
    %1730 = vmatprep.subr.bf16.mxu0 %v936
    %1731 = vmatpush2.bf16.msra.mxu0 %v935
    %1732 = vmatprep.subr.bf16.mxu0 %v932
    %1733 = vmatpush2.bf16.msra.mxu0 %v931
    %1734 = vmatprep.subr.bf16.mxu0 %v928
    %1735 = vmatpush2.bf16.msra.mxu0 %v927
    %1736 = vmatprep.subr.bf16.mxu0 %v924
    %1737 = vmatpush2.bf16.msra.mxu0 %v923
    %1738 = vmatprep.mubr.bf16.mxu0 %v1664
    %1739 = vmatmul.mubr.bf16.gmra.mxu0 %v1663
    %v1740 = vpop.f32.mrf.mxu0
    %v1741 = vadd.f32 %v688, %v1740
    %v1742 = vpop.f32.mrf.mxu0
    %v1743 = vadd.f32 %v692, %v1742
    %v1744 = vpop.f32.mrf.mxu0
    %v1745 = vpop.f32.mrf.mxu0
    %1746 = vdwg.mxu0
    %v1747 = vxor.u32 %v1700, 2147483648
    %v1748 = vxor.u32 %v1702, 2147483648
    %v1749 = vxor.u32 %v1741, 2147483648
    %v1750 = vmul.f32 %v1747, 1.442695
    %v1751 = vpow.pop %v1750
    %v1752 = vmul.f32 %v1748, 1.442695
    %v1753 = vpow.pop %v1752
    %v1754 = vmul.f32 %v1749, 1.442695
    %v1755 = vpow.pop %v1754
    %v1756 = vadd.f32 %v1751, 1.0
    %v1757 = vadd.f32 %v1753, 1.0
    %v1758 = vadd.f32 %v1755, 1.0
    %v1759 = vrcp.pop %v1756
    %v1760 = vmul.f32 1.0, %v1759
    %v1761 = vrcp.pop %v1757
    %v1762 = vmul.f32 1.0, %v1761
    %v1763 = vrcp.pop %v1758
    %v1764 = vmul.f32 1.0, %v1763
    %v1765 = vtanh.pop %v1743
    %v1766 = vmul.f32 %v1762, %v1552
    %v1767 = vmul.f32 %v1760, %v1765
    %v1768 = vadd.f32 %v1766, %v1767
    %v1769 = vtanh.pop %v1768
    %v1770 = vmul.f32 %v1764, %v1769
    %s1771 = scalar_lea.vmem %s0, 16
    %v1772 = vld [vmem:[%s1771] sm:$0xf]
    %1773 = vmatprep.subr.bf16.mxu0 %v405
    %1774 = vmatpush1.bf16.msra.mxu0 %v404
    %1775 = vmatprep.subr.bf16.mxu0 %v401
    %1776 = vmatpush1.bf16.msra.mxu0 %v400
    %1777 = vmatprep.subr.bf16.mxu0 %v397
    %1778 = vmatpush1.bf16.msra.mxu0 %v396
    %1779 = vmatprep.subr.bf16.mxu0 %v393
    %1780 = vmatpush1.bf16.msra.mxu0 %v392
    %1781 = vmatprep.subr.bf16.mxu0 %v389
    %1782 = vmatpush1.bf16.msra.mxu0 %v388
    %1783 = vmatprep.subr.bf16.mxu0 %v385
    %1784 = vmatpush1.bf16.msra.mxu0 %v384
    %1785 = vmatprep.subr.bf16.mxu0 %v381
    %1786 = vmatpush1.bf16.msra.mxu0 %v380
    %1787 = vmatprep.subr.bf16.mxu0 %v377
    %1788 = vmatpush1.bf16.msra.mxu0 %v376
    %1789 = vmatprep.subr.bf16.mxu0 %v437
    %1790 = vmatpush2.bf16.msra.mxu0 %v436
    %1791 = vmatprep.subr.bf16.mxu0 %v433
    %1792 = vmatpush2.bf16.msra.mxu0 %v432
    %1793 = vmatprep.subr.bf16.mxu0 %v429
    %1794 = vmatpush2.bf16.msra.mxu0 %v428
    %1795 = vmatprep.subr.bf16.mxu0 %v425
    %1796 = vmatpush2.bf16.msra.mxu0 %v424
    %1797 = vmatprep.subr.bf16.mxu0 %v421
    %1798 = vmatpush2.bf16.msra.mxu0 %v420
    %1799 = vmatprep.subr.bf16.mxu0 %v417
    %1800 = vmatpush2.bf16.msra.mxu0 %v416
    %1801 = vmatprep.subr.bf16.mxu0 %v413
    %1802 = vmatpush2.bf16.msra.mxu0 %v412
    %1803 = vmatprep.subr.bf16.mxu0 %v409
    %1804 = vmatpush2.bf16.msra.mxu0 %v408
    %1805 = vmatprep.mubr.bf16.mxu0 %v1663
    %1806 = vmatmul.mubr.bf16.gmra.mxu0 %v1772
    %v1807 = vpop.f32.mrf.mxu0
    %v1808 = vadd.f32 %v167, %v1807
    %v1809 = vpop.f32.mrf.mxu0
    %v1810 = vadd.f32 %v171, %v1809
    %v1811 = vpop.f32.mrf.mxu0
    %v1812 = vpop.f32.mrf.mxu0
    %1813 = vdwg.mxu0
    %1814 = vmatprep.subr.bf16.mxu0 %v407
    %1815 = vmatpush1.bf16.msra.mxu0 %v406
    %1816 = vmatprep.subr.bf16.mxu0 %v403
    %1817 = vmatpush1.bf16.msra.mxu0 %v402
    %1818 = vmatprep.subr.bf16.mxu0 %v399
    %1819 = vmatpush1.bf16.msra.mxu0 %v398
    %1820 = vmatprep.subr.bf16.mxu0 %v395
    %1821 = vmatpush1.bf16.msra.mxu0 %v394
    %1822 = vmatprep.subr.bf16.mxu0 %v391
    %1823 = vmatpush1.bf16.msra.mxu0 %v390
    %1824 = vmatprep.subr.bf16.mxu0 %v387
    %1825 = vmatpush1.bf16.msra.mxu0 %v386
    %1826 = vmatprep.subr.bf16.mxu0 %v383
    %1827 = vmatpush1.bf16.msra.mxu0 %v382
    %1828 = vmatprep.subr.bf16.mxu0 %v379
    %1829 = vmatpush1.bf16.msra.mxu0 %v378
    %1830 = vmatprep.subr.bf16.mxu0 %v439
    %1831 = vmatpush2.bf16.msra.mxu0 %v438
    %1832 = vmatprep.subr.bf16.mxu0 %v435
    %1833 = vmatpush2.bf16.msra.mxu0 %v434
    %1834 = vmatprep.subr.bf16.mxu0 %v431
    %1835 = vmatpush2.bf16.msra.mxu0 %v430
    %1836 = vmatprep.subr.bf16.mxu0 %v427
    %1837 = vmatpush2.bf16.msra.mxu0 %v426
    %1838 = vmatprep.subr.bf16.mxu0 %v423
    %1839 = vmatpush2.bf16.msra.mxu0 %v422
    %1840 = vmatprep.subr.bf16.mxu0 %v419
    %1841 = vmatpush2.bf16.msra.mxu0 %v418
    %1842 = vmatprep.subr.bf16.mxu0 %v415
    %1843 = vmatpush2.bf16.msra.mxu0 %v414
    %1844 = vmatprep.subr.bf16.mxu0 %v411
    %1845 = vmatpush2.bf16.msra.mxu0 %v410
    %1846 = vmatprep.mubr.bf16.mxu0 %v1663
    %1847 = vmatmul.mubr.bf16.gmra.mxu0 %v1772
    %v1848 = vpop.f32.mrf.mxu0
    %v1849 = vadd.f32 %v175, %v1848
    %v1850 = vpop.f32.mrf.mxu0
    %v1851 = vadd.f32 %v179, %v1850
    %v1852 = vpop.f32.mrf.mxu0
    %v1853 = vpop.f32.mrf.mxu0
    %1854 = vdwg.mxu0
    %v1855 = vxor.u32 %v1808, 2147483648
    %v1856 = vxor.u32 %v1810, 2147483648
    %v1857 = vxor.u32 %v1849, 2147483648
    %v1858 = vmul.f32 %v1855, 1.442695
    %v1859 = vpow.pop %v1858
    %v1860 = vmul.f32 %v1856, 1.442695
    %v1861 = vpow.pop %v1860
    %v1862 = vmul.f32 %v1857, 1.442695
    %v1863 = vpow.pop %v1862
    %v1864 = vadd.f32 %v1859, 1.0
    %v1865 = vadd.f32 %v1861, 1.0
    %v1866 = vadd.f32 %v1863, 1.0
    %v1867 = vrcp.pop %v1864
    %v1868 = vmul.f32 1.0, %v1867
    %v1869 = vrcp.pop %v1865
    %v1870 = vmul.f32 1.0, %v1869
    %v1871 = vrcp.pop %v1866
    %v1872 = vmul.f32 1.0, %v1871
    %v1873 = vtanh.pop %v1851
    %v1874 = vmul.f32 %v1870, %v1660
    %v1875 = vmul.f32 %v1868, %v1873
    %v1876 = vadd.f32 %v1874, %v1875
    %v1877 = vtanh.pop %v1876
    %v1878 = vmul.f32 %v1872, %v1877
    %v1879 = vpack.c.bf16 %v1878, %v1878
    %v1880 = vpack.c.bf16 %v1770, %v1770
    %1881 = vmatprep.subr.bf16.mxu0 %v918
    %1882 = vmatpush1.bf16.msra.mxu0 %v917
    %1883 = vmatprep.subr.bf16.mxu0 %v914
    %1884 = vmatpush1.bf16.msra.mxu0 %v913
    %1885 = vmatprep.subr.bf16.mxu0 %v910
    %1886 = vmatpush1.bf16.msra.mxu0 %v909
    %1887 = vmatprep.subr.bf16.mxu0 %v906
    %1888 = vmatpush1.bf16.msra.mxu0 %v905
    %1889 = vmatprep.subr.bf16.mxu0 %v902
    %1890 = vmatpush1.bf16.msra.mxu0 %v901
    %1891 = vmatprep.subr.bf16.mxu0 %v898
    %1892 = vmatpush1.bf16.msra.mxu0 %v897
    %1893 = vmatprep.subr.bf16.mxu0 %v894
    %1894 = vmatpush1.bf16.msra.mxu0 %v893
    %1895 = vmatprep.subr.bf16.mxu0 %v890
    %1896 = vmatpush1.bf16.msra.mxu0 %v889
    %1897 = vmatprep.subr.bf16.mxu0 %v950
    %1898 = vmatpush2.bf16.msra.mxu0 %v949
    %1899 = vmatprep.subr.bf16.mxu0 %v946
    %1900 = vmatpush2.bf16.msra.mxu0 %v945
    %1901 = vmatprep.subr.bf16.mxu0 %v942
    %1902 = vmatpush2.bf16.msra.mxu0 %v941
    %1903 = vmatprep.subr.bf16.mxu0 %v938
    %1904 = vmatpush2.bf16.msra.mxu0 %v937
    %1905 = vmatprep.subr.bf16.mxu0 %v934
    %1906 = vmatpush2.bf16.msra.mxu0 %v933
    %1907 = vmatprep.subr.bf16.mxu0 %v930
    %1908 = vmatpush2.bf16.msra.mxu0 %v929
    %1909 = vmatprep.subr.bf16.mxu0 %v926
    %1910 = vmatpush2.bf16.msra.mxu0 %v925
    %1911 = vmatprep.subr.bf16.mxu0 %v922
    %1912 = vmatpush2.bf16.msra.mxu0 %v921
    %1913 = vmatprep.mubr.bf16.mxu0 %v1880
    %1914 = vmatmul.mubr.bf16.gmra.mxu0 %v1879
    %v1915 = vpop.f32.mrf.mxu0
    %v1916 = vadd.f32 %v680, %v1915
    %v1917 = vpop.f32.mrf.mxu0
    %v1918 = vadd.f32 %v684, %v1917
    %v1919 = vpop.f32.mrf.mxu0
    %v1920 = vpop.f32.mrf.mxu0
    %1921 = vdwg.mxu0
    %1922 = vmatprep.subr.bf16.mxu0 %v920
    %1923 = vmatpush1.bf16.msra.mxu0 %v919
    %1924 = vmatprep.subr.bf16.mxu0 %v916
    %1925 = vmatpush1.bf16.msra.mxu0 %v915
    %1926 = vmatprep.subr.bf16.mxu0 %v912
    %1927 = vmatpush1.bf16.msra.mxu0 %v911
    %1928 = vmatprep.subr.bf16.mxu0 %v908
    %1929 = vmatpush1.bf16.msra.mxu0 %v907
    %1930 = vmatprep.subr.bf16.mxu0 %v904
    %1931 = vmatpush1.bf16.msra.mxu0 %v903
    %1932 = vmatprep.subr.bf16.mxu0 %v900
    %1933 = vmatpush1.bf16.msra.mxu0 %v899
    %1934 = vmatprep.subr.bf16.mxu0 %v896
    %1935 = vmatpush1.bf16.msra.mxu0 %v895
    %1936 = vmatprep.subr.bf16.mxu0 %v892
    %1937 = vmatpush1.bf16.msra.mxu0 %v891
    %1938 = vmatprep.subr.bf16.mxu0 %v952
    %1939 = vmatpush2.bf16.msra.mxu0 %v951
    %1940 = vmatprep.subr.bf16.mxu0 %v948
    %1941 = vmatpush2.bf16.msra.mxu0 %v947
    %1942 = vmatprep.subr.bf16.mxu0 %v944
    %1943 = vmatpush2.bf16.msra.mxu0 %v943
    %1944 = vmatprep.subr.bf16.mxu0 %v940
    %1945 = vmatpush2.bf16.msra.mxu0 %v939
    %1946 = vmatprep.subr.bf16.mxu0 %v936
    %1947 = vmatpush2.bf16.msra.mxu0 %v935
    %1948 = vmatprep.subr.bf16.mxu0 %v932
    %1949 = vmatpush2.bf16.msra.mxu0 %v931
    %1950 = vmatprep.subr.bf16.mxu0 %v928
    %1951 = vmatpush2.bf16.msra.mxu0 %v927
    %1952 = vmatprep.subr.bf16.mxu0 %v924
    %1953 = vmatpush2.bf16.msra.mxu0 %v923
    %1954 = vmatprep.mubr.bf16.mxu0 %v1880
    %1955 = vmatmul.mubr.bf16.gmra.mxu0 %v1879
    %v1956 = vpop.f32.mrf.mxu0
    %v1957 = vadd.f32 %v688, %v1956
    %v1958 = vpop.f32.mrf.mxu0
    %v1959 = vadd.f32 %v692, %v1958
    %v1960 = vpop.f32.mrf.mxu0
    %v1961 = vpop.f32.mrf.mxu0
    %1962 = vdwg.mxu0
    %v1963 = vxor.u32 %v1916, 2147483648
    %v1964 = vxor.u32 %v1918, 2147483648
    %v1965 = vxor.u32 %v1957, 2147483648
    %v1966 = vmul.f32 %v1963, 1.442695
    %v1967 = vpow.pop %v1966
    %v1968 = vmul.f32 %v1964, 1.442695
    %v1969 = vpow.pop %v1968
    %v1970 = vmul.f32 %v1965, 1.442695
    %v1971 = vpow.pop %v1970
    %v1972 = vadd.f32 %v1967, 1.0
    %v1973 = vadd.f32 %v1969, 1.0
    %v1974 = vadd.f32 %v1971, 1.0
    %v1975 = vrcp.pop %v1972
    %v1976 = vmul.f32 1.0, %v1975
    %v1977 = vrcp.pop %v1973
    %v1978 = vmul.f32 1.0, %v1977
    %v1979 = vrcp.pop %v1974
    %v1980 = vmul.f32 1.0, %v1979
    %v1981 = vtanh.pop %v1959
    %v1982 = vmul.f32 %v1978, %v1768
    %v1983 = vmul.f32 %v1976, %v1981
    %v1984 = vadd.f32 %v1982, %v1983
    %v1985 = vtanh.pop %v1984
    %v1986 = vmul.f32 %v1980, %v1985
    %s1987 = scalar_lea.vmem %s0, 20
    %v1988 = vld [vmem:[%s1987] sm:$0xf]
    %1989 = vmatprep.subr.bf16.mxu0 %v405
    %1990 = vmatpush1.bf16.msra.mxu0 %v404
    %1991 = vmatprep.subr.bf16.mxu0 %v401
    %1992 = vmatpush1.bf16.msra.mxu0 %v400
    %1993 = vmatprep.subr.bf16.mxu0 %v397
    %1994 = vmatpush1.bf16.msra.mxu0 %v396
    %1995 = vmatprep.subr.bf16.mxu0 %v393
    %1996 = vmatpush1.bf16.msra.mxu0 %v392
    %1997 = vmatprep.subr.bf16.mxu0 %v389
    %1998 = vmatpush1.bf16.msra.mxu0 %v388
    %1999 = vmatprep.subr.bf16.mxu0 %v385
    %2000 = vmatpush1.bf16.msra.mxu0 %v384
    %2001 = vmatprep.subr.bf16.mxu0 %v381
    %2002 = vmatpush1.bf16.msra.mxu0 %v380
    %2003 = vmatprep.subr.bf16.mxu0 %v377
    %2004 = vmatpush1.bf16.msra.mxu0 %v376
    %2005 = vmatprep.subr.bf16.mxu0 %v437
    %2006 = vmatpush2.bf16.msra.mxu0 %v436
    %2007 = vmatprep.subr.bf16.mxu0 %v433
    %2008 = vmatpush2.bf16.msra.mxu0 %v432
    %2009 = vmatprep.subr.bf16.mxu0 %v429
    %2010 = vmatpush2.bf16.msra.mxu0 %v428
    %2011 = vmatprep.subr.bf16.mxu0 %v425
    %2012 = vmatpush2.bf16.msra.mxu0 %v424
    %2013 = vmatprep.subr.bf16.mxu0 %v421
    %2014 = vmatpush2.bf16.msra.mxu0 %v420
    %2015 = vmatprep.subr.bf16.mxu0 %v417
    %2016 = vmatpush2.bf16.msra.mxu0 %v416
    %2017 = vmatprep.subr.bf16.mxu0 %v413
    %2018 = vmatpush2.bf16.msra.mxu0 %v412
    %2019 = vmatprep.subr.bf16.mxu0 %v409
    %2020 = vmatpush2.bf16.msra.mxu0 %v408
    %2021 = vmatprep.mubr.bf16.mxu0 %v1879
    %2022 = vmatmul.mubr.bf16.gmra.mxu0 %v1988
    %v2023 = vpop.f32.mrf.mxu0
    %v2024 = vadd.f32 %v167, %v2023
    %v2025 = vpop.f32.mrf.mxu0
    %v2026 = vadd.f32 %v171, %v2025
    %v2027 = vpop.f32.mrf.mxu0
    %v2028 = vpop.f32.mrf.mxu0
    %2029 = vdwg.mxu0
    %2030 = vmatprep.subr.bf16.mxu0 %v407
    %2031 = vmatpush1.bf16.msra.mxu0 %v406
    %2032 = vmatprep.subr.bf16.mxu0 %v403
    %2033 = vmatpush1.bf16.msra.mxu0 %v402
    %2034 = vmatprep.subr.bf16.mxu0 %v399
    %2035 = vmatpush1.bf16.msra.mxu0 %v398
    %2036 = vmatprep.subr.bf16.mxu0 %v395
    %2037 = vmatpush1.bf16.msra.mxu0 %v394
    %2038 = vmatprep.subr.bf16.mxu0 %v391
    %2039 = vmatpush1.bf16.msra.mxu0 %v390
    %2040 = vmatprep.subr.bf16.mxu0 %v387
    %2041 = vmatpush1.bf16.msra.mxu0 %v386
    %2042 = vmatprep.subr.bf16.mxu0 %v383
    %2043 = vmatpush1.bf16.msra.mxu0 %v382
    %2044 = vmatprep.subr.bf16.mxu0 %v379
    %2045 = vmatpush1.bf16.msra.mxu0 %v378
    %2046 = vmatprep.subr.bf16.mxu0 %v439
    %2047 = vmatpush2.bf16.msra.mxu0 %v438
    %2048 = vmatprep.subr.bf16.mxu0 %v435
    %2049 = vmatpush2.bf16.msra.mxu0 %v434
    %2050 = vmatprep.subr.bf16.mxu0 %v431
    %2051 = vmatpush2.bf16.msra.mxu0 %v430
    %2052 = vmatprep.subr.bf16.mxu0 %v427
    %2053 = vmatpush2.bf16.msra.mxu0 %v426
    %2054 = vmatprep.subr.bf16.mxu0 %v423
    %2055 = vmatpush2.bf16.msra.mxu0 %v422
    %2056 = vmatprep.subr.bf16.mxu0 %v419
    %2057 = vmatpush2.bf16.msra.mxu0 %v418
    %2058 = vmatprep.subr.bf16.mxu0 %v415
    %2059 = vmatpush2.bf16.msra.mxu0 %v414
    %2060 = vmatprep.subr.bf16.mxu0 %v411
    %2061 = vmatpush2.bf16.msra.mxu0 %v410
    %2062 = vmatprep.mubr.bf16.mxu0 %v1879
    %2063 = vmatmul.mubr.bf16.gmra.mxu0 %v1988
    %v2064 = vpop.f32.mrf.mxu0
    %v2065 = vadd.f32 %v175, %v2064
    %v2066 = vpop.f32.mrf.mxu0
    %v2067 = vadd.f32 %v179, %v2066
    %v2068 = vpop.f32.mrf.mxu0
    %v2069 = vpop.f32.mrf.mxu0
    %2070 = vdwg.mxu0
    %v2071 = vxor.u32 %v2024, 2147483648
    %v2072 = vxor.u32 %v2026, 2147483648
    %v2073 = vxor.u32 %v2065, 2147483648
    %v2074 = vmul.f32 %v2071, 1.442695
    %v2075 = vpow.pop %v2074
    %v2076 = vmul.f32 %v2072, 1.442695
    %v2077 = vpow.pop %v2076
    %v2078 = vmul.f32 %v2073, 1.442695
    %v2079 = vpow.pop %v2078
    %v2080 = vadd.f32 %v2075, 1.0
    %v2081 = vadd.f32 %v2077, 1.0
    %v2082 = vadd.f32 %v2079, 1.0
    %v2083 = vrcp.pop %v2080
    %v2084 = vmul.f32 1.0, %v2083
    %v2085 = vrcp.pop %v2081
    %v2086 = vmul.f32 1.0, %v2085
    %v2087 = vrcp.pop %v2082
    %v2088 = vmul.f32 1.0, %v2087
    %v2089 = vtanh.pop %v2067
    %v2090 = vmul.f32 %v2086, %v1876
    %v2091 = vmul.f32 %v2084, %v2089
    %v2092 = vadd.f32 %v2090, %v2091
    %v2093 = vtanh.pop %v2092
    %v2094 = vmul.f32 %v2088, %v2093
    %v2095 = vpack.c.bf16 %v2094, %v2094
    %v2096 = vpack.c.bf16 %v1986, %v1986
    %2097 = vmatprep.subr.bf16.mxu0 %v918
    %2098 = vmatpush1.bf16.msra.mxu0 %v917
    %2099 = vmatprep.subr.bf16.mxu0 %v914
    %2100 = vmatpush1.bf16.msra.mxu0 %v913
    %2101 = vmatprep.subr.bf16.mxu0 %v910
    %2102 = vmatpush1.bf16.msra.mxu0 %v909
    %2103 = vmatprep.subr.bf16.mxu0 %v906
    %2104 = vmatpush1.bf16.msra.mxu0 %v905
    %2105 = vmatprep.subr.bf16.mxu0 %v902
    %2106 = vmatpush1.bf16.msra.mxu0 %v901
    %2107 = vmatprep.subr.bf16.mxu0 %v898
    %2108 = vmatpush1.bf16.msra.mxu0 %v897
    %2109 = vmatprep.subr.bf16.mxu0 %v894
    %2110 = vmatpush1.bf16.msra.mxu0 %v893
    %2111 = vmatprep.subr.bf16.mxu0 %v890
    %2112 = vmatpush1.bf16.msra.mxu0 %v889
    %2113 = vmatprep.subr.bf16.mxu0 %v950
    %2114 = vmatpush2.bf16.msra.mxu0 %v949
    %2115 = vmatprep.subr.bf16.mxu0 %v946
    %2116 = vmatpush2.bf16.msra.mxu0 %v945
    %2117 = vmatprep.subr.bf16.mxu0 %v942
    %2118 = vmatpush2.bf16.msra.mxu0 %v941
    %2119 = vmatprep.subr.bf16.mxu0 %v938
    %2120 = vmatpush2.bf16.msra.mxu0 %v937
    %2121 = vmatprep.subr.bf16.mxu0 %v934
    %2122 = vmatpush2.bf16.msra.mxu0 %v933
    %2123 = vmatprep.subr.bf16.mxu0 %v930
    %2124 = vmatpush2.bf16.msra.mxu0 %v929
    %2125 = vmatprep.subr.bf16.mxu0 %v926
    %2126 = vmatpush2.bf16.msra.mxu0 %v925
    %2127 = vmatprep.subr.bf16.mxu0 %v922
    %2128 = vmatpush2.bf16.msra.mxu0 %v921
    %2129 = vmatprep.mubr.bf16.mxu0 %v2096
    %2130 = vmatmul.mubr.bf16.gmra.mxu0 %v2095
    %v2131 = vpop.f32.mrf.mxu0
    %v2132 = vadd.f32 %v680, %v2131
    %v2133 = vpop.f32.mrf.mxu0
    %v2134 = vadd.f32 %v684, %v2133
    %v2135 = vpop.f32.mrf.mxu0
    %v2136 = vpop.f32.mrf.mxu0
    %2137 = vdwg.mxu0
    %2138 = vmatprep.subr.bf16.mxu0 %v920
    %2139 = vmatpush1.bf16.msra.mxu0 %v919
    %2140 = vmatprep.subr.bf16.mxu0 %v916
    %2141 = vmatpush1.bf16.msra.mxu0 %v915
    %2142 = vmatprep.subr.bf16.mxu0 %v912
    %2143 = vmatpush1.bf16.msra.mxu0 %v911
    %2144 = vmatprep.subr.bf16.mxu0 %v908
    %2145 = vmatpush1.bf16.msra.mxu0 %v907
    %2146 = vmatprep.subr.bf16.mxu0 %v904
    %2147 = vmatpush1.bf16.msra.mxu0 %v903
    %2148 = vmatprep.subr.bf16.mxu0 %v900
    %2149 = vmatpush1.bf16.msra.mxu0 %v899
    %2150 = vmatprep.subr.bf16.mxu0 %v896
    %2151 = vmatpush1.bf16.msra.mxu0 %v895
    %2152 = vmatprep.subr.bf16.mxu0 %v892
    %2153 = vmatpush1.bf16.msra.mxu0 %v891
    %2154 = vmatprep.subr.bf16.mxu0 %v952
    %2155 = vmatpush2.bf16.msra.mxu0 %v951
    %2156 = vmatprep.subr.bf16.mxu0 %v948
    %2157 = vmatpush2.bf16.msra.mxu0 %v947
    %2158 = vmatprep.subr.bf16.mxu0 %v944
    %2159 = vmatpush2.bf16.msra.mxu0 %v943
    %2160 = vmatprep.subr.bf16.mxu0 %v940
    %2161 = vmatpush2.bf16.msra.mxu0 %v939
    %2162 = vmatprep.subr.bf16.mxu0 %v936
    %2163 = vmatpush2.bf16.msra.mxu0 %v935
    %2164 = vmatprep.subr.bf16.mxu0 %v932
    %2165 = vmatpush2.bf16.msra.mxu0 %v931
    %2166 = vmatprep.subr.bf16.mxu0 %v928
    %2167 = vmatpush2.bf16.msra.mxu0 %v927
    %2168 = vmatprep.subr.bf16.mxu0 %v924
    %2169 = vmatpush2.bf16.msra.mxu0 %v923
    %2170 = vmatprep.mubr.bf16.mxu0 %v2096
    %2171 = vmatmul.mubr.bf16.gmra.mxu0 %v2095
    %v2172 = vpop.f32.mrf.mxu0
    %v2173 = vadd.f32 %v688, %v2172
    %v2174 = vpop.f32.mrf.mxu0
    %v2175 = vadd.f32 %v692, %v2174
    %v2176 = vpop.f32.mrf.mxu0
    %v2177 = vpop.f32.mrf.mxu0
    %2178 = vdwg.mxu0
    %v2179 = vxor.u32 %v2132, 2147483648
    %v2180 = vxor.u32 %v2134, 2147483648
    %v2181 = vxor.u32 %v2173, 2147483648
    %v2182 = vmul.f32 %v2179, 1.442695
    %v2183 = vpow.pop %v2182
    %v2184 = vmul.f32 %v2180, 1.442695
    %v2185 = vpow.pop %v2184
    %v2186 = vmul.f32 %v2181, 1.442695
    %v2187 = vpow.pop %v2186
    %v2188 = vadd.f32 %v2183, 1.0
    %v2189 = vadd.f32 %v2185, 1.0
    %v2190 = vadd.f32 %v2187, 1.0
    %v2191 = vrcp.pop %v2188
    %v2192 = vmul.f32 1.0, %v2191
    %v2193 = vrcp.pop %v2189
    %v2194 = vmul.f32 1.0, %v2193
    %v2195 = vrcp.pop %v2190
    %v2196 = vmul.f32 1.0, %v2195
    %v2197 = vtanh.pop %v2175
    %v2198 = vmul.f32 %v2194, %v1984
    %v2199 = vmul.f32 %v2192, %v2197
    %v2200 = vadd.f32 %v2198, %v2199
    %v2201 = vtanh.pop %v2200
    %v2202 = vmul.f32 %v2196, %v2201
    %s2203 = scalar_lea.vmem %s0, 24
    %v2204 = vld [vmem:[%s2203] sm:$0xf]
    %2205 = vmatprep.subr.bf16.mxu0 %v405
    %2206 = vmatpush1.bf16.msra.mxu0 %v404
    %2207 = vmatprep.subr.bf16.mxu0 %v401
    %2208 = vmatpush1.bf16.msra.mxu0 %v400
    %2209 = vmatprep.subr.bf16.mxu0 %v397
    %2210 = vmatpush1.bf16.msra.mxu0 %v396
    %2211 = vmatprep.subr.bf16.mxu0 %v393
    %2212 = vmatpush1.bf16.msra.mxu0 %v392
    %2213 = vmatprep.subr.bf16.mxu0 %v389
    %2214 = vmatpush1.bf16.msra.mxu0 %v388
    %2215 = vmatprep.subr.bf16.mxu0 %v385
    %2216 = vmatpush1.bf16.msra.mxu0 %v384
    %2217 = vmatprep.subr.bf16.mxu0 %v381
    %2218 = vmatpush1.bf16.msra.mxu0 %v380
    %2219 = vmatprep.subr.bf16.mxu0 %v377
    %2220 = vmatpush1.bf16.msra.mxu0 %v376
    %2221 = vmatprep.subr.bf16.mxu0 %v437
    %2222 = vmatpush2.bf16.msra.mxu0 %v436
    %2223 = vmatprep.subr.bf16.mxu0 %v433
    %2224 = vmatpush2.bf16.msra.mxu0 %v432
    %2225 = vmatprep.subr.bf16.mxu0 %v429
    %2226 = vmatpush2.bf16.msra.mxu0 %v428
    %2227 = vmatprep.subr.bf16.mxu0 %v425
    %2228 = vmatpush2.bf16.msra.mxu0 %v424
    %2229 = vmatprep.subr.bf16.mxu0 %v421
    %2230 = vmatpush2.bf16.msra.mxu0 %v420
    %2231 = vmatprep.subr.bf16.mxu0 %v417
    %2232 = vmatpush2.bf16.msra.mxu0 %v416
    %2233 = vmatprep.subr.bf16.mxu0 %v413
    %2234 = vmatpush2.bf16.msra.mxu0 %v412
    %2235 = vmatprep.subr.bf16.mxu0 %v409
    %2236 = vmatpush2.bf16.msra.mxu0 %v408
    %2237 = vmatprep.mubr.bf16.mxu0 %v2095
    %2238 = vmatmul.mubr.bf16.gmra.mxu0 %v2204
    %v2239 = vpop.f32.mrf.mxu0
    %v2240 = vadd.f32 %v167, %v2239
    %v2241 = vpop.f32.mrf.mxu0
    %v2242 = vadd.f32 %v171, %v2241
    %v2243 = vpop.f32.mrf.mxu0
    %v2244 = vpop.f32.mrf.mxu0
    %2245 = vdwg.mxu0
    %2246 = vmatprep.subr.bf16.mxu0 %v407
    %2247 = vmatpush1.bf16.msra.mxu0 %v406
    %2248 = vmatprep.subr.bf16.mxu0 %v403
    %2249 = vmatpush1.bf16.msra.mxu0 %v402
    %2250 = vmatprep.subr.bf16.mxu0 %v399
    %2251 = vmatpush1.bf16.msra.mxu0 %v398
    %2252 = vmatprep.subr.bf16.mxu0 %v395
    %2253 = vmatpush1.bf16.msra.mxu0 %v394
    %2254 = vmatprep.subr.bf16.mxu0 %v391
    %2255 = vmatpush1.bf16.msra.mxu0 %v390
    %2256 = vmatprep.subr.bf16.mxu0 %v387
    %2257 = vmatpush1.bf16.msra.mxu0 %v386
    %2258 = vmatprep.subr.bf16.mxu0 %v383
    %2259 = vmatpush1.bf16.msra.mxu0 %v382
    %2260 = vmatprep.subr.bf16.mxu0 %v379
    %2261 = vmatpush1.bf16.msra.mxu0 %v378
    %2262 = vmatprep.subr.bf16.mxu0 %v439
    %2263 = vmatpush2.bf16.msra.mxu0 %v438
    %2264 = vmatprep.subr.bf16.mxu0 %v435
    %2265 = vmatpush2.bf16.msra.mxu0 %v434
    %2266 = vmatprep.subr.bf16.mxu0 %v431
    %2267 = vmatpush2.bf16.msra.mxu0 %v430
    %2268 = vmatprep.subr.bf16.mxu0 %v427
    %2269 = vmatpush2.bf16.msra.mxu0 %v426
    %2270 = vmatprep.subr.bf16.mxu0 %v423
    %2271 = vmatpush2.bf16.msra.mxu0 %v422
    %2272 = vmatprep.subr.bf16.mxu0 %v419
    %2273 = vmatpush2.bf16.msra.mxu0 %v418
    %2274 = vmatprep.subr.bf16.mxu0 %v415
    %2275 = vmatpush2.bf16.msra.mxu0 %v414
    %2276 = vmatprep.subr.bf16.mxu0 %v411
    %2277 = vmatpush2.bf16.msra.mxu0 %v410
    %2278 = vmatprep.mubr.bf16.mxu0 %v2095
    %2279 = vmatmul.mubr.bf16.gmra.mxu0 %v2204
    %v2280 = vpop.f32.mrf.mxu0
    %v2281 = vadd.f32 %v175, %v2280
    %v2282 = vpop.f32.mrf.mxu0
    %v2283 = vadd.f32 %v179, %v2282
    %v2284 = vpop.f32.mrf.mxu0
    %v2285 = vpop.f32.mrf.mxu0
    %2286 = vdwg.mxu0
    %v2287 = vxor.u32 %v2240, 2147483648
    %v2288 = vxor.u32 %v2242, 2147483648
    %v2289 = vxor.u32 %v2281, 2147483648
    %v2290 = vmul.f32 %v2287, 1.442695
    %v2291 = vpow.pop %v2290
    %v2292 = vmul.f32 %v2288, 1.442695
    %v2293 = vpow.pop %v2292
    %v2294 = vmul.f32 %v2289, 1.442695
    %v2295 = vpow.pop %v2294
    %v2296 = vadd.f32 %v2291, 1.0
    %v2297 = vadd.f32 %v2293, 1.0
    %v2298 = vadd.f32 %v2295, 1.0
    %v2299 = vrcp.pop %v2296
    %v2300 = vmul.f32 1.0, %v2299
    %v2301 = vrcp.pop %v2297
    %v2302 = vmul.f32 1.0, %v2301
    %v2303 = vrcp.pop %v2298
    %v2304 = vmul.f32 1.0, %v2303
    %v2305 = vtanh.pop %v2283
    %v2306 = vmul.f32 %v2302, %v2092
    %v2307 = vmul.f32 %v2300, %v2305
    %v2308 = vadd.f32 %v2306, %v2307
    %v2309 = vtanh.pop %v2308
    %v2310 = vmul.f32 %v2304, %v2309
    %v2311 = vpack.c.bf16 %v2310, %v2310
    %v2312 = vpack.c.bf16 %v2202, %v2202
    %2313 = vmatprep.subr.bf16.mxu0 %v918
    %2314 = vmatpush1.bf16.msra.mxu0 %v917
    %2315 = vmatprep.subr.bf16.mxu0 %v914
    %2316 = vmatpush1.bf16.msra.mxu0 %v913
    %2317 = vmatprep.subr.bf16.mxu0 %v910
    %2318 = vmatpush1.bf16.msra.mxu0 %v909
    %2319 = vmatprep.subr.bf16.mxu0 %v906
    %2320 = vmatpush1.bf16.msra.mxu0 %v905
    %2321 = vmatprep.subr.bf16.mxu0 %v902
    %2322 = vmatpush1.bf16.msra.mxu0 %v901
    %2323 = vmatprep.subr.bf16.mxu0 %v898
    %2324 = vmatpush1.bf16.msra.mxu0 %v897
    %2325 = vmatprep.subr.bf16.mxu0 %v894
    %2326 = vmatpush1.bf16.msra.mxu0 %v893
    %2327 = vmatprep.subr.bf16.mxu0 %v890
    %2328 = vmatpush1.bf16.msra.mxu0 %v889
    %2329 = vmatprep.subr.bf16.mxu0 %v950
    %2330 = vmatpush2.bf16.msra.mxu0 %v949
    %2331 = vmatprep.subr.bf16.mxu0 %v946
    %2332 = vmatpush2.bf16.msra.mxu0 %v945
    %2333 = vmatprep.subr.bf16.mxu0 %v942
    %2334 = vmatpush2.bf16.msra.mxu0 %v941
    %2335 = vmatprep.subr.bf16.mxu0 %v938
    %2336 = vmatpush2.bf16.msra.mxu0 %v937
    %2337 = vmatprep.subr.bf16.mxu0 %v934
    %2338 = vmatpush2.bf16.msra.mxu0 %v933
    %2339 = vmatprep.subr.bf16.mxu0 %v930
    %2340 = vmatpush2.bf16.msra.mxu0 %v929
    %2341 = vmatprep.subr.bf16.mxu0 %v926
    %2342 = vmatpush2.bf16.msra.mxu0 %v925
    %2343 = vmatprep.subr.bf16.mxu0 %v922
    %2344 = vmatpush2.bf16.msra.mxu0 %v921
    %2345 = vmatprep.mubr.bf16.mxu0 %v2312
    %2346 = vmatmul.mubr.bf16.gmra.mxu0 %v2311
    %v2347 = vpop.f32.mrf.mxu0
    %v2348 = vadd.f32 %v680, %v2347
    %v2349 = vpop.f32.mrf.mxu0
    %v2350 = vadd.f32 %v684, %v2349
    %v2351 = vpop.f32.mrf.mxu0
    %v2352 = vpop.f32.mrf.mxu0
    %2353 = vdwg.mxu0
    %2354 = vmatprep.subr.bf16.mxu0 %v920
    %2355 = vmatpush1.bf16.msra.mxu0 %v919
    %2356 = vmatprep.subr.bf16.mxu0 %v916
    %2357 = vmatpush1.bf16.msra.mxu0 %v915
    %2358 = vmatprep.subr.bf16.mxu0 %v912
    %2359 = vmatpush1.bf16.msra.mxu0 %v911
    %2360 = vmatprep.subr.bf16.mxu0 %v908
    %2361 = vmatpush1.bf16.msra.mxu0 %v907
    %2362 = vmatprep.subr.bf16.mxu0 %v904
    %2363 = vmatpush1.bf16.msra.mxu0 %v903
    %2364 = vmatprep.subr.bf16.mxu0 %v900
    %2365 = vmatpush1.bf16.msra.mxu0 %v899
    %2366 = vmatprep.subr.bf16.mxu0 %v896
    %2367 = vmatpush1.bf16.msra.mxu0 %v895
    %2368 = vmatprep.subr.bf16.mxu0 %v892
    %2369 = vmatpush1.bf16.msra.mxu0 %v891
    %2370 = vmatprep.subr.bf16.mxu0 %v952
    %2371 = vmatpush2.bf16.msra.mxu0 %v951
    %2372 = vmatprep.subr.bf16.mxu0 %v948
    %2373 = vmatpush2.bf16.msra.mxu0 %v947
    %2374 = vmatprep.subr.bf16.mxu0 %v944
    %2375 = vmatpush2.bf16.msra.mxu0 %v943
    %2376 = vmatprep.subr.bf16.mxu0 %v940
    %2377 = vmatpush2.bf16.msra.mxu0 %v939
    %2378 = vmatprep.subr.bf16.mxu0 %v936
    %2379 = vmatpush2.bf16.msra.mxu0 %v935
    %2380 = vmatprep.subr.bf16.mxu0 %v932
    %2381 = vmatpush2.bf16.msra.mxu0 %v931
    %2382 = vmatprep.subr.bf16.mxu0 %v928
    %2383 = vmatpush2.bf16.msra.mxu0 %v927
    %2384 = vmatprep.subr.bf16.mxu0 %v924
    %2385 = vmatpush2.bf16.msra.mxu0 %v923
    %2386 = vmatprep.mubr.bf16.mxu0 %v2312
    %2387 = vmatmul.mubr.bf16.gmra.mxu0 %v2311
    %v2388 = vpop.f32.mrf.mxu0
    %v2389 = vadd.f32 %v688, %v2388
    %v2390 = vpop.f32.mrf.mxu0
    %v2391 = vadd.f32 %v692, %v2390
    %v2392 = vpop.f32.mrf.mxu0
    %v2393 = vpop.f32.mrf.mxu0
    %2394 = vdwg.mxu0
    %v2395 = vxor.u32 %v2348, 2147483648
    %v2396 = vxor.u32 %v2350, 2147483648
    %v2397 = vxor.u32 %v2389, 2147483648
    %v2398 = vmul.f32 %v2395, 1.442695
    %v2399 = vpow.pop %v2398
    %v2400 = vmul.f32 %v2396, 1.442695
    %v2401 = vpow.pop %v2400
    %v2402 = vmul.f32 %v2397, 1.442695
    %v2403 = vpow.pop %v2402
    %v2404 = vadd.f32 %v2399, 1.0
    %v2405 = vadd.f32 %v2401, 1.0
    %v2406 = vadd.f32 %v2403, 1.0
    %v2407 = vrcp.pop %v2404
    %v2408 = vmul.f32 1.0, %v2407
    %v2409 = vrcp.pop %v2405
    %v2410 = vmul.f32 1.0, %v2409
    %v2411 = vrcp.pop %v2406
    %v2412 = vmul.f32 1.0, %v2411
    %v2413 = vtanh.pop %v2391
    %v2414 = vmul.f32 %v2410, %v2200
    %v2415 = vmul.f32 %v2408, %v2413
    %v2416 = vadd.f32 %v2414, %v2415
    %v2417 = vtanh.pop %v2416
    %v2418 = vmul.f32 %v2412, %v2417
    %s2419 = scalar_lea.vmem %s0, 28
    %v2420 = vld [vmem:[%s2419] sm:$0xf]
    %2421 = vmatprep.subr.bf16.mxu0 %v405
    %2422 = vmatpush1.bf16.msra.mxu0 %v404
    %2423 = vmatprep.subr.bf16.mxu0 %v401
    %2424 = vmatpush1.bf16.msra.mxu0 %v400
    %2425 = vmatprep.subr.bf16.mxu0 %v397
    %2426 = vmatpush1.bf16.msra.mxu0 %v396
    %2427 = vmatprep.subr.bf16.mxu0 %v393
    %2428 = vmatpush1.bf16.msra.mxu0 %v392
    %2429 = vmatprep.subr.bf16.mxu0 %v389
    %2430 = vmatpush1.bf16.msra.mxu0 %v388
    %2431 = vmatprep.subr.bf16.mxu0 %v385
    %2432 = vmatpush1.bf16.msra.mxu0 %v384
    %2433 = vmatprep.subr.bf16.mxu0 %v381
    %2434 = vmatpush1.bf16.msra.mxu0 %v380
    %2435 = vmatprep.subr.bf16.mxu0 %v377
    %2436 = vmatpush1.bf16.msra.mxu0 %v376
    %2437 = vmatprep.subr.bf16.mxu0 %v437
    %2438 = vmatpush2.bf16.msra.mxu0 %v436
    %2439 = vmatprep.subr.bf16.mxu0 %v433
    %2440 = vmatpush2.bf16.msra.mxu0 %v432
    %2441 = vmatprep.subr.bf16.mxu0 %v429
    %2442 = vmatpush2.bf16.msra.mxu0 %v428
    %2443 = vmatprep.subr.bf16.mxu0 %v425
    %2444 = vmatpush2.bf16.msra.mxu0 %v424
    %2445 = vmatprep.subr.bf16.mxu0 %v421
    %2446 = vmatpush2.bf16.msra.mxu0 %v420
    %2447 = vmatprep.subr.bf16.mxu0 %v417
    %2448 = vmatpush2.bf16.msra.mxu0 %v416
    %2449 = vmatprep.subr.bf16.mxu0 %v413
    %2450 = vmatpush2.bf16.msra.mxu0 %v412
    %2451 = vmatprep.subr.bf16.mxu0 %v409
    %2452 = vmatpush2.bf16.msra.mxu0 %v408
    %2453 = vmatprep.mubr.bf16.mxu0 %v2311
    %2454 = vmatmul.mubr.bf16.gmra.mxu0 %v2420
    %v2455 = vpop.f32.mrf.mxu0
    %v2456 = vadd.f32 %v167, %v2455
    %v2457 = vpop.f32.mrf.mxu0
    %v2458 = vadd.f32 %v171, %v2457
    %v2459 = vpop.f32.mrf.mxu0
    %v2460 = vpop.f32.mrf.mxu0
    %2461 = vdwg.mxu0
    %2462 = vmatprep.subr.bf16.mxu0 %v407
    %2463 = vmatpush1.bf16.msra.mxu0 %v406
    %2464 = vmatprep.subr.bf16.mxu0 %v403
    %2465 = vmatpush1.bf16.msra.mxu0 %v402
    %2466 = vmatprep.subr.bf16.mxu0 %v399
    %2467 = vmatpush1.bf16.msra.mxu0 %v398
    %2468 = vmatprep.subr.bf16.mxu0 %v395
    %2469 = vmatpush1.bf16.msra.mxu0 %v394
    %2470 = vmatprep.subr.bf16.mxu0 %v391
    %2471 = vmatpush1.bf16.msra.mxu0 %v390
    %2472 = vmatprep.subr.bf16.mxu0 %v387
    %2473 = vmatpush1.bf16.msra.mxu0 %v386
    %2474 = vmatprep.subr.bf16.mxu0 %v383
    %2475 = vmatpush1.bf16.msra.mxu0 %v382
    %2476 = vmatprep.subr.bf16.mxu0 %v379
    %2477 = vmatpush1.bf16.msra.mxu0 %v378
    %2478 = vmatprep.subr.bf16.mxu0 %v439
    %2479 = vmatpush2.bf16.msra.mxu0 %v438
    %2480 = vmatprep.subr.bf16.mxu0 %v435
    %2481 = vmatpush2.bf16.msra.mxu0 %v434
    %2482 = vmatprep.subr.bf16.mxu0 %v431
    %2483 = vmatpush2.bf16.msra.mxu0 %v430
    %2484 = vmatprep.subr.bf16.mxu0 %v427
    %2485 = vmatpush2.bf16.msra.mxu0 %v426
    %2486 = vmatprep.subr.bf16.mxu0 %v423
    %2487 = vmatpush2.bf16.msra.mxu0 %v422
    %2488 = vmatprep.subr.bf16.mxu0 %v419
    %2489 = vmatpush2.bf16.msra.mxu0 %v418
    %2490 = vmatprep.subr.bf16.mxu0 %v415
    %2491 = vmatpush2.bf16.msra.mxu0 %v414
    %2492 = vmatprep.subr.bf16.mxu0 %v411
    %2493 = vmatpush2.bf16.msra.mxu0 %v410
    %2494 = vmatprep.mubr.bf16.mxu0 %v2311
    %2495 = vmatmul.mubr.bf16.gmra.mxu0 %v2420
    %v2496 = vpop.f32.mrf.mxu0
    %v2497 = vadd.f32 %v175, %v2496
    %v2498 = vpop.f32.mrf.mxu0
    %v2499 = vadd.f32 %v179, %v2498
    %v2500 = vpop.f32.mrf.mxu0
    %v2501 = vpop.f32.mrf.mxu0
    %2502 = vdwg.mxu0
    %v2503 = vxor.u32 %v2456, 2147483648
    %v2504 = vxor.u32 %v2458, 2147483648
    %v2505 = vxor.u32 %v2497, 2147483648
    %v2506 = vmul.f32 %v2503, 1.442695
    %v2507 = vpow.pop %v2506
    %v2508 = vmul.f32 %v2504, 1.442695
    %v2509 = vpow.pop %v2508
    %v2510 = vmul.f32 %v2505, 1.442695
    %v2511 = vpow.pop %v2510
    %v2512 = vadd.f32 %v2507, 1.0
    %v2513 = vadd.f32 %v2509, 1.0
    %v2514 = vadd.f32 %v2511, 1.0
    %v2515 = vrcp.pop %v2512
    %v2516 = vmul.f32 1.0, %v2515
    %v2517 = vrcp.pop %v2513
    %v2518 = vmul.f32 1.0, %v2517
    %v2519 = vrcp.pop %v2514
    %v2520 = vmul.f32 1.0, %v2519
    %v2521 = vtanh.pop %v2499
    %v2522 = vmul.f32 %v2518, %v2308
    %v2523 = vmul.f32 %v2516, %v2521
    %v2524 = vadd.f32 %v2522, %v2523
    %v2525 = vtanh.pop %v2524
    %v2526 = vmul.f32 %v2520, %v2525
    %v2527 = vpack.c.bf16 %v2526, %v2526
    %v2528 = vpack.c.bf16 %v2418, %v2418
    %2529 = vmatprep.subr.bf16.mxu0 %v918
    %2530 = vmatpush1.bf16.msra.mxu0 %v917
    %2531 = vmatprep.subr.bf16.mxu0 %v914
    %2532 = vmatpush1.bf16.msra.mxu0 %v913
    %2533 = vmatprep.subr.bf16.mxu0 %v910
    %2534 = vmatpush1.bf16.msra.mxu0 %v909
    %2535 = vmatprep.subr.bf16.mxu0 %v906
    %2536 = vmatpush1.bf16.msra.mxu0 %v905
    %2537 = vmatprep.subr.bf16.mxu0 %v902
    %2538 = vmatpush1.bf16.msra.mxu0 %v901
    %2539 = vmatprep.subr.bf16.mxu0 %v898
    %2540 = vmatpush1.bf16.msra.mxu0 %v897
    %2541 = vmatprep.subr.bf16.mxu0 %v894
    %2542 = vmatpush1.bf16.msra.mxu0 %v893
    %2543 = vmatprep.subr.bf16.mxu0 %v890
    %2544 = vmatpush1.bf16.msra.mxu0 %v889
    %2545 = vmatprep.subr.bf16.mxu0 %v950
    %2546 = vmatpush2.bf16.msra.mxu0 %v949
    %2547 = vmatprep.subr.bf16.mxu0 %v946
    %2548 = vmatpush2.bf16.msra.mxu0 %v945
    %2549 = vmatprep.subr.bf16.mxu0 %v942
    %2550 = vmatpush2.bf16.msra.mxu0 %v941
    %2551 = vmatprep.subr.bf16.mxu0 %v938
    %2552 = vmatpush2.bf16.msra.mxu0 %v937
    %2553 = vmatprep.subr.bf16.mxu0 %v934
    %2554 = vmatpush2.bf16.msra.mxu0 %v933
    %2555 = vmatprep.subr.bf16.mxu0 %v930
    %2556 = vmatpush2.bf16.msra.mxu0 %v929
    %2557 = vmatprep.subr.bf16.mxu0 %v926
    %2558 = vmatpush2.bf16.msra.mxu0 %v925
    %2559 = vmatprep.subr.bf16.mxu0 %v922
    %2560 = vmatpush2.bf16.msra.mxu0 %v921
    %2561 = vmatprep.mubr.bf16.mxu0 %v2528
    %2562 = vmatmul.mubr.bf16.gmra.mxu0 %v2527
    %v2563 = vpop.f32.mrf.mxu0
    %v2564 = vadd.f32 %v680, %v2563
    %v2565 = vpop.f32.mrf.mxu0
    %v2566 = vadd.f32 %v684, %v2565
    %v2567 = vpop.f32.mrf.mxu0
    %v2568 = vpop.f32.mrf.mxu0
    %2569 = vdwg.mxu0
    %2570 = vmatprep.subr.bf16.mxu0 %v920
    %2571 = vmatpush1.bf16.msra.mxu0 %v919
    %2572 = vmatprep.subr.bf16.mxu0 %v916
    %2573 = vmatpush1.bf16.msra.mxu0 %v915
    %2574 = vmatprep.subr.bf16.mxu0 %v912
    %2575 = vmatpush1.bf16.msra.mxu0 %v911
    %2576 = vmatprep.subr.bf16.mxu0 %v908
    %2577 = vmatpush1.bf16.msra.mxu0 %v907
    %2578 = vmatprep.subr.bf16.mxu0 %v904
    %2579 = vmatpush1.bf16.msra.mxu0 %v903
    %2580 = vmatprep.subr.bf16.mxu0 %v900
    %2581 = vmatpush1.bf16.msra.mxu0 %v899
    %2582 = vmatprep.subr.bf16.mxu0 %v896
    %2583 = vmatpush1.bf16.msra.mxu0 %v895
    %2584 = vmatprep.subr.bf16.mxu0 %v892
    %2585 = vmatpush1.bf16.msra.mxu0 %v891
    %2586 = vmatprep.subr.bf16.mxu0 %v952
    %2587 = vmatpush2.bf16.msra.mxu0 %v951
    %2588 = vmatprep.subr.bf16.mxu0 %v948
    %2589 = vmatpush2.bf16.msra.mxu0 %v947
    %2590 = vmatprep.subr.bf16.mxu0 %v944
    %2591 = vmatpush2.bf16.msra.mxu0 %v943
    %2592 = vmatprep.subr.bf16.mxu0 %v940
    %2593 = vmatpush2.bf16.msra.mxu0 %v939
    %2594 = vmatprep.subr.bf16.mxu0 %v936
    %2595 = vmatpush2.bf16.msra.mxu0 %v935
    %2596 = vmatprep.subr.bf16.mxu0 %v932
    %2597 = vmatpush2.bf16.msra.mxu0 %v931
    %2598 = vmatprep.subr.bf16.mxu0 %v928
    %2599 = vmatpush2.bf16.msra.mxu0 %v927
    %2600 = vmatprep.subr.bf16.mxu0 %v924
    %2601 = vmatpush2.bf16.msra.mxu0 %v923
    %2602 = vmatprep.mubr.bf16.mxu0 %v2528
    %2603 = vmatmul.mubr.bf16.gmra.mxu0 %v2527
    %v2604 = vpop.f32.mrf.mxu0
    %v2605 = vadd.f32 %v688, %v2604
    %v2606 = vpop.f32.mrf.mxu0
    %v2607 = vadd.f32 %v692, %v2606
    %v2608 = vpop.f32.mrf.mxu0
    %v2609 = vpop.f32.mrf.mxu0
    %2610 = vdwg.mxu0
    %v2611 = vxor.u32 %v2564, 2147483648
    %v2612 = vxor.u32 %v2566, 2147483648
    %v2613 = vxor.u32 %v2605, 2147483648
    %v2614 = vmul.f32 %v2611, 1.442695
    %v2615 = vpow.pop %v2614
    %v2616 = vmul.f32 %v2612, 1.442695
    %v2617 = vpow.pop %v2616
    %v2618 = vmul.f32 %v2613, 1.442695
    %v2619 = vpow.pop %v2618
    %v2620 = vadd.f32 %v2615, 1.0
    %v2621 = vadd.f32 %v2617, 1.0
    %v2622 = vadd.f32 %v2619, 1.0
    %v2623 = vrcp.pop %v2620
    %v2624 = vmul.f32 1.0, %v2623
    %v2625 = vrcp.pop %v2621
    %v2626 = vmul.f32 1.0, %v2625
    %v2627 = vrcp.pop %v2622
    %v2628 = vmul.f32 1.0, %v2627
    %v2629 = vtanh.pop %v2607
    %v2630 = vmul.f32 %v2626, %v2416
    %v2631 = vmul.f32 %v2624, %v2629
    %v2632 = vadd.f32 %v2630, %v2631
    %v2633 = vtanh.pop %v2632
    %v2634 = vmul.f32 %v2628, %v2633
    %s2635 = scalar_lea.vmem %s0, 32
    %v2636 = vld [vmem:[%s2635] sm:$0xf]
    %2637 = vmatprep.subr.bf16.mxu0 %v405
    %2638 = vmatpush1.bf16.msra.mxu0 %v404
    %2639 = vmatprep.subr.bf16.mxu0 %v401
    %2640 = vmatpush1.bf16.msra.mxu0 %v400
    %2641 = vmatprep.subr.bf16.mxu0 %v397
    %2642 = vmatpush1.bf16.msra.mxu0 %v396
    %2643 = vmatprep.subr.bf16.mxu0 %v393
    %2644 = vmatpush1.bf16.msra.mxu0 %v392
    %2645 = vmatprep.subr.bf16.mxu0 %v389
    %2646 = vmatpush1.bf16.msra.mxu0 %v388
    %2647 = vmatprep.subr.bf16.mxu0 %v385
    %2648 = vmatpush1.bf16.msra.mxu0 %v384
    %2649 = vmatprep.subr.bf16.mxu0 %v381
    %2650 = vmatpush1.bf16.msra.mxu0 %v380
    %2651 = vmatprep.subr.bf16.mxu0 %v377
    %2652 = vmatpush1.bf16.msra.mxu0 %v376
    %2653 = vmatprep.subr.bf16.mxu0 %v437
    %2654 = vmatpush2.bf16.msra.mxu0 %v436
    %2655 = vmatprep.subr.bf16.mxu0 %v433
    %2656 = vmatpush2.bf16.msra.mxu0 %v432
    %2657 = vmatprep.subr.bf16.mxu0 %v429
    %2658 = vmatpush2.bf16.msra.mxu0 %v428
    %2659 = vmatprep.subr.bf16.mxu0 %v425
    %2660 = vmatpush2.bf16.msra.mxu0 %v424
    %2661 = vmatprep.subr.bf16.mxu0 %v421
    %2662 = vmatpush2.bf16.msra.mxu0 %v420
    %2663 = vmatprep.subr.bf16.mxu0 %v417
    %2664 = vmatpush2.bf16.msra.mxu0 %v416
    %2665 = vmatprep.subr.bf16.mxu0 %v413
    %2666 = vmatpush2.bf16.msra.mxu0 %v412
    %2667 = vmatprep.subr.bf16.mxu0 %v409
    %2668 = vmatpush2.bf16.msra.mxu0 %v408
    %2669 = vmatprep.mubr.bf16.mxu0 %v2527
    %2670 = vmatmul.mubr.bf16.gmra.mxu0 %v2636
    %v2671 = vpop.f32.mrf.mxu0
    %v2672 = vadd.f32 %v167, %v2671
    %v2673 = vpop.f32.mrf.mxu0
    %v2674 = vadd.f32 %v171, %v2673
    %v2675 = vpop.f32.mrf.mxu0
    %v2676 = vpop.f32.mrf.mxu0
    %2677 = vdwg.mxu0
    %2678 = vmatprep.subr.bf16.mxu0 %v407
    %2679 = vmatpush1.bf16.msra.mxu0 %v406
    %2680 = vmatprep.subr.bf16.mxu0 %v403
    %2681 = vmatpush1.bf16.msra.mxu0 %v402
    %2682 = vmatprep.subr.bf16.mxu0 %v399
    %2683 = vmatpush1.bf16.msra.mxu0 %v398
    %2684 = vmatprep.subr.bf16.mxu0 %v395
    %2685 = vmatpush1.bf16.msra.mxu0 %v394
    %2686 = vmatprep.subr.bf16.mxu0 %v391
    %2687 = vmatpush1.bf16.msra.mxu0 %v390
    %2688 = vmatprep.subr.bf16.mxu0 %v387
    %2689 = vmatpush1.bf16.msra.mxu0 %v386
    %2690 = vmatprep.subr.bf16.mxu0 %v383
    %2691 = vmatpush1.bf16.msra.mxu0 %v382
    %2692 = vmatprep.subr.bf16.mxu0 %v379
    %2693 = vmatpush1.bf16.msra.mxu0 %v378
    %2694 = vmatprep.subr.bf16.mxu0 %v439
    %2695 = vmatpush2.bf16.msra.mxu0 %v438
    %2696 = vmatprep.subr.bf16.mxu0 %v435
    %2697 = vmatpush2.bf16.msra.mxu0 %v434
    %2698 = vmatprep.subr.bf16.mxu0 %v431
    %2699 = vmatpush2.bf16.msra.mxu0 %v430
    %2700 = vmatprep.subr.bf16.mxu0 %v427
    %2701 = vmatpush2.bf16.msra.mxu0 %v426
    %2702 = vmatprep.subr.bf16.mxu0 %v423
    %2703 = vmatpush2.bf16.msra.mxu0 %v422
    %2704 = vmatprep.subr.bf16.mxu0 %v419
    %2705 = vmatpush2.bf16.msra.mxu0 %v418
    %2706 = vmatprep.subr.bf16.mxu0 %v415
    %2707 = vmatpush2.bf16.msra.mxu0 %v414
    %2708 = vmatprep.subr.bf16.mxu0 %v411
    %2709 = vmatpush2.bf16.msra.mxu0 %v410
    %2710 = vmatprep.mubr.bf16.mxu0 %v2527
    %2711 = vmatmul.mubr.bf16.gmra.mxu0 %v2636
    %v2712 = vpop.f32.mrf.mxu0
    %v2713 = vadd.f32 %v175, %v2712
    %v2714 = vpop.f32.mrf.mxu0
    %v2715 = vadd.f32 %v179, %v2714
    %v2716 = vpop.f32.mrf.mxu0
    %v2717 = vpop.f32.mrf.mxu0
    %2718 = vdwg.mxu0
    %v2719 = vxor.u32 %v2672, 2147483648
    %v2720 = vxor.u32 %v2674, 2147483648
    %v2721 = vxor.u32 %v2713, 2147483648
    %v2722 = vmul.f32 %v2719, 1.442695
    %v2723 = vpow.pop %v2722
    %v2724 = vmul.f32 %v2720, 1.442695
    %v2725 = vpow.pop %v2724
    %v2726 = vmul.f32 %v2721, 1.442695
    %v2727 = vpow.pop %v2726
    %v2728 = vadd.f32 %v2723, 1.0
    %v2729 = vadd.f32 %v2725, 1.0
    %v2730 = vadd.f32 %v2727, 1.0
    %v2731 = vrcp.pop %v2728
    %v2732 = vmul.f32 1.0, %v2731
    %v2733 = vrcp.pop %v2729
    %v2734 = vmul.f32 1.0, %v2733
    %v2735 = vrcp.pop %v2730
    %v2736 = vmul.f32 1.0, %v2735
    %v2737 = vtanh.pop %v2715
    %v2738 = vmul.f32 %v2734, %v2524
    %v2739 = vmul.f32 %v2732, %v2737
    %v2740 = vadd.f32 %v2738, %v2739
    %v2741 = vtanh.pop %v2740
    %v2742 = vmul.f32 %v2736, %v2741
    %v2743 = vpack.c.bf16 %v2742, %v2742
    %v2744 = vpack.c.bf16 %v2634, %v2634
    %2745 = vmatprep.subr.bf16.mxu0 %v918
    %2746 = vmatpush1.bf16.msra.mxu0 %v917
    %2747 = vmatprep.subr.bf16.mxu0 %v914
    %2748 = vmatpush1.bf16.msra.mxu0 %v913
    %2749 = vmatprep.subr.bf16.mxu0 %v910
    %2750 = vmatpush1.bf16.msra.mxu0 %v909
    %2751 = vmatprep.subr.bf16.mxu0 %v906
    %2752 = vmatpush1.bf16.msra.mxu0 %v905
    %2753 = vmatprep.subr.bf16.mxu0 %v902
    %2754 = vmatpush1.bf16.msra.mxu0 %v901
    %2755 = vmatprep.subr.bf16.mxu0 %v898
    %2756 = vmatpush1.bf16.msra.mxu0 %v897
    %2757 = vmatprep.subr.bf16.mxu0 %v894
    %2758 = vmatpush1.bf16.msra.mxu0 %v893
    %2759 = vmatprep.subr.bf16.mxu0 %v890
    %2760 = vmatpush1.bf16.msra.mxu0 %v889
    %2761 = vmatprep.subr.bf16.mxu0 %v950
    %2762 = vmatpush2.bf16.msra.mxu0 %v949
    %2763 = vmatprep.subr.bf16.mxu0 %v946
    %2764 = vmatpush2.bf16.msra.mxu0 %v945
    %2765 = vmatprep.subr.bf16.mxu0 %v942
    %2766 = vmatpush2.bf16.msra.mxu0 %v941
    %2767 = vmatprep.subr.bf16.mxu0 %v938
    %2768 = vmatpush2.bf16.msra.mxu0 %v937
    %2769 = vmatprep.subr.bf16.mxu0 %v934
    %2770 = vmatpush2.bf16.msra.mxu0 %v933
    %2771 = vmatprep.subr.bf16.mxu0 %v930
    %2772 = vmatpush2.bf16.msra.mxu0 %v929
    %2773 = vmatprep.subr.bf16.mxu0 %v926
    %2774 = vmatpush2.bf16.msra.mxu0 %v925
    %2775 = vmatprep.subr.bf16.mxu0 %v922
    %2776 = vmatpush2.bf16.msra.mxu0 %v921
    %2777 = vmatprep.mubr.bf16.mxu0 %v2744
    %2778 = vmatmul.mubr.bf16.gmra.mxu0 %v2743
    %v2779 = vpop.f32.mrf.mxu0
    %v2780 = vadd.f32 %v680, %v2779
    %v2781 = vpop.f32.mrf.mxu0
    %v2782 = vadd.f32 %v684, %v2781
    %v2783 = vpop.f32.mrf.mxu0
    %v2784 = vpop.f32.mrf.mxu0
    %2785 = vdwg.mxu0
    %2786 = vmatprep.subr.bf16.mxu0 %v920
    %2787 = vmatpush1.bf16.msra.mxu0 %v919
    %2788 = vmatprep.subr.bf16.mxu0 %v916
    %2789 = vmatpush1.bf16.msra.mxu0 %v915
    %2790 = vmatprep.subr.bf16.mxu0 %v912
    %2791 = vmatpush1.bf16.msra.mxu0 %v911
    %2792 = vmatprep.subr.bf16.mxu0 %v908
    %2793 = vmatpush1.bf16.msra.mxu0 %v907
    %2794 = vmatprep.subr.bf16.mxu0 %v904
    %2795 = vmatpush1.bf16.msra.mxu0 %v903
    %2796 = vmatprep.subr.bf16.mxu0 %v900
    %2797 = vmatpush1.bf16.msra.mxu0 %v899
    %2798 = vmatprep.subr.bf16.mxu0 %v896
    %2799 = vmatpush1.bf16.msra.mxu0 %v895
    %2800 = vmatprep.subr.bf16.mxu0 %v892
    %2801 = vmatpush1.bf16.msra.mxu0 %v891
    %2802 = vmatprep.subr.bf16.mxu0 %v952
    %2803 = vmatpush2.bf16.msra.mxu0 %v951
    %2804 = vmatprep.subr.bf16.mxu0 %v948
    %2805 = vmatpush2.bf16.msra.mxu0 %v947
    %2806 = vmatprep.subr.bf16.mxu0 %v944
    %2807 = vmatpush2.bf16.msra.mxu0 %v943
    %2808 = vmatprep.subr.bf16.mxu0 %v940
    %2809 = vmatpush2.bf16.msra.mxu0 %v939
    %2810 = vmatprep.subr.bf16.mxu0 %v936
    %2811 = vmatpush2.bf16.msra.mxu0 %v935
    %2812 = vmatprep.subr.bf16.mxu0 %v932
    %2813 = vmatpush2.bf16.msra.mxu0 %v931
    %2814 = vmatprep.subr.bf16.mxu0 %v928
    %2815 = vmatpush2.bf16.msra.mxu0 %v927
    %2816 = vmatprep.subr.bf16.mxu0 %v924
    %2817 = vmatpush2.bf16.msra.mxu0 %v923
    %2818 = vmatprep.mubr.bf16.mxu0 %v2744
    %2819 = vmatmul.mubr.bf16.gmra.mxu0 %v2743
    %v2820 = vpop.f32.mrf.mxu0
    %v2821 = vadd.f32 %v688, %v2820
    %v2822 = vpop.f32.mrf.mxu0
    %v2823 = vadd.f32 %v692, %v2822
    %v2824 = vpop.f32.mrf.mxu0
    %v2825 = vpop.f32.mrf.mxu0
    %2826 = vdwg.mxu0
    %v2827 = vxor.u32 %v2780, 2147483648
    %v2828 = vxor.u32 %v2782, 2147483648
    %v2829 = vxor.u32 %v2821, 2147483648
    %v2830 = vmul.f32 %v2827, 1.442695
    %v2831 = vpow.pop %v2830
    %v2832 = vmul.f32 %v2828, 1.442695
    %v2833 = vpow.pop %v2832
    %v2834 = vmul.f32 %v2829, 1.442695
    %v2835 = vpow.pop %v2834
    %v2836 = vadd.f32 %v2831, 1.0
    %v2837 = vadd.f32 %v2833, 1.0
    %v2838 = vadd.f32 %v2835, 1.0
    %v2839 = vrcp.pop %v2836
    %v2840 = vmul.f32 1.0, %v2839
    %v2841 = vrcp.pop %v2837
    %v2842 = vmul.f32 1.0, %v2841
    %v2843 = vrcp.pop %v2838
    %v2844 = vmul.f32 1.0, %v2843
    %v2845 = vtanh.pop %v2823
    %v2846 = vmul.f32 %v2842, %v2632
    %v2847 = vmul.f32 %v2840, %v2845
    %v2848 = vadd.f32 %v2846, %v2847
    %v2849 = vtanh.pop %v2848
    %v2850 = vmul.f32 %v2844, %v2849
    %s2851 = scalar_lea.vmem %s0, 36
    %v2852 = vld [vmem:[%s2851] sm:$0xf]
    %2853 = vmatprep.subr.bf16.mxu0 %v405
    %2854 = vmatpush1.bf16.msra.mxu0 %v404
    %2855 = vmatprep.subr.bf16.mxu0 %v401
    %2856 = vmatpush1.bf16.msra.mxu0 %v400
    %2857 = vmatprep.subr.bf16.mxu0 %v397
    %2858 = vmatpush1.bf16.msra.mxu0 %v396
    %2859 = vmatprep.subr.bf16.mxu0 %v393
    %2860 = vmatpush1.bf16.msra.mxu0 %v392
    %2861 = vmatprep.subr.bf16.mxu0 %v389
    %2862 = vmatpush1.bf16.msra.mxu0 %v388
    %2863 = vmatprep.subr.bf16.mxu0 %v385
    %2864 = vmatpush1.bf16.msra.mxu0 %v384
    %2865 = vmatprep.subr.bf16.mxu0 %v381
    %2866 = vmatpush1.bf16.msra.mxu0 %v380
    %2867 = vmatprep.subr.bf16.mxu0 %v377
    %2868 = vmatpush1.bf16.msra.mxu0 %v376
    %2869 = vmatprep.subr.bf16.mxu0 %v437
    %2870 = vmatpush2.bf16.msra.mxu0 %v436
    %2871 = vmatprep.subr.bf16.mxu0 %v433
    %2872 = vmatpush2.bf16.msra.mxu0 %v432
    %2873 = vmatprep.subr.bf16.mxu0 %v429
    %2874 = vmatpush2.bf16.msra.mxu0 %v428
    %2875 = vmatprep.subr.bf16.mxu0 %v425
    %2876 = vmatpush2.bf16.msra.mxu0 %v424
    %2877 = vmatprep.subr.bf16.mxu0 %v421
    %2878 = vmatpush2.bf16.msra.mxu0 %v420
    %2879 = vmatprep.subr.bf16.mxu0 %v417
    %2880 = vmatpush2.bf16.msra.mxu0 %v416
    %2881 = vmatprep.subr.bf16.mxu0 %v413
    %2882 = vmatpush2.bf16.msra.mxu0 %v412
    %2883 = vmatprep.subr.bf16.mxu0 %v409
    %2884 = vmatpush2.bf16.msra.mxu0 %v408
    %2885 = vmatprep.mubr.bf16.mxu0 %v2743
    %2886 = vmatmul.mubr.bf16.gmra.mxu0 %v2852
    %v2887 = vpop.f32.mrf.mxu0
    %v2888 = vadd.f32 %v167, %v2887
    %v2889 = vpop.f32.mrf.mxu0
    %v2890 = vadd.f32 %v171, %v2889
    %v2891 = vpop.f32.mrf.mxu0
    %v2892 = vpop.f32.mrf.mxu0
    %2893 = vdwg.mxu0
    %2894 = vmatprep.subr.bf16.mxu0 %v407
    %2895 = vmatpush1.bf16.msra.mxu0 %v406
    %2896 = vmatprep.subr.bf16.mxu0 %v403
    %2897 = vmatpush1.bf16.msra.mxu0 %v402
    %2898 = vmatprep.subr.bf16.mxu0 %v399
    %2899 = vmatpush1.bf16.msra.mxu0 %v398
    %2900 = vmatprep.subr.bf16.mxu0 %v395
    %2901 = vmatpush1.bf16.msra.mxu0 %v394
    %2902 = vmatprep.subr.bf16.mxu0 %v391
    %2903 = vmatpush1.bf16.msra.mxu0 %v390
    %2904 = vmatprep.subr.bf16.mxu0 %v387
    %2905 = vmatpush1.bf16.msra.mxu0 %v386
    %2906 = vmatprep.subr.bf16.mxu0 %v383
    %2907 = vmatpush1.bf16.msra.mxu0 %v382
    %2908 = vmatprep.subr.bf16.mxu0 %v379
    %2909 = vmatpush1.bf16.msra.mxu0 %v378
    %2910 = vmatprep.subr.bf16.mxu0 %v439
    %2911 = vmatpush2.bf16.msra.mxu0 %v438
    %2912 = vmatprep.subr.bf16.mxu0 %v435
    %2913 = vmatpush2.bf16.msra.mxu0 %v434
    %2914 = vmatprep.subr.bf16.mxu0 %v431
    %2915 = vmatpush2.bf16.msra.mxu0 %v430
    %2916 = vmatprep.subr.bf16.mxu0 %v427
    %2917 = vmatpush2.bf16.msra.mxu0 %v426
    %2918 = vmatprep.subr.bf16.mxu0 %v423
    %2919 = vmatpush2.bf16.msra.mxu0 %v422
    %2920 = vmatprep.subr.bf16.mxu0 %v419
    %2921 = vmatpush2.bf16.msra.mxu0 %v418
    %2922 = vmatprep.subr.bf16.mxu0 %v415
    %2923 = vmatpush2.bf16.msra.mxu0 %v414
    %2924 = vmatprep.subr.bf16.mxu0 %v411
    %2925 = vmatpush2.bf16.msra.mxu0 %v410
    %2926 = vmatprep.mubr.bf16.mxu0 %v2743
    %2927 = vmatmul.mubr.bf16.gmra.mxu0 %v2852
    %v2928 = vpop.f32.mrf.mxu0
    %v2929 = vadd.f32 %v175, %v2928
    %v2930 = vpop.f32.mrf.mxu0
    %v2931 = vadd.f32 %v179, %v2930
    %v2932 = vpop.f32.mrf.mxu0
    %v2933 = vpop.f32.mrf.mxu0
    %2934 = vdwg.mxu0
    %v2935 = vxor.u32 %v2888, 2147483648
    %v2936 = vxor.u32 %v2890, 2147483648
    %v2937 = vxor.u32 %v2929, 2147483648
    %v2938 = vmul.f32 %v2935, 1.442695
    %v2939 = vpow.pop %v2938
    %v2940 = vmul.f32 %v2936, 1.442695
    %v2941 = vpow.pop %v2940
    %v2942 = vmul.f32 %v2937, 1.442695
    %v2943 = vpow.pop %v2942
    %v2944 = vadd.f32 %v2939, 1.0
    %v2945 = vadd.f32 %v2941, 1.0
    %v2946 = vadd.f32 %v2943, 1.0
    %v2947 = vrcp.pop %v2944
    %v2948 = vmul.f32 1.0, %v2947
    %v2949 = vrcp.pop %v2945
    %v2950 = vmul.f32 1.0, %v2949
    %v2951 = vrcp.pop %v2946
    %v2952 = vmul.f32 1.0, %v2951
    %v2953 = vtanh.pop %v2931
    %v2954 = vmul.f32 %v2950, %v2740
    %v2955 = vmul.f32 %v2948, %v2953
    %v2956 = vadd.f32 %v2954, %v2955
    %v2957 = vtanh.pop %v2956
    %v2958 = vmul.f32 %v2952, %v2957
    %v2959 = vpack.c.bf16 %v2958, %v2958
    %v2960 = vpack.c.bf16 %v2850, %v2850
    %2961 = vmatprep.subr.bf16.mxu0 %v918
    %2962 = vmatpush1.bf16.msra.mxu0 %v917
    %2963 = vmatprep.subr.bf16.mxu0 %v914
    %2964 = vmatpush1.bf16.msra.mxu0 %v913
    %2965 = vmatprep.subr.bf16.mxu0 %v910
    %2966 = vmatpush1.bf16.msra.mxu0 %v909
    %2967 = vmatprep.subr.bf16.mxu0 %v906
    %2968 = vmatpush1.bf16.msra.mxu0 %v905
    %2969 = vmatprep.subr.bf16.mxu0 %v902
    %2970 = vmatpush1.bf16.msra.mxu0 %v901
    %2971 = vmatprep.subr.bf16.mxu0 %v898
    %2972 = vmatpush1.bf16.msra.mxu0 %v897
    %2973 = vmatprep.subr.bf16.mxu0 %v894
    %2974 = vmatpush1.bf16.msra.mxu0 %v893
    %2975 = vmatprep.subr.bf16.mxu0 %v890
    %2976 = vmatpush1.bf16.msra.mxu0 %v889
    %2977 = vmatprep.subr.bf16.mxu0 %v950
    %2978 = vmatpush2.bf16.msra.mxu0 %v949
    %2979 = vmatprep.subr.bf16.mxu0 %v946
    %2980 = vmatpush2.bf16.msra.mxu0 %v945
    %2981 = vmatprep.subr.bf16.mxu0 %v942
    %2982 = vmatpush2.bf16.msra.mxu0 %v941
    %2983 = vmatprep.subr.bf16.mxu0 %v938
    %2984 = vmatpush2.bf16.msra.mxu0 %v937
    %2985 = vmatprep.subr.bf16.mxu0 %v934
    %2986 = vmatpush2.bf16.msra.mxu0 %v933
    %2987 = vmatprep.subr.bf16.mxu0 %v930
    %2988 = vmatpush2.bf16.msra.mxu0 %v929
    %2989 = vmatprep.subr.bf16.mxu0 %v926
    %2990 = vmatpush2.bf16.msra.mxu0 %v925
    %2991 = vmatprep.subr.bf16.mxu0 %v922
    %2992 = vmatpush2.bf16.msra.mxu0 %v921
    %2993 = vmatprep.mubr.bf16.mxu0 %v2960
    %2994 = vmatmul.mubr.bf16.gmra.mxu0 %v2959
    %v2995 = vpop.f32.mrf.mxu0
    %v2996 = vadd.f32 %v680, %v2995
    %v2997 = vpop.f32.mrf.mxu0
    %v2998 = vadd.f32 %v684, %v2997
    %v2999 = vpop.f32.mrf.mxu0
    %v3000 = vpop.f32.mrf.mxu0
    %3001 = vdwg.mxu0
    %3002 = vmatprep.subr.bf16.mxu0 %v920
    %3003 = vmatpush1.bf16.msra.mxu0 %v919
    %3004 = vmatprep.subr.bf16.mxu0 %v916
    %3005 = vmatpush1.bf16.msra.mxu0 %v915
    %3006 = vmatprep.subr.bf16.mxu0 %v912
    %3007 = vmatpush1.bf16.msra.mxu0 %v911
    %3008 = vmatprep.subr.bf16.mxu0 %v908
    %3009 = vmatpush1.bf16.msra.mxu0 %v907
    %3010 = vmatprep.subr.bf16.mxu0 %v904
    %3011 = vmatpush1.bf16.msra.mxu0 %v903
    %3012 = vmatprep.subr.bf16.mxu0 %v900
    %3013 = vmatpush1.bf16.msra.mxu0 %v899
    %3014 = vmatprep.subr.bf16.mxu0 %v896
    %3015 = vmatpush1.bf16.msra.mxu0 %v895
    %3016 = vmatprep.subr.bf16.mxu0 %v892
    %3017 = vmatpush1.bf16.msra.mxu0 %v891
    %3018 = vmatprep.subr.bf16.mxu0 %v952
    %3019 = vmatpush2.bf16.msra.mxu0 %v951
    %3020 = vmatprep.subr.bf16.mxu0 %v948
    %3021 = vmatpush2.bf16.msra.mxu0 %v947
    %3022 = vmatprep.subr.bf16.mxu0 %v944
    %3023 = vmatpush2.bf16.msra.mxu0 %v943
    %3024 = vmatprep.subr.bf16.mxu0 %v940
    %3025 = vmatpush2.bf16.msra.mxu0 %v939
    %3026 = vmatprep.subr.bf16.mxu0 %v936
    %3027 = vmatpush2.bf16.msra.mxu0 %v935
    %3028 = vmatprep.subr.bf16.mxu0 %v932
    %3029 = vmatpush2.bf16.msra.mxu0 %v931
    %3030 = vmatprep.subr.bf16.mxu0 %v928
    %3031 = vmatpush2.bf16.msra.mxu0 %v927
    %3032 = vmatprep.subr.bf16.mxu0 %v924
    %3033 = vmatpush2.bf16.msra.mxu0 %v923
    %3034 = vmatprep.mubr.bf16.mxu0 %v2960
    %3035 = vmatmul.mubr.bf16.gmra.mxu0 %v2959
    %v3036 = vpop.f32.mrf.mxu0
    %v3037 = vadd.f32 %v688, %v3036
    %v3038 = vpop.f32.mrf.mxu0
    %v3039 = vadd.f32 %v692, %v3038
    %v3040 = vpop.f32.mrf.mxu0
    %v3041 = vpop.f32.mrf.mxu0
    %3042 = vdwg.mxu0
    %v3043 = vxor.u32 %v2996, 2147483648
    %v3044 = vxor.u32 %v2998, 2147483648
    %v3045 = vxor.u32 %v3037, 2147483648
    %v3046 = vmul.f32 %v3043, 1.442695
    %v3047 = vpow.pop %v3046
    %v3048 = vmul.f32 %v3044, 1.442695
    %v3049 = vpow.pop %v3048
    %v3050 = vmul.f32 %v3045, 1.442695
    %v3051 = vpow.pop %v3050
    %v3052 = vadd.f32 %v3047, 1.0
    %v3053 = vadd.f32 %v3049, 1.0
    %v3054 = vadd.f32 %v3051, 1.0
    %v3055 = vrcp.pop %v3052
    %v3056 = vmul.f32 1.0, %v3055
    %v3057 = vrcp.pop %v3053
    %v3058 = vmul.f32 1.0, %v3057
    %v3059 = vrcp.pop %v3054
    %v3060 = vmul.f32 1.0, %v3059
    %v3061 = vtanh.pop %v3039
    %v3062 = vmul.f32 %v3058, %v2848
    %v3063 = vmul.f32 %v3056, %v3061
    %v3064 = vadd.f32 %v3062, %v3063
    %v3065 = vtanh.pop %v3064
    %v3066 = vmul.f32 %v3060, %v3065
    %v3067 = vld [vmem:[%s1] sm:$0xf]
    %v3068 = vld [vmem:[#allocation5] sm:$0xff]
    %v3069 = vld [vmem:[#allocation5 + $0x8] sm:$0xff]
    %v3070 = vld [vmem:[#allocation5 + $0x10] sm:$0xff]
    %v3071 = vld [vmem:[#allocation5 + $0x18] sm:$0xff]
    %v3072 = vld [vmem:[#allocation5 + $0x20] sm:$0xff]
    %v3073 = vld [vmem:[#allocation5 + $0x28] sm:$0xff]
    %v3074 = vld [vmem:[#allocation5 + $0x30] sm:$0xff]
    %v3075 = vld [vmem:[#allocation5 + $0x38] sm:$0xff]
    %v3076 = vld [vmem:[#allocation5 + $0x40] sm:$0xff]
    %v3077 = vld [vmem:[#allocation5 + $0x48] sm:$0xff]
    %v3078 = vld [vmem:[#allocation5 + $0x50] sm:$0xff]
    %v3079 = vld [vmem:[#allocation5 + $0x58] sm:$0xff]
    %v3080 = vld [vmem:[#allocation5 + $0x60] sm:$0xff]
    %v3081 = vld [vmem:[#allocation5 + $0x68] sm:$0xff]
    %v3082 = vld [vmem:[#allocation5 + $0x70] sm:$0xff]
    %v3083 = vld [vmem:[#allocation5 + $0x78] sm:$0xff]
    %v3084 = vld [vmem:[#allocation5 + $0x80] sm:$0xff]
    %v3085 = vld [vmem:[#allocation5 + $0x88] sm:$0xff]
    %v3086 = vld [vmem:[#allocation5 + $0x90] sm:$0xff]
    %v3087 = vld [vmem:[#allocation5 + $0x98] sm:$0xff]
    %v3088 = vld [vmem:[#allocation5 + $0xa0] sm:$0xff]
    %v3089 = vld [vmem:[#allocation5 + $0xa8] sm:$0xff]
    %v3090 = vld [vmem:[#allocation5 + $0xb0] sm:$0xff]
    %v3091 = vld [vmem:[#allocation5 + $0xb8] sm:$0xff]
    %v3092 = vld [vmem:[#allocation5 + $0xc0] sm:$0xff]
    %v3093 = vld [vmem:[#allocation5 + $0xc8] sm:$0xff]
    %v3094 = vld [vmem:[#allocation5 + $0xd0] sm:$0xff]
    %v3095 = vld [vmem:[#allocation5 + $0xd8] sm:$0xff]
    %v3096 = vld [vmem:[#allocation5 + $0xe0] sm:$0xff]
    %v3097 = vld [vmem:[#allocation5 + $0xe8] sm:$0xff]
    %v3098 = vld [vmem:[#allocation5 + $0xf0] sm:$0xff]
    %v3099 = vld [vmem:[#allocation5 + $0xf8] sm:$0xff]
    %v3100 = vld [vmem:[#allocation5 + $0x100] sm:$0xff]
    %v3101 = vld [vmem:[#allocation5 + $0x108] sm:$0xff]
    %v3102 = vld [vmem:[#allocation5 + $0x110] sm:$0xff]
    %v3103 = vld [vmem:[#allocation5 + $0x118] sm:$0xff]
    %v3104 = vld [vmem:[#allocation5 + $0x120] sm:$0xff]
    %v3105 = vld [vmem:[#allocation5 + $0x128] sm:$0xff]
    %v3106 = vld [vmem:[#allocation5 + $0x130] sm:$0xff]
    %v3107 = vld [vmem:[#allocation5 + $0x138] sm:$0xff]
    %v3108 = vld [vmem:[#allocation5 + $0x140] sm:$0xff]
    %v3109 = vld [vmem:[#allocation5 + $0x148] sm:$0xff]
    %v3110 = vld [vmem:[#allocation5 + $0x150] sm:$0xff]
    %v3111 = vld [vmem:[#allocation5 + $0x158] sm:$0xff]
    %v3112 = vld [vmem:[#allocation5 + $0x160] sm:$0xff]
    %v3113 = vld [vmem:[#allocation5 + $0x168] sm:$0xff]
    %v3114 = vld [vmem:[#allocation5 + $0x170] sm:$0xff]
    %v3115 = vld [vmem:[#allocation5 + $0x178] sm:$0xff]
    %v3116 = vld [vmem:[#allocation5 + $0x180] sm:$0xff]
    %v3117 = vld [vmem:[#allocation5 + $0x188] sm:$0xff]
    %v3118 = vld [vmem:[#allocation5 + $0x190] sm:$0xff]
    %v3119 = vld [vmem:[#allocation5 + $0x198] sm:$0xff]
    %v3120 = vld [vmem:[#allocation5 + $0x1a0] sm:$0xff]
    %v3121 = vld [vmem:[#allocation5 + $0x1a8] sm:$0xff]
    %v3122 = vld [vmem:[#allocation5 + $0x1b0] sm:$0xff]
    %v3123 = vld [vmem:[#allocation5 + $0x1b8] sm:$0xff]
    %v3124 = vld [vmem:[#allocation5 + $0x1c0] sm:$0xff]
    %v3125 = vld [vmem:[#allocation5 + $0x1c8] sm:$0xff]
    %v3126 = vld [vmem:[#allocation5 + $0x1d0] sm:$0xff]
    %v3127 = vld [vmem:[#allocation5 + $0x1d8] sm:$0xff]
    %v3128 = vld [vmem:[#allocation5 + $0x1e0] sm:$0xff]
    %v3129 = vld [vmem:[#allocation5 + $0x1e8] sm:$0xff]
    %v3130 = vld [vmem:[#allocation5 + $0x1f0] sm:$0xff]
    %v3131 = vld [vmem:[#allocation5 + $0x1f8] sm:$0xff]
    %v3132 = vld [vmem:[%s7] sm:$0xf]
    %v3134 = vlaneseq
    %v3135 = vshrl.u32 %v3134, 7
    %v3136 = vsub.s32 0, %v3135
    %v3137 = vrot.slane %v3132, %v3136
    %v3138 = vlaneseq
    %v3139 = vshrl.u32 %v3138, 7
    %v3140 = vsub.s32 1, %v3139
    %v3141 = vrot.slane %v3132, %v3140
    %v3142 = vlaneseq
    %v3143 = vshrl.u32 %v3142, 7
    %v3144 = vsub.s32 2, %v3143
    %v3145 = vrot.slane %v3132, %v3144
    %v3146 = vlaneseq
    %v3147 = vshrl.u32 %v3146, 7
    %v3148 = vsub.s32 3, %v3147
    %v3149 = vrot.slane %v3132, %v3148
    %v3218 = vunpack.c.l.b16 %v3068
    %v3219 = vunpack.c.h.b16 %v3068
    %v3220 = vunpack.c.l.b16 %v3069
    %v3221 = vunpack.c.h.b16 %v3069
    %v3222 = vunpack.c.l.b16 %v3070
    %v3223 = vunpack.c.h.b16 %v3070
    %v3224 = vunpack.c.l.b16 %v3071
    %v3225 = vunpack.c.h.b16 %v3071
    %v3226 = vunpack.c.l.b16 %v3072
    %v3227 = vunpack.c.h.b16 %v3072
    %v3228 = vunpack.c.l.b16 %v3073
    %v3229 = vunpack.c.h.b16 %v3073
    %v3230 = vunpack.c.l.b16 %v3074
    %v3231 = vunpack.c.h.b16 %v3074
    %v3232 = vunpack.c.l.b16 %v3075
    %v3233 = vunpack.c.h.b16 %v3075
    %v3234 = vunpack.c.l.b16 %v3076
    %v3235 = vunpack.c.h.b16 %v3076
    %v3236 = vunpack.c.l.b16 %v3077
    %v3237 = vunpack.c.h.b16 %v3077
    %v3238 = vunpack.c.l.b16 %v3078
    %v3239 = vunpack.c.h.b16 %v3078
    %v3240 = vunpack.c.l.b16 %v3079
    %v3241 = vunpack.c.h.b16 %v3079
    %v3242 = vunpack.c.l.b16 %v3080
    %v3243 = vunpack.c.h.b16 %v3080
    %v3244 = vunpack.c.l.b16 %v3081
    %v3245 = vunpack.c.h.b16 %v3081
    %v3246 = vunpack.c.l.b16 %v3082
    %v3247 = vunpack.c.h.b16 %v3082
    %v3248 = vunpack.c.l.b16 %v3083
    %v3249 = vunpack.c.h.b16 %v3083
    %v3250 = vunpack.c.l.b16 %v3084
    %v3251 = vunpack.c.h.b16 %v3084
    %v3252 = vunpack.c.l.b16 %v3085
    %v3253 = vunpack.c.h.b16 %v3085
    %v3254 = vunpack.c.l.b16 %v3086
    %v3255 = vunpack.c.h.b16 %v3086
    %v3256 = vunpack.c.l.b16 %v3087
    %v3257 = vunpack.c.h.b16 %v3087
    %v3258 = vunpack.c.l.b16 %v3088
    %v3259 = vunpack.c.h.b16 %v3088
    %v3260 = vunpack.c.l.b16 %v3089
    %v3261 = vunpack.c.h.b16 %v3089
    %v3262 = vunpack.c.l.b16 %v3090
    %v3263 = vunpack.c.h.b16 %v3090
    %v3264 = vunpack.c.l.b16 %v3091
    %v3265 = vunpack.c.h.b16 %v3091
    %v3266 = vunpack.c.l.b16 %v3092
    %v3267 = vunpack.c.h.b16 %v3092
    %v3268 = vunpack.c.l.b16 %v3093
    %v3269 = vunpack.c.h.b16 %v3093
    %v3270 = vunpack.c.l.b16 %v3094
    %v3271 = vunpack.c.h.b16 %v3094
    %v3272 = vunpack.c.l.b16 %v3095
    %v3273 = vunpack.c.h.b16 %v3095
    %v3274 = vunpack.c.l.b16 %v3096
    %v3275 = vunpack.c.h.b16 %v3096
    %v3276 = vunpack.c.l.b16 %v3097
    %v3277 = vunpack.c.h.b16 %v3097
    %v3278 = vunpack.c.l.b16 %v3098
    %v3279 = vunpack.c.h.b16 %v3098
    %v3280 = vunpack.c.l.b16 %v3099
    %v3281 = vunpack.c.h.b16 %v3099
    %v3282 = vunpack.c.l.b16 %v3100
    %v3283 = vunpack.c.h.b16 %v3100
    %v3284 = vunpack.c.l.b16 %v3101
    %v3285 = vunpack.c.h.b16 %v3101
    %v3286 = vunpack.c.l.b16 %v3102
    %v3287 = vunpack.c.h.b16 %v3102
    %v3288 = vunpack.c.l.b16 %v3103
    %v3289 = vunpack.c.h.b16 %v3103
    %v3290 = vunpack.c.l.b16 %v3104
    %v3291 = vunpack.c.h.b16 %v3104
    %v3292 = vunpack.c.l.b16 %v3105
    %v3293 = vunpack.c.h.b16 %v3105
    %v3294 = vunpack.c.l.b16 %v3106
    %v3295 = vunpack.c.h.b16 %v3106
    %v3296 = vunpack.c.l.b16 %v3107
    %v3297 = vunpack.c.h.b16 %v3107
    %v3298 = vunpack.c.l.b16 %v3108
    %v3299 = vunpack.c.h.b16 %v3108
    %v3300 = vunpack.c.l.b16 %v3109
    %v3301 = vunpack.c.h.b16 %v3109
    %v3302 = vunpack.c.l.b16 %v3110
    %v3303 = vunpack.c.h.b16 %v3110
    %v3304 = vunpack.c.l.b16 %v3111
    %v3305 = vunpack.c.h.b16 %v3111
    %v3306 = vunpack.c.l.b16 %v3112
    %v3307 = vunpack.c.h.b16 %v3112
    %v3308 = vunpack.c.l.b16 %v3113
    %v3309 = vunpack.c.h.b16 %v3113
    %v3310 = vunpack.c.l.b16 %v3114
    %v3311 = vunpack.c.h.b16 %v3114
    %v3312 = vunpack.c.l.b16 %v3115
    %v3313 = vunpack.c.h.b16 %v3115
    %v3314 = vunpack.c.l.b16 %v3116
    %v3315 = vunpack.c.h.b16 %v3116
    %v3316 = vunpack.c.l.b16 %v3117
    %v3317 = vunpack.c.h.b16 %v3117
    %v3318 = vunpack.c.l.b16 %v3118
    %v3319 = vunpack.c.h.b16 %v3118
    %v3320 = vunpack.c.l.b16 %v3119
    %v3321 = vunpack.c.h.b16 %v3119
    %v3322 = vunpack.c.l.b16 %v3120
    %v3323 = vunpack.c.h.b16 %v3120
    %v3324 = vunpack.c.l.b16 %v3121
    %v3325 = vunpack.c.h.b16 %v3121
    %v3326 = vunpack.c.l.b16 %v3122
    %v3327 = vunpack.c.h.b16 %v3122
    %v3328 = vunpack.c.l.b16 %v3123
    %v3329 = vunpack.c.h.b16 %v3123
    %v3330 = vunpack.c.l.b16 %v3124
    %v3331 = vunpack.c.h.b16 %v3124
    %v3332 = vunpack.c.l.b16 %v3125
    %v3333 = vunpack.c.h.b16 %v3125
    %v3334 = vunpack.c.l.b16 %v3126
    %v3335 = vunpack.c.h.b16 %v3126
    %v3336 = vunpack.c.l.b16 %v3127
    %v3337 = vunpack.c.h.b16 %v3127
    %v3338 = vunpack.c.l.b16 %v3128
    %v3339 = vunpack.c.h.b16 %v3128
    %v3340 = vunpack.c.l.b16 %v3129
    %v3341 = vunpack.c.h.b16 %v3129
    %v3342 = vunpack.c.l.b16 %v3130
    %v3343 = vunpack.c.h.b16 %v3130
    %v3344 = vunpack.c.l.b16 %v3131
    %v3345 = vunpack.c.h.b16 %v3131
    %v3346 = vpack.c.b16 %v3222, %v3218
    %v3347 = vpack.c.b16 %v3223, %v3219
    %v3348 = vpack.c.b16 %v3224, %v3220
    %v3349 = vpack.c.b16 %v3225, %v3221
    %v3350 = vpack.c.b16 %v3230, %v3226
    %v3351 = vpack.c.b16 %v3231, %v3227
    %v3352 = vpack.c.b16 %v3232, %v3228
    %v3353 = vpack.c.b16 %v3233, %v3229
    %v3354 = vpack.c.b16 %v3238, %v3234
    %v3355 = vpack.c.b16 %v3239, %v3235
    %v3356 = vpack.c.b16 %v3240, %v3236
    %v3357 = vpack.c.b16 %v3241, %v3237
    %v3358 = vpack.c.b16 %v3246, %v3242
    %v3359 = vpack.c.b16 %v3247, %v3243
    %v3360 = vpack.c.b16 %v3248, %v3244
    %v3361 = vpack.c.b16 %v3249, %v3245
    %v3362 = vpack.c.b16 %v3254, %v3250
    %v3363 = vpack.c.b16 %v3255, %v3251
    %v3364 = vpack.c.b16 %v3256, %v3252
    %v3365 = vpack.c.b16 %v3257, %v3253
    %v3366 = vpack.c.b16 %v3262, %v3258
    %v3367 = vpack.c.b16 %v3263, %v3259
    %v3368 = vpack.c.b16 %v3264, %v3260
    %v3369 = vpack.c.b16 %v3265, %v3261
    %v3370 = vpack.c.b16 %v3270, %v3266
    %v3371 = vpack.c.b16 %v3271, %v3267
    %v3372 = vpack.c.b16 %v3272, %v3268
    %v3373 = vpack.c.b16 %v3273, %v3269
    %v3374 = vpack.c.b16 %v3278, %v3274
    %v3375 = vpack.c.b16 %v3279, %v3275
    %v3376 = vpack.c.b16 %v3280, %v3276
    %v3377 = vpack.c.b16 %v3281, %v3277
    %v3378 = vpack.c.b16 %v3286, %v3282
    %v3379 = vpack.c.b16 %v3287, %v3283
    %v3380 = vpack.c.b16 %v3288, %v3284
    %v3381 = vpack.c.b16 %v3289, %v3285
    %v3382 = vpack.c.b16 %v3294, %v3290
    %v3383 = vpack.c.b16 %v3295, %v3291
    %v3384 = vpack.c.b16 %v3296, %v3292
    %v3385 = vpack.c.b16 %v3297, %v3293
    %v3386 = vpack.c.b16 %v3302, %v3298
    %v3387 = vpack.c.b16 %v3303, %v3299
    %v3388 = vpack.c.b16 %v3304, %v3300
    %v3389 = vpack.c.b16 %v3305, %v3301
    %v3390 = vpack.c.b16 %v3310, %v3306
    %v3391 = vpack.c.b16 %v3311, %v3307
    %v3392 = vpack.c.b16 %v3312, %v3308
    %v3393 = vpack.c.b16 %v3313, %v3309
    %v3394 = vpack.c.b16 %v3318, %v3314
    %v3395 = vpack.c.b16 %v3319, %v3315
    %v3396 = vpack.c.b16 %v3320, %v3316
    %v3397 = vpack.c.b16 %v3321, %v3317
    %v3398 = vpack.c.b16 %v3326, %v3322
    %v3399 = vpack.c.b16 %v3327, %v3323
    %v3400 = vpack.c.b16 %v3328, %v3324
    %v3401 = vpack.c.b16 %v3329, %v3325
    %v3402 = vpack.c.b16 %v3334, %v3330
    %v3403 = vpack.c.b16 %v3335, %v3331
    %v3404 = vpack.c.b16 %v3336, %v3332
    %v3405 = vpack.c.b16 %v3337, %v3333
    %v3406 = vpack.c.b16 %v3342, %v3338
    %v3407 = vpack.c.b16 %v3343, %v3339
    %v3408 = vpack.c.b16 %v3344, %v3340
    %v3409 = vpack.c.b16 %v3345, %v3341
    %3474 = vmatprep.subr.bf16.mxu0 %v3375
    %3475 = vmatpush1.bf16.msra.mxu0 %v3374
    %3476 = vmatprep.subr.bf16.mxu0 %v3371
    %3477 = vmatpush1.bf16.msra.mxu0 %v3370
    %3478 = vmatprep.subr.bf16.mxu0 %v3367
    %3479 = vmatpush1.bf16.msra.mxu0 %v3366
    %3480 = vmatprep.subr.bf16.mxu0 %v3363
    %3481 = vmatpush1.bf16.msra.mxu0 %v3362
    %3482 = vmatprep.subr.bf16.mxu0 %v3359
    %3483 = vmatpush1.bf16.msra.mxu0 %v3358
    %3484 = vmatprep.subr.bf16.mxu0 %v3355
    %3485 = vmatpush1.bf16.msra.mxu0 %v3354
    %3486 = vmatprep.subr.bf16.mxu0 %v3351
    %3487 = vmatpush1.bf16.msra.mxu0 %v3350
    %3488 = vmatprep.subr.bf16.mxu0 %v3347
    %3489 = vmatpush1.bf16.msra.mxu0 %v3346
    %3490 = vmatprep.subr.bf16.mxu0 %v3407
    %3491 = vmatpush2.bf16.msra.mxu0 %v3406
    %3492 = vmatprep.subr.bf16.mxu0 %v3403
    %3493 = vmatpush2.bf16.msra.mxu0 %v3402
    %3494 = vmatprep.subr.bf16.mxu0 %v3399
    %3495 = vmatpush2.bf16.msra.mxu0 %v3398
    %3496 = vmatprep.subr.bf16.mxu0 %v3395
    %3497 = vmatpush2.bf16.msra.mxu0 %v3394
    %3498 = vmatprep.subr.bf16.mxu0 %v3391
    %3499 = vmatpush2.bf16.msra.mxu0 %v3390
    %3500 = vmatprep.subr.bf16.mxu0 %v3387
    %3501 = vmatpush2.bf16.msra.mxu0 %v3386
    %3502 = vmatprep.subr.bf16.mxu0 %v3383
    %3503 = vmatpush2.bf16.msra.mxu0 %v3382
    %3504 = vmatprep.subr.bf16.mxu0 %v3379
    %3505 = vmatpush2.bf16.msra.mxu0 %v3378
    %3506 = vmatprep.mubr.bf16.mxu0 %v2959
    %3507 = vmatmul.mubr.bf16.gmra.mxu0 %v3067
    %v3508 = vpop.f32.mrf.mxu0
    %v3509 = vadd.f32 %v3137, %v3508
    %v3510 = vpop.f32.mrf.mxu0
    %v3511 = vadd.f32 %v3141, %v3510
    %v3512 = vpop.f32.mrf.mxu0
    %v3513 = vpop.f32.mrf.mxu0
    %3514 = vdwg.mxu0
    %3515 = vmatprep.subr.bf16.mxu0 %v3377
    %3516 = vmatpush1.bf16.msra.mxu0 %v3376
    %3517 = vmatprep.subr.bf16.mxu0 %v3373
    %3518 = vmatpush1.bf16.msra.mxu0 %v3372
    %3519 = vmatprep.subr.bf16.mxu0 %v3369
    %3520 = vmatpush1.bf16.msra.mxu0 %v3368
    %3521 = vmatprep.subr.bf16.mxu0 %v3365
    %3522 = vmatpush1.bf16.msra.mxu0 %v3364
    %3523 = vmatprep.subr.bf16.mxu0 %v3361
    %3524 = vmatpush1.bf16.msra.mxu0 %v3360
    %3525 = vmatprep.subr.bf16.mxu0 %v3357
    %3526 = vmatpush1.bf16.msra.mxu0 %v3356
    %3527 = vmatprep.subr.bf16.mxu0 %v3353
    %3528 = vmatpush1.bf16.msra.mxu0 %v3352
    %3529 = vmatprep.subr.bf16.mxu0 %v3349
    %3530 = vmatpush1.bf16.msra.mxu0 %v3348
    %3531 = vmatprep.subr.bf16.mxu0 %v3409
    %3532 = vmatpush2.bf16.msra.mxu0 %v3408
    %3533 = vmatprep.subr.bf16.mxu0 %v3405
    %3534 = vmatpush2.bf16.msra.mxu0 %v3404
    %3535 = vmatprep.subr.bf16.mxu0 %v3401
    %3536 = vmatpush2.bf16.msra.mxu0 %v3400
    %3537 = vmatprep.subr.bf16.mxu0 %v3397
    %3538 = vmatpush2.bf16.msra.mxu0 %v3396
    %3539 = vmatprep.subr.bf16.mxu0 %v3393
    %3540 = vmatpush2.bf16.msra.mxu0 %v3392
    %3541 = vmatprep.subr.bf16.mxu0 %v3389
    %3542 = vmatpush2.bf16.msra.mxu0 %v3388
    %3543 = vmatprep.subr.bf16.mxu0 %v3385
    %3544 = vmatpush2.bf16.msra.mxu0 %v3384
    %3545 = vmatprep.subr.bf16.mxu0 %v3381
    %3546 = vmatpush2.bf16.msra.mxu0 %v3380
    %3547 = vmatprep.mubr.bf16.mxu0 %v2959
    %3548 = vmatmul.mubr.bf16.gmra.mxu0 %v3067
    %v3549 = vpop.f32.mrf.mxu0
    %v3550 = vadd.f32 %v3145, %v3549
    %v3551 = vpop.f32.mrf.mxu0
    %v3552 = vadd.f32 %v3149, %v3551
    %v3553 = vpop.f32.mrf.mxu0
    %v3554 = vpop.f32.mrf.mxu0
    %3555 = vdwg.mxu0
    %v3556 = vxor.u32 %v3509, 2147483648
    %v3557 = vxor.u32 %v3511, 2147483648
    %v3558 = vxor.u32 %v3550, 2147483648
    %v3559 = vmul.f32 %v3556, 1.442695
    %v3560 = vpow.pop %v3559
    %v3561 = vmul.f32 %v3557, 1.442695
    %v3562 = vpow.pop %v3561
    %v3563 = vmul.f32 %v3558, 1.442695
    %v3564 = vpow.pop %v3563
    %v3565 = vadd.f32 %v3560, 1.0
    %v3566 = vadd.f32 %v3562, 1.0
    %v3567 = vadd.f32 %v3564, 1.0
    %v3568 = vrcp.pop %v3565
    %v3569 = vmul.f32 1.0, %v3568
    %v3570 = vrcp.pop %v3566
    %v3571 = vmul.f32 1.0, %v3570
    %v3572 = vrcp.pop %v3567
    %v3573 = vmul.f32 1.0, %v3572
    %v3574 = vtanh.pop %v3552
    %v3575 = vmul.f32 %v3571, %v2956
    %v3576 = vmul.f32 %v3569, %v3574
    %v3577 = vadd.f32 %v3575, %v3576
    %v3578 = vtanh.pop %v3577
    %v3579 = vmul.f32 %v3573, %v3578
    %v3580 = vpack.c.bf16 %v3579, %v3579
    %v3581 = vpack.c.bf16 %v3066, %v3066
    %v3582 = vld [vmem:[#allocation7] sm:$0xff]
    %v3583 = vld [vmem:[#allocation7 + $0x8] sm:$0xff]
    %v3584 = vld [vmem:[#allocation7 + $0x10] sm:$0xff]
    %v3585 = vld [vmem:[#allocation7 + $0x18] sm:$0xff]
    %v3586 = vld [vmem:[#allocation7 + $0x20] sm:$0xff]
    %v3587 = vld [vmem:[#allocation7 + $0x28] sm:$0xff]
    %v3588 = vld [vmem:[#allocation7 + $0x30] sm:$0xff]
    %v3589 = vld [vmem:[#allocation7 + $0x38] sm:$0xff]
    %v3590 = vld [vmem:[#allocation7 + $0x40] sm:$0xff]
    %v3591 = vld [vmem:[#allocation7 + $0x48] sm:$0xff]
    %v3592 = vld [vmem:[#allocation7 + $0x50] sm:$0xff]
    %v3593 = vld [vmem:[#allocation7 + $0x58] sm:$0xff]
    %v3594 = vld [vmem:[#allocation7 + $0x60] sm:$0xff]
    %v3595 = vld [vmem:[#allocation7 + $0x68] sm:$0xff]
    %v3596 = vld [vmem:[#allocation7 + $0x70] sm:$0xff]
    %v3597 = vld [vmem:[#allocation7 + $0x78] sm:$0xff]
    %v3598 = vld [vmem:[#allocation7 + $0x80] sm:$0xff]
    %v3599 = vld [vmem:[#allocation7 + $0x88] sm:$0xff]
    %v3600 = vld [vmem:[#allocation7 + $0x90] sm:$0xff]
    %v3601 = vld [vmem:[#allocation7 + $0x98] sm:$0xff]
    %v3602 = vld [vmem:[#allocation7 + $0xa0] sm:$0xff]
    %v3603 = vld [vmem:[#allocation7 + $0xa8] sm:$0xff]
    %v3604 = vld [vmem:[#allocation7 + $0xb0] sm:$0xff]
    %v3605 = vld [vmem:[#allocation7 + $0xb8] sm:$0xff]
    %v3606 = vld [vmem:[#allocation7 + $0xc0] sm:$0xff]
    %v3607 = vld [vmem:[#allocation7 + $0xc8] sm:$0xff]
    %v3608 = vld [vmem:[#allocation7 + $0xd0] sm:$0xff]
    %v3609 = vld [vmem:[#allocation7 + $0xd8] sm:$0xff]
    %v3610 = vld [vmem:[#allocation7 + $0xe0] sm:$0xff]
    %v3611 = vld [vmem:[#allocation7 + $0xe8] sm:$0xff]
    %v3612 = vld [vmem:[#allocation7 + $0xf0] sm:$0xff]
    %v3613 = vld [vmem:[#allocation7 + $0xf8] sm:$0xff]
    %v3614 = vld [vmem:[#allocation7 + $0x100] sm:$0xff]
    %v3615 = vld [vmem:[#allocation7 + $0x108] sm:$0xff]
    %v3616 = vld [vmem:[#allocation7 + $0x110] sm:$0xff]
    %v3617 = vld [vmem:[#allocation7 + $0x118] sm:$0xff]
    %v3618 = vld [vmem:[#allocation7 + $0x120] sm:$0xff]
    %v3619 = vld [vmem:[#allocation7 + $0x128] sm:$0xff]
    %v3620 = vld [vmem:[#allocation7 + $0x130] sm:$0xff]
    %v3621 = vld [vmem:[#allocation7 + $0x138] sm:$0xff]
    %v3622 = vld [vmem:[#allocation7 + $0x140] sm:$0xff]
    %v3623 = vld [vmem:[#allocation7 + $0x148] sm:$0xff]
    %v3624 = vld [vmem:[#allocation7 + $0x150] sm:$0xff]
    %v3625 = vld [vmem:[#allocation7 + $0x158] sm:$0xff]
    %v3626 = vld [vmem:[#allocation7 + $0x160] sm:$0xff]
    %v3627 = vld [vmem:[#allocation7 + $0x168] sm:$0xff]
    %v3628 = vld [vmem:[#allocation7 + $0x170] sm:$0xff]
    %v3629 = vld [vmem:[#allocation7 + $0x178] sm:$0xff]
    %v3630 = vld [vmem:[#allocation7 + $0x180] sm:$0xff]
    %v3631 = vld [vmem:[#allocation7 + $0x188] sm:$0xff]
    %v3632 = vld [vmem:[#allocation7 + $0x190] sm:$0xff]
    %v3633 = vld [vmem:[#allocation7 + $0x198] sm:$0xff]
    %v3634 = vld [vmem:[#allocation7 + $0x1a0] sm:$0xff]
    %v3635 = vld [vmem:[#allocation7 + $0x1a8] sm:$0xff]
    %v3636 = vld [vmem:[#allocation7 + $0x1b0] sm:$0xff]
    %v3637 = vld [vmem:[#allocation7 + $0x1b8] sm:$0xff]
    %v3638 = vld [vmem:[#allocation7 + $0x1c0] sm:$0xff]
    %v3639 = vld [vmem:[#allocation7 + $0x1c8] sm:$0xff]
    %v3640 = vld [vmem:[#allocation7 + $0x1d0] sm:$0xff]
    %v3641 = vld [vmem:[#allocation7 + $0x1d8] sm:$0xff]
    %v3642 = vld [vmem:[#allocation7 + $0x1e0] sm:$0xff]
    %v3643 = vld [vmem:[#allocation7 + $0x1e8] sm:$0xff]
    %v3644 = vld [vmem:[#allocation7 + $0x1f0] sm:$0xff]
    %v3645 = vld [vmem:[#allocation7 + $0x1f8] sm:$0xff]
    %v3646 = vld [vmem:[%s9] sm:$0xf]
    %v3648 = vlaneseq
    %v3649 = vshrl.u32 %v3648, 7
    %v3650 = vsub.s32 0, %v3649
    %v3651 = vrot.slane %v3646, %v3650
    %v3652 = vlaneseq
    %v3653 = vshrl.u32 %v3652, 7
    %v3654 = vsub.s32 1, %v3653
    %v3655 = vrot.slane %v3646, %v3654
    %v3656 = vlaneseq
    %v3657 = vshrl.u32 %v3656, 7
    %v3658 = vsub.s32 2, %v3657
    %v3659 = vrot.slane %v3646, %v3658
    %v3660 = vlaneseq
    %v3661 = vshrl.u32 %v3660, 7
    %v3662 = vsub.s32 3, %v3661
    %v3663 = vrot.slane %v3646, %v3662
    %v3732 = vunpack.c.l.b16 %v3582
    %v3733 = vunpack.c.h.b16 %v3582
    %v3734 = vunpack.c.l.b16 %v3583
    %v3735 = vunpack.c.h.b16 %v3583
    %v3736 = vunpack.c.l.b16 %v3584
    %v3737 = vunpack.c.h.b16 %v3584
    %v3738 = vunpack.c.l.b16 %v3585
    %v3739 = vunpack.c.h.b16 %v3585
    %v3740 = vunpack.c.l.b16 %v3586
    %v3741 = vunpack.c.h.b16 %v3586
    %v3742 = vunpack.c.l.b16 %v3587
    %v3743 = vunpack.c.h.b16 %v3587
    %v3744 = vunpack.c.l.b16 %v3588
    %v3745 = vunpack.c.h.b16 %v3588
    %v3746 = vunpack.c.l.b16 %v3589
    %v3747 = vunpack.c.h.b16 %v3589
    %v3748 = vunpack.c.l.b16 %v3590
    %v3749 = vunpack.c.h.b16 %v3590
    %v3750 = vunpack.c.l.b16 %v3591
    %v3751 = vunpack.c.h.b16 %v3591
    %v3752 = vunpack.c.l.b16 %v3592
    %v3753 = vunpack.c.h.b16 %v3592
    %v3754 = vunpack.c.l.b16 %v3593
    %v3755 = vunpack.c.h.b16 %v3593
    %v3756 = vunpack.c.l.b16 %v3594
    %v3757 = vunpack.c.h.b16 %v3594
    %v3758 = vunpack.c.l.b16 %v3595
    %v3759 = vunpack.c.h.b16 %v3595
    %v3760 = vunpack.c.l.b16 %v3596
    %v3761 = vunpack.c.h.b16 %v3596
    %v3762 = vunpack.c.l.b16 %v3597
    %v3763 = vunpack.c.h.b16 %v3597
    %v3764 = vunpack.c.l.b16 %v3598
    %v3765 = vunpack.c.h.b16 %v3598
    %v3766 = vunpack.c.l.b16 %v3599
    %v3767 = vunpack.c.h.b16 %v3599
    %v3768 = vunpack.c.l.b16 %v3600
    %v3769 = vunpack.c.h.b16 %v3600
    %v3770 = vunpack.c.l.b16 %v3601
    %v3771 = vunpack.c.h.b16 %v3601
    %v3772 = vunpack.c.l.b16 %v3602
    %v3773 = vunpack.c.h.b16 %v3602
    %v3774 = vunpack.c.l.b16 %v3603
    %v3775 = vunpack.c.h.b16 %v3603
    %v3776 = vunpack.c.l.b16 %v3604
    %v3777 = vunpack.c.h.b16 %v3604
    %v3778 = vunpack.c.l.b16 %v3605
    %v3779 = vunpack.c.h.b16 %v3605
    %v3780 = vunpack.c.l.b16 %v3606
    %v3781 = vunpack.c.h.b16 %v3606
    %v3782 = vunpack.c.l.b16 %v3607
    %v3783 = vunpack.c.h.b16 %v3607
    %v3784 = vunpack.c.l.b16 %v3608
    %v3785 = vunpack.c.h.b16 %v3608
    %v3786 = vunpack.c.l.b16 %v3609
    %v3787 = vunpack.c.h.b16 %v3609
    %v3788 = vunpack.c.l.b16 %v3610
    %v3789 = vunpack.c.h.b16 %v3610
    %v3790 = vunpack.c.l.b16 %v3611
    %v3791 = vunpack.c.h.b16 %v3611
    %v3792 = vunpack.c.l.b16 %v3612
    %v3793 = vunpack.c.h.b16 %v3612
    %v3794 = vunpack.c.l.b16 %v3613
    %v3795 = vunpack.c.h.b16 %v3613
    %v3796 = vunpack.c.l.b16 %v3614
    %v3797 = vunpack.c.h.b16 %v3614
    %v3798 = vunpack.c.l.b16 %v3615
    %v3799 = vunpack.c.h.b16 %v3615
    %v3800 = vunpack.c.l.b16 %v3616
    %v3801 = vunpack.c.h.b16 %v3616
    %v3802 = vunpack.c.l.b16 %v3617
    %v3803 = vunpack.c.h.b16 %v3617
    %v3804 = vunpack.c.l.b16 %v3618
    %v3805 = vunpack.c.h.b16 %v3618
    %v3806 = vunpack.c.l.b16 %v3619
    %v3807 = vunpack.c.h.b16 %v3619
    %v3808 = vunpack.c.l.b16 %v3620
    %v3809 = vunpack.c.h.b16 %v3620
    %v3810 = vunpack.c.l.b16 %v3621
    %v3811 = vunpack.c.h.b16 %v3621
    %v3812 = vunpack.c.l.b16 %v3622
    %v3813 = vunpack.c.h.b16 %v3622
    %v3814 = vunpack.c.l.b16 %v3623
    %v3815 = vunpack.c.h.b16 %v3623
    %v3816 = vunpack.c.l.b16 %v3624
    %v3817 = vunpack.c.h.b16 %v3624
    %v3818 = vunpack.c.l.b16 %v3625
    %v3819 = vunpack.c.h.b16 %v3625
    %v3820 = vunpack.c.l.b16 %v3626
    %v3821 = vunpack.c.h.b16 %v3626
    %v3822 = vunpack.c.l.b16 %v3627
    %v3823 = vunpack.c.h.b16 %v3627
    %v3824 = vunpack.c.l.b16 %v3628
    %v3825 = vunpack.c.h.b16 %v3628
    %v3826 = vunpack.c.l.b16 %v3629
    %v3827 = vunpack.c.h.b16 %v3629
    %v3828 = vunpack.c.l.b16 %v3630
    %v3829 = vunpack.c.h.b16 %v3630
    %v3830 = vunpack.c.l.b16 %v3631
    %v3831 = vunpack.c.h.b16 %v3631
    %v3832 = vunpack.c.l.b16 %v3632
    %v3833 = vunpack.c.h.b16 %v3632
    %v3834 = vunpack.c.l.b16 %v3633
    %v3835 = vunpack.c.h.b16 %v3633
    %v3836 = vunpack.c.l.b16 %v3634
    %v3837 = vunpack.c.h.b16 %v3634
    %v3838 = vunpack.c.l.b16 %v3635
    %v3839 = vunpack.c.h.b16 %v3635
    %v3840 = vunpack.c.l.b16 %v3636
    %v3841 = vunpack.c.h.b16 %v3636
    %v3842 = vunpack.c.l.b16 %v3637
    %v3843 = vunpack.c.h.b16 %v3637
    %v3844 = vunpack.c.l.b16 %v3638
    %v3845 = vunpack.c.h.b16 %v3638
    %v3846 = vunpack.c.l.b16 %v3639
    %v3847 = vunpack.c.h.b16 %v3639
    %v3848 = vunpack.c.l.b16 %v3640
    %v3849 = vunpack.c.h.b16 %v3640
    %v3850 = vunpack.c.l.b16 %v3641
    %v3851 = vunpack.c.h.b16 %v3641
    %v3852 = vunpack.c.l.b16 %v3642
    %v3853 = vunpack.c.h.b16 %v3642
    %v3854 = vunpack.c.l.b16 %v3643
    %v3855 = vunpack.c.h.b16 %v3643
    %v3856 = vunpack.c.l.b16 %v3644
    %v3857 = vunpack.c.h.b16 %v3644
    %v3858 = vunpack.c.l.b16 %v3645
    %v3859 = vunpack.c.h.b16 %v3645
    %v3860 = vpack.c.b16 %v3736, %v3732
    %v3861 = vpack.c.b16 %v3737, %v3733
    %v3862 = vpack.c.b16 %v3738, %v3734
    %v3863 = vpack.c.b16 %v3739, %v3735
    %v3864 = vpack.c.b16 %v3744, %v3740
    %v3865 = vpack.c.b16 %v3745, %v3741
    %v3866 = vpack.c.b16 %v3746, %v3742
    %v3867 = vpack.c.b16 %v3747, %v3743
    %v3868 = vpack.c.b16 %v3752, %v3748
    %v3869 = vpack.c.b16 %v3753, %v3749
    %v3870 = vpack.c.b16 %v3754, %v3750
    %v3871 = vpack.c.b16 %v3755, %v3751
    %v3872 = vpack.c.b16 %v3760, %v3756
    %v3873 = vpack.c.b16 %v3761, %v3757
    %v3874 = vpack.c.b16 %v3762, %v3758
    %v3875 = vpack.c.b16 %v3763, %v3759
    %v3876 = vpack.c.b16 %v3768, %v3764
    %v3877 = vpack.c.b16 %v3769, %v3765
    %v3878 = vpack.c.b16 %v3770, %v3766
    %v3879 = vpack.c.b16 %v3771, %v3767
    %v3880 = vpack.c.b16 %v3776, %v3772
    %v3881 = vpack.c.b16 %v3777, %v3773
    %v3882 = vpack.c.b16 %v3778, %v3774
    %v3883 = vpack.c.b16 %v3779, %v3775
    %v3884 = vpack.c.b16 %v3784, %v3780
    %v3885 = vpack.c.b16 %v3785, %v3781
    %v3886 = vpack.c.b16 %v3786, %v3782
    %v3887 = vpack.c.b16 %v3787, %v3783
    %v3888 = vpack.c.b16 %v3792, %v3788
    %v3889 = vpack.c.b16 %v3793, %v3789
    %v3890 = vpack.c.b16 %v3794, %v3790
    %v3891 = vpack.c.b16 %v3795, %v3791
    %v3892 = vpack.c.b16 %v3800, %v3796
    %v3893 = vpack.c.b16 %v3801, %v3797
    %v3894 = vpack.c.b16 %v3802, %v3798
    %v3895 = vpack.c.b16 %v3803, %v3799
    %v3896 = vpack.c.b16 %v3808, %v3804
    %v3897 = vpack.c.b16 %v3809, %v3805
    %v3898 = vpack.c.b16 %v3810, %v3806
    %v3899 = vpack.c.b16 %v3811, %v3807
    %v3900 = vpack.c.b16 %v3816, %v3812
    %v3901 = vpack.c.b16 %v3817, %v3813
    %v3902 = vpack.c.b16 %v3818, %v3814
    %v3903 = vpack.c.b16 %v3819, %v3815
    %v3904 = vpack.c.b16 %v3824, %v3820
    %v3905 = vpack.c.b16 %v3825, %v3821
    %v3906 = vpack.c.b16 %v3826, %v3822
    %v3907 = vpack.c.b16 %v3827, %v3823
    %v3908 = vpack.c.b16 %v3832, %v3828
    %v3909 = vpack.c.b16 %v3833, %v3829
    %v3910 = vpack.c.b16 %v3834, %v3830
    %v3911 = vpack.c.b16 %v3835, %v3831
    %v3912 = vpack.c.b16 %v3840, %v3836
    %v3913 = vpack.c.b16 %v3841, %v3837
    %v3914 = vpack.c.b16 %v3842, %v3838
    %v3915 = vpack.c.b16 %v3843, %v3839
    %v3916 = vpack.c.b16 %v3848, %v3844
    %v3917 = vpack.c.b16 %v3849, %v3845
    %v3918 = vpack.c.b16 %v3850, %v3846
    %v3919 = vpack.c.b16 %v3851, %v3847
    %v3920 = vpack.c.b16 %v3856, %v3852
    %v3921 = vpack.c.b16 %v3857, %v3853
    %v3922 = vpack.c.b16 %v3858, %v3854
    %v3923 = vpack.c.b16 %v3859, %v3855
    %3988 = vmatprep.subr.bf16.mxu0 %v3889
    %3989 = vmatpush1.bf16.msra.mxu0 %v3888
    %3990 = vmatprep.subr.bf16.mxu0 %v3885
    %3991 = vmatpush1.bf16.msra.mxu0 %v3884
    %3992 = vmatprep.subr.bf16.mxu0 %v3881
    %3993 = vmatpush1.bf16.msra.mxu0 %v3880
    %3994 = vmatprep.subr.bf16.mxu0 %v3877
    %3995 = vmatpush1.bf16.msra.mxu0 %v3876
    %3996 = vmatprep.subr.bf16.mxu0 %v3873
    %3997 = vmatpush1.bf16.msra.mxu0 %v3872
    %3998 = vmatprep.subr.bf16.mxu0 %v3869
    %3999 = vmatpush1.bf16.msra.mxu0 %v3868
    %4000 = vmatprep.subr.bf16.mxu0 %v3865
    %4001 = vmatpush1.bf16.msra.mxu0 %v3864
    %4002 = vmatprep.subr.bf16.mxu0 %v3861
    %4003 = vmatpush1.bf16.msra.mxu0 %v3860
    %4004 = vmatprep.subr.bf16.mxu0 %v3921
    %4005 = vmatpush2.bf16.msra.mxu0 %v3920
    %4006 = vmatprep.subr.bf16.mxu0 %v3917
    %4007 = vmatpush2.bf16.msra.mxu0 %v3916
    %4008 = vmatprep.subr.bf16.mxu0 %v3913
    %4009 = vmatpush2.bf16.msra.mxu0 %v3912
    %4010 = vmatprep.subr.bf16.mxu0 %v3909
    %4011 = vmatpush2.bf16.msra.mxu0 %v3908
    %4012 = vmatprep.subr.bf16.mxu0 %v3905
    %4013 = vmatpush2.bf16.msra.mxu0 %v3904
    %4014 = vmatprep.subr.bf16.mxu0 %v3901
    %4015 = vmatpush2.bf16.msra.mxu0 %v3900
    %4016 = vmatprep.subr.bf16.mxu0 %v3897
    %4017 = vmatpush2.bf16.msra.mxu0 %v3896
    %4018 = vmatprep.subr.bf16.mxu0 %v3893
    %4019 = vmatpush2.bf16.msra.mxu0 %v3892
    %4020 = vmatprep.mubr.bf16.mxu0 %v3581
    %4021 = vmatmul.mubr.bf16.gmra.mxu0 %v3580
    %v4022 = vpop.f32.mrf.mxu0
    %v4023 = vadd.f32 %v3651, %v4022
    %v4024 = vpop.f32.mrf.mxu0
    %v4025 = vadd.f32 %v3655, %v4024
    %v4026 = vpop.f32.mrf.mxu0
    %v4027 = vpop.f32.mrf.mxu0
    %4028 = vdwg.mxu0
    %4029 = vmatprep.subr.bf16.mxu0 %v3891
    %4030 = vmatpush1.bf16.msra.mxu0 %v3890
    %4031 = vmatprep.subr.bf16.mxu0 %v3887
    %4032 = vmatpush1.bf16.msra.mxu0 %v3886
    %4033 = vmatprep.subr.bf16.mxu0 %v3883
    %4034 = vmatpush1.bf16.msra.mxu0 %v3882
    %4035 = vmatprep.subr.bf16.mxu0 %v3879
    %4036 = vmatpush1.bf16.msra.mxu0 %v3878
    %4037 = vmatprep.subr.bf16.mxu0 %v3875
    %4038 = vmatpush1.bf16.msra.mxu0 %v3874
    %4039 = vmatprep.subr.bf16.mxu0 %v3871
    %4040 = vmatpush1.bf16.msra.mxu0 %v3870
    %4041 = vmatprep.subr.bf16.mxu0 %v3867
    %4042 = vmatpush1.bf16.msra.mxu0 %v3866
    %4043 = vmatprep.subr.bf16.mxu0 %v3863
    %4044 = vmatpush1.bf16.msra.mxu0 %v3862
    %4045 = vmatprep.subr.bf16.mxu0 %v3923
    %4046 = vmatpush2.bf16.msra.mxu0 %v3922
    %4047 = vmatprep.subr.bf16.mxu0 %v3919
    %4048 = vmatpush2.bf16.msra.mxu0 %v3918
    %4049 = vmatprep.subr.bf16.mxu0 %v3915
    %4050 = vmatpush2.bf16.msra.mxu0 %v3914
    %4051 = vmatprep.subr.bf16.mxu0 %v3911
    %4052 = vmatpush2.bf16.msra.mxu0 %v3910
    %4053 = vmatprep.subr.bf16.mxu0 %v3907
    %4054 = vmatpush2.bf16.msra.mxu0 %v3906
    %4055 = vmatprep.subr.bf16.mxu0 %v3903
    %4056 = vmatpush2.bf16.msra.mxu0 %v3902
    %4057 = vmatprep.subr.bf16.mxu0 %v3899
    %4058 = vmatpush2.bf16.msra.mxu0 %v3898
    %4059 = vmatprep.subr.bf16.mxu0 %v3895
    %4060 = vmatpush2.bf16.msra.mxu0 %v3894
    %4061 = vmatprep.mubr.bf16.mxu0 %v3581
    %4062 = vmatmul.mubr.bf16.gmra.mxu0 %v3580
    %v4063 = vpop.f32.mrf.mxu0
    %v4064 = vadd.f32 %v3659, %v4063
    %v4065 = vpop.f32.mrf.mxu0
    %v4066 = vadd.f32 %v3663, %v4065
    %v4067 = vpop.f32.mrf.mxu0
    %v4068 = vpop.f32.mrf.mxu0
    %4069 = vdwg.mxu0
    %v4070 = vxor.u32 %v4023, 2147483648
    %v4071 = vxor.u32 %v4025, 2147483648
    %v4072 = vxor.u32 %v4064, 2147483648
    %v4073 = vmul.f32 %v4070, 1.442695
    %v4074 = vpow.pop %v4073
    %v4075 = vmul.f32 %v4071, 1.442695
    %v4076 = vpow.pop %v4075
    %v4077 = vmul.f32 %v4072, 1.442695
    %v4078 = vpow.pop %v4077
    %v4079 = vadd.f32 %v4074, 1.0
    %v4080 = vadd.f32 %v4076, 1.0
    %v4081 = vadd.f32 %v4078, 1.0
    %v4082 = vrcp.pop %v4079
    %v4083 = vmul.f32 1.0, %v4082
    %v4084 = vrcp.pop %v4080
    %v4085 = vmul.f32 1.0, %v4084
    %v4086 = vrcp.pop %v4081
    %v4087 = vmul.f32 1.0, %v4086
    %v4088 = vtanh.pop %v4066
    %v4089 = vmul.f32 %v4085, %v3064
    %v4090 = vmul.f32 %v4083, %v4088
    %v4091 = vadd.f32 %v4089, %v4090
    %v4092 = vtanh.pop %v4091
    %v4093 = vmul.f32 %v4087, %v4092
    %4094 = vst [vmem:[#allocation2] sm:$0xff] %v4093
    %s4095 = scalar_lea.vmem %s1, 4
    %v4096 = vld [vmem:[%s4095] sm:$0xf]
    %v4097 = vld [vmem:[#allocation5] sm:$0xff]
    %v4098 = vld [vmem:[#allocation5 + $0x8] sm:$0xff]
    %v4099 = vld [vmem:[#allocation5 + $0x10] sm:$0xff]
    %v4100 = vld [vmem:[#allocation5 + $0x18] sm:$0xff]
    %v4101 = vld [vmem:[#allocation5 + $0x20] sm:$0xff]
    %v4102 = vld [vmem:[#allocation5 + $0x28] sm:$0xff]
    %v4103 = vld [vmem:[#allocation5 + $0x30] sm:$0xff]
    %v4104 = vld [vmem:[#allocation5 + $0x38] sm:$0xff]
    %v4105 = vld [vmem:[#allocation5 + $0x40] sm:$0xff]
    %v4106 = vld [vmem:[#allocation5 + $0x48] sm:$0xff]
    %v4107 = vld [vmem:[#allocation5 + $0x50] sm:$0xff]
    %v4108 = vld [vmem:[#allocation5 + $0x58] sm:$0xff]
    %v4109 = vld [vmem:[#allocation5 + $0x60] sm:$0xff]
    %v4110 = vld [vmem:[#allocation5 + $0x68] sm:$0xff]
    %v4111 = vld [vmem:[#allocation5 + $0x70] sm:$0xff]
    %v4112 = vld [vmem:[#allocation5 + $0x78] sm:$0xff]
    %v4113 = vld [vmem:[#allocation5 + $0x80] sm:$0xff]
    %v4114 = vld [vmem:[#allocation5 + $0x88] sm:$0xff]
    %v4115 = vld [vmem:[#allocation5 + $0x90] sm:$0xff]
    %v4116 = vld [vmem:[#allocation5 + $0x98] sm:$0xff]
    %v4117 = vld [vmem:[#allocation5 + $0xa0] sm:$0xff]
    %v4118 = vld [vmem:[#allocation5 + $0xa8] sm:$0xff]
    %v4119 = vld [vmem:[#allocation5 + $0xb0] sm:$0xff]
    %v4120 = vld [vmem:[#allocation5 + $0xb8] sm:$0xff]
    %v4121 = vld [vmem:[#allocation5 + $0xc0] sm:$0xff]
    %v4122 = vld [vmem:[#allocation5 + $0xc8] sm:$0xff]
    %v4123 = vld [vmem:[#allocation5 + $0xd0] sm:$0xff]
    %v4124 = vld [vmem:[#allocation5 + $0xd8] sm:$0xff]
    %v4125 = vld [vmem:[#allocation5 + $0xe0] sm:$0xff]
    %v4126 = vld [vmem:[#allocation5 + $0xe8] sm:$0xff]
    %v4127 = vld [vmem:[#allocation5 + $0xf0] sm:$0xff]
    %v4128 = vld [vmem:[#allocation5 + $0xf8] sm:$0xff]
    %v4129 = vld [vmem:[#allocation5 + $0x100] sm:$0xff]
    %v4130 = vld [vmem:[#allocation5 + $0x108] sm:$0xff]
    %v4131 = vld [vmem:[#allocation5 + $0x110] sm:$0xff]
    %v4132 = vld [vmem:[#allocation5 + $0x118] sm:$0xff]
    %v4133 = vld [vmem:[#allocation5 + $0x120] sm:$0xff]
    %v4134 = vld [vmem:[#allocation5 + $0x128] sm:$0xff]
    %v4135 = vld [vmem:[#allocation5 + $0x130] sm:$0xff]
    %v4136 = vld [vmem:[#allocation5 + $0x138] sm:$0xff]
    %v4137 = vld [vmem:[#allocation5 + $0x140] sm:$0xff]
    %v4138 = vld [vmem:[#allocation5 + $0x148] sm:$0xff]
    %v4139 = vld [vmem:[#allocation5 + $0x150] sm:$0xff]
    %v4140 = vld [vmem:[#allocation5 + $0x158] sm:$0xff]
    %v4141 = vld [vmem:[#allocation5 + $0x160] sm:$0xff]
    %v4142 = vld [vmem:[#allocation5 + $0x168] sm:$0xff]
    %v4143 = vld [vmem:[#allocation5 + $0x170] sm:$0xff]
    %v4144 = vld [vmem:[#allocation5 + $0x178] sm:$0xff]
    %v4145 = vld [vmem:[#allocation5 + $0x180] sm:$0xff]
    %v4146 = vld [vmem:[#allocation5 + $0x188] sm:$0xff]
    %v4147 = vld [vmem:[#allocation5 + $0x190] sm:$0xff]
    %v4148 = vld [vmem:[#allocation5 + $0x198] sm:$0xff]
    %v4149 = vld [vmem:[#allocation5 + $0x1a0] sm:$0xff]
    %v4150 = vld [vmem:[#allocation5 + $0x1a8] sm:$0xff]
    %v4151 = vld [vmem:[#allocation5 + $0x1b0] sm:$0xff]
    %v4152 = vld [vmem:[#allocation5 + $0x1b8] sm:$0xff]
    %v4153 = vld [vmem:[#allocation5 + $0x1c0] sm:$0xff]
    %v4154 = vld [vmem:[#allocation5 + $0x1c8] sm:$0xff]
    %v4155 = vld [vmem:[#allocation5 + $0x1d0] sm:$0xff]
    %v4156 = vld [vmem:[#allocation5 + $0x1d8] sm:$0xff]
    %v4157 = vld [vmem:[#allocation5 + $0x1e0] sm:$0xff]
    %v4158 = vld [vmem:[#allocation5 + $0x1e8] sm:$0xff]
    %v4159 = vld [vmem:[#allocation5 + $0x1f0] sm:$0xff]
    %v4160 = vld [vmem:[#allocation5 + $0x1f8] sm:$0xff]
    %v4161 = vld [vmem:[%s7] sm:$0xf]
    %v4163 = vlaneseq
    %v4164 = vshrl.u32 %v4163, 7
    %v4165 = vsub.s32 0, %v4164
    %v4166 = vrot.slane %v4161, %v4165
    %v4167 = vlaneseq
    %v4168 = vshrl.u32 %v4167, 7
    %v4169 = vsub.s32 1, %v4168
    %v4170 = vrot.slane %v4161, %v4169
    %v4171 = vlaneseq
    %v4172 = vshrl.u32 %v4171, 7
    %v4173 = vsub.s32 2, %v4172
    %v4174 = vrot.slane %v4161, %v4173
    %v4175 = vlaneseq
    %v4176 = vshrl.u32 %v4175, 7
    %v4177 = vsub.s32 3, %v4176
    %v4178 = vrot.slane %v4161, %v4177
    %v4247 = vunpack.c.l.b16 %v4097
    %v4248 = vunpack.c.h.b16 %v4097
    %v4249 = vunpack.c.l.b16 %v4098
    %v4250 = vunpack.c.h.b16 %v4098
    %v4251 = vunpack.c.l.b16 %v4099
    %v4252 = vunpack.c.h.b16 %v4099
    %v4253 = vunpack.c.l.b16 %v4100
    %v4254 = vunpack.c.h.b16 %v4100
    %v4255 = vunpack.c.l.b16 %v4101
    %v4256 = vunpack.c.h.b16 %v4101
    %v4257 = vunpack.c.l.b16 %v4102
    %v4258 = vunpack.c.h.b16 %v4102
    %v4259 = vunpack.c.l.b16 %v4103
    %v4260 = vunpack.c.h.b16 %v4103
    %v4261 = vunpack.c.l.b16 %v4104
    %v4262 = vunpack.c.h.b16 %v4104
    %v4263 = vunpack.c.l.b16 %v4105
    %v4264 = vunpack.c.h.b16 %v4105
    %v4265 = vunpack.c.l.b16 %v4106
    %v4266 = vunpack.c.h.b16 %v4106
    %v4267 = vunpack.c.l.b16 %v4107
    %v4268 = vunpack.c.h.b16 %v4107
    %v4269 = vunpack.c.l.b16 %v4108
    %v4270 = vunpack.c.h.b16 %v4108
    %v4271 = vunpack.c.l.b16 %v4109
    %v4272 = vunpack.c.h.b16 %v4109
    %v4273 = vunpack.c.l.b16 %v4110
    %v4274 = vunpack.c.h.b16 %v4110
    %v4275 = vunpack.c.l.b16 %v4111
    %v4276 = vunpack.c.h.b16 %v4111
    %v4277 = vunpack.c.l.b16 %v4112
    %v4278 = vunpack.c.h.b16 %v4112
    %v4279 = vunpack.c.l.b16 %v4113
    %v4280 = vunpack.c.h.b16 %v4113
    %v4281 = vunpack.c.l.b16 %v4114
    %v4282 = vunpack.c.h.b16 %v4114
    %v4283 = vunpack.c.l.b16 %v4115
    %v4284 = vunpack.c.h.b16 %v4115
    %v4285 = vunpack.c.l.b16 %v4116
    %v4286 = vunpack.c.h.b16 %v4116
    %v4287 = vunpack.c.l.b16 %v4117
    %v4288 = vunpack.c.h.b16 %v4117
    %v4289 = vunpack.c.l.b16 %v4118
    %v4290 = vunpack.c.h.b16 %v4118
    %v4291 = vunpack.c.l.b16 %v4119
    %v4292 = vunpack.c.h.b16 %v4119
    %v4293 = vunpack.c.l.b16 %v4120
    %v4294 = vunpack.c.h.b16 %v4120
    %v4295 = vunpack.c.l.b16 %v4121
    %v4296 = vunpack.c.h.b16 %v4121
    %v4297 = vunpack.c.l.b16 %v4122
    %v4298 = vunpack.c.h.b16 %v4122
    %v4299 = vunpack.c.l.b16 %v4123
    %v4300 = vunpack.c.h.b16 %v4123
    %v4301 = vunpack.c.l.b16 %v4124
    %v4302 = vunpack.c.h.b16 %v4124
    %v4303 = vunpack.c.l.b16 %v4125
    %v4304 = vunpack.c.h.b16 %v4125
    %v4305 = vunpack.c.l.b16 %v4126
    %v4306 = vunpack.c.h.b16 %v4126
    %v4307 = vunpack.c.l.b16 %v4127
    %v4308 = vunpack.c.h.b16 %v4127
    %v4309 = vunpack.c.l.b16 %v4128
    %v4310 = vunpack.c.h.b16 %v4128
    %v4311 = vunpack.c.l.b16 %v4129
    %v4312 = vunpack.c.h.b16 %v4129
    %v4313 = vunpack.c.l.b16 %v4130
    %v4314 = vunpack.c.h.b16 %v4130
    %v4315 = vunpack.c.l.b16 %v4131
    %v4316 = vunpack.c.h.b16 %v4131
    %v4317 = vunpack.c.l.b16 %v4132
    %v4318 = vunpack.c.h.b16 %v4132
    %v4319 = vunpack.c.l.b16 %v4133
    %v4320 = vunpack.c.h.b16 %v4133
    %v4321 = vunpack.c.l.b16 %v4134
    %v4322 = vunpack.c.h.b16 %v4134
    %v4323 = vunpack.c.l.b16 %v4135
    %v4324 = vunpack.c.h.b16 %v4135
    %v4325 = vunpack.c.l.b16 %v4136
    %v4326 = vunpack.c.h.b16 %v4136
    %v4327 = vunpack.c.l.b16 %v4137
    %v4328 = vunpack.c.h.b16 %v4137
    %v4329 = vunpack.c.l.b16 %v4138
    %v4330 = vunpack.c.h.b16 %v4138
    %v4331 = vunpack.c.l.b16 %v4139
    %v4332 = vunpack.c.h.b16 %v4139
    %v4333 = vunpack.c.l.b16 %v4140
    %v4334 = vunpack.c.h.b16 %v4140
    %v4335 = vunpack.c.l.b16 %v4141
    %v4336 = vunpack.c.h.b16 %v4141
    %v4337 = vunpack.c.l.b16 %v4142
    %v4338 = vunpack.c.h.b16 %v4142
    %v4339 = vunpack.c.l.b16 %v4143
    %v4340 = vunpack.c.h.b16 %v4143
    %v4341 = vunpack.c.l.b16 %v4144
    %v4342 = vunpack.c.h.b16 %v4144
    %v4343 = vunpack.c.l.b16 %v4145
    %v4344 = vunpack.c.h.b16 %v4145
    %v4345 = vunpack.c.l.b16 %v4146
    %v4346 = vunpack.c.h.b16 %v4146
    %v4347 = vunpack.c.l.b16 %v4147
    %v4348 = vunpack.c.h.b16 %v4147
    %v4349 = vunpack.c.l.b16 %v4148
    %v4350 = vunpack.c.h.b16 %v4148
    %v4351 = vunpack.c.l.b16 %v4149
    %v4352 = vunpack.c.h.b16 %v4149
    %v4353 = vunpack.c.l.b16 %v4150
    %v4354 = vunpack.c.h.b16 %v4150
    %v4355 = vunpack.c.l.b16 %v4151
    %v4356 = vunpack.c.h.b16 %v4151
    %v4357 = vunpack.c.l.b16 %v4152
    %v4358 = vunpack.c.h.b16 %v4152
    %v4359 = vunpack.c.l.b16 %v4153
    %v4360 = vunpack.c.h.b16 %v4153
    %v4361 = vunpack.c.l.b16 %v4154
    %v4362 = vunpack.c.h.b16 %v4154
    %v4363 = vunpack.c.l.b16 %v4155
    %v4364 = vunpack.c.h.b16 %v4155
    %v4365 = vunpack.c.l.b16 %v4156
    %v4366 = vunpack.c.h.b16 %v4156
    %v4367 = vunpack.c.l.b16 %v4157
    %v4368 = vunpack.c.h.b16 %v4157
    %v4369 = vunpack.c.l.b16 %v4158
    %v4370 = vunpack.c.h.b16 %v4158
    %v4371 = vunpack.c.l.b16 %v4159
    %v4372 = vunpack.c.h.b16 %v4159
    %v4373 = vunpack.c.l.b16 %v4160
    %v4374 = vunpack.c.h.b16 %v4160
    %v4375 = vpack.c.b16 %v4251, %v4247
    %v4376 = vpack.c.b16 %v4252, %v4248
    %v4377 = vpack.c.b16 %v4253, %v4249
    %v4378 = vpack.c.b16 %v4254, %v4250
    %v4379 = vpack.c.b16 %v4259, %v4255
    %v4380 = vpack.c.b16 %v4260, %v4256
    %v4381 = vpack.c.b16 %v4261, %v4257
    %v4382 = vpack.c.b16 %v4262, %v4258
    %v4383 = vpack.c.b16 %v4267, %v4263
    %v4384 = vpack.c.b16 %v4268, %v4264
    %v4385 = vpack.c.b16 %v4269, %v4265
    %v4386 = vpack.c.b16 %v4270, %v4266
    %v4387 = vpack.c.b16 %v4275, %v4271
    %v4388 = vpack.c.b16 %v4276, %v4272
    %v4389 = vpack.c.b16 %v4277, %v4273
    %v4390 = vpack.c.b16 %v4278, %v4274
    %v4391 = vpack.c.b16 %v4283, %v4279
    %v4392 = vpack.c.b16 %v4284, %v4280
    %v4393 = vpack.c.b16 %v4285, %v4281
    %v4394 = vpack.c.b16 %v4286, %v4282
    %v4395 = vpack.c.b16 %v4291, %v4287
    %v4396 = vpack.c.b16 %v4292, %v4288
    %v4397 = vpack.c.b16 %v4293, %v4289
    %v4398 = vpack.c.b16 %v4294, %v4290
    %v4399 = vpack.c.b16 %v4299, %v4295
    %v4400 = vpack.c.b16 %v4300, %v4296
    %v4401 = vpack.c.b16 %v4301, %v4297
    %v4402 = vpack.c.b16 %v4302, %v4298
    %v4403 = vpack.c.b16 %v4307, %v4303
    %v4404 = vpack.c.b16 %v4308, %v4304
    %v4405 = vpack.c.b16 %v4309, %v4305
    %v4406 = vpack.c.b16 %v4310, %v4306
    %v4407 = vpack.c.b16 %v4315, %v4311
    %v4408 = vpack.c.b16 %v4316, %v4312
    %v4409 = vpack.c.b16 %v4317, %v4313
    %v4410 = vpack.c.b16 %v4318, %v4314
    %v4411 = vpack.c.b16 %v4323, %v4319
    %v4412 = vpack.c.b16 %v4324, %v4320
    %v4413 = vpack.c.b16 %v4325, %v4321
    %v4414 = vpack.c.b16 %v4326, %v4322
    %v4415 = vpack.c.b16 %v4331, %v4327
    %v4416 = vpack.c.b16 %v4332, %v4328
    %v4417 = vpack.c.b16 %v4333, %v4329
    %v4418 = vpack.c.b16 %v4334, %v4330
    %v4419 = vpack.c.b16 %v4339, %v4335
    %v4420 = vpack.c.b16 %v4340, %v4336
    %v4421 = vpack.c.b16 %v4341, %v4337
    %v4422 = vpack.c.b16 %v4342, %v4338
    %v4423 = vpack.c.b16 %v4347, %v4343
    %v4424 = vpack.c.b16 %v4348, %v4344
    %v4425 = vpack.c.b16 %v4349, %v4345
    %v4426 = vpack.c.b16 %v4350, %v4346
    %v4427 = vpack.c.b16 %v4355, %v4351
    %v4428 = vpack.c.b16 %v4356, %v4352
    %v4429 = vpack.c.b16 %v4357, %v4353
    %v4430 = vpack.c.b16 %v4358, %v4354
    %v4431 = vpack.c.b16 %v4363, %v4359
    %v4432 = vpack.c.b16 %v4364, %v4360
    %v4433 = vpack.c.b16 %v4365, %v4361
    %v4434 = vpack.c.b16 %v4366, %v4362
    %v4435 = vpack.c.b16 %v4371, %v4367
    %v4436 = vpack.c.b16 %v4372, %v4368
    %v4437 = vpack.c.b16 %v4373, %v4369
    %v4438 = vpack.c.b16 %v4374, %v4370
    %4503 = vmatprep.subr.bf16.mxu0 %v4404
    %4504 = vmatpush1.bf16.msra.mxu0 %v4403
    %4505 = vmatprep.subr.bf16.mxu0 %v4400
    %4506 = vmatpush1.bf16.msra.mxu0 %v4399
    %4507 = vmatprep.subr.bf16.mxu0 %v4396
    %4508 = vmatpush1.bf16.msra.mxu0 %v4395
    %4509 = vmatprep.subr.bf16.mxu0 %v4392
    %4510 = vmatpush1.bf16.msra.mxu0 %v4391
    %4511 = vmatprep.subr.bf16.mxu0 %v4388
    %4512 = vmatpush1.bf16.msra.mxu0 %v4387
    %4513 = vmatprep.subr.bf16.mxu0 %v4384
    %4514 = vmatpush1.bf16.msra.mxu0 %v4383
    %4515 = vmatprep.subr.bf16.mxu0 %v4380
    %4516 = vmatpush1.bf16.msra.mxu0 %v4379
    %4517 = vmatprep.subr.bf16.mxu0 %v4376
    %4518 = vmatpush1.bf16.msra.mxu0 %v4375
    %4519 = vmatprep.subr.bf16.mxu0 %v4436
    %4520 = vmatpush2.bf16.msra.mxu0 %v4435
    %4521 = vmatprep.subr.bf16.mxu0 %v4432
    %4522 = vmatpush2.bf16.msra.mxu0 %v4431
    %4523 = vmatprep.subr.bf16.mxu0 %v4428
    %4524 = vmatpush2.bf16.msra.mxu0 %v4427
    %4525 = vmatprep.subr.bf16.mxu0 %v4424
    %4526 = vmatpush2.bf16.msra.mxu0 %v4423
    %4527 = vmatprep.subr.bf16.mxu0 %v4420
    %4528 = vmatpush2.bf16.msra.mxu0 %v4419
    %4529 = vmatprep.subr.bf16.mxu0 %v4416
    %4530 = vmatpush2.bf16.msra.mxu0 %v4415
    %4531 = vmatprep.subr.bf16.mxu0 %v4412
    %4532 = vmatpush2.bf16.msra.mxu0 %v4411
    %4533 = vmatprep.subr.bf16.mxu0 %v4408
    %4534 = vmatpush2.bf16.msra.mxu0 %v4407
    %4535 = vmatprep.mubr.bf16.mxu0 %v3580
    %4536 = vmatmul.mubr.bf16.gmra.mxu0 %v4096
    %v4537 = vpop.f32.mrf.mxu0
    %v4538 = vadd.f32 %v4166, %v4537
    %v4539 = vpop.f32.mrf.mxu0
    %v4540 = vadd.f32 %v4170, %v4539
    %v4541 = vpop.f32.mrf.mxu0
    %v4542 = vpop.f32.mrf.mxu0
    %4543 = vdwg.mxu0
    %4544 = vmatprep.subr.bf16.mxu0 %v4406
    %4545 = vmatpush1.bf16.msra.mxu0 %v4405
    %4546 = vmatprep.subr.bf16.mxu0 %v4402
    %4547 = vmatpush1.bf16.msra.mxu0 %v4401
    %4548 = vmatprep.subr.bf16.mxu0 %v4398
    %4549 = vmatpush1.bf16.msra.mxu0 %v4397
    %4550 = vmatprep.subr.bf16.mxu0 %v4394
    %4551 = vmatpush1.bf16.msra.mxu0 %v4393
    %4552 = vmatprep.subr.bf16.mxu0 %v4390
    %4553 = vmatpush1.bf16.msra.mxu0 %v4389
    %4554 = vmatprep.subr.bf16.mxu0 %v4386
    %4555 = vmatpush1.bf16.msra.mxu0 %v4385
    %4556 = vmatprep.subr.bf16.mxu0 %v4382
    %4557 = vmatpush1.bf16.msra.mxu0 %v4381
    %4558 = vmatprep.subr.bf16.mxu0 %v4378
    %4559 = vmatpush1.bf16.msra.mxu0 %v4377
    %4560 = vmatprep.subr.bf16.mxu0 %v4438
    %4561 = vmatpush2.bf16.msra.mxu0 %v4437
    %4562 = vmatprep.subr.bf16.mxu0 %v4434
    %4563 = vmatpush2.bf16.msra.mxu0 %v4433
    %4564 = vmatprep.subr.bf16.mxu0 %v4430
    %4565 = vmatpush2.bf16.msra.mxu0 %v4429
    %4566 = vmatprep.subr.bf16.mxu0 %v4426
    %4567 = vmatpush2.bf16.msra.mxu0 %v4425
    %4568 = vmatprep.subr.bf16.mxu0 %v4422
    %4569 = vmatpush2.bf16.msra.mxu0 %v4421
    %4570 = vmatprep.subr.bf16.mxu0 %v4418
    %4571 = vmatpush2.bf16.msra.mxu0 %v4417
    %4572 = vmatprep.subr.bf16.mxu0 %v4414
    %4573 = vmatpush2.bf16.msra.mxu0 %v4413
    %4574 = vmatprep.subr.bf16.mxu0 %v4410
    %4575 = vmatpush2.bf16.msra.mxu0 %v4409
    %4576 = vmatprep.mubr.bf16.mxu0 %v3580
    %4577 = vmatmul.mubr.bf16.gmra.mxu0 %v4096
    %v4578 = vpop.f32.mrf.mxu0
    %v4579 = vadd.f32 %v4174, %v4578
    %v4580 = vpop.f32.mrf.mxu0
    %v4581 = vadd.f32 %v4178, %v4580
    %v4582 = vpop.f32.mrf.mxu0
    %v4583 = vpop.f32.mrf.mxu0
    %4584 = vdwg.mxu0
    %v4585 = vxor.u32 %v4538, 2147483648
    %v4586 = vxor.u32 %v4540, 2147483648
    %v4587 = vxor.u32 %v4579, 2147483648
    %v4588 = vmul.f32 %v4585, 1.442695
    %v4589 = vpow.pop %v4588
    %v4590 = vmul.f32 %v4586, 1.442695
    %v4591 = vpow.pop %v4590
    %v4592 = vmul.f32 %v4587, 1.442695
    %v4593 = vpow.pop %v4592
    %v4594 = vadd.f32 %v4589, 1.0
    %v4595 = vadd.f32 %v4591, 1.0
    %v4596 = vadd.f32 %v4593, 1.0
    %v4597 = vrcp.pop %v4594
    %v4598 = vmul.f32 1.0, %v4597
    %v4599 = vrcp.pop %v4595
    %v4600 = vmul.f32 1.0, %v4599
    %v4601 = vrcp.pop %v4596
    %v4602 = vmul.f32 1.0, %v4601
    %v4603 = vtanh.pop %v4581
    %v4604 = vmul.f32 %v4600, %v3577
    %v4605 = vmul.f32 %v4598, %v4603
    %v4606 = vadd.f32 %v4604, %v4605
    %v4607 = vtanh.pop %v4606
    %v4608 = vmul.f32 %v4602, %v4607
    %v4609 = vpack.c.bf16 %v4608, %v4608
    %v4610 = vpack.c.bf16 %v4093, %v4093
    %v4611 = vld [vmem:[#allocation7] sm:$0xff]
    %v4612 = vld [vmem:[#allocation7 + $0x8] sm:$0xff]
    %v4613 = vld [vmem:[#allocation7 + $0x10] sm:$0xff]
    %v4614 = vld [vmem:[#allocation7 + $0x18] sm:$0xff]
    %v4615 = vld [vmem:[#allocation7 + $0x20] sm:$0xff]
    %v4616 = vld [vmem:[#allocation7 + $0x28] sm:$0xff]
    %v4617 = vld [vmem:[#allocation7 + $0x30] sm:$0xff]
    %v4618 = vld [vmem:[#allocation7 + $0x38] sm:$0xff]
    %v4619 = vld [vmem:[#allocation7 + $0x40] sm:$0xff]
    %v4620 = vld [vmem:[#allocation7 + $0x48] sm:$0xff]
    %v4621 = vld [vmem:[#allocation7 + $0x50] sm:$0xff]
    %v4622 = vld [vmem:[#allocation7 + $0x58] sm:$0xff]
    %v4623 = vld [vmem:[#allocation7 + $0x60] sm:$0xff]
    %v4624 = vld [vmem:[#allocation7 + $0x68] sm:$0xff]
    %v4625 = vld [vmem:[#allocation7 + $0x70] sm:$0xff]
    %v4626 = vld [vmem:[#allocation7 + $0x78] sm:$0xff]
    %v4627 = vld [vmem:[#allocation7 + $0x80] sm:$0xff]
    %v4628 = vld [vmem:[#allocation7 + $0x88] sm:$0xff]
    %v4629 = vld [vmem:[#allocation7 + $0x90] sm:$0xff]
    %v4630 = vld [vmem:[#allocation7 + $0x98] sm:$0xff]
    %v4631 = vld [vmem:[#allocation7 + $0xa0] sm:$0xff]
    %v4632 = vld [vmem:[#allocation7 + $0xa8] sm:$0xff]
    %v4633 = vld [vmem:[#allocation7 + $0xb0] sm:$0xff]
    %v4634 = vld [vmem:[#allocation7 + $0xb8] sm:$0xff]
    %v4635 = vld [vmem:[#allocation7 + $0xc0] sm:$0xff]
    %v4636 = vld [vmem:[#allocation7 + $0xc8] sm:$0xff]
    %v4637 = vld [vmem:[#allocation7 + $0xd0] sm:$0xff]
    %v4638 = vld [vmem:[#allocation7 + $0xd8] sm:$0xff]
    %v4639 = vld [vmem:[#allocation7 + $0xe0] sm:$0xff]
    %v4640 = vld [vmem:[#allocation7 + $0xe8] sm:$0xff]
    %v4641 = vld [vmem:[#allocation7 + $0xf0] sm:$0xff]
    %v4642 = vld [vmem:[#allocation7 + $0xf8] sm:$0xff]
    %v4643 = vld [vmem:[#allocation7 + $0x100] sm:$0xff]
    %v4644 = vld [vmem:[#allocation7 + $0x108] sm:$0xff]
    %v4645 = vld [vmem:[#allocation7 + $0x110] sm:$0xff]
    %v4646 = vld [vmem:[#allocation7 + $0x118] sm:$0xff]
    %v4647 = vld [vmem:[#allocation7 + $0x120] sm:$0xff]
    %v4648 = vld [vmem:[#allocation7 + $0x128] sm:$0xff]
    %v4649 = vld [vmem:[#allocation7 + $0x130] sm:$0xff]
    %v4650 = vld [vmem:[#allocation7 + $0x138] sm:$0xff]
    %v4651 = vld [vmem:[#allocation7 + $0x140] sm:$0xff]
    %v4652 = vld [vmem:[#allocation7 + $0x148] sm:$0xff]
    %v4653 = vld [vmem:[#allocation7 + $0x150] sm:$0xff]
    %v4654 = vld [vmem:[#allocation7 + $0x158] sm:$0xff]
    %v4655 = vld [vmem:[#allocation7 + $0x160] sm:$0xff]
    %v4656 = vld [vmem:[#allocation7 + $0x168] sm:$0xff]
    %v4657 = vld [vmem:[#allocation7 + $0x170] sm:$0xff]
    %v4658 = vld [vmem:[#allocation7 + $0x178] sm:$0xff]
    %v4659 = vld [vmem:[#allocation7 + $0x180] sm:$0xff]
    %v4660 = vld [vmem:[#allocation7 + $0x188] sm:$0xff]
    %v4661 = vld [vmem:[#allocation7 + $0x190] sm:$0xff]
    %v4662 = vld [vmem:[#allocation7 + $0x198] sm:$0xff]
    %v4663 = vld [vmem:[#allocation7 + $0x1a0] sm:$0xff]
    %v4664 = vld [vmem:[#allocation7 + $0x1a8] sm:$0xff]
    %v4665 = vld [vmem:[#allocation7 + $0x1b0] sm:$0xff]
    %v4666 = vld [vmem:[#allocation7 + $0x1b8] sm:$0xff]
    %v4667 = vld [vmem:[#allocation7 + $0x1c0] sm:$0xff]
    %v4668 = vld [vmem:[#allocation7 + $0x1c8] sm:$0xff]
    %v4669 = vld [vmem:[#allocation7 + $0x1d0] sm:$0xff]
    %v4670 = vld [vmem:[#allocation7 + $0x1d8] sm:$0xff]
    %v4671 = vld [vmem:[#allocation7 + $0x1e0] sm:$0xff]
    %v4672 = vld [vmem:[#allocation7 + $0x1e8] sm:$0xff]
    %v4673 = vld [vmem:[#allocation7 + $0x1f0] sm:$0xff]
    %v4674 = vld [vmem:[#allocation7 + $0x1f8] sm:$0xff]
    %v4675 = vld [vmem:[%s9] sm:$0xf]
    %v4677 = vlaneseq
    %v4678 = vshrl.u32 %v4677, 7
    %v4679 = vsub.s32 0, %v4678
    %v4680 = vrot.slane %v4675, %v4679
    %v4681 = vlaneseq
    %v4682 = vshrl.u32 %v4681, 7
    %v4683 = vsub.s32 1, %v4682
    %v4684 = vrot.slane %v4675, %v4683
    %v4685 = vlaneseq
    %v4686 = vshrl.u32 %v4685, 7
    %v4687 = vsub.s32 2, %v4686
    %v4688 = vrot.slane %v4675, %v4687
    %v4689 = vlaneseq
    %v4690 = vshrl.u32 %v4689, 7
    %v4691 = vsub.s32 3, %v4690
    %v4692 = vrot.slane %v4675, %v4691
    %v4761 = vunpack.c.l.b16 %v4611
    %v4762 = vunpack.c.h.b16 %v4611
    %v4763 = vunpack.c.l.b16 %v4612
    %v4764 = vunpack.c.h.b16 %v4612
    %v4765 = vunpack.c.l.b16 %v4613
    %v4766 = vunpack.c.h.b16 %v4613
    %v4767 = vunpack.c.l.b16 %v4614
    %v4768 = vunpack.c.h.b16 %v4614
    %v4769 = vunpack.c.l.b16 %v4615
    %v4770 = vunpack.c.h.b16 %v4615
    %v4771 = vunpack.c.l.b16 %v4616
    %v4772 = vunpack.c.h.b16 %v4616
    %v4773 = vunpack.c.l.b16 %v4617
    %v4774 = vunpack.c.h.b16 %v4617
    %v4775 = vunpack.c.l.b16 %v4618
    %v4776 = vunpack.c.h.b16 %v4618
    %v4777 = vunpack.c.l.b16 %v4619
    %v4778 = vunpack.c.h.b16 %v4619
    %v4779 = vunpack.c.l.b16 %v4620
    %v4780 = vunpack.c.h.b16 %v4620
    %v4781 = vunpack.c.l.b16 %v4621
    %v4782 = vunpack.c.h.b16 %v4621
    %v4783 = vunpack.c.l.b16 %v4622
    %v4784 = vunpack.c.h.b16 %v4622
    %v4785 = vunpack.c.l.b16 %v4623
    %v4786 = vunpack.c.h.b16 %v4623
    %v4787 = vunpack.c.l.b16 %v4624
    %v4788 = vunpack.c.h.b16 %v4624
    %v4789 = vunpack.c.l.b16 %v4625
    %v4790 = vunpack.c.h.b16 %v4625
    %v4791 = vunpack.c.l.b16 %v4626
    %v4792 = vunpack.c.h.b16 %v4626
    %v4793 = vunpack.c.l.b16 %v4627
    %v4794 = vunpack.c.h.b16 %v4627
    %v4795 = vunpack.c.l.b16 %v4628
    %v4796 = vunpack.c.h.b16 %v4628
    %v4797 = vunpack.c.l.b16 %v4629
    %v4798 = vunpack.c.h.b16 %v4629
    %v4799 = vunpack.c.l.b16 %v4630
    %v4800 = vunpack.c.h.b16 %v4630
    %v4801 = vunpack.c.l.b16 %v4631
    %v4802 = vunpack.c.h.b16 %v4631
    %v4803 = vunpack.c.l.b16 %v4632
    %v4804 = vunpack.c.h.b16 %v4632
    %v4805 = vunpack.c.l.b16 %v4633
    %v4806 = vunpack.c.h.b16 %v4633
    %v4807 = vunpack.c.l.b16 %v4634
    %v4808 = vunpack.c.h.b16 %v4634
    %v4809 = vunpack.c.l.b16 %v4635
    %v4810 = vunpack.c.h.b16 %v4635
    %v4811 = vunpack.c.l.b16 %v4636
    %v4812 = vunpack.c.h.b16 %v4636
    %v4813 = vunpack.c.l.b16 %v4637
    %v4814 = vunpack.c.h.b16 %v4637
    %v4815 = vunpack.c.l.b16 %v4638
    %v4816 = vunpack.c.h.b16 %v4638
    %v4817 = vunpack.c.l.b16 %v4639
    %v4818 = vunpack.c.h.b16 %v4639
    %v4819 = vunpack.c.l.b16 %v4640
    %v4820 = vunpack.c.h.b16 %v4640
    %v4821 = vunpack.c.l.b16 %v4641
    %v4822 = vunpack.c.h.b16 %v4641
    %v4823 = vunpack.c.l.b16 %v4642
    %v4824 = vunpack.c.h.b16 %v4642
    %v4825 = vunpack.c.l.b16 %v4643
    %v4826 = vunpack.c.h.b16 %v4643
    %v4827 = vunpack.c.l.b16 %v4644
    %v4828 = vunpack.c.h.b16 %v4644
    %v4829 = vunpack.c.l.b16 %v4645
    %v4830 = vunpack.c.h.b16 %v4645
    %v4831 = vunpack.c.l.b16 %v4646
    %v4832 = vunpack.c.h.b16 %v4646
    %v4833 = vunpack.c.l.b16 %v4647
    %v4834 = vunpack.c.h.b16 %v4647
    %v4835 = vunpack.c.l.b16 %v4648
    %v4836 = vunpack.c.h.b16 %v4648
    %v4837 = vunpack.c.l.b16 %v4649
    %v4838 = vunpack.c.h.b16 %v4649
    %v4839 = vunpack.c.l.b16 %v4650
    %v4840 = vunpack.c.h.b16 %v4650
    %v4841 = vunpack.c.l.b16 %v4651
    %v4842 = vunpack.c.h.b16 %v4651
    %v4843 = vunpack.c.l.b16 %v4652
    %v4844 = vunpack.c.h.b16 %v4652
    %v4845 = vunpack.c.l.b16 %v4653
    %v4846 = vunpack.c.h.b16 %v4653
    %v4847 = vunpack.c.l.b16 %v4654
    %v4848 = vunpack.c.h.b16 %v4654
    %v4849 = vunpack.c.l.b16 %v4655
    %v4850 = vunpack.c.h.b16 %v4655
    %v4851 = vunpack.c.l.b16 %v4656
    %v4852 = vunpack.c.h.b16 %v4656
    %v4853 = vunpack.c.l.b16 %v4657
    %v4854 = vunpack.c.h.b16 %v4657
    %v4855 = vunpack.c.l.b16 %v4658
    %v4856 = vunpack.c.h.b16 %v4658
    %v4857 = vunpack.c.l.b16 %v4659
    %v4858 = vunpack.c.h.b16 %v4659
    %v4859 = vunpack.c.l.b16 %v4660
    %v4860 = vunpack.c.h.b16 %v4660
    %v4861 = vunpack.c.l.b16 %v4661
    %v4862 = vunpack.c.h.b16 %v4661
    %v4863 = vunpack.c.l.b16 %v4662
    %v4864 = vunpack.c.h.b16 %v4662
    %v4865 = vunpack.c.l.b16 %v4663
    %v4866 = vunpack.c.h.b16 %v4663
    %v4867 = vunpack.c.l.b16 %v4664
    %v4868 = vunpack.c.h.b16 %v4664
    %v4869 = vunpack.c.l.b16 %v4665
    %v4870 = vunpack.c.h.b16 %v4665
    %v4871 = vunpack.c.l.b16 %v4666
    %v4872 = vunpack.c.h.b16 %v4666
    %v4873 = vunpack.c.l.b16 %v4667
    %v4874 = vunpack.c.h.b16 %v4667
    %v4875 = vunpack.c.l.b16 %v4668
    %v4876 = vunpack.c.h.b16 %v4668
    %v4877 = vunpack.c.l.b16 %v4669
    %v4878 = vunpack.c.h.b16 %v4669
    %v4879 = vunpack.c.l.b16 %v4670
    %v4880 = vunpack.c.h.b16 %v4670
    %v4881 = vunpack.c.l.b16 %v4671
    %v4882 = vunpack.c.h.b16 %v4671
    %v4883 = vunpack.c.l.b16 %v4672
    %v4884 = vunpack.c.h.b16 %v4672
    %v4885 = vunpack.c.l.b16 %v4673
    %v4886 = vunpack.c.h.b16 %v4673
    %v4887 = vunpack.c.l.b16 %v4674
    %v4888 = vunpack.c.h.b16 %v4674
    %v4889 = vpack.c.b16 %v4765, %v4761
    %v4890 = vpack.c.b16 %v4766, %v4762
    %v4891 = vpack.c.b16 %v4767, %v4763
    %v4892 = vpack.c.b16 %v4768, %v4764
    %v4893 = vpack.c.b16 %v4773, %v4769
    %v4894 = vpack.c.b16 %v4774, %v4770
    %v4895 = vpack.c.b16 %v4775, %v4771
    %v4896 = vpack.c.b16 %v4776, %v4772
    %v4897 = vpack.c.b16 %v4781, %v4777
    %v4898 = vpack.c.b16 %v4782, %v4778
    %v4899 = vpack.c.b16 %v4783, %v4779
    %v4900 = vpack.c.b16 %v4784, %v4780
    %v4901 = vpack.c.b16 %v4789, %v4785
    %v4902 = vpack.c.b16 %v4790, %v4786
    %v4903 = vpack.c.b16 %v4791, %v4787
    %v4904 = vpack.c.b16 %v4792, %v4788
    %v4905 = vpack.c.b16 %v4797, %v4793
    %v4906 = vpack.c.b16 %v4798, %v4794
    %v4907 = vpack.c.b16 %v4799, %v4795
    %v4908 = vpack.c.b16 %v4800, %v4796
    %v4909 = vpack.c.b16 %v4805, %v4801
    %v4910 = vpack.c.b16 %v4806, %v4802
    %v4911 = vpack.c.b16 %v4807, %v4803
    %v4912 = vpack.c.b16 %v4808, %v4804
    %v4913 = vpack.c.b16 %v4813, %v4809
    %v4914 = vpack.c.b16 %v4814, %v4810
    %v4915 = vpack.c.b16 %v4815, %v4811
    %v4916 = vpack.c.b16 %v4816, %v4812
    %v4917 = vpack.c.b16 %v4821, %v4817
    %v4918 = vpack.c.b16 %v4822, %v4818
    %v4919 = vpack.c.b16 %v4823, %v4819
    %v4920 = vpack.c.b16 %v4824, %v4820
    %v4921 = vpack.c.b16 %v4829, %v4825
    %v4922 = vpack.c.b16 %v4830, %v4826
    %v4923 = vpack.c.b16 %v4831, %v4827
    %v4924 = vpack.c.b16 %v4832, %v4828
    %v4925 = vpack.c.b16 %v4837, %v4833
    %v4926 = vpack.c.b16 %v4838, %v4834
    %v4927 = vpack.c.b16 %v4839, %v4835
    %v4928 = vpack.c.b16 %v4840, %v4836
    %v4929 = vpack.c.b16 %v4845, %v4841
    %v4930 = vpack.c.b16 %v4846, %v4842
    %v4931 = vpack.c.b16 %v4847, %v4843
    %v4932 = vpack.c.b16 %v4848, %v4844
    %v4933 = vpack.c.b16 %v4853, %v4849
    %v4934 = vpack.c.b16 %v4854, %v4850
    %v4935 = vpack.c.b16 %v4855, %v4851
    %v4936 = vpack.c.b16 %v4856, %v4852
    %v4937 = vpack.c.b16 %v4861, %v4857
    %v4938 = vpack.c.b16 %v4862, %v4858
    %v4939 = vpack.c.b16 %v4863, %v4859
    %v4940 = vpack.c.b16 %v4864, %v4860
    %v4941 = vpack.c.b16 %v4869, %v4865
    %v4942 = vpack.c.b16 %v4870, %v4866
    %v4943 = vpack.c.b16 %v4871, %v4867
    %v4944 = vpack.c.b16 %v4872, %v4868
    %v4945 = vpack.c.b16 %v4877, %v4873
    %v4946 = vpack.c.b16 %v4878, %v4874
    %v4947 = vpack.c.b16 %v4879, %v4875
    %v4948 = vpack.c.b16 %v4880, %v4876
    %v4949 = vpack.c.b16 %v4885, %v4881
    %v4950 = vpack.c.b16 %v4886, %v4882
    %v4951 = vpack.c.b16 %v4887, %v4883
    %v4952 = vpack.c.b16 %v4888, %v4884
    %5017 = vmatprep.subr.bf16.mxu0 %v4918
    %5018 = vmatpush1.bf16.msra.mxu0 %v4917
    %5019 = vmatprep.subr.bf16.mxu0 %v4914
    %5020 = vmatpush1.bf16.msra.mxu0 %v4913
    %5021 = vmatprep.subr.bf16.mxu0 %v4910
    %5022 = vmatpush1.bf16.msra.mxu0 %v4909
    %5023 = vmatprep.subr.bf16.mxu0 %v4906
    %5024 = vmatpush1.bf16.msra.mxu0 %v4905
    %5025 = vmatprep.subr.bf16.mxu0 %v4902
    %5026 = vmatpush1.bf16.msra.mxu0 %v4901
    %5027 = vmatprep.subr.bf16.mxu0 %v4898
    %5028 = vmatpush1.bf16.msra.mxu0 %v4897
    %5029 = vmatprep.subr.bf16.mxu0 %v4894
    %5030 = vmatpush1.bf16.msra.mxu0 %v4893
    %5031 = vmatprep.subr.bf16.mxu0 %v4890
    %5032 = vmatpush1.bf16.msra.mxu0 %v4889
    %5033 = vmatprep.subr.bf16.mxu0 %v4950
    %5034 = vmatpush2.bf16.msra.mxu0 %v4949
    %5035 = vmatprep.subr.bf16.mxu0 %v4946
    %5036 = vmatpush2.bf16.msra.mxu0 %v4945
    %5037 = vmatprep.subr.bf16.mxu0 %v4942
    %5038 = vmatpush2.bf16.msra.mxu0 %v4941
    %5039 = vmatprep.subr.bf16.mxu0 %v4938
    %5040 = vmatpush2.bf16.msra.mxu0 %v4937
    %5041 = vmatprep.subr.bf16.mxu0 %v4934
    %5042 = vmatpush2.bf16.msra.mxu0 %v4933
    %5043 = vmatprep.subr.bf16.mxu0 %v4930
    %5044 = vmatpush2.bf16.msra.mxu0 %v4929
    %5045 = vmatprep.subr.bf16.mxu0 %v4926
    %5046 = vmatpush2.bf16.msra.mxu0 %v4925
    %5047 = vmatprep.subr.bf16.mxu0 %v4922
    %5048 = vmatpush2.bf16.msra.mxu0 %v4921
    %5049 = vmatprep.mubr.bf16.mxu0 %v4610
    %5050 = vmatmul.mubr.bf16.gmra.mxu0 %v4609
    %v5051 = vpop.f32.mrf.mxu0
    %v5052 = vadd.f32 %v4680, %v5051
    %v5053 = vpop.f32.mrf.mxu0
    %v5054 = vadd.f32 %v4684, %v5053
    %v5055 = vpop.f32.mrf.mxu0
    %v5056 = vpop.f32.mrf.mxu0
    %5057 = vdwg.mxu0
    %5058 = vmatprep.subr.bf16.mxu0 %v4920
    %5059 = vmatpush1.bf16.msra.mxu0 %v4919
    %5060 = vmatprep.subr.bf16.mxu0 %v4916
    %5061 = vmatpush1.bf16.msra.mxu0 %v4915
    %5062 = vmatprep.subr.bf16.mxu0 %v4912
    %5063 = vmatpush1.bf16.msra.mxu0 %v4911
    %5064 = vmatprep.subr.bf16.mxu0 %v4908
    %5065 = vmatpush1.bf16.msra.mxu0 %v4907
    %5066 = vmatprep.subr.bf16.mxu0 %v4904
    %5067 = vmatpush1.bf16.msra.mxu0 %v4903
    %5068 = vmatprep.subr.bf16.mxu0 %v4900
    %5069 = vmatpush1.bf16.msra.mxu0 %v4899
    %5070 = vmatprep.subr.bf16.mxu0 %v4896
    %5071 = vmatpush1.bf16.msra.mxu0 %v4895
    %5072 = vmatprep.subr.bf16.mxu0 %v4892
    %5073 = vmatpush1.bf16.msra.mxu0 %v4891
    %5074 = vmatprep.subr.bf16.mxu0 %v4952
    %5075 = vmatpush2.bf16.msra.mxu0 %v4951
    %5076 = vmatprep.subr.bf16.mxu0 %v4948
    %5077 = vmatpush2.bf16.msra.mxu0 %v4947
    %5078 = vmatprep.subr.bf16.mxu0 %v4944
    %5079 = vmatpush2.bf16.msra.mxu0 %v4943
    %5080 = vmatprep.subr.bf16.mxu0 %v4940
    %5081 = vmatpush2.bf16.msra.mxu0 %v4939
    %5082 = vmatprep.subr.bf16.mxu0 %v4936
    %5083 = vmatpush2.bf16.msra.mxu0 %v4935
    %5084 = vmatprep.subr.bf16.mxu0 %v4932
    %5085 = vmatpush2.bf16.msra.mxu0 %v4931
    %5086 = vmatprep.subr.bf16.mxu0 %v4928
    %5087 = vmatpush2.bf16.msra.mxu0 %v4927
    %5088 = vmatprep.subr.bf16.mxu0 %v4924
    %5089 = vmatpush2.bf16.msra.mxu0 %v4923
    %5090 = vmatprep.mubr.bf16.mxu0 %v4610
    %5091 = vmatmul.mubr.bf16.gmra.mxu0 %v4609
    %v5092 = vpop.f32.mrf.mxu0
    %v5093 = vadd.f32 %v4688, %v5092
    %v5094 = vpop.f32.mrf.mxu0
    %v5095 = vadd.f32 %v4692, %v5094
    %v5096 = vpop.f32.mrf.mxu0
    %v5097 = vpop.f32.mrf.mxu0
    %5098 = vdwg.mxu0
    %v5099 = vxor.u32 %v5052, 2147483648
    %v5100 = vxor.u32 %v5054, 2147483648
    %v5101 = vxor.u32 %v5093, 2147483648
    %v5102 = vmul.f32 %v5099, 1.442695
    %v5103 = vpow.pop %v5102
    %v5104 = vmul.f32 %v5100, 1.442695
    %v5105 = vpow.pop %v5104
    %v5106 = vmul.f32 %v5101, 1.442695
    %v5107 = vpow.pop %v5106
    %v5108 = vadd.f32 %v5103, 1.0
    %v5109 = vadd.f32 %v5105, 1.0
    %v5110 = vadd.f32 %v5107, 1.0
    %v5111 = vrcp.pop %v5108
    %v5112 = vmul.f32 1.0, %v5111
    %v5113 = vrcp.pop %v5109
    %v5114 = vmul.f32 1.0, %v5113
    %v5115 = vrcp.pop %v5110
    %v5116 = vmul.f32 1.0, %v5115
    %v5117 = vtanh.pop %v5095
    %v5118 = vmul.f32 %v5114, %v4091
    %v5119 = vmul.f32 %v5112, %v5117
    %v5120 = vadd.f32 %v5118, %v5119
    %v5121 = vtanh.pop %v5120
    %v5122 = vmul.f32 %v5116, %v5121
    %s5123 = scalar_lea.vmem [#allocation2], 8
    %5124 = vst [vmem:[%s5123] sm:$0xff] %v5122
    %s5125 = scalar_lea.vmem %s1, 8
    %v5126 = vld [vmem:[%s5125] sm:$0xf]
    %v5127 = vld [vmem:[#allocation5] sm:$0xff]
    %v5128 = vld [vmem:[#allocation5 + $0x8] sm:$0xff]
    %v5129 = vld [vmem:[#allocation5 + $0x10] sm:$0xff]
    %v5130 = vld [vmem:[#allocation5 + $0x18] sm:$0xff]
    %v5131 = vld [vmem:[#allocation5 + $0x20] sm:$0xff]
    %v5132 = vld [vmem:[#allocation5 + $0x28] sm:$0xff]
    %v5133 = vld [vmem:[#allocation5 + $0x30] sm:$0xff]
    %v5134 = vld [vmem:[#allocation5 + $0x38] sm:$0xff]
    %v5135 = vld [vmem:[#allocation5 + $0x40] sm:$0xff]
    %v5136 = vld [vmem:[#allocation5 + $0x48] sm:$0xff]
    %v5137 = vld [vmem:[#allocation5 + $0x50] sm:$0xff]
    %v5138 = vld [vmem:[#allocation5 + $0x58] sm:$0xff]
    %v5139 = vld [vmem:[#allocation5 + $0x60] sm:$0xff]
    %v5140 = vld [vmem:[#allocation5 + $0x68] sm:$0xff]
    %v5141 = vld [vmem:[#allocation5 + $0x70] sm:$0xff]
    %v5142 = vld [vmem:[#allocation5 + $0x78] sm:$0xff]
    %v5143 = vld [vmem:[#allocation5 + $0x80] sm:$0xff]
    %v5144 = vld [vmem:[#allocation5 + $0x88] sm:$0xff]
    %v5145 = vld [vmem:[#allocation5 + $0x90] sm:$0xff]
    %v5146 = vld [vmem:[#allocation5 + $0x98] sm:$0xff]
    %v5147 = vld [vmem:[#allocation5 + $0xa0] sm:$0xff]
    %v5148 = vld [vmem:[#allocation5 + $0xa8] sm:$0xff]
    %v5149 = vld [vmem:[#allocation5 + $0xb0] sm:$0xff]
    %v5150 = vld [vmem:[#allocation5 + $0xb8] sm:$0xff]
    %v5151 = vld [vmem:[#allocation5 + $0xc0] sm:$0xff]
    %v5152 = vld [vmem:[#allocation5 + $0xc8] sm:$0xff]
    %v5153 = vld [vmem:[#allocation5 + $0xd0] sm:$0xff]
    %v5154 = vld [vmem:[#allocation5 + $0xd8] sm:$0xff]
    %v5155 = vld [vmem:[#allocation5 + $0xe0] sm:$0xff]
    %v5156 = vld [vmem:[#allocation5 + $0xe8] sm:$0xff]
    %v5157 = vld [vmem:[#allocation5 + $0xf0] sm:$0xff]
    %v5158 = vld [vmem:[#allocation5 + $0xf8] sm:$0xff]
    %v5159 = vld [vmem:[#allocation5 + $0x100] sm:$0xff]
    %v5160 = vld [vmem:[#allocation5 + $0x108] sm:$0xff]
    %v5161 = vld [vmem:[#allocation5 + $0x110] sm:$0xff]
    %v5162 = vld [vmem:[#allocation5 + $0x118] sm:$0xff]
    %v5163 = vld [vmem:[#allocation5 + $0x120] sm:$0xff]
    %v5164 = vld [vmem:[#allocation5 + $0x128] sm:$0xff]
    %v5165 = vld [vmem:[#allocation5 + $0x130] sm:$0xff]
    %v5166 = vld [vmem:[#allocation5 + $0x138] sm:$0xff]
    %v5167 = vld [vmem:[#allocation5 + $0x140] sm:$0xff]
    %v5168 = vld [vmem:[#allocation5 + $0x148] sm:$0xff]
    %v5169 = vld [vmem:[#allocation5 + $0x150] sm:$0xff]
    %v5170 = vld [vmem:[#allocation5 + $0x158] sm:$0xff]
    %v5171 = vld [vmem:[#allocation5 + $0x160] sm:$0xff]
    %v5172 = vld [vmem:[#allocation5 + $0x168] sm:$0xff]
    %v5173 = vld [vmem:[#allocation5 + $0x170] sm:$0xff]
    %v5174 = vld [vmem:[#allocation5 + $0x178] sm:$0xff]
    %v5175 = vld [vmem:[#allocation5 + $0x180] sm:$0xff]
    %v5176 = vld [vmem:[#allocation5 + $0x188] sm:$0xff]
    %v5177 = vld [vmem:[#allocation5 + $0x190] sm:$0xff]
    %v5178 = vld [vmem:[#allocation5 + $0x198] sm:$0xff]
    %v5179 = vld [vmem:[#allocation5 + $0x1a0] sm:$0xff]
    %v5180 = vld [vmem:[#allocation5 + $0x1a8] sm:$0xff]
    %v5181 = vld [vmem:[#allocation5 + $0x1b0] sm:$0xff]
    %v5182 = vld [vmem:[#allocation5 + $0x1b8] sm:$0xff]
    %v5183 = vld [vmem:[#allocation5 + $0x1c0] sm:$0xff]
    %v5184 = vld [vmem:[#allocation5 + $0x1c8] sm:$0xff]
    %v5185 = vld [vmem:[#allocation5 + $0x1d0] sm:$0xff]
    %v5186 = vld [vmem:[#allocation5 + $0x1d8] sm:$0xff]
    %v5187 = vld [vmem:[#allocation5 + $0x1e0] sm:$0xff]
    %v5188 = vld [vmem:[#allocation5 + $0x1e8] sm:$0xff]
    %v5189 = vld [vmem:[#allocation5 + $0x1f0] sm:$0xff]
    %v5190 = vld [vmem:[#allocation5 + $0x1f8] sm:$0xff]
    %v5191 = vld [vmem:[%s7] sm:$0xf]
    %v5193 = vlaneseq
    %v5194 = vshrl.u32 %v5193, 7
    %v5195 = vsub.s32 0, %v5194
    %v5196 = vrot.slane %v5191, %v5195
    %v5197 = vlaneseq
    %v5198 = vshrl.u32 %v5197, 7
    %v5199 = vsub.s32 1, %v5198
    %v5200 = vrot.slane %v5191, %v5199
    %v5201 = vlaneseq
    %v5202 = vshrl.u32 %v5201, 7
    %v5203 = vsub.s32 2, %v5202
    %v5204 = vrot.slane %v5191, %v5203
    %v5205 = vlaneseq
    %v5206 = vshrl.u32 %v5205, 7
    %v5207 = vsub.s32 3, %v5206
    %v5208 = vrot.slane %v5191, %v5207
    %v5277 = vunpack.c.l.b16 %v5127
    %v5278 = vunpack.c.h.b16 %v5127
    %v5279 = vunpack.c.l.b16 %v5128
    %v5280 = vunpack.c.h.b16 %v5128
    %v5281 = vunpack.c.l.b16 %v5129
    %v5282 = vunpack.c.h.b16 %v5129
    %v5283 = vunpack.c.l.b16 %v5130
    %v5284 = vunpack.c.h.b16 %v5130
    %v5285 = vunpack.c.l.b16 %v5131
    %v5286 = vunpack.c.h.b16 %v5131
    %v5287 = vunpack.c.l.b16 %v5132
    %v5288 = vunpack.c.h.b16 %v5132
    %v5289 = vunpack.c.l.b16 %v5133
    %v5290 = vunpack.c.h.b16 %v5133
    %v5291 = vunpack.c.l.b16 %v5134
    %v5292 = vunpack.c.h.b16 %v5134
    %v5293 = vunpack.c.l.b16 %v5135
    %v5294 = vunpack.c.h.b16 %v5135
    %v5295 = vunpack.c.l.b16 %v5136
    %v5296 = vunpack.c.h.b16 %v5136
    %v5297 = vunpack.c.l.b16 %v5137
    %v5298 = vunpack.c.h.b16 %v5137
    %v5299 = vunpack.c.l.b16 %v5138
    %v5300 = vunpack.c.h.b16 %v5138
    %v5301 = vunpack.c.l.b16 %v5139
    %v5302 = vunpack.c.h.b16 %v5139
    %v5303 = vunpack.c.l.b16 %v5140
    %v5304 = vunpack.c.h.b16 %v5140
    %v5305 = vunpack.c.l.b16 %v5141
    %v5306 = vunpack.c.h.b16 %v5141
    %v5307 = vunpack.c.l.b16 %v5142
    %v5308 = vunpack.c.h.b16 %v5142
    %v5309 = vunpack.c.l.b16 %v5143
    %v5310 = vunpack.c.h.b16 %v5143
    %v5311 = vunpack.c.l.b16 %v5144
    %v5312 = vunpack.c.h.b16 %v5144
    %v5313 = vunpack.c.l.b16 %v5145
    %v5314 = vunpack.c.h.b16 %v5145
    %v5315 = vunpack.c.l.b16 %v5146
    %v5316 = vunpack.c.h.b16 %v5146
    %v5317 = vunpack.c.l.b16 %v5147
    %v5318 = vunpack.c.h.b16 %v5147
    %v5319 = vunpack.c.l.b16 %v5148
    %v5320 = vunpack.c.h.b16 %v5148
    %v5321 = vunpack.c.l.b16 %v5149
    %v5322 = vunpack.c.h.b16 %v5149
    %v5323 = vunpack.c.l.b16 %v5150
    %v5324 = vunpack.c.h.b16 %v5150
    %v5325 = vunpack.c.l.b16 %v5151
    %v5326 = vunpack.c.h.b16 %v5151
    %v5327 = vunpack.c.l.b16 %v5152
    %v5328 = vunpack.c.h.b16 %v5152
    %v5329 = vunpack.c.l.b16 %v5153
    %v5330 = vunpack.c.h.b16 %v5153
    %v5331 = vunpack.c.l.b16 %v5154
    %v5332 = vunpack.c.h.b16 %v5154
    %v5333 = vunpack.c.l.b16 %v5155
    %v5334 = vunpack.c.h.b16 %v5155
    %v5335 = vunpack.c.l.b16 %v5156
    %v5336 = vunpack.c.h.b16 %v5156
    %v5337 = vunpack.c.l.b16 %v5157
    %v5338 = vunpack.c.h.b16 %v5157
    %v5339 = vunpack.c.l.b16 %v5158
    %v5340 = vunpack.c.h.b16 %v5158
    %v5341 = vunpack.c.l.b16 %v5159
    %v5342 = vunpack.c.h.b16 %v5159
    %v5343 = vunpack.c.l.b16 %v5160
    %v5344 = vunpack.c.h.b16 %v5160
    %v5345 = vunpack.c.l.b16 %v5161
    %v5346 = vunpack.c.h.b16 %v5161
    %v5347 = vunpack.c.l.b16 %v5162
    %v5348 = vunpack.c.h.b16 %v5162
    %v5349 = vunpack.c.l.b16 %v5163
    %v5350 = vunpack.c.h.b16 %v5163
    %v5351 = vunpack.c.l.b16 %v5164
    %v5352 = vunpack.c.h.b16 %v5164
    %v5353 = vunpack.c.l.b16 %v5165
    %v5354 = vunpack.c.h.b16 %v5165
    %v5355 = vunpack.c.l.b16 %v5166
    %v5356 = vunpack.c.h.b16 %v5166
    %v5357 = vunpack.c.l.b16 %v5167
    %v5358 = vunpack.c.h.b16 %v5167
    %v5359 = vunpack.c.l.b16 %v5168
    %v5360 = vunpack.c.h.b16 %v5168
    %v5361 = vunpack.c.l.b16 %v5169
    %v5362 = vunpack.c.h.b16 %v5169
    %v5363 = vunpack.c.l.b16 %v5170
    %v5364 = vunpack.c.h.b16 %v5170
    %v5365 = vunpack.c.l.b16 %v5171
    %v5366 = vunpack.c.h.b16 %v5171
    %v5367 = vunpack.c.l.b16 %v5172
    %v5368 = vunpack.c.h.b16 %v5172
    %v5369 = vunpack.c.l.b16 %v5173
    %v5370 = vunpack.c.h.b16 %v5173
    %v5371 = vunpack.c.l.b16 %v5174
    %v5372 = vunpack.c.h.b16 %v5174
    %v5373 = vunpack.c.l.b16 %v5175
    %v5374 = vunpack.c.h.b16 %v5175
    %v5375 = vunpack.c.l.b16 %v5176
    %v5376 = vunpack.c.h.b16 %v5176
    %v5377 = vunpack.c.l.b16 %v5177
    %v5378 = vunpack.c.h.b16 %v5177
    %v5379 = vunpack.c.l.b16 %v5178
    %v5380 = vunpack.c.h.b16 %v5178
    %v5381 = vunpack.c.l.b16 %v5179
    %v5382 = vunpack.c.h.b16 %v5179
    %v5383 = vunpack.c.l.b16 %v5180
    %v5384 = vunpack.c.h.b16 %v5180
    %v5385 = vunpack.c.l.b16 %v5181
    %v5386 = vunpack.c.h.b16 %v5181
    %v5387 = vunpack.c.l.b16 %v5182
    %v5388 = vunpack.c.h.b16 %v5182
    %v5389 = vunpack.c.l.b16 %v5183
    %v5390 = vunpack.c.h.b16 %v5183
    %v5391 = vunpack.c.l.b16 %v5184
    %v5392 = vunpack.c.h.b16 %v5184
    %v5393 = vunpack.c.l.b16 %v5185
    %v5394 = vunpack.c.h.b16 %v5185
    %v5395 = vunpack.c.l.b16 %v5186
    %v5396 = vunpack.c.h.b16 %v5186
    %v5397 = vunpack.c.l.b16 %v5187
    %v5398 = vunpack.c.h.b16 %v5187
    %v5399 = vunpack.c.l.b16 %v5188
    %v5400 = vunpack.c.h.b16 %v5188
    %v5401 = vunpack.c.l.b16 %v5189
    %v5402 = vunpack.c.h.b16 %v5189
    %v5403 = vunpack.c.l.b16 %v5190
    %v5404 = vunpack.c.h.b16 %v5190
    %v5405 = vpack.c.b16 %v5281, %v5277
    %v5406 = vpack.c.b16 %v5282, %v5278
    %v5407 = vpack.c.b16 %v5283, %v5279
    %v5408 = vpack.c.b16 %v5284, %v5280
    %v5409 = vpack.c.b16 %v5289, %v5285
    %v5410 = vpack.c.b16 %v5290, %v5286
    %v5411 = vpack.c.b16 %v5291, %v5287
    %v5412 = vpack.c.b16 %v5292, %v5288
    %v5413 = vpack.c.b16 %v5297, %v5293
    %v5414 = vpack.c.b16 %v5298, %v5294
    %v5415 = vpack.c.b16 %v5299, %v5295
    %v5416 = vpack.c.b16 %v5300, %v5296
    %v5417 = vpack.c.b16 %v5305, %v5301
    %v5418 = vpack.c.b16 %v5306, %v5302
    %v5419 = vpack.c.b16 %v5307, %v5303
    %v5420 = vpack.c.b16 %v5308, %v5304
    %v5421 = vpack.c.b16 %v5313, %v5309
    %v5422 = vpack.c.b16 %v5314, %v5310
    %v5423 = vpack.c.b16 %v5315, %v5311
    %v5424 = vpack.c.b16 %v5316, %v5312
    %v5425 = vpack.c.b16 %v5321, %v5317
    %v5426 = vpack.c.b16 %v5322, %v5318
    %v5427 = vpack.c.b16 %v5323, %v5319
    %v5428 = vpack.c.b16 %v5324, %v5320
    %v5429 = vpack.c.b16 %v5329, %v5325
    %v5430 = vpack.c.b16 %v5330, %v5326
    %v5431 = vpack.c.b16 %v5331, %v5327
    %v5432 = vpack.c.b16 %v5332, %v5328
    %v5433 = vpack.c.b16 %v5337, %v5333
    %v5434 = vpack.c.b16 %v5338, %v5334
    %v5435 = vpack.c.b16 %v5339, %v5335
    %v5436 = vpack.c.b16 %v5340, %v5336
    %v5437 = vpack.c.b16 %v5345, %v5341
    %v5438 = vpack.c.b16 %v5346, %v5342
    %v5439 = vpack.c.b16 %v5347, %v5343
    %v5440 = vpack.c.b16 %v5348, %v5344
    %v5441 = vpack.c.b16 %v5353, %v5349
    %v5442 = vpack.c.b16 %v5354, %v5350
    %v5443 = vpack.c.b16 %v5355, %v5351
    %v5444 = vpack.c.b16 %v5356, %v5352
    %v5445 = vpack.c.b16 %v5361, %v5357
    %v5446 = vpack.c.b16 %v5362, %v5358
    %v5447 = vpack.c.b16 %v5363, %v5359
    %v5448 = vpack.c.b16 %v5364, %v5360
    %v5449 = vpack.c.b16 %v5369, %v5365
    %v5450 = vpack.c.b16 %v5370, %v5366
    %v5451 = vpack.c.b16 %v5371, %v5367
    %v5452 = vpack.c.b16 %v5372, %v5368
    %v5453 = vpack.c.b16 %v5377, %v5373
    %v5454 = vpack.c.b16 %v5378, %v5374
    %v5455 = vpack.c.b16 %v5379, %v5375
    %v5456 = vpack.c.b16 %v5380, %v5376
    %v5457 = vpack.c.b16 %v5385, %v5381
    %v5458 = vpack.c.b16 %v5386, %v5382
    %v5459 = vpack.c.b16 %v5387, %v5383
    %v5460 = vpack.c.b16 %v5388, %v5384
    %v5461 = vpack.c.b16 %v5393, %v5389
    %v5462 = vpack.c.b16 %v5394, %v5390
    %v5463 = vpack.c.b16 %v5395, %v5391
    %v5464 = vpack.c.b16 %v5396, %v5392
    %v5465 = vpack.c.b16 %v5401, %v5397
    %v5466 = vpack.c.b16 %v5402, %v5398
    %v5467 = vpack.c.b16 %v5403, %v5399
    %v5468 = vpack.c.b16 %v5404, %v5400
    %5533 = vmatprep.subr.bf16.mxu0 %v5434
    %5534 = vmatpush1.bf16.msra.mxu0 %v5433
    %5535 = vmatprep.subr.bf16.mxu0 %v5430
    %5536 = vmatpush1.bf16.msra.mxu0 %v5429
    %5537 = vmatprep.subr.bf16.mxu0 %v5426
    %5538 = vmatpush1.bf16.msra.mxu0 %v5425
    %5539 = vmatprep.subr.bf16.mxu0 %v5422
    %5540 = vmatpush1.bf16.msra.mxu0 %v5421
    %5541 = vmatprep.subr.bf16.mxu0 %v5418
    %5542 = vmatpush1.bf16.msra.mxu0 %v5417
    %5543 = vmatprep.subr.bf16.mxu0 %v5414
    %5544 = vmatpush1.bf16.msra.mxu0 %v5413
    %5545 = vmatprep.subr.bf16.mxu0 %v5410
    %5546 = vmatpush1.bf16.msra.mxu0 %v5409
    %5547 = vmatprep.subr.bf16.mxu0 %v5406
    %5548 = vmatpush1.bf16.msra.mxu0 %v5405
    %5549 = vmatprep.subr.bf16.mxu0 %v5466
    %5550 = vmatpush2.bf16.msra.mxu0 %v5465
    %5551 = vmatprep.subr.bf16.mxu0 %v5462
    %5552 = vmatpush2.bf16.msra.mxu0 %v5461
    %5553 = vmatprep.subr.bf16.mxu0 %v5458
    %5554 = vmatpush2.bf16.msra.mxu0 %v5457
    %5555 = vmatprep.subr.bf16.mxu0 %v5454
    %5556 = vmatpush2.bf16.msra.mxu0 %v5453
    %5557 = vmatprep.subr.bf16.mxu0 %v5450
    %5558 = vmatpush2.bf16.msra.mxu0 %v5449
    %5559 = vmatprep.subr.bf16.mxu0 %v5446
    %5560 = vmatpush2.bf16.msra.mxu0 %v5445
    %5561 = vmatprep.subr.bf16.mxu0 %v5442
    %5562 = vmatpush2.bf16.msra.mxu0 %v5441
    %5563 = vmatprep.subr.bf16.mxu0 %v5438
    %5564 = vmatpush2.bf16.msra.mxu0 %v5437
    %5565 = vmatprep.mubr.bf16.mxu0 %v4609
    %5566 = vmatmul.mubr.bf16.gmra.mxu0 %v5126
    %v5567 = vpop.f32.mrf.mxu0
    %v5568 = vadd.f32 %v5196, %v5567
    %v5569 = vpop.f32.mrf.mxu0
    %v5570 = vadd.f32 %v5200, %v5569
    %v5571 = vpop.f32.mrf.mxu0
    %v5572 = vpop.f32.mrf.mxu0
    %5573 = vdwg.mxu0
    %5574 = vmatprep.subr.bf16.mxu0 %v5436
    %5575 = vmatpush1.bf16.msra.mxu0 %v5435
    %5576 = vmatprep.subr.bf16.mxu0 %v5432
    %5577 = vmatpush1.bf16.msra.mxu0 %v5431
    %5578 = vmatprep.subr.bf16.mxu0 %v5428
    %5579 = vmatpush1.bf16.msra.mxu0 %v5427
    %5580 = vmatprep.subr.bf16.mxu0 %v5424
    %5581 = vmatpush1.bf16.msra.mxu0 %v5423
    %5582 = vmatprep.subr.bf16.mxu0 %v5420
    %5583 = vmatpush1.bf16.msra.mxu0 %v5419
    %5584 = vmatprep.subr.bf16.mxu0 %v5416
    %5585 = vmatpush1.bf16.msra.mxu0 %v5415
    %5586 = vmatprep.subr.bf16.mxu0 %v5412
    %5587 = vmatpush1.bf16.msra.mxu0 %v5411
    %5588 = vmatprep.subr.bf16.mxu0 %v5408
    %5589 = vmatpush1.bf16.msra.mxu0 %v5407
    %5590 = vmatprep.subr.bf16.mxu0 %v5468
    %5591 = vmatpush2.bf16.msra.mxu0 %v5467
    %5592 = vmatprep.subr.bf16.mxu0 %v5464
    %5593 = vmatpush2.bf16.msra.mxu0 %v5463
    %5594 = vmatprep.subr.bf16.mxu0 %v5460
    %5595 = vmatpush2.bf16.msra.mxu0 %v5459
    %5596 = vmatprep.subr.bf16.mxu0 %v5456
    %5597 = vmatpush2.bf16.msra.mxu0 %v5455
    %5598 = vmatprep.subr.bf16.mxu0 %v5452
    %5599 = vmatpush2.bf16.msra.mxu0 %v5451
    %5600 = vmatprep.subr.bf16.mxu0 %v5448
    %5601 = vmatpush2.bf16.msra.mxu0 %v5447
    %5602 = vmatprep.subr.bf16.mxu0 %v5444
    %5603 = vmatpush2.bf16.msra.mxu0 %v5443
    %5604 = vmatprep.subr.bf16.mxu0 %v5440
    %5605 = vmatpush2.bf16.msra.mxu0 %v5439
    %5606 = vmatprep.mubr.bf16.mxu0 %v4609
    %5607 = vmatmul.mubr.bf16.gmra.mxu0 %v5126
    %v5608 = vpop.f32.mrf.mxu0
    %v5609 = vadd.f32 %v5204, %v5608
    %v5610 = vpop.f32.mrf.mxu0
    %v5611 = vadd.f32 %v5208, %v5610
    %v5612 = vpop.f32.mrf.mxu0
    %v5613 = vpop.f32.mrf.mxu0
    %5614 = vdwg.mxu0
    %v5615 = vxor.u32 %v5568, 2147483648
    %v5616 = vxor.u32 %v5570, 2147483648
    %v5617 = vxor.u32 %v5609, 2147483648
    %v5618 = vmul.f32 %v5615, 1.442695
    %v5619 = vpow.pop %v5618
    %v5620 = vmul.f32 %v5616, 1.442695
    %v5621 = vpow.pop %v5620
    %v5622 = vmul.f32 %v5617, 1.442695
    %v5623 = vpow.pop %v5622
    %v5624 = vadd.f32 %v5619, 1.0
    %v5625 = vadd.f32 %v5621, 1.0
    %v5626 = vadd.f32 %v5623, 1.0
    %v5627 = vrcp.pop %v5624
    %v5628 = vmul.f32 1.0, %v5627
    %v5629 = vrcp.pop %v5625
    %v5630 = vmul.f32 1.0, %v5629
    %v5631 = vrcp.pop %v5626
    %v5632 = vmul.f32 1.0, %v5631
    %v5633 = vtanh.pop %v5611
    %v5634 = vmul.f32 %v5630, %v4606
    %v5635 = vmul.f32 %v5628, %v5633
    %v5636 = vadd.f32 %v5634, %v5635
    %v5637 = vtanh.pop %v5636
    %v5638 = vmul.f32 %v5632, %v5637
    %v5639 = vpack.c.bf16 %v5638, %v5638
    %v5640 = vpack.c.bf16 %v5122, %v5122
    %v5641 = vld [vmem:[#allocation7] sm:$0xff]
    %v5642 = vld [vmem:[#allocation7 + $0x8] sm:$0xff]
    %v5643 = vld [vmem:[#allocation7 + $0x10] sm:$0xff]
    %v5644 = vld [vmem:[#allocation7 + $0x18] sm:$0xff]
    %v5645 = vld [vmem:[#allocation7 + $0x20] sm:$0xff]
    %v5646 = vld [vmem:[#allocation7 + $0x28] sm:$0xff]
    %v5647 = vld [vmem:[#allocation7 + $0x30] sm:$0xff]
    %v5648 = vld [vmem:[#allocation7 + $0x38] sm:$0xff]
    %v5649 = vld [vmem:[#allocation7 + $0x40] sm:$0xff]
    %v5650 = vld [vmem:[#allocation7 + $0x48] sm:$0xff]
    %v5651 = vld [vmem:[#allocation7 + $0x50] sm:$0xff]
    %v5652 = vld [vmem:[#allocation7 + $0x58] sm:$0xff]
    %v5653 = vld [vmem:[#allocation7 + $0x60] sm:$0xff]
    %v5654 = vld [vmem:[#allocation7 + $0x68] sm:$0xff]
    %v5655 = vld [vmem:[#allocation7 + $0x70] sm:$0xff]
    %v5656 = vld [vmem:[#allocation7 + $0x78] sm:$0xff]
    %v5657 = vld [vmem:[#allocation7 + $0x80] sm:$0xff]
    %v5658 = vld [vmem:[#allocation7 + $0x88] sm:$0xff]
    %v5659 = vld [vmem:[#allocation7 + $0x90] sm:$0xff]
    %v5660 = vld [vmem:[#allocation7 + $0x98] sm:$0xff]
    %v5661 = vld [vmem:[#allocation7 + $0xa0] sm:$0xff]
    %v5662 = vld [vmem:[#allocation7 + $0xa8] sm:$0xff]
    %v5663 = vld [vmem:[#allocation7 + $0xb0] sm:$0xff]
    %v5664 = vld [vmem:[#allocation7 + $0xb8] sm:$0xff]
    %v5665 = vld [vmem:[#allocation7 + $0xc0] sm:$0xff]
    %v5666 = vld [vmem:[#allocation7 + $0xc8] sm:$0xff]
    %v5667 = vld [vmem:[#allocation7 + $0xd0] sm:$0xff]
    %v5668 = vld [vmem:[#allocation7 + $0xd8] sm:$0xff]
    %v5669 = vld [vmem:[#allocation7 + $0xe0] sm:$0xff]
    %v5670 = vld [vmem:[#allocation7 + $0xe8] sm:$0xff]
    %v5671 = vld [vmem:[#allocation7 + $0xf0] sm:$0xff]
    %v5672 = vld [vmem:[#allocation7 + $0xf8] sm:$0xff]
    %v5673 = vld [vmem:[#allocation7 + $0x100] sm:$0xff]
    %v5674 = vld [vmem:[#allocation7 + $0x108] sm:$0xff]
    %v5675 = vld [vmem:[#allocation7 + $0x110] sm:$0xff]
    %v5676 = vld [vmem:[#allocation7 + $0x118] sm:$0xff]
    %v5677 = vld [vmem:[#allocation7 + $0x120] sm:$0xff]
    %v5678 = vld [vmem:[#allocation7 + $0x128] sm:$0xff]
    %v5679 = vld [vmem:[#allocation7 + $0x130] sm:$0xff]
    %v5680 = vld [vmem:[#allocation7 + $0x138] sm:$0xff]
    %v5681 = vld [vmem:[#allocation7 + $0x140] sm:$0xff]
    %v5682 = vld [vmem:[#allocation7 + $0x148] sm:$0xff]
    %v5683 = vld [vmem:[#allocation7 + $0x150] sm:$0xff]
    %v5684 = vld [vmem:[#allocation7 + $0x158] sm:$0xff]
    %v5685 = vld [vmem:[#allocation7 + $0x160] sm:$0xff]
    %v5686 = vld [vmem:[#allocation7 + $0x168] sm:$0xff]
    %v5687 = vld [vmem:[#allocation7 + $0x170] sm:$0xff]
    %v5688 = vld [vmem:[#allocation7 + $0x178] sm:$0xff]
    %v5689 = vld [vmem:[#allocation7 + $0x180] sm:$0xff]
    %v5690 = vld [vmem:[#allocation7 + $0x188] sm:$0xff]
    %v5691 = vld [vmem:[#allocation7 + $0x190] sm:$0xff]
    %v5692 = vld [vmem:[#allocation7 + $0x198] sm:$0xff]
    %v5693 = vld [vmem:[#allocation7 + $0x1a0] sm:$0xff]
    %v5694 = vld [vmem:[#allocation7 + $0x1a8] sm:$0xff]
    %v5695 = vld [vmem:[#allocation7 + $0x1b0] sm:$0xff]
    %v5696 = vld [vmem:[#allocation7 + $0x1b8] sm:$0xff]
    %v5697 = vld [vmem:[#allocation7 + $0x1c0] sm:$0xff]
    %v5698 = vld [vmem:[#allocation7 + $0x1c8] sm:$0xff]
    %v5699 = vld [vmem:[#allocation7 + $0x1d0] sm:$0xff]
    %v5700 = vld [vmem:[#allocation7 + $0x1d8] sm:$0xff]
    %v5701 = vld [vmem:[#allocation7 + $0x1e0] sm:$0xff]
    %v5702 = vld [vmem:[#allocation7 + $0x1e8] sm:$0xff]
    %v5703 = vld [vmem:[#allocation7 + $0x1f0] sm:$0xff]
    %v5704 = vld [vmem:[#allocation7 + $0x1f8] sm:$0xff]
    %v5705 = vld [vmem:[%s9] sm:$0xf]
    %v5707 = vlaneseq
    %v5708 = vshrl.u32 %v5707, 7
    %v5709 = vsub.s32 0, %v5708
    %v5710 = vrot.slane %v5705, %v5709
    %v5711 = vlaneseq
    %v5712 = vshrl.u32 %v5711, 7
    %v5713 = vsub.s32 1, %v5712
    %v5714 = vrot.slane %v5705, %v5713
    %v5715 = vlaneseq
    %v5716 = vshrl.u32 %v5715, 7
    %v5717 = vsub.s32 2, %v5716
    %v5718 = vrot.slane %v5705, %v5717
    %v5719 = vlaneseq
    %v5720 = vshrl.u32 %v5719, 7
    %v5721 = vsub.s32 3, %v5720
    %v5722 = vrot.slane %v5705, %v5721
    %v5791 = vunpack.c.l.b16 %v5641
    %v5792 = vunpack.c.h.b16 %v5641
    %v5793 = vunpack.c.l.b16 %v5642
    %v5794 = vunpack.c.h.b16 %v5642
    %v5795 = vunpack.c.l.b16 %v5643
    %v5796 = vunpack.c.h.b16 %v5643
    %v5797 = vunpack.c.l.b16 %v5644
    %v5798 = vunpack.c.h.b16 %v5644
    %v5799 = vunpack.c.l.b16 %v5645
    %v5800 = vunpack.c.h.b16 %v5645
    %v5801 = vunpack.c.l.b16 %v5646
    %v5802 = vunpack.c.h.b16 %v5646
    %v5803 = vunpack.c.l.b16 %v5647
    %v5804 = vunpack.c.h.b16 %v5647
    %v5805 = vunpack.c.l.b16 %v5648
    %v5806 = vunpack.c.h.b16 %v5648
    %v5807 = vunpack.c.l.b16 %v5649
    %v5808 = vunpack.c.h.b16 %v5649
    %v5809 = vunpack.c.l.b16 %v5650
    %v5810 = vunpack.c.h.b16 %v5650
    %v5811 = vunpack.c.l.b16 %v5651
    %v5812 = vunpack.c.h.b16 %v5651
    %v5813 = vunpack.c.l.b16 %v5652
    %v5814 = vunpack.c.h.b16 %v5652
    %v5815 = vunpack.c.l.b16 %v5653
    %v5816 = vunpack.c.h.b16 %v5653
    %v5817 = vunpack.c.l.b16 %v5654
    %v5818 = vunpack.c.h.b16 %v5654
    %v5819 = vunpack.c.l.b16 %v5655
    %v5820 = vunpack.c.h.b16 %v5655
    %v5821 = vunpack.c.l.b16 %v5656
    %v5822 = vunpack.c.h.b16 %v5656
    %v5823 = vunpack.c.l.b16 %v5657
    %v5824 = vunpack.c.h.b16 %v5657
    %v5825 = vunpack.c.l.b16 %v5658
    %v5826 = vunpack.c.h.b16 %v5658
    %v5827 = vunpack.c.l.b16 %v5659
    %v5828 = vunpack.c.h.b16 %v5659
    %v5829 = vunpack.c.l.b16 %v5660
    %v5830 = vunpack.c.h.b16 %v5660
    %v5831 = vunpack.c.l.b16 %v5661
    %v5832 = vunpack.c.h.b16 %v5661
    %v5833 = vunpack.c.l.b16 %v5662
    %v5834 = vunpack.c.h.b16 %v5662
    %v5835 = vunpack.c.l.b16 %v5663
    %v5836 = vunpack.c.h.b16 %v5663
    %v5837 = vunpack.c.l.b16 %v5664
    %v5838 = vunpack.c.h.b16 %v5664
    %v5839 = vunpack.c.l.b16 %v5665
    %v5840 = vunpack.c.h.b16 %v5665
    %v5841 = vunpack.c.l.b16 %v5666
    %v5842 = vunpack.c.h.b16 %v5666
    %v5843 = vunpack.c.l.b16 %v5667
    %v5844 = vunpack.c.h.b16 %v5667
    %v5845 = vunpack.c.l.b16 %v5668
    %v5846 = vunpack.c.h.b16 %v5668
    %v5847 = vunpack.c.l.b16 %v5669
    %v5848 = vunpack.c.h.b16 %v5669
    %v5849 = vunpack.c.l.b16 %v5670
    %v5850 = vunpack.c.h.b16 %v5670
    %v5851 = vunpack.c.l.b16 %v5671
    %v5852 = vunpack.c.h.b16 %v5671
    %v5853 = vunpack.c.l.b16 %v5672
    %v5854 = vunpack.c.h.b16 %v5672
    %v5855 = vunpack.c.l.b16 %v5673
    %v5856 = vunpack.c.h.b16 %v5673
    %v5857 = vunpack.c.l.b16 %v5674
    %v5858 = vunpack.c.h.b16 %v5674
    %v5859 = vunpack.c.l.b16 %v5675
    %v5860 = vunpack.c.h.b16 %v5675
    %v5861 = vunpack.c.l.b16 %v5676
    %v5862 = vunpack.c.h.b16 %v5676
    %v5863 = vunpack.c.l.b16 %v5677
    %v5864 = vunpack.c.h.b16 %v5677
    %v5865 = vunpack.c.l.b16 %v5678
    %v5866 = vunpack.c.h.b16 %v5678
    %v5867 = vunpack.c.l.b16 %v5679
    %v5868 = vunpack.c.h.b16 %v5679
    %v5869 = vunpack.c.l.b16 %v5680
    %v5870 = vunpack.c.h.b16 %v5680
    %v5871 = vunpack.c.l.b16 %v5681
    %v5872 = vunpack.c.h.b16 %v5681
    %v5873 = vunpack.c.l.b16 %v5682
    %v5874 = vunpack.c.h.b16 %v5682
    %v5875 = vunpack.c.l.b16 %v5683
    %v5876 = vunpack.c.h.b16 %v5683
    %v5877 = vunpack.c.l.b16 %v5684
    %v5878 = vunpack.c.h.b16 %v5684
    %v5879 = vunpack.c.l.b16 %v5685
    %v5880 = vunpack.c.h.b16 %v5685
    %v5881 = vunpack.c.l.b16 %v5686
    %v5882 = vunpack.c.h.b16 %v5686
    %v5883 = vunpack.c.l.b16 %v5687
    %v5884 = vunpack.c.h.b16 %v5687
    %v5885 = vunpack.c.l.b16 %v5688
    %v5886 = vunpack.c.h.b16 %v5688
    %v5887 = vunpack.c.l.b16 %v5689
    %v5888 = vunpack.c.h.b16 %v5689
    %v5889 = vunpack.c.l.b16 %v5690
    %v5890 = vunpack.c.h.b16 %v5690
    %v5891 = vunpack.c.l.b16 %v5691
    %v5892 = vunpack.c.h.b16 %v5691
    %v5893 = vunpack.c.l.b16 %v5692
    %v5894 = vunpack.c.h.b16 %v5692
    %v5895 = vunpack.c.l.b16 %v5693
    %v5896 = vunpack.c.h.b16 %v5693
    %v5897 = vunpack.c.l.b16 %v5694
    %v5898 = vunpack.c.h.b16 %v5694
    %v5899 = vunpack.c.l.b16 %v5695
    %v5900 = vunpack.c.h.b16 %v5695
    %v5901 = vunpack.c.l.b16 %v5696
    %v5902 = vunpack.c.h.b16 %v5696
    %v5903 = vunpack.c.l.b16 %v5697
    %v5904 = vunpack.c.h.b16 %v5697
    %v5905 = vunpack.c.l.b16 %v5698
    %v5906 = vunpack.c.h.b16 %v5698
    %v5907 = vunpack.c.l.b16 %v5699
    %v5908 = vunpack.c.h.b16 %v5699
    %v5909 = vunpack.c.l.b16 %v5700
    %v5910 = vunpack.c.h.b16 %v5700
    %v5911 = vunpack.c.l.b16 %v5701
    %v5912 = vunpack.c.h.b16 %v5701
    %v5913 = vunpack.c.l.b16 %v5702
    %v5914 = vunpack.c.h.b16 %v5702
    %v5915 = vunpack.c.l.b16 %v5703
    %v5916 = vunpack.c.h.b16 %v5703
    %v5917 = vunpack.c.l.b16 %v5704
    %v5918 = vunpack.c.h.b16 %v5704
    %v5919 = vpack.c.b16 %v5795, %v5791
    %v5920 = vpack.c.b16 %v5796, %v5792
    %v5921 = vpack.c.b16 %v5797, %v5793
    %v5922 = vpack.c.b16 %v5798, %v5794
    %v5923 = vpack.c.b16 %v5803, %v5799
    %v5924 = vpack.c.b16 %v5804, %v5800
    %v5925 = vpack.c.b16 %v5805, %v5801
    %v5926 = vpack.c.b16 %v5806, %v5802
    %v5927 = vpack.c.b16 %v5811, %v5807
    %v5928 = vpack.c.b16 %v5812, %v5808
    %v5929 = vpack.c.b16 %v5813, %v5809
    %v5930 = vpack.c.b16 %v5814, %v5810
    %v5931 = vpack.c.b16 %v5819, %v5815
    %v5932 = vpack.c.b16 %v5820, %v5816
    %v5933 = vpack.c.b16 %v5821, %v5817
    %v5934 = vpack.c.b16 %v5822, %v5818
    %v5935 = vpack.c.b16 %v5827, %v5823
    %v5936 = vpack.c.b16 %v5828, %v5824
    %v5937 = vpack.c.b16 %v5829, %v5825
    %v5938 = vpack.c.b16 %v5830, %v5826
    %v5939 = vpack.c.b16 %v5835, %v5831
    %v5940 = vpack.c.b16 %v5836, %v5832
    %v5941 = vpack.c.b16 %v5837, %v5833
    %v5942 = vpack.c.b16 %v5838, %v5834
    %v5943 = vpack.c.b16 %v5843, %v5839
    %v5944 = vpack.c.b16 %v5844, %v5840
    %v5945 = vpack.c.b16 %v5845, %v5841
    %v5946 = vpack.c.b16 %v5846, %v5842
    %v5947 = vpack.c.b16 %v5851, %v5847
    %v5948 = vpack.c.b16 %v5852, %v5848
    %v5949 = vpack.c.b16 %v5853, %v5849
    %v5950 = vpack.c.b16 %v5854, %v5850
    %v5951 = vpack.c.b16 %v5859, %v5855
    %v5952 = vpack.c.b16 %v5860, %v5856
    %v5953 = vpack.c.b16 %v5861, %v5857
    %v5954 = vpack.c.b16 %v5862, %v5858
    %v5955 = vpack.c.b16 %v5867, %v5863
    %v5956 = vpack.c.b16 %v5868, %v5864
    %v5957 = vpack.c.b16 %v5869, %v5865
    %v5958 = vpack.c.b16 %v5870, %v5866
    %v5959 = vpack.c.b16 %v5875, %v5871
    %v5960 = vpack.c.b16 %v5876, %v5872
    %v5961 = vpack.c.b16 %v5877, %v5873
    %v5962 = vpack.c.b16 %v5878, %v5874
    %v5963 = vpack.c.b16 %v5883, %v5879
    %v5964 = vpack.c.b16 %v5884, %v5880
    %v5965 = vpack.c.b16 %v5885, %v5881
    %v5966 = vpack.c.b16 %v5886, %v5882
    %v5967 = vpack.c.b16 %v5891, %v5887
    %v5968 = vpack.c.b16 %v5892, %v5888
    %v5969 = vpack.c.b16 %v5893, %v5889
    %v5970 = vpack.c.b16 %v5894, %v5890
    %v5971 = vpack.c.b16 %v5899, %v5895
    %v5972 = vpack.c.b16 %v5900, %v5896
    %v5973 = vpack.c.b16 %v5901, %v5897
    %v5974 = vpack.c.b16 %v5902, %v5898
    %v5975 = vpack.c.b16 %v5907, %v5903
    %v5976 = vpack.c.b16 %v5908, %v5904
    %v5977 = vpack.c.b16 %v5909, %v5905
    %v5978 = vpack.c.b16 %v5910, %v5906
    %v5979 = vpack.c.b16 %v5915, %v5911
    %v5980 = vpack.c.b16 %v5916, %v5912
    %v5981 = vpack.c.b16 %v5917, %v5913
    %v5982 = vpack.c.b16 %v5918, %v5914
    %6047 = vmatprep.subr.bf16.mxu0 %v5948
    %6048 = vmatpush1.bf16.msra.mxu0 %v5947
    %6049 = vmatprep.subr.bf16.mxu0 %v5944
    %6050 = vmatpush1.bf16.msra.mxu0 %v5943
    %6051 = vmatprep.subr.bf16.mxu0 %v5940
    %6052 = vmatpush1.bf16.msra.mxu0 %v5939
    %6053 = vmatprep.subr.bf16.mxu0 %v5936
    %6054 = vmatpush1.bf16.msra.mxu0 %v5935
    %6055 = vmatprep.subr.bf16.mxu0 %v5932
    %6056 = vmatpush1.bf16.msra.mxu0 %v5931
    %6057 = vmatprep.subr.bf16.mxu0 %v5928
    %6058 = vmatpush1.bf16.msra.mxu0 %v5927
    %6059 = vmatprep.subr.bf16.mxu0 %v5924
    %6060 = vmatpush1.bf16.msra.mxu0 %v5923
    %6061 = vmatprep.subr.bf16.mxu0 %v5920
    %6062 = vmatpush1.bf16.msra.mxu0 %v5919
    %6063 = vmatprep.subr.bf16.mxu0 %v5980
    %6064 = vmatpush2.bf16.msra.mxu0 %v5979
    %6065 = vmatprep.subr.bf16.mxu0 %v5976
    %6066 = vmatpush2.bf16.msra.mxu0 %v5975
    %6067 = vmatprep.subr.bf16.mxu0 %v5972
    %6068 = vmatpush2.bf16.msra.mxu0 %v5971
    %6069 = vmatprep.subr.bf16.mxu0 %v5968
    %6070 = vmatpush2.bf16.msra.mxu0 %v5967
    %6071 = vmatprep.subr.bf16.mxu0 %v5964
    %6072 = vmatpush2.bf16.msra.mxu0 %v5963
    %6073 = vmatprep.subr.bf16.mxu0 %v5960
    %6074 = vmatpush2.bf16.msra.mxu0 %v5959
    %6075 = vmatprep.subr.bf16.mxu0 %v5956
    %6076 = vmatpush2.bf16.msra.mxu0 %v5955
    %6077 = vmatprep.subr.bf16.mxu0 %v5952
    %6078 = vmatpush2.bf16.msra.mxu0 %v5951
    %6079 = vmatprep.mubr.bf16.mxu0 %v5640
    %6080 = vmatmul.mubr.bf16.gmra.mxu0 %v5639
    %v6081 = vpop.f32.mrf.mxu0
    %v6082 = vadd.f32 %v5710, %v6081
    %v6083 = vpop.f32.mrf.mxu0
    %v6084 = vadd.f32 %v5714, %v6083
    %v6085 = vpop.f32.mrf.mxu0
    %v6086 = vpop.f32.mrf.mxu0
    %6087 = vdwg.mxu0
    %6088 = vmatprep.subr.bf16.mxu0 %v5950
    %6089 = vmatpush1.bf16.msra.mxu0 %v5949
    %6090 = vmatprep.subr.bf16.mxu0 %v5946
    %6091 = vmatpush1.bf16.msra.mxu0 %v5945
    %6092 = vmatprep.subr.bf16.mxu0 %v5942
    %6093 = vmatpush1.bf16.msra.mxu0 %v5941
    %6094 = vmatprep.subr.bf16.mxu0 %v5938
    %6095 = vmatpush1.bf16.msra.mxu0 %v5937
    %6096 = vmatprep.subr.bf16.mxu0 %v5934
    %6097 = vmatpush1.bf16.msra.mxu0 %v5933
    %6098 = vmatprep.subr.bf16.mxu0 %v5930
    %6099 = vmatpush1.bf16.msra.mxu0 %v5929
    %6100 = vmatprep.subr.bf16.mxu0 %v5926
    %6101 = vmatpush1.bf16.msra.mxu0 %v5925
    %6102 = vmatprep.subr.bf16.mxu0 %v5922
    %6103 = vmatpush1.bf16.msra.mxu0 %v5921
    %6104 = vmatprep.subr.bf16.mxu0 %v5982
    %6105 = vmatpush2.bf16.msra.mxu0 %v5981
    %6106 = vmatprep.subr.bf16.mxu0 %v5978
    %6107 = vmatpush2.bf16.msra.mxu0 %v5977
    %6108 = vmatprep.subr.bf16.mxu0 %v5974
    %6109 = vmatpush2.bf16.msra.mxu0 %v5973
    %6110 = vmatprep.subr.bf16.mxu0 %v5970
    %6111 = vmatpush2.bf16.msra.mxu0 %v5969
    %6112 = vmatprep.subr.bf16.mxu0 %v5966
    %6113 = vmatpush2.bf16.msra.mxu0 %v5965
    %6114 = vmatprep.subr.bf16.mxu0 %v5962
    %6115 = vmatpush2.bf16.msra.mxu0 %v5961
    %6116 = vmatprep.subr.bf16.mxu0 %v5958
    %6117 = vmatpush2.bf16.msra.mxu0 %v5957
    %6118 = vmatprep.subr.bf16.mxu0 %v5954
    %6119 = vmatpush2.bf16.msra.mxu0 %v5953
    %6120 = vmatprep.mubr.bf16.mxu0 %v5640
    %6121 = vmatmul.mubr.bf16.gmra.mxu0 %v5639
    %v6122 = vpop.f32.mrf.mxu0
    %v6123 = vadd.f32 %v5718, %v6122
    %v6124 = vpop.f32.mrf.mxu0
    %v6125 = vadd.f32 %v5722, %v6124
    %v6126 = vpop.f32.mrf.mxu0
    %v6127 = vpop.f32.mrf.mxu0
    %6128 = vdwg.mxu0
    %v6129 = vxor.u32 %v6082, 2147483648
    %v6130 = vxor.u32 %v6084, 2147483648
    %v6131 = vxor.u32 %v6123, 2147483648
    %v6132 = vmul.f32 %v6129, 1.442695
    %v6133 = vpow.pop %v6132
    %v6134 = vmul.f32 %v6130, 1.442695
    %v6135 = vpow.pop %v6134
    %v6136 = vmul.f32 %v6131, 1.442695
    %v6137 = vpow.pop %v6136
    %v6138 = vadd.f32 %v6133, 1.0
    %v6139 = vadd.f32 %v6135, 1.0
    %v6140 = vadd.f32 %v6137, 1.0
    %v6141 = vrcp.pop %v6138
    %v6142 = vmul.f32 1.0, %v6141
    %v6143 = vrcp.pop %v6139
    %v6144 = vmul.f32 1.0, %v6143
    %v6145 = vrcp.pop %v6140
    %v6146 = vmul.f32 1.0, %v6145
    %v6147 = vtanh.pop %v6125
    %v6148 = vmul.f32 %v6144, %v5120
    %v6149 = vmul.f32 %v6142, %v6147
    %v6150 = vadd.f32 %v6148, %v6149
    %v6151 = vtanh.pop %v6150
    %v6152 = vmul.f32 %v6146, %v6151
    %s6153 = scalar_lea.vmem [#allocation2], 16
    %6154 = vst [vmem:[%s6153] sm:$0xff] %v6152
    %s6155 = scalar_lea.vmem %s1, 12
    %v6156 = vld [vmem:[%s6155] sm:$0xf]
    %v6157 = vld [vmem:[#allocation5] sm:$0xff]
    %v6158 = vld [vmem:[#allocation5 + $0x8] sm:$0xff]
    %v6159 = vld [vmem:[#allocation5 + $0x10] sm:$0xff]
    %v6160 = vld [vmem:[#allocation5 + $0x18] sm:$0xff]
    %v6161 = vld [vmem:[#allocation5 + $0x20] sm:$0xff]
    %v6162 = vld [vmem:[#allocation5 + $0x28] sm:$0xff]
    %v6163 = vld [vmem:[#allocation5 + $0x30] sm:$0xff]
    %v6164 = vld [vmem:[#allocation5 + $0x38] sm:$0xff]
    %v6165 = vld [vmem:[#allocation5 + $0x40] sm:$0xff]
    %v6166 = vld [vmem:[#allocation5 + $0x48] sm:$0xff]
    %v6167 = vld [vmem:[#allocation5 + $0x50] sm:$0xff]
    %v6168 = vld [vmem:[#allocation5 + $0x58] sm:$0xff]
    %v6169 = vld [vmem:[#allocation5 + $0x60] sm:$0xff]
    %v6170 = vld [vmem:[#allocation5 + $0x68] sm:$0xff]
    %v6171 = vld [vmem:[#allocation5 + $0x70] sm:$0xff]
    %v6172 = vld [vmem:[#allocation5 + $0x78] sm:$0xff]
    %v6173 = vld [vmem:[#allocation5 + $0x80] sm:$0xff]
    %v6174 = vld [vmem:[#allocation5 + $0x88] sm:$0xff]
    %v6175 = vld [vmem:[#allocation5 + $0x90] sm:$0xff]
    %v6176 = vld [vmem:[#allocation5 + $0x98] sm:$0xff]
    %v6177 = vld [vmem:[#allocation5 + $0xa0] sm:$0xff]
    %v6178 = vld [vmem:[#allocation5 + $0xa8] sm:$0xff]
    %v6179 = vld [vmem:[#allocation5 + $0xb0] sm:$0xff]
    %v6180 = vld [vmem:[#allocation5 + $0xb8] sm:$0xff]
    %v6181 = vld [vmem:[#allocation5 + $0xc0] sm:$0xff]
    %v6182 = vld [vmem:[#allocation5 + $0xc8] sm:$0xff]
    %v6183 = vld [vmem:[#allocation5 + $0xd0] sm:$0xff]
    %v6184 = vld [vmem:[#allocation5 + $0xd8] sm:$0xff]
    %v6185 = vld [vmem:[#allocation5 + $0xe0] sm:$0xff]
    %v6186 = vld [vmem:[#allocation5 + $0xe8] sm:$0xff]
    %v6187 = vld [vmem:[#allocation5 + $0xf0] sm:$0xff]
    %v6188 = vld [vmem:[#allocation5 + $0xf8] sm:$0xff]
    %v6189 = vld [vmem:[#allocation5 + $0x100] sm:$0xff]
    %v6190 = vld [vmem:[#allocation5 + $0x108] sm:$0xff]
    %v6191 = vld [vmem:[#allocation5 + $0x110] sm:$0xff]
    %v6192 = vld [vmem:[#allocation5 + $0x118] sm:$0xff]
    %v6193 = vld [vmem:[#allocation5 + $0x120] sm:$0xff]
    %v6194 = vld [vmem:[#allocation5 + $0x128] sm:$0xff]
    %v6195 = vld [vmem:[#allocation5 + $0x130] sm:$0xff]
    %v6196 = vld [vmem:[#allocation5 + $0x138] sm:$0xff]
    %v6197 = vld [vmem:[#allocation5 + $0x140] sm:$0xff]
    %v6198 = vld [vmem:[#allocation5 + $0x148] sm:$0xff]
    %v6199 = vld [vmem:[#allocation5 + $0x150] sm:$0xff]
    %v6200 = vld [vmem:[#allocation5 + $0x158] sm:$0xff]
    %v6201 = vld [vmem:[#allocation5 + $0x160] sm:$0xff]
    %v6202 = vld [vmem:[#allocation5 + $0x168] sm:$0xff]
    %v6203 = vld [vmem:[#allocation5 + $0x170] sm:$0xff]
    %v6204 = vld [vmem:[#allocation5 + $0x178] sm:$0xff]
    %v6205 = vld [vmem:[#allocation5 + $0x180] sm:$0xff]
    %v6206 = vld [vmem:[#allocation5 + $0x188] sm:$0xff]
    %v6207 = vld [vmem:[#allocation5 + $0x190] sm:$0xff]
    %v6208 = vld [vmem:[#allocation5 + $0x198] sm:$0xff]
    %v6209 = vld [vmem:[#allocation5 + $0x1a0] sm:$0xff]
    %v6210 = vld [vmem:[#allocation5 + $0x1a8] sm:$0xff]
    %v6211 = vld [vmem:[#allocation5 + $0x1b0] sm:$0xff]
    %v6212 = vld [vmem:[#allocation5 + $0x1b8] sm:$0xff]
    %v6213 = vld [vmem:[#allocation5 + $0x1c0] sm:$0xff]
    %v6214 = vld [vmem:[#allocation5 + $0x1c8] sm:$0xff]
    %v6215 = vld [vmem:[#allocation5 + $0x1d0] sm:$0xff]
    %v6216 = vld [vmem:[#allocation5 + $0x1d8] sm:$0xff]
    %v6217 = vld [vmem:[#allocation5 + $0x1e0] sm:$0xff]
    %v6218 = vld [vmem:[#allocation5 + $0x1e8] sm:$0xff]
    %v6219 = vld [vmem:[#allocation5 + $0x1f0] sm:$0xff]
    %v6220 = vld [vmem:[#allocation5 + $0x1f8] sm:$0xff]
    %v6221 = vld [vmem:[%s7] sm:$0xf]
    %v6223 = vlaneseq
    %v6224 = vshrl.u32 %v6223, 7
    %v6225 = vsub.s32 0, %v6224
    %v6226 = vrot.slane %v6221, %v6225
    %v6227 = vlaneseq
    %v6228 = vshrl.u32 %v6227, 7
    %v6229 = vsub.s32 1, %v6228
    %v6230 = vrot.slane %v6221, %v6229
    %v6231 = vlaneseq
    %v6232 = vshrl.u32 %v6231, 7
    %v6233 = vsub.s32 2, %v6232
    %v6234 = vrot.slane %v6221, %v6233
    %v6235 = vlaneseq
    %v6236 = vshrl.u32 %v6235, 7
    %v6237 = vsub.s32 3, %v6236
    %v6238 = vrot.slane %v6221, %v6237
    %v6307 = vunpack.c.l.b16 %v6157
    %v6308 = vunpack.c.h.b16 %v6157
    %v6309 = vunpack.c.l.b16 %v6158
    %v6310 = vunpack.c.h.b16 %v6158
    %v6311 = vunpack.c.l.b16 %v6159
    %v6312 = vunpack.c.h.b16 %v6159
    %v6313 = vunpack.c.l.b16 %v6160
    %v6314 = vunpack.c.h.b16 %v6160
    %v6315 = vunpack.c.l.b16 %v6161
    %v6316 = vunpack.c.h.b16 %v6161
    %v6317 = vunpack.c.l.b16 %v6162
    %v6318 = vunpack.c.h.b16 %v6162
    %v6319 = vunpack.c.l.b16 %v6163
    %v6320 = vunpack.c.h.b16 %v6163
    %v6321 = vunpack.c.l.b16 %v6164
    %v6322 = vunpack.c.h.b16 %v6164
    %v6323 = vunpack.c.l.b16 %v6165
    %v6324 = vunpack.c.h.b16 %v6165
    %v6325 = vunpack.c.l.b16 %v6166
    %v6326 = vunpack.c.h.b16 %v6166
    %v6327 = vunpack.c.l.b16 %v6167
    %v6328 = vunpack.c.h.b16 %v6167
    %v6329 = vunpack.c.l.b16 %v6168
    %v6330 = vunpack.c.h.b16 %v6168
    %v6331 = vunpack.c.l.b16 %v6169
    %v6332 = vunpack.c.h.b16 %v6169
    %v6333 = vunpack.c.l.b16 %v6170
    %v6334 = vunpack.c.h.b16 %v6170
    %v6335 = vunpack.c.l.b16 %v6171
    %v6336 = vunpack.c.h.b16 %v6171
    %v6337 = vunpack.c.l.b16 %v6172
    %v6338 = vunpack.c.h.b16 %v6172
    %v6339 = vunpack.c.l.b16 %v6173
    %v6340 = vunpack.c.h.b16 %v6173
    %v6341 = vunpack.c.l.b16 %v6174
    %v6342 = vunpack.c.h.b16 %v6174
    %v6343 = vunpack.c.l.b16 %v6175
    %v6344 = vunpack.c.h.b16 %v6175
    %v6345 = vunpack.c.l.b16 %v6176
    %v6346 = vunpack.c.h.b16 %v6176
    %v6347 = vunpack.c.l.b16 %v6177
    %v6348 = vunpack.c.h.b16 %v6177
    %v6349 = vunpack.c.l.b16 %v6178
    %v6350 = vunpack.c.h.b16 %v6178
    %v6351 = vunpack.c.l.b16 %v6179
    %v6352 = vunpack.c.h.b16 %v6179
    %v6353 = vunpack.c.l.b16 %v6180
    %v6354 = vunpack.c.h.b16 %v6180
    %v6355 = vunpack.c.l.b16 %v6181
    %v6356 = vunpack.c.h.b16 %v6181
    %v6357 = vunpack.c.l.b16 %v6182
    %v6358 = vunpack.c.h.b16 %v6182
    %v6359 = vunpack.c.l.b16 %v6183
    %v6360 = vunpack.c.h.b16 %v6183
    %v6361 = vunpack.c.l.b16 %v6184
    %v6362 = vunpack.c.h.b16 %v6184
    %v6363 = vunpack.c.l.b16 %v6185
    %v6364 = vunpack.c.h.b16 %v6185
    %v6365 = vunpack.c.l.b16 %v6186
    %v6366 = vunpack.c.h.b16 %v6186
    %v6367 = vunpack.c.l.b16 %v6187
    %v6368 = vunpack.c.h.b16 %v6187
    %v6369 = vunpack.c.l.b16 %v6188
    %v6370 = vunpack.c.h.b16 %v6188
    %v6371 = vunpack.c.l.b16 %v6189
    %v6372 = vunpack.c.h.b16 %v6189
    %v6373 = vunpack.c.l.b16 %v6190
    %v6374 = vunpack.c.h.b16 %v6190
    %v6375 = vunpack.c.l.b16 %v6191
    %v6376 = vunpack.c.h.b16 %v6191
    %v6377 = vunpack.c.l.b16 %v6192
    %v6378 = vunpack.c.h.b16 %v6192
    %v6379 = vunpack.c.l.b16 %v6193
    %v6380 = vunpack.c.h.b16 %v6193
    %v6381 = vunpack.c.l.b16 %v6194
    %v6382 = vunpack.c.h.b16 %v6194
    %v6383 = vunpack.c.l.b16 %v6195
    %v6384 = vunpack.c.h.b16 %v6195
    %v6385 = vunpack.c.l.b16 %v6196
    %v6386 = vunpack.c.h.b16 %v6196
    %v6387 = vunpack.c.l.b16 %v6197
    %v6388 = vunpack.c.h.b16 %v6197
    %v6389 = vunpack.c.l.b16 %v6198
    %v6390 = vunpack.c.h.b16 %v6198
    %v6391 = vunpack.c.l.b16 %v6199
    %v6392 = vunpack.c.h.b16 %v6199
    %v6393 = vunpack.c.l.b16 %v6200
    %v6394 = vunpack.c.h.b16 %v6200
    %v6395 = vunpack.c.l.b16 %v6201
    %v6396 = vunpack.c.h.b16 %v6201
    %v6397 = vunpack.c.l.b16 %v6202
    %v6398 = vunpack.c.h.b16 %v6202
    %v6399 = vunpack.c.l.b16 %v6203
    %v6400 = vunpack.c.h.b16 %v6203
    %v6401 = vunpack.c.l.b16 %v6204
    %v6402 = vunpack.c.h.b16 %v6204
    %v6403 = vunpack.c.l.b16 %v6205
    %v6404 = vunpack.c.h.b16 %v6205
    %v6405 = vunpack.c.l.b16 %v6206
    %v6406 = vunpack.c.h.b16 %v6206
    %v6407 = vunpack.c.l.b16 %v6207
    %v6408 = vunpack.c.h.b16 %v6207
    %v6409 = vunpack.c.l.b16 %v6208
    %v6410 = vunpack.c.h.b16 %v6208
    %v6411 = vunpack.c.l.b16 %v6209
    %v6412 = vunpack.c.h.b16 %v6209
    %v6413 = vunpack.c.l.b16 %v6210
    %v6414 = vunpack.c.h.b16 %v6210
    %v6415 = vunpack.c.l.b16 %v6211
    %v6416 = vunpack.c.h.b16 %v6211
    %v6417 = vunpack.c.l.b16 %v6212
    %v6418 = vunpack.c.h.b16 %v6212
    %v6419 = vunpack.c.l.b16 %v6213
    %v6420 = vunpack.c.h.b16 %v6213
    %v6421 = vunpack.c.l.b16 %v6214
    %v6422 = vunpack.c.h.b16 %v6214
    %v6423 = vunpack.c.l.b16 %v6215
    %v6424 = vunpack.c.h.b16 %v6215
    %v6425 = vunpack.c.l.b16 %v6216
    %v6426 = vunpack.c.h.b16 %v6216
    %v6427 = vunpack.c.l.b16 %v6217
    %v6428 = vunpack.c.h.b16 %v6217
    %v6429 = vunpack.c.l.b16 %v6218
    %v6430 = vunpack.c.h.b16 %v6218
    %v6431 = vunpack.c.l.b16 %v6219
    %v6432 = vunpack.c.h.b16 %v6219
    %v6433 = vunpack.c.l.b16 %v6220
    %v6434 = vunpack.c.h.b16 %v6220
    %v6435 = vpack.c.b16 %v6311, %v6307
    %v6436 = vpack.c.b16 %v6312, %v6308
    %v6437 = vpack.c.b16 %v6313, %v6309
    %v6438 = vpack.c.b16 %v6314, %v6310
    %v6439 = vpack.c.b16 %v6319, %v6315
    %v6440 = vpack.c.b16 %v6320, %v6316
    %v6441 = vpack.c.b16 %v6321, %v6317
    %v6442 = vpack.c.b16 %v6322, %v6318
    %v6443 = vpack.c.b16 %v6327, %v6323
    %v6444 = vpack.c.b16 %v6328, %v6324
    %v6445 = vpack.c.b16 %v6329, %v6325
    %v6446 = vpack.c.b16 %v6330, %v6326
    %v6447 = vpack.c.b16 %v6335, %v6331
    %v6448 = vpack.c.b16 %v6336, %v6332
    %v6449 = vpack.c.b16 %v6337, %v6333
    %v6450 = vpack.c.b16 %v6338, %v6334
    %v6451 = vpack.c.b16 %v6343, %v6339
    %v6452 = vpack.c.b16 %v6344, %v6340
    %v6453 = vpack.c.b16 %v6345, %v6341
    %v6454 = vpack.c.b16 %v6346, %v6342
    %v6455 = vpack.c.b16 %v6351, %v6347
    %v6456 = vpack.c.b16 %v6352, %v6348
    %v6457 = vpack.c.b16 %v6353, %v6349
    %v6458 = vpack.c.b16 %v6354, %v6350
    %v6459 = vpack.c.b16 %v6359, %v6355
    %v6460 = vpack.c.b16 %v6360, %v6356
    %v6461 = vpack.c.b16 %v6361, %v6357
    %v6462 = vpack.c.b16 %v6362, %v6358
    %v6463 = vpack.c.b16 %v6367, %v6363
    %v6464 = vpack.c.b16 %v6368, %v6364
    %v6465 = vpack.c.b16 %v6369, %v6365
    %v6466 = vpack.c.b16 %v6370, %v6366
    %v6467 = vpack.c.b16 %v6375, %v6371
    %v6468 = vpack.c.b16 %v6376, %v6372
    %v6469 = vpack.c.b16 %v6377, %v6373
    %v6470 = vpack.c.b16 %v6378, %v6374
    %v6471 = vpack.c.b16 %v6383, %v6379
    %v6472 = vpack.c.b16 %v6384, %v6380
    %v6473 = vpack.c.b16 %v6385, %v6381
    %v6474 = vpack.c.b16 %v6386, %v6382
    %v6475 = vpack.c.b16 %v6391, %v6387
    %v6476 = vpack.c.b16 %v6392, %v6388
    %v6477 = vpack.c.b16 %v6393, %v6389
    %v6478 = vpack.c.b16 %v6394, %v6390
    %v6479 = vpack.c.b16 %v6399, %v6395
    %v6480 = vpack.c.b16 %v6400, %v6396
    %v6481 = vpack.c.b16 %v6401, %v6397
    %v6482 = vpack.c.b16 %v6402, %v6398
    %v6483 = vpack.c.b16 %v6407, %v6403
    %v6484 = vpack.c.b16 %v6408, %v6404
    %v6485 = vpack.c.b16 %v6409, %v6405
    %v6486 = vpack.c.b16 %v6410, %v6406
    %v6487 = vpack.c.b16 %v6415, %v6411
    %v6488 = vpack.c.b16 %v6416, %v6412
    %v6489 = vpack.c.b16 %v6417, %v6413
    %v6490 = vpack.c.b16 %v6418, %v6414
    %v6491 = vpack.c.b16 %v6423, %v6419
    %v6492 = vpack.c.b16 %v6424, %v6420
    %v6493 = vpack.c.b16 %v6425, %v6421
    %v6494 = vpack.c.b16 %v6426, %v6422
    %v6495 = vpack.c.b16 %v6431, %v6427
    %v6496 = vpack.c.b16 %v6432, %v6428
    %v6497 = vpack.c.b16 %v6433, %v6429
    %v6498 = vpack.c.b16 %v6434, %v6430
    %6563 = vmatprep.subr.bf16.mxu0 %v6464
    %6564 = vmatpush1.bf16.msra.mxu0 %v6463
    %6565 = vmatprep.subr.bf16.mxu0 %v6460
    %6566 = vmatpush1.bf16.msra.mxu0 %v6459
    %6567 = vmatprep.subr.bf16.mxu0 %v6456
    %6568 = vmatpush1.bf16.msra.mxu0 %v6455
    %6569 = vmatprep.subr.bf16.mxu0 %v6452
    %6570 = vmatpush1.bf16.msra.mxu0 %v6451
    %6571 = vmatprep.subr.bf16.mxu0 %v6448
    %6572 = vmatpush1.bf16.msra.mxu0 %v6447
    %6573 = vmatprep.subr.bf16.mxu0 %v6444
    %6574 = vmatpush1.bf16.msra.mxu0 %v6443
    %6575 = vmatprep.subr.bf16.mxu0 %v6440
    %6576 = vmatpush1.bf16.msra.mxu0 %v6439
    %6577 = vmatprep.subr.bf16.mxu0 %v6436
    %6578 = vmatpush1.bf16.msra.mxu0 %v6435
    %6579 = vmatprep.subr.bf16.mxu0 %v6496
    %6580 = vmatpush2.bf16.msra.mxu0 %v6495
    %6581 = vmatprep.subr.bf16.mxu0 %v6492
    %6582 = vmatpush2.bf16.msra.mxu0 %v6491
    %6583 = vmatprep.subr.bf16.mxu0 %v6488
    %6584 = vmatpush2.bf16.msra.mxu0 %v6487
    %6585 = vmatprep.subr.bf16.mxu0 %v6484
    %6586 = vmatpush2.bf16.msra.mxu0 %v6483
    %6587 = vmatprep.subr.bf16.mxu0 %v6480
    %6588 = vmatpush2.bf16.msra.mxu0 %v6479
    %6589 = vmatprep.subr.bf16.mxu0 %v6476
    %6590 = vmatpush2.bf16.msra.mxu0 %v6475
    %6591 = vmatprep.subr.bf16.mxu0 %v6472
    %6592 = vmatpush2.bf16.msra.mxu0 %v6471
    %6593 = vmatprep.subr.bf16.mxu0 %v6468
    %6594 = vmatpush2.bf16.msra.mxu0 %v6467
    %6595 = vmatprep.mubr.bf16.mxu0 %v5639
    %6596 = vmatmul.mubr.bf16.gmra.mxu0 %v6156
    %v6597 = vpop.f32.mrf.mxu0
    %v6598 = vadd.f32 %v6226, %v6597
    %v6599 = vpop.f32.mrf.mxu0
    %v6600 = vadd.f32 %v6230, %v6599
    %v6601 = vpop.f32.mrf.mxu0
    %v6602 = vpop.f32.mrf.mxu0
    %6603 = vdwg.mxu0
    %6604 = vmatprep.subr.bf16.mxu0 %v6466
    %6605 = vmatpush1.bf16.msra.mxu0 %v6465
    %6606 = vmatprep.subr.bf16.mxu0 %v6462
    %6607 = vmatpush1.bf16.msra.mxu0 %v6461
    %6608 = vmatprep.subr.bf16.mxu0 %v6458
    %6609 = vmatpush1.bf16.msra.mxu0 %v6457
    %6610 = vmatprep.subr.bf16.mxu0 %v6454
    %6611 = vmatpush1.bf16.msra.mxu0 %v6453
    %6612 = vmatprep.subr.bf16.mxu0 %v6450
    %6613 = vmatpush1.bf16.msra.mxu0 %v6449
    %6614 = vmatprep.subr.bf16.mxu0 %v6446
    %6615 = vmatpush1.bf16.msra.mxu0 %v6445
    %6616 = vmatprep.subr.bf16.mxu0 %v6442
    %6617 = vmatpush1.bf16.msra.mxu0 %v6441
    %6618 = vmatprep.subr.bf16.mxu0 %v6438
    %6619 = vmatpush1.bf16.msra.mxu0 %v6437
    %6620 = vmatprep.subr.bf16.mxu0 %v6498
    %6621 = vmatpush2.bf16.msra.mxu0 %v6497
    %6622 = vmatprep.subr.bf16.mxu0 %v6494
    %6623 = vmatpush2.bf16.msra.mxu0 %v6493
    %6624 = vmatprep.subr.bf16.mxu0 %v6490
    %6625 = vmatpush2.bf16.msra.mxu0 %v6489
    %6626 = vmatprep.subr.bf16.mxu0 %v6486
    %6627 = vmatpush2.bf16.msra.mxu0 %v6485
    %6628 = vmatprep.subr.bf16.mxu0 %v6482
    %6629 = vmatpush2.bf16.msra.mxu0 %v6481
    %6630 = vmatprep.subr.bf16.mxu0 %v6478
    %6631 = vmatpush2.bf16.msra.mxu0 %v6477
    %6632 = vmatprep.subr.bf16.mxu0 %v6474
    %6633 = vmatpush2.bf16.msra.mxu0 %v6473
    %6634 = vmatprep.subr.bf16.mxu0 %v6470
    %6635 = vmatpush2.bf16.msra.mxu0 %v6469
    %6636 = vmatprep.mubr.bf16.mxu0 %v5639
    %6637 = vmatmul.mubr.bf16.gmra.mxu0 %v6156
    %v6638 = vpop.f32.mrf.mxu0
    %v6639 = vadd.f32 %v6234, %v6638
    %v6640 = vpop.f32.mrf.mxu0
    %v6641 = vadd.f32 %v6238, %v6640
    %v6642 = vpop.f32.mrf.mxu0
    %v6643 = vpop.f32.mrf.mxu0
    %6644 = vdwg.mxu0
    %v6645 = vxor.u32 %v6598, 2147483648
    %v6646 = vxor.u32 %v6600, 2147483648
    %v6647 = vxor.u32 %v6639, 2147483648
    %v6648 = vmul.f32 %v6645, 1.442695
    %v6649 = vpow.pop %v6648
    %v6650 = vmul.f32 %v6646, 1.442695
    %v6651 = vpow.pop %v6650
    %v6652 = vmul.f32 %v6647, 1.442695
    %v6653 = vpow.pop %v6652
    %v6654 = vadd.f32 %v6649, 1.0
    %v6655 = vadd.f32 %v6651, 1.0
    %v6656 = vadd.f32 %v6653, 1.0
    %v6657 = vrcp.pop %v6654
    %v6658 = vmul.f32 1.0, %v6657
    %v6659 = vrcp.pop %v6655
    %v6660 = vmul.f32 1.0, %v6659
    %v6661 = vrcp.pop %v6656
    %v6662 = vmul.f32 1.0, %v6661
    %v6663 = vtanh.pop %v6641
    %v6664 = vmul.f32 %v6660, %v5636
    %v6665 = vmul.f32 %v6658, %v6663
    %v6666 = vadd.f32 %v6664, %v6665
    %v6667 = vtanh.pop %v6666
    %v6668 = vmul.f32 %v6662, %v6667
    %v6669 = vpack.c.bf16 %v6668, %v6668
    %v6670 = vpack.c.bf16 %v6152, %v6152
    %v6671 = vld [vmem:[#allocation7] sm:$0xff]
    %v6672 = vld [vmem:[#allocation7 + $0x8] sm:$0xff]
    %v6673 = vld [vmem:[#allocation7 + $0x10] sm:$0xff]
    %v6674 = vld [vmem:[#allocation7 + $0x18] sm:$0xff]
    %v6675 = vld [vmem:[#allocation7 + $0x20] sm:$0xff]
    %v6676 = vld [vmem:[#allocation7 + $0x28] sm:$0xff]
    %v6677 = vld [vmem:[#allocation7 + $0x30] sm:$0xff]
    %v6678 = vld [vmem:[#allocation7 + $0x38] sm:$0xff]
    %v6679 = vld [vmem:[#allocation7 + $0x40] sm:$0xff]
    %v6680 = vld [vmem:[#allocation7 + $0x48] sm:$0xff]
    %v6681 = vld [vmem:[#allocation7 + $0x50] sm:$0xff]
    %v6682 = vld [vmem:[#allocation7 + $0x58] sm:$0xff]
    %v6683 = vld [vmem:[#allocation7 + $0x60] sm:$0xff]
    %v6684 = vld [vmem:[#allocation7 + $0x68] sm:$0xff]
    %v6685 = vld [vmem:[#allocation7 + $0x70] sm:$0xff]
    %v6686 = vld [vmem:[#allocation7 + $0x78] sm:$0xff]
    %v6687 = vld [vmem:[#allocation7 + $0x80] sm:$0xff]
    %v6688 = vld [vmem:[#allocation7 + $0x88] sm:$0xff]
    %v6689 = vld [vmem:[#allocation7 + $0x90] sm:$0xff]
    %v6690 = vld [vmem:[#allocation7 + $0x98] sm:$0xff]
    %v6691 = vld [vmem:[#allocation7 + $0xa0] sm:$0xff]
    %v6692 = vld [vmem:[#allocation7 + $0xa8] sm:$0xff]
    %v6693 = vld [vmem:[#allocation7 + $0xb0] sm:$0xff]
    %v6694 = vld [vmem:[#allocation7 + $0xb8] sm:$0xff]
    %v6695 = vld [vmem:[#allocation7 + $0xc0] sm:$0xff]
    %v6696 = vld [vmem:[#allocation7 + $0xc8] sm:$0xff]
    %v6697 = vld [vmem:[#allocation7 + $0xd0] sm:$0xff]
    %v6698 = vld [vmem:[#allocation7 + $0xd8] sm:$0xff]
    %v6699 = vld [vmem:[#allocation7 + $0xe0] sm:$0xff]
    %v6700 = vld [vmem:[#allocation7 + $0xe8] sm:$0xff]
    %v6701 = vld [vmem:[#allocation7 + $0xf0] sm:$0xff]
    %v6702 = vld [vmem:[#allocation7 + $0xf8] sm:$0xff]
    %v6703 = vld [vmem:[#allocation7 + $0x100] sm:$0xff]
    %v6704 = vld [vmem:[#allocation7 + $0x108] sm:$0xff]
    %v6705 = vld [vmem:[#allocation7 + $0x110] sm:$0xff]
    %v6706 = vld [vmem:[#allocation7 + $0x118] sm:$0xff]
    %v6707 = vld [vmem:[#allocation7 + $0x120] sm:$0xff]
    %v6708 = vld [vmem:[#allocation7 + $0x128] sm:$0xff]
    %v6709 = vld [vmem:[#allocation7 + $0x130] sm:$0xff]
    %v6710 = vld [vmem:[#allocation7 + $0x138] sm:$0xff]
    %v6711 = vld [vmem:[#allocation7 + $0x140] sm:$0xff]
    %v6712 = vld [vmem:[#allocation7 + $0x148] sm:$0xff]
    %v6713 = vld [vmem:[#allocation7 + $0x150] sm:$0xff]
    %v6714 = vld [vmem:[#allocation7 + $0x158] sm:$0xff]
    %v6715 = vld [vmem:[#allocation7 + $0x160] sm:$0xff]
    %v6716 = vld [vmem:[#allocation7 + $0x168] sm:$0xff]
    %v6717 = vld [vmem:[#allocation7 + $0x170] sm:$0xff]
    %v6718 = vld [vmem:[#allocation7 + $0x178] sm:$0xff]
    %v6719 = vld [vmem:[#allocation7 + $0x180] sm:$0xff]
    %v6720 = vld [vmem:[#allocation7 + $0x188] sm:$0xff]
    %v6721 = vld [vmem:[#allocation7 + $0x190] sm:$0xff]
    %v6722 = vld [vmem:[#allocation7 + $0x198] sm:$0xff]
    %v6723 = vld [vmem:[#allocation7 + $0x1a0] sm:$0xff]
    %v6724 = vld [vmem:[#allocation7 + $0x1a8] sm:$0xff]
    %v6725 = vld [vmem:[#allocation7 + $0x1b0] sm:$0xff]
    %v6726 = vld [vmem:[#allocation7 + $0x1b8] sm:$0xff]
    %v6727 = vld [vmem:[#allocation7 + $0x1c0] sm:$0xff]
    %v6728 = vld [vmem:[#allocation7 + $0x1c8] sm:$0xff]
    %v6729 = vld [vmem:[#allocation7 + $0x1d0] sm:$0xff]
    %v6730 = vld [vmem:[#allocation7 + $0x1d8] sm:$0xff]
    %v6731 = vld [vmem:[#allocation7 + $0x1e0] sm:$0xff]
    %v6732 = vld [vmem:[#allocation7 + $0x1e8] sm:$0xff]
    %v6733 = vld [vmem:[#allocation7 + $0x1f0] sm:$0xff]
    %v6734 = vld [vmem:[#allocation7 + $0x1f8] sm:$0xff]
    %v6735 = vld [vmem:[%s9] sm:$0xf]
    %v6737 = vlaneseq
    %v6738 = vshrl.u32 %v6737, 7
    %v6739 = vsub.s32 0, %v6738
    %v6740 = vrot.slane %v6735, %v6739
    %v6741 = vlaneseq
    %v6742 = vshrl.u32 %v6741, 7
    %v6743 = vsub.s32 1, %v6742
    %v6744 = vrot.slane %v6735, %v6743
    %v6745 = vlaneseq
    %v6746 = vshrl.u32 %v6745, 7
    %v6747 = vsub.s32 2, %v6746
    %v6748 = vrot.slane %v6735, %v6747
    %v6749 = vlaneseq
    %v6750 = vshrl.u32 %v6749, 7
    %v6751 = vsub.s32 3, %v6750
    %v6752 = vrot.slane %v6735, %v6751
    %v6821 = vunpack.c.l.b16 %v6671
    %v6822 = vunpack.c.h.b16 %v6671
    %v6823 = vunpack.c.l.b16 %v6672
    %v6824 = vunpack.c.h.b16 %v6672
    %v6825 = vunpack.c.l.b16 %v6673
    %v6826 = vunpack.c.h.b16 %v6673
    %v6827 = vunpack.c.l.b16 %v6674
    %v6828 = vunpack.c.h.b16 %v6674
    %v6829 = vunpack.c.l.b16 %v6675
    %v6830 = vunpack.c.h.b16 %v6675
    %v6831 = vunpack.c.l.b16 %v6676
    %v6832 = vunpack.c.h.b16 %v6676
    %v6833 = vunpack.c.l.b16 %v6677
    %v6834 = vunpack.c.h.b16 %v6677
    %v6835 = vunpack.c.l.b16 %v6678
    %v6836 = vunpack.c.h.b16 %v6678
    %v6837 = vunpack.c.l.b16 %v6679
    %v6838 = vunpack.c.h.b16 %v6679
    %v6839 = vunpack.c.l.b16 %v6680
    %v6840 = vunpack.c.h.b16 %v6680
    %v6841 = vunpack.c.l.b16 %v6681
    %v6842 = vunpack.c.h.b16 %v6681
    %v6843 = vunpack.c.l.b16 %v6682
    %v6844 = vunpack.c.h.b16 %v6682
    %v6845 = vunpack.c.l.b16 %v6683
    %v6846 = vunpack.c.h.b16 %v6683
    %v6847 = vunpack.c.l.b16 %v6684
    %v6848 = vunpack.c.h.b16 %v6684
    %v6849 = vunpack.c.l.b16 %v6685
    %v6850 = vunpack.c.h.b16 %v6685
    %v6851 = vunpack.c.l.b16 %v6686
    %v6852 = vunpack.c.h.b16 %v6686
    %v6853 = vunpack.c.l.b16 %v6687
    %v6854 = vunpack.c.h.b16 %v6687
    %v6855 = vunpack.c.l.b16 %v6688
    %v6856 = vunpack.c.h.b16 %v6688
    %v6857 = vunpack.c.l.b16 %v6689
    %v6858 = vunpack.c.h.b16 %v6689
    %v6859 = vunpack.c.l.b16 %v6690
    %v6860 = vunpack.c.h.b16 %v6690
    %v6861 = vunpack.c.l.b16 %v6691
    %v6862 = vunpack.c.h.b16 %v6691
    %v6863 = vunpack.c.l.b16 %v6692
    %v6864 = vunpack.c.h.b16 %v6692
    %v6865 = vunpack.c.l.b16 %v6693
    %v6866 = vunpack.c.h.b16 %v6693
    %v6867 = vunpack.c.l.b16 %v6694
    %v6868 = vunpack.c.h.b16 %v6694
    %v6869 = vunpack.c.l.b16 %v6695
    %v6870 = vunpack.c.h.b16 %v6695
    %v6871 = vunpack.c.l.b16 %v6696
    %v6872 = vunpack.c.h.b16 %v6696
    %v6873 = vunpack.c.l.b16 %v6697
    %v6874 = vunpack.c.h.b16 %v6697
    %v6875 = vunpack.c.l.b16 %v6698
    %v6876 = vunpack.c.h.b16 %v6698
    %v6877 = vunpack.c.l.b16 %v6699
    %v6878 = vunpack.c.h.b16 %v6699
    %v6879 = vunpack.c.l.b16 %v6700
    %v6880 = vunpack.c.h.b16 %v6700
    %v6881 = vunpack.c.l.b16 %v6701
    %v6882 = vunpack.c.h.b16 %v6701
    %v6883 = vunpack.c.l.b16 %v6702
    %v6884 = vunpack.c.h.b16 %v6702
    %v6885 = vunpack.c.l.b16 %v6703
    %v6886 = vunpack.c.h.b16 %v6703
    %v6887 = vunpack.c.l.b16 %v6704
    %v6888 = vunpack.c.h.b16 %v6704
    %v6889 = vunpack.c.l.b16 %v6705
    %v6890 = vunpack.c.h.b16 %v6705
    %v6891 = vunpack.c.l.b16 %v6706
    %v6892 = vunpack.c.h.b16 %v6706
    %v6893 = vunpack.c.l.b16 %v6707
    %v6894 = vunpack.c.h.b16 %v6707
    %v6895 = vunpack.c.l.b16 %v6708
    %v6896 = vunpack.c.h.b16 %v6708
    %v6897 = vunpack.c.l.b16 %v6709
    %v6898 = vunpack.c.h.b16 %v6709
    %v6899 = vunpack.c.l.b16 %v6710
    %v6900 = vunpack.c.h.b16 %v6710
    %v6901 = vunpack.c.l.b16 %v6711
    %v6902 = vunpack.c.h.b16 %v6711
    %v6903 = vunpack.c.l.b16 %v6712
    %v6904 = vunpack.c.h.b16 %v6712
    %v6905 = vunpack.c.l.b16 %v6713
    %v6906 = vunpack.c.h.b16 %v6713
    %v6907 = vunpack.c.l.b16 %v6714
    %v6908 = vunpack.c.h.b16 %v6714
    %v6909 = vunpack.c.l.b16 %v6715
    %v6910 = vunpack.c.h.b16 %v6715
    %v6911 = vunpack.c.l.b16 %v6716
    %v6912 = vunpack.c.h.b16 %v6716
    %v6913 = vunpack.c.l.b16 %v6717
    %v6914 = vunpack.c.h.b16 %v6717
    %v6915 = vunpack.c.l.b16 %v6718
    %v6916 = vunpack.c.h.b16 %v6718
    %v6917 = vunpack.c.l.b16 %v6719
    %v6918 = vunpack.c.h.b16 %v6719
    %v6919 = vunpack.c.l.b16 %v6720
    %v6920 = vunpack.c.h.b16 %v6720
    %v6921 = vunpack.c.l.b16 %v6721
    %v6922 = vunpack.c.h.b16 %v6721
    %v6923 = vunpack.c.l.b16 %v6722
    %v6924 = vunpack.c.h.b16 %v6722
    %v6925 = vunpack.c.l.b16 %v6723
    %v6926 = vunpack.c.h.b16 %v6723
    %v6927 = vunpack.c.l.b16 %v6724
    %v6928 = vunpack.c.h.b16 %v6724
    %v6929 = vunpack.c.l.b16 %v6725
    %v6930 = vunpack.c.h.b16 %v6725
    %v6931 = vunpack.c.l.b16 %v6726
    %v6932 = vunpack.c.h.b16 %v6726
    %v6933 = vunpack.c.l.b16 %v6727
    %v6934 = vunpack.c.h.b16 %v6727
    %v6935 = vunpack.c.l.b16 %v6728
    %v6936 = vunpack.c.h.b16 %v6728
    %v6937 = vunpack.c.l.b16 %v6729
    %v6938 = vunpack.c.h.b16 %v6729
    %v6939 = vunpack.c.l.b16 %v6730
    %v6940 = vunpack.c.h.b16 %v6730
    %v6941 = vunpack.c.l.b16 %v6731
    %v6942 = vunpack.c.h.b16 %v6731
    %v6943 = vunpack.c.l.b16 %v6732
    %v6944 = vunpack.c.h.b16 %v6732
    %v6945 = vunpack.c.l.b16 %v6733
    %v6946 = vunpack.c.h.b16 %v6733
    %v6947 = vunpack.c.l.b16 %v6734
    %v6948 = vunpack.c.h.b16 %v6734
    %v6949 = vpack.c.b16 %v6825, %v6821
    %v6950 = vpack.c.b16 %v6826, %v6822
    %v6951 = vpack.c.b16 %v6827, %v6823
    %v6952 = vpack.c.b16 %v6828, %v6824
    %v6953 = vpack.c.b16 %v6833, %v6829
    %v6954 = vpack.c.b16 %v6834, %v6830
    %v6955 = vpack.c.b16 %v6835, %v6831
    %v6956 = vpack.c.b16 %v6836, %v6832
    %v6957 = vpack.c.b16 %v6841, %v6837
    %v6958 = vpack.c.b16 %v6842, %v6838
    %v6959 = vpack.c.b16 %v6843, %v6839
    %v6960 = vpack.c.b16 %v6844, %v6840
    %v6961 = vpack.c.b16 %v6849, %v6845
    %v6962 = vpack.c.b16 %v6850, %v6846
    %v6963 = vpack.c.b16 %v6851, %v6847
    %v6964 = vpack.c.b16 %v6852, %v6848
    %v6965 = vpack.c.b16 %v6857, %v6853
    %v6966 = vpack.c.b16 %v6858, %v6854
    %v6967 = vpack.c.b16 %v6859, %v6855
    %v6968 = vpack.c.b16 %v6860, %v6856
    %v6969 = vpack.c.b16 %v6865, %v6861
    %v6970 = vpack.c.b16 %v6866, %v6862
    %v6971 = vpack.c.b16 %v6867, %v6863
    %v6972 = vpack.c.b16 %v6868, %v6864
    %v6973 = vpack.c.b16 %v6873, %v6869
    %v6974 = vpack.c.b16 %v6874, %v6870
    %v6975 = vpack.c.b16 %v6875, %v6871
    %v6976 = vpack.c.b16 %v6876, %v6872
    %v6977 = vpack.c.b16 %v6881, %v6877
    %v6978 = vpack.c.b16 %v6882, %v6878
    %v6979 = vpack.c.b16 %v6883, %v6879
    %v6980 = vpack.c.b16 %v6884, %v6880
    %v6981 = vpack.c.b16 %v6889, %v6885
    %v6982 = vpack.c.b16 %v6890, %v6886
    %v6983 = vpack.c.b16 %v6891, %v6887
    %v6984 = vpack.c.b16 %v6892, %v6888
    %v6985 = vpack.c.b16 %v6897, %v6893
    %v6986 = vpack.c.b16 %v6898, %v6894
    %v6987 = vpack.c.b16 %v6899, %v6895
    %v6988 = vpack.c.b16 %v6900, %v6896
    %v6989 = vpack.c.b16 %v6905, %v6901
    %v6990 = vpack.c.b16 %v6906, %v6902
    %v6991 = vpack.c.b16 %v6907, %v6903
    %v6992 = vpack.c.b16 %v6908, %v6904
    %v6993 = vpack.c.b16 %v6913, %v6909
    %v6994 = vpack.c.b16 %v6914, %v6910
    %v6995 = vpack.c.b16 %v6915, %v6911
    %v6996 = vpack.c.b16 %v6916, %v6912
    %v6997 = vpack.c.b16 %v6921, %v6917
    %v6998 = vpack.c.b16 %v6922, %v6918
    %v6999 = vpack.c.b16 %v6923, %v6919
    %v7000 = vpack.c.b16 %v6924, %v6920
    %v7001 = vpack.c.b16 %v6929, %v6925
    %v7002 = vpack.c.b16 %v6930, %v6926
    %v7003 = vpack.c.b16 %v6931, %v6927
    %v7004 = vpack.c.b16 %v6932, %v6928
    %v7005 = vpack.c.b16 %v6937, %v6933
    %v7006 = vpack.c.b16 %v6938, %v6934
    %v7007 = vpack.c.b16 %v6939, %v6935
    %v7008 = vpack.c.b16 %v6940, %v6936
    %v7009 = vpack.c.b16 %v6945, %v6941
    %v7010 = vpack.c.b16 %v6946, %v6942
    %v7011 = vpack.c.b16 %v6947, %v6943
    %v7012 = vpack.c.b16 %v6948, %v6944
    %7077 = vmatprep.subr.bf16.mxu0 %v6978
    %7078 = vmatpush1.bf16.msra.mxu0 %v6977
    %7079 = vmatprep.subr.bf16.mxu0 %v6974
    %7080 = vmatpush1.bf16.msra.mxu0 %v6973
    %7081 = vmatprep.subr.bf16.mxu0 %v6970
    %7082 = vmatpush1.bf16.msra.mxu0 %v6969
    %7083 = vmatprep.subr.bf16.mxu0 %v6966
    %7084 = vmatpush1.bf16.msra.mxu0 %v6965
    %7085 = vmatprep.subr.bf16.mxu0 %v6962
    %7086 = vmatpush1.bf16.msra.mxu0 %v6961
    %7087 = vmatprep.subr.bf16.mxu0 %v6958
    %7088 = vmatpush1.bf16.msra.mxu0 %v6957
    %7089 = vmatprep.subr.bf16.mxu0 %v6954
    %7090 = vmatpush1.bf16.msra.mxu0 %v6953
    %7091 = vmatprep.subr.bf16.mxu0 %v6950
    %7092 = vmatpush1.bf16.msra.mxu0 %v6949
    %7093 = vmatprep.subr.bf16.mxu0 %v7010
    %7094 = vmatpush2.bf16.msra.mxu0 %v7009
    %7095 = vmatprep.subr.bf16.mxu0 %v7006
    %7096 = vmatpush2.bf16.msra.mxu0 %v7005
    %7097 = vmatprep.subr.bf16.mxu0 %v7002
    %7098 = vmatpush2.bf16.msra.mxu0 %v7001
    %7099 = vmatprep.subr.bf16.mxu0 %v6998
    %7100 = vmatpush2.bf16.msra.mxu0 %v6997
    %7101 = vmatprep.subr.bf16.mxu0 %v6994
    %7102 = vmatpush2.bf16.msra.mxu0 %v6993
    %7103 = vmatprep.subr.bf16.mxu0 %v6990
    %7104 = vmatpush2.bf16.msra.mxu0 %v6989
    %7105 = vmatprep.subr.bf16.mxu0 %v6986
    %7106 = vmatpush2.bf16.msra.mxu0 %v6985
    %7107 = vmatprep.subr.bf16.mxu0 %v6982
    %7108 = vmatpush2.bf16.msra.mxu0 %v6981
    %7109 = vmatprep.mubr.bf16.mxu0 %v6670
    %7110 = vmatmul.mubr.bf16.gmra.mxu0 %v6669
    %v7111 = vpop.f32.mrf.mxu0
    %v7112 = vadd.f32 %v6740, %v7111
    %v7113 = vpop.f32.mrf.mxu0
    %v7114 = vadd.f32 %v6744, %v7113
    %v7115 = vpop.f32.mrf.mxu0
    %v7116 = vpop.f32.mrf.mxu0
    %7117 = vdwg.mxu0
    %7118 = vmatprep.subr.bf16.mxu0 %v6980
    %7119 = vmatpush1.bf16.msra.mxu0 %v6979
    %7120 = vmatprep.subr.bf16.mxu0 %v6976
    %7121 = vmatpush1.bf16.msra.mxu0 %v6975
    %7122 = vmatprep.subr.bf16.mxu0 %v6972
    %7123 = vmatpush1.bf16.msra.mxu0 %v6971
    %7124 = vmatprep.subr.bf16.mxu0 %v6968
    %7125 = vmatpush1.bf16.msra.mxu0 %v6967
    %7126 = vmatprep.subr.bf16.mxu0 %v6964
    %7127 = vmatpush1.bf16.msra.mxu0 %v6963
    %7128 = vmatprep.subr.bf16.mxu0 %v6960
    %7129 = vmatpush1.bf16.msra.mxu0 %v6959
    %7130 = vmatprep.subr.bf16.mxu0 %v6956
    %7131 = vmatpush1.bf16.msra.mxu0 %v6955
    %7132 = vmatprep.subr.bf16.mxu0 %v6952
    %7133 = vmatpush1.bf16.msra.mxu0 %v6951
    %7134 = vmatprep.subr.bf16.mxu0 %v7012
    %7135 = vmatpush2.bf16.msra.mxu0 %v7011
    %7136 = vmatprep.subr.bf16.mxu0 %v7008
    %7137 = vmatpush2.bf16.msra.mxu0 %v7007
    %7138 = vmatprep.subr.bf16.mxu0 %v7004
    %7139 = vmatpush2.bf16.msra.mxu0 %v7003
    %7140 = vmatprep.subr.bf16.mxu0 %v7000
    %7141 = vmatpush2.bf16.msra.mxu0 %v6999
    %7142 = vmatprep.subr.bf16.mxu0 %v6996
    %7143 = vmatpush2.bf16.msra.mxu0 %v6995
    %7144 = vmatprep.subr.bf16.mxu0 %v6992
    %7145 = vmatpush2.bf16.msra.mxu0 %v6991
    %7146 = vmatprep.subr.bf16.mxu0 %v6988
    %7147 = vmatpush2.bf16.msra.mxu0 %v6987
    %7148 = vmatprep.subr.bf16.mxu0 %v6984
    %7149 = vmatpush2.bf16.msra.mxu0 %v6983
    %7150 = vmatprep.mubr.bf16.mxu0 %v6670
    %7151 = vmatmul.mubr.bf16.gmra.mxu0 %v6669
    %v7152 = vpop.f32.mrf.mxu0
    %v7153 = vadd.f32 %v6748, %v7152
    %v7154 = vpop.f32.mrf.mxu0
    %v7155 = vadd.f32 %v6752, %v7154
    %v7156 = vpop.f32.mrf.mxu0
    %v7157 = vpop.f32.mrf.mxu0
    %7158 = vdwg.mxu0
    %v7159 = vxor.u32 %v7112, 2147483648
    %v7160 = vxor.u32 %v7114, 2147483648
    %v7161 = vxor.u32 %v7153, 2147483648
    %v7162 = vmul.f32 %v7159, 1.442695
    %v7163 = vpow.pop %v7162
    %v7164 = vmul.f32 %v7160, 1.442695
    %v7165 = vpow.pop %v7164
    %v7166 = vmul.f32 %v7161, 1.442695
    %v7167 = vpow.pop %v7166
    %v7168 = vadd.f32 %v7163, 1.0
    %v7169 = vadd.f32 %v7165, 1.0
    %v7170 = vadd.f32 %v7167, 1.0
    %v7171 = vrcp.pop %v7168
    %v7172 = vmul.f32 1.0, %v7171
    %v7173 = vrcp.pop %v7169
    %v7174 = vmul.f32 1.0, %v7173
    %v7175 = vrcp.pop %v7170
    %v7176 = vmul.f32 1.0, %v7175
    %v7177 = vtanh.pop %v7155
    %v7178 = vmul.f32 %v7174, %v6150
    %v7179 = vmul.f32 %v7172, %v7177
    %v7180 = vadd.f32 %v7178, %v7179
    %v7181 = vtanh.pop %v7180
    %v7182 = vmul.f32 %v7176, %v7181
    %s7183 = scalar_lea.vmem [#allocation2], 24
    %7184 = vst [vmem:[%s7183] sm:$0xff] %v7182
    %s7185 = scalar_lea.vmem %s1, 16
    %v7186 = vld [vmem:[%s7185] sm:$0xf]
    %v7187 = vld [vmem:[#allocation5] sm:$0xff]
    %v7188 = vld [vmem:[#allocation5 + $0x8] sm:$0xff]
    %v7189 = vld [vmem:[#allocation5 + $0x10] sm:$0xff]
    %v7190 = vld [vmem:[#allocation5 + $0x18] sm:$0xff]
    %v7191 = vld [vmem:[#allocation5 + $0x20] sm:$0xff]
    %v7192 = vld [vmem:[#allocation5 + $0x28] sm:$0xff]
    %v7193 = vld [vmem:[#allocation5 + $0x30] sm:$0xff]
    %v7194 = vld [vmem:[#allocation5 + $0x38] sm:$0xff]
    %v7195 = vld [vmem:[#allocation5 + $0x40] sm:$0xff]
    %v7196 = vld [vmem:[#allocation5 + $0x48] sm:$0xff]
    %v7197 = vld [vmem:[#allocation5 + $0x50] sm:$0xff]
    %v7198 = vld [vmem:[#allocation5 + $0x58] sm:$0xff]
    %v7199 = vld [vmem:[#allocation5 + $0x60] sm:$0xff]
    %v7200 = vld [vmem:[#allocation5 + $0x68] sm:$0xff]
    %v7201 = vld [vmem:[#allocation5 + $0x70] sm:$0xff]
    %v7202 = vld [vmem:[#allocation5 + $0x78] sm:$0xff]
    %v7203 = vld [vmem:[#allocation5 + $0x80] sm:$0xff]
    %v7204 = vld [vmem:[#allocation5 + $0x88] sm:$0xff]
    %v7205 = vld [vmem:[#allocation5 + $0x90] sm:$0xff]
    %v7206 = vld [vmem:[#allocation5 + $0x98] sm:$0xff]
    %v7207 = vld [vmem:[#allocation5 + $0xa0] sm:$0xff]
    %v7208 = vld [vmem:[#allocation5 + $0xa8] sm:$0xff]
    %v7209 = vld [vmem:[#allocation5 + $0xb0] sm:$0xff]
    %v7210 = vld [vmem:[#allocation5 + $0xb8] sm:$0xff]
    %v7211 = vld [vmem:[#allocation5 + $0xc0] sm:$0xff]
    %v7212 = vld [vmem:[#allocation5 + $0xc8] sm:$0xff]
    %v7213 = vld [vmem:[#allocation5 + $0xd0] sm:$0xff]
    %v7214 = vld [vmem:[#allocation5 + $0xd8] sm:$0xff]
    %v7215 = vld [vmem:[#allocation5 + $0xe0] sm:$0xff]
    %v7216 = vld [vmem:[#allocation5 + $0xe8] sm:$0xff]
    %v7217 = vld [vmem:[#allocation5 + $0xf0] sm:$0xff]
    %v7218 = vld [vmem:[#allocation5 + $0xf8] sm:$0xff]
    %v7219 = vld [vmem:[#allocation5 + $0x100] sm:$0xff]
    %v7220 = vld [vmem:[#allocation5 + $0x108] sm:$0xff]
    %v7221 = vld [vmem:[#allocation5 + $0x110] sm:$0xff]
    %v7222 = vld [vmem:[#allocation5 + $0x118] sm:$0xff]
    %v7223 = vld [vmem:[#allocation5 + $0x120] sm:$0xff]
    %v7224 = vld [vmem:[#allocation5 + $0x128] sm:$0xff]
    %v7225 = vld [vmem:[#allocation5 + $0x130] sm:$0xff]
    %v7226 = vld [vmem:[#allocation5 + $0x138] sm:$0xff]
    %v7227 = vld [vmem:[#allocation5 + $0x140] sm:$0xff]
    %v7228 = vld [vmem:[#allocation5 + $0x148] sm:$0xff]
    %v7229 = vld [vmem:[#allocation5 + $0x150] sm:$0xff]
    %v7230 = vld [vmem:[#allocation5 + $0x158] sm:$0xff]
    %v7231 = vld [vmem:[#allocation5 + $0x160] sm:$0xff]
    %v7232 = vld [vmem:[#allocation5 + $0x168] sm:$0xff]
    %v7233 = vld [vmem:[#allocation5 + $0x170] sm:$0xff]
    %v7234 = vld [vmem:[#allocation5 + $0x178] sm:$0xff]
    %v7235 = vld [vmem:[#allocation5 + $0x180] sm:$0xff]
    %v7236 = vld [vmem:[#allocation5 + $0x188] sm:$0xff]
    %v7237 = vld [vmem:[#allocation5 + $0x190] sm:$0xff]
    %v7238 = vld [vmem:[#allocation5 + $0x198] sm:$0xff]
    %v7239 = vld [vmem:[#allocation5 + $0x1a0] sm:$0xff]
    %v7240 = vld [vmem:[#allocation5 + $0x1a8] sm:$0xff]
    %v7241 = vld [vmem:[#allocation5 + $0x1b0] sm:$0xff]
    %v7242 = vld [vmem:[#allocation5 + $0x1b8] sm:$0xff]
    %v7243 = vld [vmem:[#allocation5 + $0x1c0] sm:$0xff]
    %v7244 = vld [vmem:[#allocation5 + $0x1c8] sm:$0xff]
    %v7245 = vld [vmem:[#allocation5 + $0x1d0] sm:$0xff]
    %v7246 = vld [vmem:[#allocation5 + $0x1d8] sm:$0xff]
    %v7247 = vld [vmem:[#allocation5 + $0x1e0] sm:$0xff]
    %v7248 = vld [vmem:[#allocation5 + $0x1e8] sm:$0xff]
    %v7249 = vld [vmem:[#allocation5 + $0x1f0] sm:$0xff]
    %v7250 = vld [vmem:[#allocation5 + $0x1f8] sm:$0xff]
    %v7251 = vld [vmem:[%s7] sm:$0xf]
    %v7253 = vlaneseq
    %v7254 = vshrl.u32 %v7253, 7
    %v7255 = vsub.s32 0, %v7254
    %v7256 = vrot.slane %v7251, %v7255
    %v7257 = vlaneseq
    %v7258 = vshrl.u32 %v7257, 7
    %v7259 = vsub.s32 1, %v7258
    %v7260 = vrot.slane %v7251, %v7259
    %v7261 = vlaneseq
    %v7262 = vshrl.u32 %v7261, 7
    %v7263 = vsub.s32 2, %v7262
    %v7264 = vrot.slane %v7251, %v7263
    %v7265 = vlaneseq
    %v7266 = vshrl.u32 %v7265, 7
    %v7267 = vsub.s32 3, %v7266
    %v7268 = vrot.slane %v7251, %v7267
    %v7337 = vunpack.c.l.b16 %v7187
    %v7338 = vunpack.c.h.b16 %v7187
    %v7339 = vunpack.c.l.b16 %v7188
    %v7340 = vunpack.c.h.b16 %v7188
    %v7341 = vunpack.c.l.b16 %v7189
    %v7342 = vunpack.c.h.b16 %v7189
    %v7343 = vunpack.c.l.b16 %v7190
    %v7344 = vunpack.c.h.b16 %v7190
    %v7345 = vunpack.c.l.b16 %v7191
    %v7346 = vunpack.c.h.b16 %v7191
    %v7347 = vunpack.c.l.b16 %v7192
    %v7348 = vunpack.c.h.b16 %v7192
    %v7349 = vunpack.c.l.b16 %v7193
    %v7350 = vunpack.c.h.b16 %v7193
    %v7351 = vunpack.c.l.b16 %v7194
    %v7352 = vunpack.c.h.b16 %v7194
    %v7353 = vunpack.c.l.b16 %v7195
    %v7354 = vunpack.c.h.b16 %v7195
    %v7355 = vunpack.c.l.b16 %v7196
    %v7356 = vunpack.c.h.b16 %v7196
    %v7357 = vunpack.c.l.b16 %v7197
    %v7358 = vunpack.c.h.b16 %v7197
    %v7359 = vunpack.c.l.b16 %v7198
    %v7360 = vunpack.c.h.b16 %v7198
    %v7361 = vunpack.c.l.b16 %v7199
    %v7362 = vunpack.c.h.b16 %v7199
    %v7363 = vunpack.c.l.b16 %v7200
    %v7364 = vunpack.c.h.b16 %v7200
    %v7365 = vunpack.c.l.b16 %v7201
    %v7366 = vunpack.c.h.b16 %v7201
    %v7367 = vunpack.c.l.b16 %v7202
    %v7368 = vunpack.c.h.b16 %v7202
    %v7369 = vunpack.c.l.b16 %v7203
    %v7370 = vunpack.c.h.b16 %v7203
    %v7371 = vunpack.c.l.b16 %v7204
    %v7372 = vunpack.c.h.b16 %v7204
    %v7373 = vunpack.c.l.b16 %v7205
    %v7374 = vunpack.c.h.b16 %v7205
    %v7375 = vunpack.c.l.b16 %v7206
    %v7376 = vunpack.c.h.b16 %v7206
    %v7377 = vunpack.c.l.b16 %v7207
    %v7378 = vunpack.c.h.b16 %v7207
    %v7379 = vunpack.c.l.b16 %v7208
    %v7380 = vunpack.c.h.b16 %v7208
    %v7381 = vunpack.c.l.b16 %v7209
    %v7382 = vunpack.c.h.b16 %v7209
    %v7383 = vunpack.c.l.b16 %v7210
    %v7384 = vunpack.c.h.b16 %v7210
    %v7385 = vunpack.c.l.b16 %v7211
    %v7386 = vunpack.c.h.b16 %v7211
    %v7387 = vunpack.c.l.b16 %v7212
    %v7388 = vunpack.c.h.b16 %v7212
    %v7389 = vunpack.c.l.b16 %v7213
    %v7390 = vunpack.c.h.b16 %v7213
    %v7391 = vunpack.c.l.b16 %v7214
    %v7392 = vunpack.c.h.b16 %v7214
    %v7393 = vunpack.c.l.b16 %v7215
    %v7394 = vunpack.c.h.b16 %v7215
    %v7395 = vunpack.c.l.b16 %v7216
    %v7396 = vunpack.c.h.b16 %v7216
    %v7397 = vunpack.c.l.b16 %v7217
    %v7398 = vunpack.c.h.b16 %v7217
    %v7399 = vunpack.c.l.b16 %v7218
    %v7400 = vunpack.c.h.b16 %v7218
    %v7401 = vunpack.c.l.b16 %v7219
    %v7402 = vunpack.c.h.b16 %v7219
    %v7403 = vunpack.c.l.b16 %v7220
    %v7404 = vunpack.c.h.b16 %v7220
    %v7405 = vunpack.c.l.b16 %v7221
    %v7406 = vunpack.c.h.b16 %v7221
    %v7407 = vunpack.c.l.b16 %v7222
    %v7408 = vunpack.c.h.b16 %v7222
    %v7409 = vunpack.c.l.b16 %v7223
    %v7410 = vunpack.c.h.b16 %v7223
    %v7411 = vunpack.c.l.b16 %v7224
    %v7412 = vunpack.c.h.b16 %v7224
    %v7413 = vunpack.c.l.b16 %v7225
    %v7414 = vunpack.c.h.b16 %v7225
    %v7415 = vunpack.c.l.b16 %v7226
    %v7416 = vunpack.c.h.b16 %v7226
    %v7417 = vunpack.c.l.b16 %v7227
    %v7418 = vunpack.c.h.b16 %v7227
    %v7419 = vunpack.c.l.b16 %v7228
    %v7420 = vunpack.c.h.b16 %v7228
    %v7421 = vunpack.c.l.b16 %v7229
    %v7422 = vunpack.c.h.b16 %v7229
    %v7423 = vunpack.c.l.b16 %v7230
    %v7424 = vunpack.c.h.b16 %v7230
    %v7425 = vunpack.c.l.b16 %v7231
    %v7426 = vunpack.c.h.b16 %v7231
    %v7427 = vunpack.c.l.b16 %v7232
    %v7428 = vunpack.c.h.b16 %v7232
    %v7429 = vunpack.c.l.b16 %v7233
    %v7430 = vunpack.c.h.b16 %v7233
    %v7431 = vunpack.c.l.b16 %v7234
    %v7432 = vunpack.c.h.b16 %v7234
    %v7433 = vunpack.c.l.b16 %v7235
    %v7434 = vunpack.c.h.b16 %v7235
    %v7435 = vunpack.c.l.b16 %v7236
    %v7436 = vunpack.c.h.b16 %v7236
    %v7437 = vunpack.c.l.b16 %v7237
    %v7438 = vunpack.c.h.b16 %v7237
    %v7439 = vunpack.c.l.b16 %v7238
    %v7440 = vunpack.c.h.b16 %v7238
    %v7441 = vunpack.c.l.b16 %v7239
    %v7442 = vunpack.c.h.b16 %v7239
    %v7443 = vunpack.c.l.b16 %v7240
    %v7444 = vunpack.c.h.b16 %v7240
    %v7445 = vunpack.c.l.b16 %v7241
    %v7446 = vunpack.c.h.b16 %v7241
    %v7447 = vunpack.c.l.b16 %v7242
    %v7448 = vunpack.c.h.b16 %v7242
    %v7449 = vunpack.c.l.b16 %v7243
    %v7450 = vunpack.c.h.b16 %v7243
    %v7451 = vunpack.c.l.b16 %v7244
    %v7452 = vunpack.c.h.b16 %v7244
    %v7453 = vunpack.c.l.b16 %v7245
    %v7454 = vunpack.c.h.b16 %v7245
    %v7455 = vunpack.c.l.b16 %v7246
    %v7456 = vunpack.c.h.b16 %v7246
    %v7457 = vunpack.c.l.b16 %v7247
    %v7458 = vunpack.c.h.b16 %v7247
    %v7459 = vunpack.c.l.b16 %v7248
    %v7460 = vunpack.c.h.b16 %v7248
    %v7461 = vunpack.c.l.b16 %v7249
    %v7462 = vunpack.c.h.b16 %v7249
    %v7463 = vunpack.c.l.b16 %v7250
    %v7464 = vunpack.c.h.b16 %v7250
    %v7465 = vpack.c.b16 %v7341, %v7337
    %v7466 = vpack.c.b16 %v7342, %v7338
    %v7467 = vpack.c.b16 %v7343, %v7339
    %v7468 = vpack.c.b16 %v7344, %v7340
    %v7469 = vpack.c.b16 %v7349, %v7345
    %v7470 = vpack.c.b16 %v7350, %v7346
    %v7471 = vpack.c.b16 %v7351, %v7347
    %v7472 = vpack.c.b16 %v7352, %v7348
    %v7473 = vpack.c.b16 %v7357, %v7353
    %v7474 = vpack.c.b16 %v7358, %v7354
    %v7475 = vpack.c.b16 %v7359, %v7355
    %v7476 = vpack.c.b16 %v7360, %v7356
    %v7477 = vpack.c.b16 %v7365, %v7361
    %v7478 = vpack.c.b16 %v7366, %v7362
    %v7479 = vpack.c.b16 %v7367, %v7363
    %v7480 = vpack.c.b16 %v7368, %v7364
    %v7481 = vpack.c.b16 %v7373, %v7369
    %v7482 = vpack.c.b16 %v7374, %v7370
    %v7483 = vpack.c.b16 %v7375, %v7371
    %v7484 = vpack.c.b16 %v7376, %v7372
    %v7485 = vpack.c.b16 %v7381, %v7377
    %v7486 = vpack.c.b16 %v7382, %v7378
    %v7487 = vpack.c.b16 %v7383, %v7379
    %v7488 = vpack.c.b16 %v7384, %v7380
    %v7489 = vpack.c.b16 %v7389, %v7385
    %v7490 = vpack.c.b16 %v7390, %v7386
    %v7491 = vpack.c.b16 %v7391, %v7387
    %v7492 = vpack.c.b16 %v7392, %v7388
    %v7493 = vpack.c.b16 %v7397, %v7393
    %v7494 = vpack.c.b16 %v7398, %v7394
    %v7495 = vpack.c.b16 %v7399, %v7395
    %v7496 = vpack.c.b16 %v7400, %v7396
    %v7497 = vpack.c.b16 %v7405, %v7401
    %v7498 = vpack.c.b16 %v7406, %v7402
    %v7499 = vpack.c.b16 %v7407, %v7403
    %v7500 = vpack.c.b16 %v7408, %v7404
    %v7501 = vpack.c.b16 %v7413, %v7409
    %v7502 = vpack.c.b16 %v7414, %v7410
    %v7503 = vpack.c.b16 %v7415, %v7411
    %v7504 = vpack.c.b16 %v7416, %v7412
    %v7505 = vpack.c.b16 %v7421, %v7417
    %v7506 = vpack.c.b16 %v7422, %v7418
    %v7507 = vpack.c.b16 %v7423, %v7419
    %v7508 = vpack.c.b16 %v7424, %v7420
    %v7509 = vpack.c.b16 %v7429, %v7425
    %v7510 = vpack.c.b16 %v7430, %v7426
    %v7511 = vpack.c.b16 %v7431, %v7427
    %v7512 = vpack.c.b16 %v7432, %v7428
    %v7513 = vpack.c.b16 %v7437, %v7433
    %v7514 = vpack.c.b16 %v7438, %v7434
    %v7515 = vpack.c.b16 %v7439, %v7435
    %v7516 = vpack.c.b16 %v7440, %v7436
    %v7517 = vpack.c.b16 %v7445, %v7441
    %v7518 = vpack.c.b16 %v7446, %v7442
    %v7519 = vpack.c.b16 %v7447, %v7443
    %v7520 = vpack.c.b16 %v7448, %v7444
    %v7521 = vpack.c.b16 %v7453, %v7449
    %v7522 = vpack.c.b16 %v7454, %v7450
    %v7523 = vpack.c.b16 %v7455, %v7451
    %v7524 = vpack.c.b16 %v7456, %v7452
    %v7525 = vpack.c.b16 %v7461, %v7457
    %v7526 = vpack.c.b16 %v7462, %v7458
    %v7527 = vpack.c.b16 %v7463, %v7459
    %v7528 = vpack.c.b16 %v7464, %v7460
    %7593 = vmatprep.subr.bf16.mxu0 %v7494
    %7594 = vmatpush1.bf16.msra.mxu0 %v7493
    %7595 = vmatprep.subr.bf16.mxu0 %v7490
    %7596 = vmatpush1.bf16.msra.mxu0 %v7489
    %7597 = vmatprep.subr.bf16.mxu0 %v7486
    %7598 = vmatpush1.bf16.msra.mxu0 %v7485
    %7599 = vmatprep.subr.bf16.mxu0 %v7482
    %7600 = vmatpush1.bf16.msra.mxu0 %v7481
    %7601 = vmatprep.subr.bf16.mxu0 %v7478
    %7602 = vmatpush1.bf16.msra.mxu0 %v7477
    %7603 = vmatprep.subr.bf16.mxu0 %v7474
    %7604 = vmatpush1.bf16.msra.mxu0 %v7473
    %7605 = vmatprep.subr.bf16.mxu0 %v7470
    %7606 = vmatpush1.bf16.msra.mxu0 %v7469
    %7607 = vmatprep.subr.bf16.mxu0 %v7466
    %7608 = vmatpush1.bf16.msra.mxu0 %v7465
    %7609 = vmatprep.subr.bf16.mxu0 %v7526
    %7610 = vmatpush2.bf16.msra.mxu0 %v7525
    %7611 = vmatprep.subr.bf16.mxu0 %v7522
    %7612 = vmatpush2.bf16.msra.mxu0 %v7521
    %7613 = vmatprep.subr.bf16.mxu0 %v7518
    %7614 = vmatpush2.bf16.msra.mxu0 %v7517
    %7615 = vmatprep.subr.bf16.mxu0 %v7514
    %7616 = vmatpush2.bf16.msra.mxu0 %v7513
    %7617 = vmatprep.subr.bf16.mxu0 %v7510
    %7618 = vmatpush2.bf16.msra.mxu0 %v7509
    %7619 = vmatprep.subr.bf16.mxu0 %v7506
    %7620 = vmatpush2.bf16.msra.mxu0 %v7505
    %7621 = vmatprep.subr.bf16.mxu0 %v7502
    %7622 = vmatpush2.bf16.msra.mxu0 %v7501
    %7623 = vmatprep.subr.bf16.mxu0 %v7498
    %7624 = vmatpush2.bf16.msra.mxu0 %v7497
    %7625 = vmatprep.mubr.bf16.mxu0 %v6669
    %7626 = vmatmul.mubr.bf16.gmra.mxu0 %v7186
    %v7627 = vpop.f32.mrf.mxu0
    %v7628 = vadd.f32 %v7256, %v7627
    %v7629 = vpop.f32.mrf.mxu0
    %v7630 = vadd.f32 %v7260, %v7629
    %v7631 = vpop.f32.mrf.mxu0
    %v7632 = vpop.f32.mrf.mxu0
    %7633 = vdwg.mxu0
    %7634 = vmatprep.subr.bf16.mxu0 %v7496
    %7635 = vmatpush1.bf16.msra.mxu0 %v7495
    %7636 = vmatprep.subr.bf16.mxu0 %v7492
    %7637 = vmatpush1.bf16.msra.mxu0 %v7491
    %7638 = vmatprep.subr.bf16.mxu0 %v7488
    %7639 = vmatpush1.bf16.msra.mxu0 %v7487
    %7640 = vmatprep.subr.bf16.mxu0 %v7484
    %7641 = vmatpush1.bf16.msra.mxu0 %v7483
    %7642 = vmatprep.subr.bf16.mxu0 %v7480
    %7643 = vmatpush1.bf16.msra.mxu0 %v7479
    %7644 = vmatprep.subr.bf16.mxu0 %v7476
    %7645 = vmatpush1.bf16.msra.mxu0 %v7475
    %7646 = vmatprep.subr.bf16.mxu0 %v7472
    %7647 = vmatpush1.bf16.msra.mxu0 %v7471
    %7648 = vmatprep.subr.bf16.mxu0 %v7468
    %7649 = vmatpush1.bf16.msra.mxu0 %v7467
    %7650 = vmatprep.subr.bf16.mxu0 %v7528
    %7651 = vmatpush2.bf16.msra.mxu0 %v7527
    %7652 = vmatprep.subr.bf16.mxu0 %v7524
    %7653 = vmatpush2.bf16.msra.mxu0 %v7523
    %7654 = vmatprep.subr.bf16.mxu0 %v7520
    %7655 = vmatpush2.bf16.msra.mxu0 %v7519
    %7656 = vmatprep.subr.bf16.mxu0 %v7516
    %7657 = vmatpush2.bf16.msra.mxu0 %v7515
    %7658 = vmatprep.subr.bf16.mxu0 %v7512
    %7659 = vmatpush2.bf16.msra.mxu0 %v7511
    %7660 = vmatprep.subr.bf16.mxu0 %v7508
    %7661 = vmatpush2.bf16.msra.mxu0 %v7507
    %7662 = vmatprep.subr.bf16.mxu0 %v7504
    %7663 = vmatpush2.bf16.msra.mxu0 %v7503
    %7664 = vmatprep.subr.bf16.mxu0 %v7500
    %7665 = vmatpush2.bf16.msra.mxu0 %v7499
    %7666 = vmatprep.mubr.bf16.mxu0 %v6669
    %7667 = vmatmul.mubr.bf16.gmra.mxu0 %v7186
    %v7668 = vpop.f32.mrf.mxu0
    %v7669 = vadd.f32 %v7264, %v7668
    %v7670 = vpop.f32.mrf.mxu0
    %v7671 = vadd.f32 %v7268, %v7670
    %v7672 = vpop.f32.mrf.mxu0
    %v7673 = vpop.f32.mrf.mxu0
    %7674 = vdwg.mxu0
    %v7675 = vxor.u32 %v7628, 2147483648
    %v7676 = vxor.u32 %v7630, 2147483648
    %v7677 = vxor.u32 %v7669, 2147483648
    %v7678 = vmul.f32 %v7675, 1.442695
    %v7679 = vpow.pop %v7678
    %v7680 = vmul.f32 %v7676, 1.442695
    %v7681 = vpow.pop %v7680
    %v7682 = vmul.f32 %v7677, 1.442695
    %v7683 = vpow.pop %v7682
    %v7684 = vadd.f32 %v7679, 1.0
    %v7685 = vadd.f32 %v7681, 1.0
    %v7686 = vadd.f32 %v7683, 1.0
    %v7687 = vrcp.pop %v7684
    %v7688 = vmul.f32 1.0, %v7687
    %v7689 = vrcp.pop %v7685
    %v7690 = vmul.f32 1.0, %v7689
    %v7691 = vrcp.pop %v7686
    %v7692 = vmul.f32 1.0, %v7691
    %v7693 = vtanh.pop %v7671
    %v7694 = vmul.f32 %v7690, %v6666
    %v7695 = vmul.f32 %v7688, %v7693
    %v7696 = vadd.f32 %v7694, %v7695
    %v7697 = vtanh.pop %v7696
    %v7698 = vmul.f32 %v7692, %v7697
    %v7699 = vpack.c.bf16 %v7698, %v7698
    %v7700 = vpack.c.bf16 %v7182, %v7182
    %v7701 = vld [vmem:[#allocation7] sm:$0xff]
    %v7702 = vld [vmem:[#allocation7 + $0x8] sm:$0xff]
    %v7703 = vld [vmem:[#allocation7 + $0x10] sm:$0xff]
    %v7704 = vld [vmem:[#allocation7 + $0x18] sm:$0xff]
    %v7705 = vld [vmem:[#allocation7 + $0x20] sm:$0xff]
    %v7706 = vld [vmem:[#allocation7 + $0x28] sm:$0xff]
    %v7707 = vld [vmem:[#allocation7 + $0x30] sm:$0xff]
    %v7708 = vld [vmem:[#allocation7 + $0x38] sm:$0xff]
    %v7709 = vld [vmem:[#allocation7 + $0x40] sm:$0xff]
    %v7710 = vld [vmem:[#allocation7 + $0x48] sm:$0xff]
    %v7711 = vld [vmem:[#allocation7 + $0x50] sm:$0xff]
    %v7712 = vld [vmem:[#allocation7 + $0x58] sm:$0xff]
    %v7713 = vld [vmem:[#allocation7 + $0x60] sm:$0xff]
    %v7714 = vld [vmem:[#allocation7 + $0x68] sm:$0xff]
    %v7715 = vld [vmem:[#allocation7 + $0x70] sm:$0xff]
    %v7716 = vld [vmem:[#allocation7 + $0x78] sm:$0xff]
    %v7717 = vld [vmem:[#allocation7 + $0x80] sm:$0xff]
    %v7718 = vld [vmem:[#allocation7 + $0x88] sm:$0xff]
    %v7719 = vld [vmem:[#allocation7 + $0x90] sm:$0xff]
    %v7720 = vld [vmem:[#allocation7 + $0x98] sm:$0xff]
    %v7721 = vld [vmem:[#allocation7 + $0xa0] sm:$0xff]
    %v7722 = vld [vmem:[#allocation7 + $0xa8] sm:$0xff]
    %v7723 = vld [vmem:[#allocation7 + $0xb0] sm:$0xff]
    %v7724 = vld [vmem:[#allocation7 + $0xb8] sm:$0xff]
    %v7725 = vld [vmem:[#allocation7 + $0xc0] sm:$0xff]
    %v7726 = vld [vmem:[#allocation7 + $0xc8] sm:$0xff]
    %v7727 = vld [vmem:[#allocation7 + $0xd0] sm:$0xff]
    %v7728 = vld [vmem:[#allocation7 + $0xd8] sm:$0xff]
    %v7729 = vld [vmem:[#allocation7 + $0xe0] sm:$0xff]
    %v7730 = vld [vmem:[#allocation7 + $0xe8] sm:$0xff]
    %v7731 = vld [vmem:[#allocation7 + $0xf0] sm:$0xff]
    %v7732 = vld [vmem:[#allocation7 + $0xf8] sm:$0xff]
    %v7733 = vld [vmem:[#allocation7 + $0x100] sm:$0xff]
    %v7734 = vld [vmem:[#allocation7 + $0x108] sm:$0xff]
    %v7735 = vld [vmem:[#allocation7 + $0x110] sm:$0xff]
    %v7736 = vld [vmem:[#allocation7 + $0x118] sm:$0xff]
    %v7737 = vld [vmem:[#allocation7 + $0x120] sm:$0xff]
    %v7738 = vld [vmem:[#allocation7 + $0x128] sm:$0xff]
    %v7739 = vld [vmem:[#allocation7 + $0x130] sm:$0xff]
    %v7740 = vld [vmem:[#allocation7 + $0x138] sm:$0xff]
    %v7741 = vld [vmem:[#allocation7 + $0x140] sm:$0xff]
    %v7742 = vld [vmem:[#allocation7 + $0x148] sm:$0xff]
    %v7743 = vld [vmem:[#allocation7 + $0x150] sm:$0xff]
    %v7744 = vld [vmem:[#allocation7 + $0x158] sm:$0xff]
    %v7745 = vld [vmem:[#allocation7 + $0x160] sm:$0xff]
    %v7746 = vld [vmem:[#allocation7 + $0x168] sm:$0xff]
    %v7747 = vld [vmem:[#allocation7 + $0x170] sm:$0xff]
    %v7748 = vld [vmem:[#allocation7 + $0x178] sm:$0xff]
    %v7749 = vld [vmem:[#allocation7 + $0x180] sm:$0xff]
    %v7750 = vld [vmem:[#allocation7 + $0x188] sm:$0xff]
    %v7751 = vld [vmem:[#allocation7 + $0x190] sm:$0xff]
    %v7752 = vld [vmem:[#allocation7 + $0x198] sm:$0xff]
    %v7753 = vld [vmem:[#allocation7 + $0x1a0] sm:$0xff]
    %v7754 = vld [vmem:[#allocation7 + $0x1a8] sm:$0xff]
    %v7755 = vld [vmem:[#allocation7 + $0x1b0] sm:$0xff]
    %v7756 = vld [vmem:[#allocation7 + $0x1b8] sm:$0xff]
    %v7757 = vld [vmem:[#allocation7 + $0x1c0] sm:$0xff]
    %v7758 = vld [vmem:[#allocation7 + $0x1c8] sm:$0xff]
    %v7759 = vld [vmem:[#allocation7 + $0x1d0] sm:$0xff]
    %v7760 = vld [vmem:[#allocation7 + $0x1d8] sm:$0xff]
    %v7761 = vld [vmem:[#allocation7 + $0x1e0] sm:$0xff]
    %v7762 = vld [vmem:[#allocation7 + $0x1e8] sm:$0xff]
    %v7763 = vld [vmem:[#allocation7 + $0x1f0] sm:$0xff]
    %v7764 = vld [vmem:[#allocation7 + $0x1f8] sm:$0xff]
    %v7765 = vld [vmem:[%s9] sm:$0xf]
    %v7767 = vlaneseq
    %v7768 = vshrl.u32 %v7767, 7
    %v7769 = vsub.s32 0, %v7768
    %v7770 = vrot.slane %v7765, %v7769
    %v7771 = vlaneseq
    %v7772 = vshrl.u32 %v7771, 7
    %v7773 = vsub.s32 1, %v7772
    %v7774 = vrot.slane %v7765, %v7773
    %v7775 = vlaneseq
    %v7776 = vshrl.u32 %v7775, 7
    %v7777 = vsub.s32 2, %v7776
    %v7778 = vrot.slane %v7765, %v7777
    %v7779 = vlaneseq
    %v7780 = vshrl.u32 %v7779, 7
    %v7781 = vsub.s32 3, %v7780
    %v7782 = vrot.slane %v7765, %v7781
    %v7851 = vunpack.c.l.b16 %v7701
    %v7852 = vunpack.c.h.b16 %v7701
    %v7853 = vunpack.c.l.b16 %v7702
    %v7854 = vunpack.c.h.b16 %v7702
    %v7855 = vunpack.c.l.b16 %v7703
    %v7856 = vunpack.c.h.b16 %v7703
    %v7857 = vunpack.c.l.b16 %v7704
    %v7858 = vunpack.c.h.b16 %v7704
    %v7859 = vunpack.c.l.b16 %v7705
    %v7860 = vunpack.c.h.b16 %v7705
    %v7861 = vunpack.c.l.b16 %v7706
    %v7862 = vunpack.c.h.b16 %v7706
    %v7863 = vunpack.c.l.b16 %v7707
    %v7864 = vunpack.c.h.b16 %v7707
    %v7865 = vunpack.c.l.b16 %v7708
    %v7866 = vunpack.c.h.b16 %v7708
    %v7867 = vunpack.c.l.b16 %v7709
    %v7868 = vunpack.c.h.b16 %v7709
    %v7869 = vunpack.c.l.b16 %v7710
    %v7870 = vunpack.c.h.b16 %v7710
    %v7871 = vunpack.c.l.b16 %v7711
    %v7872 = vunpack.c.h.b16 %v7711
    %v7873 = vunpack.c.l.b16 %v7712
    %v7874 = vunpack.c.h.b16 %v7712
    %v7875 = vunpack.c.l.b16 %v7713
    %v7876 = vunpack.c.h.b16 %v7713
    %v7877 = vunpack.c.l.b16 %v7714
    %v7878 = vunpack.c.h.b16 %v7714
    %v7879 = vunpack.c.l.b16 %v7715
    %v7880 = vunpack.c.h.b16 %v7715
    %v7881 = vunpack.c.l.b16 %v7716
    %v7882 = vunpack.c.h.b16 %v7716
    %v7883 = vunpack.c.l.b16 %v7717
    %v7884 = vunpack.c.h.b16 %v7717
    %v7885 = vunpack.c.l.b16 %v7718
    %v7886 = vunpack.c.h.b16 %v7718
    %v7887 = vunpack.c.l.b16 %v7719
    %v7888 = vunpack.c.h.b16 %v7719
    %v7889 = vunpack.c.l.b16 %v7720
    %v7890 = vunpack.c.h.b16 %v7720
    %v7891 = vunpack.c.l.b16 %v7721
    %v7892 = vunpack.c.h.b16 %v7721
    %v7893 = vunpack.c.l.b16 %v7722
    %v7894 = vunpack.c.h.b16 %v7722
    %v7895 = vunpack.c.l.b16 %v7723
    %v7896 = vunpack.c.h.b16 %v7723
    %v7897 = vunpack.c.l.b16 %v7724
    %v7898 = vunpack.c.h.b16 %v7724
    %v7899 = vunpack.c.l.b16 %v7725
    %v7900 = vunpack.c.h.b16 %v7725
    %v7901 = vunpack.c.l.b16 %v7726
    %v7902 = vunpack.c.h.b16 %v7726
    %v7903 = vunpack.c.l.b16 %v7727
    %v7904 = vunpack.c.h.b16 %v7727
    %v7905 = vunpack.c.l.b16 %v7728
    %v7906 = vunpack.c.h.b16 %v7728
    %v7907 = vunpack.c.l.b16 %v7729
    %v7908 = vunpack.c.h.b16 %v7729
    %v7909 = vunpack.c.l.b16 %v7730
    %v7910 = vunpack.c.h.b16 %v7730
    %v7911 = vunpack.c.l.b16 %v7731
    %v7912 = vunpack.c.h.b16 %v7731
    %v7913 = vunpack.c.l.b16 %v7732
    %v7914 = vunpack.c.h.b16 %v7732
    %v7915 = vunpack.c.l.b16 %v7733
    %v7916 = vunpack.c.h.b16 %v7733
    %v7917 = vunpack.c.l.b16 %v7734
    %v7918 = vunpack.c.h.b16 %v7734
    %v7919 = vunpack.c.l.b16 %v7735
    %v7920 = vunpack.c.h.b16 %v7735
    %v7921 = vunpack.c.l.b16 %v7736
    %v7922 = vunpack.c.h.b16 %v7736
    %v7923 = vunpack.c.l.b16 %v7737
    %v7924 = vunpack.c.h.b16 %v7737
    %v7925 = vunpack.c.l.b16 %v7738
    %v7926 = vunpack.c.h.b16 %v7738
    %v7927 = vunpack.c.l.b16 %v7739
    %v7928 = vunpack.c.h.b16 %v7739
    %v7929 = vunpack.c.l.b16 %v7740
    %v7930 = vunpack.c.h.b16 %v7740
    %v7931 = vunpack.c.l.b16 %v7741
    %v7932 = vunpack.c.h.b16 %v7741
    %v7933 = vunpack.c.l.b16 %v7742
    %v7934 = vunpack.c.h.b16 %v7742
    %v7935 = vunpack.c.l.b16 %v7743
    %v7936 = vunpack.c.h.b16 %v7743
    %v7937 = vunpack.c.l.b16 %v7744
    %v7938 = vunpack.c.h.b16 %v7744
    %v7939 = vunpack.c.l.b16 %v7745
    %v7940 = vunpack.c.h.b16 %v7745
    %v7941 = vunpack.c.l.b16 %v7746
    %v7942 = vunpack.c.h.b16 %v7746
    %v7943 = vunpack.c.l.b16 %v7747
    %v7944 = vunpack.c.h.b16 %v7747
    %v7945 = vunpack.c.l.b16 %v7748
    %v7946 = vunpack.c.h.b16 %v7748
    %v7947 = vunpack.c.l.b16 %v7749
    %v7948 = vunpack.c.h.b16 %v7749
    %v7949 = vunpack.c.l.b16 %v7750
    %v7950 = vunpack.c.h.b16 %v7750
    %v7951 = vunpack.c.l.b16 %v7751
    %v7952 = vunpack.c.h.b16 %v7751
    %v7953 = vunpack.c.l.b16 %v7752
    %v7954 = vunpack.c.h.b16 %v7752
    %v7955 = vunpack.c.l.b16 %v7753
    %v7956 = vunpack.c.h.b16 %v7753
    %v7957 = vunpack.c.l.b16 %v7754
    %v7958 = vunpack.c.h.b16 %v7754
    %v7959 = vunpack.c.l.b16 %v7755
    %v7960 = vunpack.c.h.b16 %v7755
    %v7961 = vunpack.c.l.b16 %v7756
    %v7962 = vunpack.c.h.b16 %v7756
    %v7963 = vunpack.c.l.b16 %v7757
    %v7964 = vunpack.c.h.b16 %v7757
    %v7965 = vunpack.c.l.b16 %v7758
    %v7966 = vunpack.c.h.b16 %v7758
    %v7967 = vunpack.c.l.b16 %v7759
    %v7968 = vunpack.c.h.b16 %v7759
    %v7969 = vunpack.c.l.b16 %v7760
    %v7970 = vunpack.c.h.b16 %v7760
    %v7971 = vunpack.c.l.b16 %v7761
    %v7972 = vunpack.c.h.b16 %v7761
    %v7973 = vunpack.c.l.b16 %v7762
    %v7974 = vunpack.c.h.b16 %v7762
    %v7975 = vunpack.c.l.b16 %v7763
    %v7976 = vunpack.c.h.b16 %v7763
    %v7977 = vunpack.c.l.b16 %v7764
    %v7978 = vunpack.c.h.b16 %v7764
    %v7979 = vpack.c.b16 %v7855, %v7851
    %v7980 = vpack.c.b16 %v7856, %v7852
    %v7981 = vpack.c.b16 %v7857, %v7853
    %v7982 = vpack.c.b16 %v7858, %v7854
    %v7983 = vpack.c.b16 %v7863, %v7859
    %v7984 = vpack.c.b16 %v7864, %v7860
    %v7985 = vpack.c.b16 %v7865, %v7861
    %v7986 = vpack.c.b16 %v7866, %v7862
    %v7987 = vpack.c.b16 %v7871, %v7867
    %v7988 = vpack.c.b16 %v7872, %v7868
    %v7989 = vpack.c.b16 %v7873, %v7869
    %v7990 = vpack.c.b16 %v7874, %v7870
    %v7991 = vpack.c.b16 %v7879, %v7875
    %v7992 = vpack.c.b16 %v7880, %v7876
    %v7993 = vpack.c.b16 %v7881, %v7877
    %v7994 = vpack.c.b16 %v7882, %v7878
    %v7995 = vpack.c.b16 %v7887, %v7883
    %v7996 = vpack.c.b16 %v7888, %v7884
    %v7997 = vpack.c.b16 %v7889, %v7885
    %v7998 = vpack.c.b16 %v7890, %v7886
    %v7999 = vpack.c.b16 %v7895, %v7891
    %v8000 = vpack.c.b16 %v7896, %v7892
    %v8001 = vpack.c.b16 %v7897, %v7893
    %v8002 = vpack.c.b16 %v7898, %v7894
    %v8003 = vpack.c.b16 %v7903, %v7899
    %v8004 = vpack.c.b16 %v7904, %v7900
    %v8005 = vpack.c.b16 %v7905, %v7901
    %v8006 = vpack.c.b16 %v7906, %v7902
    %v8007 = vpack.c.b16 %v7911, %v7907
    %v8008 = vpack.c.b16 %v7912, %v7908
    %v8009 = vpack.c.b16 %v7913, %v7909
    %v8010 = vpack.c.b16 %v7914, %v7910
    %v8011 = vpack.c.b16 %v7919, %v7915
    %v8012 = vpack.c.b16 %v7920, %v7916
    %v8013 = vpack.c.b16 %v7921, %v7917
    %v8014 = vpack.c.b16 %v7922, %v7918
    %v8015 = vpack.c.b16 %v7927, %v7923
    %v8016 = vpack.c.b16 %v7928, %v7924
    %v8017 = vpack.c.b16 %v7929, %v7925
    %v8018 = vpack.c.b16 %v7930, %v7926
    %v8019 = vpack.c.b16 %v7935, %v7931
    %v8020 = vpack.c.b16 %v7936, %v7932
    %v8021 = vpack.c.b16 %v7937, %v7933
    %v8022 = vpack.c.b16 %v7938, %v7934
    %v8023 = vpack.c.b16 %v7943, %v7939
    %v8024 = vpack.c.b16 %v7944, %v7940
    %v8025 = vpack.c.b16 %v7945, %v7941
    %v8026 = vpack.c.b16 %v7946, %v7942
    %v8027 = vpack.c.b16 %v7951, %v7947
    %v8028 = vpack.c.b16 %v7952, %v7948
    %v8029 = vpack.c.b16 %v7953, %v7949
    %v8030 = vpack.c.b16 %v7954, %v7950
    %v8031 = vpack.c.b16 %v7959, %v7955
    %v8032 = vpack.c.b16 %v7960, %v7956
    %v8033 = vpack.c.b16 %v7961, %v7957
    %v8034 = vpack.c.b16 %v7962, %v7958
    %v8035 = vpack.c.b16 %v7967, %v7963
    %v8036 = vpack.c.b16 %v7968, %v7964
    %v8037 = vpack.c.b16 %v7969, %v7965
    %v8038 = vpack.c.b16 %v7970, %v7966
    %v8039 = vpack.c.b16 %v7975, %v7971
    %v8040 = vpack.c.b16 %v7976, %v7972
    %v8041 = vpack.c.b16 %v7977, %v7973
    %v8042 = vpack.c.b16 %v7978, %v7974
    %8107 = vmatprep.subr.bf16.mxu0 %v8008
    %8108 = vmatpush1.bf16.msra.mxu0 %v8007
    %8109 = vmatprep.subr.bf16.mxu0 %v8004
    %8110 = vmatpush1.bf16.msra.mxu0 %v8003
    %8111 = vmatprep.subr.bf16.mxu0 %v8000
    %8112 = vmatpush1.bf16.msra.mxu0 %v7999
    %8113 = vmatprep.subr.bf16.mxu0 %v7996
    %8114 = vmatpush1.bf16.msra.mxu0 %v7995
    %8115 = vmatprep.subr.bf16.mxu0 %v7992
    %8116 = vmatpush1.bf16.msra.mxu0 %v7991
    %8117 = vmatprep.subr.bf16.mxu0 %v7988
    %8118 = vmatpush1.bf16.msra.mxu0 %v7987
    %8119 = vmatprep.subr.bf16.mxu0 %v7984
    %8120 = vmatpush1.bf16.msra.mxu0 %v7983
    %8121 = vmatprep.subr.bf16.mxu0 %v7980
    %8122 = vmatpush1.bf16.msra.mxu0 %v7979
    %8123 = vmatprep.subr.bf16.mxu0 %v8040
    %8124 = vmatpush2.bf16.msra.mxu0 %v8039
    %8125 = vmatprep.subr.bf16.mxu0 %v8036
    %8126 = vmatpush2.bf16.msra.mxu0 %v8035
    %8127 = vmatprep.subr.bf16.mxu0 %v8032
    %8128 = vmatpush2.bf16.msra.mxu0 %v8031
    %8129 = vmatprep.subr.bf16.mxu0 %v8028
    %8130 = vmatpush2.bf16.msra.mxu0 %v8027
    %8131 = vmatprep.subr.bf16.mxu0 %v8024
    %8132 = vmatpush2.bf16.msra.mxu0 %v8023
    %8133 = vmatprep.subr.bf16.mxu0 %v8020
    %8134 = vmatpush2.bf16.msra.mxu0 %v8019
    %8135 = vmatprep.subr.bf16.mxu0 %v8016
    %8136 = vmatpush2.bf16.msra.mxu0 %v8015
    %8137 = vmatprep.subr.bf16.mxu0 %v8012
    %8138 = vmatpush2.bf16.msra.mxu0 %v8011
    %8139 = vmatprep.mubr.bf16.mxu0 %v7700
    %8140 = vmatmul.mubr.bf16.gmra.mxu0 %v7699
    %v8141 = vpop.f32.mrf.mxu0
    %v8142 = vadd.f32 %v7770, %v8141
    %v8143 = vpop.f32.mrf.mxu0
    %v8144 = vadd.f32 %v7774, %v8143
    %v8145 = vpop.f32.mrf.mxu0
    %v8146 = vpop.f32.mrf.mxu0
    %8147 = vdwg.mxu0
    %8148 = vmatprep.subr.bf16.mxu0 %v8010
    %8149 = vmatpush1.bf16.msra.mxu0 %v8009
    %8150 = vmatprep.subr.bf16.mxu0 %v8006
    %8151 = vmatpush1.bf16.msra.mxu0 %v8005
    %8152 = vmatprep.subr.bf16.mxu0 %v8002
    %8153 = vmatpush1.bf16.msra.mxu0 %v8001
    %8154 = vmatprep.subr.bf16.mxu0 %v7998
    %8155 = vmatpush1.bf16.msra.mxu0 %v7997
    %8156 = vmatprep.subr.bf16.mxu0 %v7994
    %8157 = vmatpush1.bf16.msra.mxu0 %v7993
    %8158 = vmatprep.subr.bf16.mxu0 %v7990
    %8159 = vmatpush1.bf16.msra.mxu0 %v7989
    %8160 = vmatprep.subr.bf16.mxu0 %v7986
    %8161 = vmatpush1.bf16.msra.mxu0 %v7985
    %8162 = vmatprep.subr.bf16.mxu0 %v7982
    %8163 = vmatpush1.bf16.msra.mxu0 %v7981
    %8164 = vmatprep.subr.bf16.mxu0 %v8042
    %8165 = vmatpush2.bf16.msra.mxu0 %v8041
    %8166 = vmatprep.subr.bf16.mxu0 %v8038
    %8167 = vmatpush2.bf16.msra.mxu0 %v8037
    %8168 = vmatprep.subr.bf16.mxu0 %v8034
    %8169 = vmatpush2.bf16.msra.mxu0 %v8033
    %8170 = vmatprep.subr.bf16.mxu0 %v8030
    %8171 = vmatpush2.bf16.msra.mxu0 %v8029
    %8172 = vmatprep.subr.bf16.mxu0 %v8026
    %8173 = vmatpush2.bf16.msra.mxu0 %v8025
    %8174 = vmatprep.subr.bf16.mxu0 %v8022
    %8175 = vmatpush2.bf16.msra.mxu0 %v8021
    %8176 = vmatprep.subr.bf16.mxu0 %v8018
    %8177 = vmatpush2.bf16.msra.mxu0 %v8017
    %8178 = vmatprep.subr.bf16.mxu0 %v8014
    %8179 = vmatpush2.bf16.msra.mxu0 %v8013
    %8180 = vmatprep.mubr.bf16.mxu0 %v7700
    %8181 = vmatmul.mubr.bf16.gmra.mxu0 %v7699
    %v8182 = vpop.f32.mrf.mxu0
    %v8183 = vadd.f32 %v7778, %v8182
    %v8184 = vpop.f32.mrf.mxu0
    %v8185 = vadd.f32 %v7782, %v8184
    %v8186 = vpop.f32.mrf.mxu0
    %v8187 = vpop.f32.mrf.mxu0
    %8188 = vdwg.mxu0
    %v8189 = vxor.u32 %v8142, 2147483648
    %v8190 = vxor.u32 %v8144, 2147483648
    %v8191 = vxor.u32 %v8183, 2147483648
    %v8192 = vmul.f32 %v8189, 1.442695
    %v8193 = vpow.pop %v8192
    %v8194 = vmul.f32 %v8190, 1.442695
    %v8195 = vpow.pop %v8194
    %v8196 = vmul.f32 %v8191, 1.442695
    %v8197 = vpow.pop %v8196
    %v8198 = vadd.f32 %v8193, 1.0
    %v8199 = vadd.f32 %v8195, 1.0
    %v8200 = vadd.f32 %v8197, 1.0
    %v8201 = vrcp.pop %v8198
    %v8202 = vmul.f32 1.0, %v8201
    %v8203 = vrcp.pop %v8199
    %v8204 = vmul.f32 1.0, %v8203
    %v8205 = vrcp.pop %v8200
    %v8206 = vmul.f32 1.0, %v8205
    %v8207 = vtanh.pop %v8185
    %v8208 = vmul.f32 %v8204, %v7180
    %v8209 = vmul.f32 %v8202, %v8207
    %v8210 = vadd.f32 %v8208, %v8209
    %v8211 = vtanh.pop %v8210
    %v8212 = vmul.f32 %v8206, %v8211
    %s8213 = scalar_lea.vmem [#allocation2], 32
    %8214 = vst [vmem:[%s8213] sm:$0xff] %v8212
    %s8215 = scalar_lea.vmem %s1, 20
    %v8216 = vld [vmem:[%s8215] sm:$0xf]
    %v8217 = vld [vmem:[#allocation5] sm:$0xff]
    %v8218 = vld [vmem:[#allocation5 + $0x8] sm:$0xff]
    %v8219 = vld [vmem:[#allocation5 + $0x10] sm:$0xff]
    %v8220 = vld [vmem:[#allocation5 + $0x18] sm:$0xff]
    %v8221 = vld [vmem:[#allocation5 + $0x20] sm:$0xff]
    %v8222 = vld [vmem:[#allocation5 + $0x28] sm:$0xff]
    %v8223 = vld [vmem:[#allocation5 + $0x30] sm:$0xff]
    %v8224 = vld [vmem:[#allocation5 + $0x38] sm:$0xff]
    %v8225 = vld [vmem:[#allocation5 + $0x40] sm:$0xff]
    %v8226 = vld [vmem:[#allocation5 + $0x48] sm:$0xff]
    %v8227 = vld [vmem:[#allocation5 + $0x50] sm:$0xff]
    %v8228 = vld [vmem:[#allocation5 + $0x58] sm:$0xff]
    %v8229 = vld [vmem:[#allocation5 + $0x60] sm:$0xff]
    %v8230 = vld [vmem:[#allocation5 + $0x68] sm:$0xff]
    %v8231 = vld [vmem:[#allocation5 + $0x70] sm:$0xff]
    %v8232 = vld [vmem:[#allocation5 + $0x78] sm:$0xff]
    %v8233 = vld [vmem:[#allocation5 + $0x80] sm:$0xff]
    %v8234 = vld [vmem:[#allocation5 + $0x88] sm:$0xff]
    %v8235 = vld [vmem:[#allocation5 + $0x90] sm:$0xff]
    %v8236 = vld [vmem:[#allocation5 + $0x98] sm:$0xff]
    %v8237 = vld [vmem:[#allocation5 + $0xa0] sm:$0xff]
    %v8238 = vld [vmem:[#allocation5 + $0xa8] sm:$0xff]
    %v8239 = vld [vmem:[#allocation5 + $0xb0] sm:$0xff]
    %v8240 = vld [vmem:[#allocation5 + $0xb8] sm:$0xff]
    %v8241 = vld [vmem:[#allocation5 + $0xc0] sm:$0xff]
    %v8242 = vld [vmem:[#allocation5 + $0xc8] sm:$0xff]
    %v8243 = vld [vmem:[#allocation5 + $0xd0] sm:$0xff]
    %v8244 = vld [vmem:[#allocation5 + $0xd8] sm:$0xff]
    %v8245 = vld [vmem:[#allocation5 + $0xe0] sm:$0xff]
    %v8246 = vld [vmem:[#allocation5 + $0xe8] sm:$0xff]
    %v8247 = vld [vmem:[#allocation5 + $0xf0] sm:$0xff]
    %v8248 = vld [vmem:[#allocation5 + $0xf8] sm:$0xff]
    %v8249 = vld [vmem:[#allocation5 + $0x100] sm:$0xff]
    %v8250 = vld [vmem:[#allocation5 + $0x108] sm:$0xff]
    %v8251 = vld [vmem:[#allocation5 + $0x110] sm:$0xff]
    %v8252 = vld [vmem:[#allocation5 + $0x118] sm:$0xff]
    %v8253 = vld [vmem:[#allocation5 + $0x120] sm:$0xff]
    %v8254 = vld [vmem:[#allocation5 + $0x128] sm:$0xff]
    %v8255 = vld [vmem:[#allocation5 + $0x130] sm:$0xff]
    %v8256 = vld [vmem:[#allocation5 + $0x138] sm:$0xff]
    %v8257 = vld [vmem:[#allocation5 + $0x140] sm:$0xff]
    %v8258 = vld [vmem:[#allocation5 + $0x148] sm:$0xff]
    %v8259 = vld [vmem:[#allocation5 + $0x150] sm:$0xff]
    %v8260 = vld [vmem:[#allocation5 + $0x158] sm:$0xff]
    %v8261 = vld [vmem:[#allocation5 + $0x160] sm:$0xff]
    %v8262 = vld [vmem:[#allocation5 + $0x168] sm:$0xff]
    %v8263 = vld [vmem:[#allocation5 + $0x170] sm:$0xff]
    %v8264 = vld [vmem:[#allocation5 + $0x178] sm:$0xff]
    %v8265 = vld [vmem:[#allocation5 + $0x180] sm:$0xff]
    %v8266 = vld [vmem:[#allocation5 + $0x188] sm:$0xff]
    %v8267 = vld [vmem:[#allocation5 + $0x190] sm:$0xff]
    %v8268 = vld [vmem:[#allocation5 + $0x198] sm:$0xff]
    %v8269 = vld [vmem:[#allocation5 + $0x1a0] sm:$0xff]
    %v8270 = vld [vmem:[#allocation5 + $0x1a8] sm:$0xff]
    %v8271 = vld [vmem:[#allocation5 + $0x1b0] sm:$0xff]
    %v8272 = vld [vmem:[#allocation5 + $0x1b8] sm:$0xff]
    %v8273 = vld [vmem:[#allocation5 + $0x1c0] sm:$0xff]
    %v8274 = vld [vmem:[#allocation5 + $0x1c8] sm:$0xff]
    %v8275 = vld [vmem:[#allocation5 + $0x1d0] sm:$0xff]
    %v8276 = vld [vmem:[#allocation5 + $0x1d8] sm:$0xff]
    %v8277 = vld [vmem:[#allocation5 + $0x1e0] sm:$0xff]
    %v8278 = vld [vmem:[#allocation5 + $0x1e8] sm:$0xff]
    %v8279 = vld [vmem:[#allocation5 + $0x1f0] sm:$0xff]
    %v8280 = vld [vmem:[#allocation5 + $0x1f8] sm:$0xff]
    %v8281 = vld [vmem:[%s7] sm:$0xf]
    %v8283 = vlaneseq
    %v8284 = vshrl.u32 %v8283, 7
    %v8285 = vsub.s32 0, %v8284
    %v8286 = vrot.slane %v8281, %v8285
    %v8287 = vlaneseq
    %v8288 = vshrl.u32 %v8287, 7
    %v8289 = vsub.s32 1, %v8288
    %v8290 = vrot.slane %v8281, %v8289
    %v8291 = vlaneseq
    %v8292 = vshrl.u32 %v8291, 7
    %v8293 = vsub.s32 2, %v8292
    %v8294 = vrot.slane %v8281, %v8293
    %v8295 = vlaneseq
    %v8296 = vshrl.u32 %v8295, 7
    %v8297 = vsub.s32 3, %v8296
    %v8298 = vrot.slane %v8281, %v8297
    %v8367 = vunpack.c.l.b16 %v8217
    %v8368 = vunpack.c.h.b16 %v8217
    %v8369 = vunpack.c.l.b16 %v8218
    %v8370 = vunpack.c.h.b16 %v8218
    %v8371 = vunpack.c.l.b16 %v8219
    %v8372 = vunpack.c.h.b16 %v8219
    %v8373 = vunpack.c.l.b16 %v8220
    %v8374 = vunpack.c.h.b16 %v8220
    %v8375 = vunpack.c.l.b16 %v8221
    %v8376 = vunpack.c.h.b16 %v8221
    %v8377 = vunpack.c.l.b16 %v8222
    %v8378 = vunpack.c.h.b16 %v8222
    %v8379 = vunpack.c.l.b16 %v8223
    %v8380 = vunpack.c.h.b16 %v8223
    %v8381 = vunpack.c.l.b16 %v8224
    %v8382 = vunpack.c.h.b16 %v8224
    %v8383 = vunpack.c.l.b16 %v8225
    %v8384 = vunpack.c.h.b16 %v8225
    %v8385 = vunpack.c.l.b16 %v8226
    %v8386 = vunpack.c.h.b16 %v8226
    %v8387 = vunpack.c.l.b16 %v8227
    %v8388 = vunpack.c.h.b16 %v8227
    %v8389 = vunpack.c.l.b16 %v8228
    %v8390 = vunpack.c.h.b16 %v8228
    %v8391 = vunpack.c.l.b16 %v8229
    %v8392 = vunpack.c.h.b16 %v8229
    %v8393 = vunpack.c.l.b16 %v8230
    %v8394 = vunpack.c.h.b16 %v8230
    %v8395 = vunpack.c.l.b16 %v8231
    %v8396 = vunpack.c.h.b16 %v8231
    %v8397 = vunpack.c.l.b16 %v8232
    %v8398 = vunpack.c.h.b16 %v8232
    %v8399 = vunpack.c.l.b16 %v8233
    %v8400 = vunpack.c.h.b16 %v8233
    %v8401 = vunpack.c.l.b16 %v8234
    %v8402 = vunpack.c.h.b16 %v8234
    %v8403 = vunpack.c.l.b16 %v8235
    %v8404 = vunpack.c.h.b16 %v8235
    %v8405 = vunpack.c.l.b16 %v8236
    %v8406 = vunpack.c.h.b16 %v8236
    %v8407 = vunpack.c.l.b16 %v8237
    %v8408 = vunpack.c.h.b16 %v8237
    %v8409 = vunpack.c.l.b16 %v8238
    %v8410 = vunpack.c.h.b16 %v8238
    %v8411 = vunpack.c.l.b16 %v8239
    %v8412 = vunpack.c.h.b16 %v8239
    %v8413 = vunpack.c.l.b16 %v8240
    %v8414 = vunpack.c.h.b16 %v8240
    %v8415 = vunpack.c.l.b16 %v8241
    %v8416 = vunpack.c.h.b16 %v8241
    %v8417 = vunpack.c.l.b16 %v8242
    %v8418 = vunpack.c.h.b16 %v8242
    %v8419 = vunpack.c.l.b16 %v8243
    %v8420 = vunpack.c.h.b16 %v8243
    %v8421 = vunpack.c.l.b16 %v8244
    %v8422 = vunpack.c.h.b16 %v8244
    %v8423 = vunpack.c.l.b16 %v8245
    %v8424 = vunpack.c.h.b16 %v8245
    %v8425 = vunpack.c.l.b16 %v8246
    %v8426 = vunpack.c.h.b16 %v8246
    %v8427 = vunpack.c.l.b16 %v8247
    %v8428 = vunpack.c.h.b16 %v8247
    %v8429 = vunpack.c.l.b16 %v8248
    %v8430 = vunpack.c.h.b16 %v8248
    %v8431 = vunpack.c.l.b16 %v8249
    %v8432 = vunpack.c.h.b16 %v8249
    %v8433 = vunpack.c.l.b16 %v8250
    %v8434 = vunpack.c.h.b16 %v8250
    %v8435 = vunpack.c.l.b16 %v8251
    %v8436 = vunpack.c.h.b16 %v8251
    %v8437 = vunpack.c.l.b16 %v8252
    %v8438 = vunpack.c.h.b16 %v8252
    %v8439 = vunpack.c.l.b16 %v8253
    %v8440 = vunpack.c.h.b16 %v8253
    %v8441 = vunpack.c.l.b16 %v8254
    %v8442 = vunpack.c.h.b16 %v8254
    %v8443 = vunpack.c.l.b16 %v8255
    %v8444 = vunpack.c.h.b16 %v8255
    %v8445 = vunpack.c.l.b16 %v8256
    %v8446 = vunpack.c.h.b16 %v8256
    %v8447 = vunpack.c.l.b16 %v8257
    %v8448 = vunpack.c.h.b16 %v8257
    %v8449 = vunpack.c.l.b16 %v8258
    %v8450 = vunpack.c.h.b16 %v8258
    %v8451 = vunpack.c.l.b16 %v8259
    %v8452 = vunpack.c.h.b16 %v8259
    %v8453 = vunpack.c.l.b16 %v8260
    %v8454 = vunpack.c.h.b16 %v8260
    %v8455 = vunpack.c.l.b16 %v8261
    %v8456 = vunpack.c.h.b16 %v8261
    %v8457 = vunpack.c.l.b16 %v8262
    %v8458 = vunpack.c.h.b16 %v8262
    %v8459 = vunpack.c.l.b16 %v8263
    %v8460 = vunpack.c.h.b16 %v8263
    %v8461 = vunpack.c.l.b16 %v8264
    %v8462 = vunpack.c.h.b16 %v8264
    %v8463 = vunpack.c.l.b16 %v8265
    %v8464 = vunpack.c.h.b16 %v8265
    %v8465 = vunpack.c.l.b16 %v8266
    %v8466 = vunpack.c.h.b16 %v8266
    %v8467 = vunpack.c.l.b16 %v8267
    %v8468 = vunpack.c.h.b16 %v8267
    %v8469 = vunpack.c.l.b16 %v8268
    %v8470 = vunpack.c.h.b16 %v8268
    %v8471 = vunpack.c.l.b16 %v8269
    %v8472 = vunpack.c.h.b16 %v8269
    %v8473 = vunpack.c.l.b16 %v8270
    %v8474 = vunpack.c.h.b16 %v8270
    %v8475 = vunpack.c.l.b16 %v8271
    %v8476 = vunpack.c.h.b16 %v8271
    %v8477 = vunpack.c.l.b16 %v8272
    %v8478 = vunpack.c.h.b16 %v8272
    %v8479 = vunpack.c.l.b16 %v8273
    %v8480 = vunpack.c.h.b16 %v8273
    %v8481 = vunpack.c.l.b16 %v8274
    %v8482 = vunpack.c.h.b16 %v8274
    %v8483 = vunpack.c.l.b16 %v8275
    %v8484 = vunpack.c.h.b16 %v8275
    %v8485 = vunpack.c.l.b16 %v8276
    %v8486 = vunpack.c.h.b16 %v8276
    %v8487 = vunpack.c.l.b16 %v8277
    %v8488 = vunpack.c.h.b16 %v8277
    %v8489 = vunpack.c.l.b16 %v8278
    %v8490 = vunpack.c.h.b16 %v8278
    %v8491 = vunpack.c.l.b16 %v8279
    %v8492 = vunpack.c.h.b16 %v8279
    %v8493 = vunpack.c.l.b16 %v8280
    %v8494 = vunpack.c.h.b16 %v8280
    %v8495 = vpack.c.b16 %v8371, %v8367
    %v8496 = vpack.c.b16 %v8372, %v8368
    %v8497 = vpack.c.b16 %v8373, %v8369
    %v8498 = vpack.c.b16 %v8374, %v8370
    %v8499 = vpack.c.b16 %v8379, %v8375
    %v8500 = vpack.c.b16 %v8380, %v8376
    %v8501 = vpack.c.b16 %v8381, %v8377
    %v8502 = vpack.c.b16 %v8382, %v8378
    %v8503 = vpack.c.b16 %v8387, %v8383
    %v8504 = vpack.c.b16 %v8388, %v8384
    %v8505 = vpack.c.b16 %v8389, %v8385
    %v8506 = vpack.c.b16 %v8390, %v8386
    %v8507 = vpack.c.b16 %v8395, %v8391
    %v8508 = vpack.c.b16 %v8396, %v8392
    %v8509 = vpack.c.b16 %v8397, %v8393
    %v8510 = vpack.c.b16 %v8398, %v8394
    %v8511 = vpack.c.b16 %v8403, %v8399
    %v8512 = vpack.c.b16 %v8404, %v8400
    %v8513 = vpack.c.b16 %v8405, %v8401
    %v8514 = vpack.c.b16 %v8406, %v8402
    %v8515 = vpack.c.b16 %v8411, %v8407
    %v8516 = vpack.c.b16 %v8412, %v8408
    %v8517 = vpack.c.b16 %v8413, %v8409
    %v8518 = vpack.c.b16 %v8414, %v8410
    %v8519 = vpack.c.b16 %v8419, %v8415
    %v8520 = vpack.c.b16 %v8420, %v8416
    %v8521 = vpack.c.b16 %v8421, %v8417
    %v8522 = vpack.c.b16 %v8422, %v8418
    %v8523 = vpack.c.b16 %v8427, %v8423
    %v8524 = vpack.c.b16 %v8428, %v8424
    %v8525 = vpack.c.b16 %v8429, %v8425
    %v8526 = vpack.c.b16 %v8430, %v8426
    %v8527 = vpack.c.b16 %v8435, %v8431
    %v8528 = vpack.c.b16 %v8436, %v8432
    %v8529 = vpack.c.b16 %v8437, %v8433
    %v8530 = vpack.c.b16 %v8438, %v8434
    %v8531 = vpack.c.b16 %v8443, %v8439
    %v8532 = vpack.c.b16 %v8444, %v8440
    %v8533 = vpack.c.b16 %v8445, %v8441
    %v8534 = vpack.c.b16 %v8446, %v8442
    %v8535 = vpack.c.b16 %v8451, %v8447
    %v8536 = vpack.c.b16 %v8452, %v8448
    %v8537 = vpack.c.b16 %v8453, %v8449
    %v8538 = vpack.c.b16 %v8454, %v8450
    %v8539 = vpack.c.b16 %v8459, %v8455
    %v8540 = vpack.c.b16 %v8460, %v8456
    %v8541 = vpack.c.b16 %v8461, %v8457
    %v8542 = vpack.c.b16 %v8462, %v8458
    %v8543 = vpack.c.b16 %v8467, %v8463
    %v8544 = vpack.c.b16 %v8468, %v8464
    %v8545 = vpack.c.b16 %v8469, %v8465
    %v8546 = vpack.c.b16 %v8470, %v8466
    %v8547 = vpack.c.b16 %v8475, %v8471
    %v8548 = vpack.c.b16 %v8476, %v8472
    %v8549 = vpack.c.b16 %v8477, %v8473
    %v8550 = vpack.c.b16 %v8478, %v8474
    %v8551 = vpack.c.b16 %v8483, %v8479
    %v8552 = vpack.c.b16 %v8484, %v8480
    %v8553 = vpack.c.b16 %v8485, %v8481
    %v8554 = vpack.c.b16 %v8486, %v8482
    %v8555 = vpack.c.b16 %v8491, %v8487
    %v8556 = vpack.c.b16 %v8492, %v8488
    %v8557 = vpack.c.b16 %v8493, %v8489
    %v8558 = vpack.c.b16 %v8494, %v8490
    %8623 = vmatprep.subr.bf16.mxu0 %v8524
    %8624 = vmatpush1.bf16.msra.mxu0 %v8523
    %8625 = vmatprep.subr.bf16.mxu0 %v8520
    %8626 = vmatpush1.bf16.msra.mxu0 %v8519
    %8627 = vmatprep.subr.bf16.mxu0 %v8516
    %8628 = vmatpush1.bf16.msra.mxu0 %v8515
    %8629 = vmatprep.subr.bf16.mxu0 %v8512
    %8630 = vmatpush1.bf16.msra.mxu0 %v8511
    %8631 = vmatprep.subr.bf16.mxu0 %v8508
    %8632 = vmatpush1.bf16.msra.mxu0 %v8507
    %8633 = vmatprep.subr.bf16.mxu0 %v8504
    %8634 = vmatpush1.bf16.msra.mxu0 %v8503
    %8635 = vmatprep.subr.bf16.mxu0 %v8500
    %8636 = vmatpush1.bf16.msra.mxu0 %v8499
    %8637 = vmatprep.subr.bf16.mxu0 %v8496
    %8638 = vmatpush1.bf16.msra.mxu0 %v8495
    %8639 = vmatprep.subr.bf16.mxu0 %v8556
    %8640 = vmatpush2.bf16.msra.mxu0 %v8555
    %8641 = vmatprep.subr.bf16.mxu0 %v8552
    %8642 = vmatpush2.bf16.msra.mxu0 %v8551
    %8643 = vmatprep.subr.bf16.mxu0 %v8548
    %8644 = vmatpush2.bf16.msra.mxu0 %v8547
    %8645 = vmatprep.subr.bf16.mxu0 %v8544
    %8646 = vmatpush2.bf16.msra.mxu0 %v8543
    %8647 = vmatprep.subr.bf16.mxu0 %v8540
    %8648 = vmatpush2.bf16.msra.mxu0 %v8539
    %8649 = vmatprep.subr.bf16.mxu0 %v8536
    %8650 = vmatpush2.bf16.msra.mxu0 %v8535
    %8651 = vmatprep.subr.bf16.mxu0 %v8532
    %8652 = vmatpush2.bf16.msra.mxu0 %v8531
    %8653 = vmatprep.subr.bf16.mxu0 %v8528
    %8654 = vmatpush2.bf16.msra.mxu0 %v8527
    %8655 = vmatprep.mubr.bf16.mxu0 %v7699
    %8656 = vmatmul.mubr.bf16.gmra.mxu0 %v8216
    %v8657 = vpop.f32.mrf.mxu0
    %v8658 = vadd.f32 %v8286, %v8657
    %v8659 = vpop.f32.mrf.mxu0
    %v8660 = vadd.f32 %v8290, %v8659
    %v8661 = vpop.f32.mrf.mxu0
    %v8662 = vpop.f32.mrf.mxu0
    %8663 = vdwg.mxu0
    %8664 = vmatprep.subr.bf16.mxu0 %v8526
    %8665 = vmatpush1.bf16.msra.mxu0 %v8525
    %8666 = vmatprep.subr.bf16.mxu0 %v8522
    %8667 = vmatpush1.bf16.msra.mxu0 %v8521
    %8668 = vmatprep.subr.bf16.mxu0 %v8518
    %8669 = vmatpush1.bf16.msra.mxu0 %v8517
    %8670 = vmatprep.subr.bf16.mxu0 %v8514
    %8671 = vmatpush1.bf16.msra.mxu0 %v8513
    %8672 = vmatprep.subr.bf16.mxu0 %v8510
    %8673 = vmatpush1.bf16.msra.mxu0 %v8509
    %8674 = vmatprep.subr.bf16.mxu0 %v8506
    %8675 = vmatpush1.bf16.msra.mxu0 %v8505
    %8676 = vmatprep.subr.bf16.mxu0 %v8502
    %8677 = vmatpush1.bf16.msra.mxu0 %v8501
    %8678 = vmatprep.subr.bf16.mxu0 %v8498
    %8679 = vmatpush1.bf16.msra.mxu0 %v8497
    %8680 = vmatprep.subr.bf16.mxu0 %v8558
    %8681 = vmatpush2.bf16.msra.mxu0 %v8557
    %8682 = vmatprep.subr.bf16.mxu0 %v8554
    %8683 = vmatpush2.bf16.msra.mxu0 %v8553
    %8684 = vmatprep.subr.bf16.mxu0 %v8550
    %8685 = vmatpush2.bf16.msra.mxu0 %v8549
    %8686 = vmatprep.subr.bf16.mxu0 %v8546
    %8687 = vmatpush2.bf16.msra.mxu0 %v8545
    %8688 = vmatprep.subr.bf16.mxu0 %v8542
    %8689 = vmatpush2.bf16.msra.mxu0 %v8541
    %8690 = vmatprep.subr.bf16.mxu0 %v8538
    %8691 = vmatpush2.bf16.msra.mxu0 %v8537
    %8692 = vmatprep.subr.bf16.mxu0 %v8534
    %8693 = vmatpush2.bf16.msra.mxu0 %v8533
    %8694 = vmatprep.subr.bf16.mxu0 %v8530
    %8695 = vmatpush2.bf16.msra.mxu0 %v8529
    %8696 = vmatprep.mubr.bf16.mxu0 %v7699
    %8697 = vmatmul.mubr.bf16.gmra.mxu0 %v8216
    %v8698 = vpop.f32.mrf.mxu0
    %v8699 = vadd.f32 %v8294, %v8698
    %v8700 = vpop.f32.mrf.mxu0
    %v8701 = vadd.f32 %v8298, %v8700
    %v8702 = vpop.f32.mrf.mxu0
    %v8703 = vpop.f32.mrf.mxu0
    %8704 = vdwg.mxu0
    %v8705 = vxor.u32 %v8658, 2147483648
    %v8706 = vxor.u32 %v8660, 2147483648
    %v8707 = vxor.u32 %v8699, 2147483648
    %v8708 = vmul.f32 %v8705, 1.442695
    %v8709 = vpow.pop %v8708
    %v8710 = vmul.f32 %v8706, 1.442695
    %v8711 = vpow.pop %v8710
    %v8712 = vmul.f32 %v8707, 1.442695
    %v8713 = vpow.pop %v8712
    %v8714 = vadd.f32 %v8709, 1.0
    %v8715 = vadd.f32 %v8711, 1.0
    %v8716 = vadd.f32 %v8713, 1.0
    %v8717 = vrcp.pop %v8714
    %v8718 = vmul.f32 1.0, %v8717
    %v8719 = vrcp.pop %v8715
    %v8720 = vmul.f32 1.0, %v8719
    %v8721 = vrcp.pop %v8716
    %v8722 = vmul.f32 1.0, %v8721
    %v8723 = vtanh.pop %v8701
    %v8724 = vmul.f32 %v8720, %v7696
    %v8725 = vmul.f32 %v8718, %v8723
    %v8726 = vadd.f32 %v8724, %v8725
    %v8727 = vtanh.pop %v8726
    %v8728 = vmul.f32 %v8722, %v8727
    %v8729 = vpack.c.bf16 %v8728, %v8728
    %v8730 = vpack.c.bf16 %v8212, %v8212
    %v8731 = vld [vmem:[#allocation7] sm:$0xff]
    %v8732 = vld [vmem:[#allocation7 + $0x8] sm:$0xff]
    %v8733 = vld [vmem:[#allocation7 + $0x10] sm:$0xff]
    %v8734 = vld [vmem:[#allocation7 + $0x18] sm:$0xff]
    %v8735 = vld [vmem:[#allocation7 + $0x20] sm:$0xff]
    %v8736 = vld [vmem:[#allocation7 + $0x28] sm:$0xff]
    %v8737 = vld [vmem:[#allocation7 + $0x30] sm:$0xff]
    %v8738 = vld [vmem:[#allocation7 + $0x38] sm:$0xff]
    %v8739 = vld [vmem:[#allocation7 + $0x40] sm:$0xff]
    %v8740 = vld [vmem:[#allocation7 + $0x48] sm:$0xff]
    %v8741 = vld [vmem:[#allocation7 + $0x50] sm:$0xff]
    %v8742 = vld [vmem:[#allocation7 + $0x58] sm:$0xff]
    %v8743 = vld [vmem:[#allocation7 + $0x60] sm:$0xff]
    %v8744 = vld [vmem:[#allocation7 + $0x68] sm:$0xff]
    %v8745 = vld [vmem:[#allocation7 + $0x70] sm:$0xff]
    %v8746 = vld [vmem:[#allocation7 + $0x78] sm:$0xff]
    %v8747 = vld [vmem:[#allocation7 + $0x80] sm:$0xff]
    %v8748 = vld [vmem:[#allocation7 + $0x88] sm:$0xff]
    %v8749 = vld [vmem:[#allocation7 + $0x90] sm:$0xff]
    %v8750 = vld [vmem:[#allocation7 + $0x98] sm:$0xff]
    %v8751 = vld [vmem:[#allocation7 + $0xa0] sm:$0xff]
    %v8752 = vld [vmem:[#allocation7 + $0xa8] sm:$0xff]
    %v8753 = vld [vmem:[#allocation7 + $0xb0] sm:$0xff]
    %v8754 = vld [vmem:[#allocation7 + $0xb8] sm:$0xff]
    %v8755 = vld [vmem:[#allocation7 + $0xc0] sm:$0xff]
    %v8756 = vld [vmem:[#allocation7 + $0xc8] sm:$0xff]
    %v8757 = vld [vmem:[#allocation7 + $0xd0] sm:$0xff]
    %v8758 = vld [vmem:[#allocation7 + $0xd8] sm:$0xff]
    %v8759 = vld [vmem:[#allocation7 + $0xe0] sm:$0xff]
    %v8760 = vld [vmem:[#allocation7 + $0xe8] sm:$0xff]
    %v8761 = vld [vmem:[#allocation7 + $0xf0] sm:$0xff]
    %v8762 = vld [vmem:[#allocation7 + $0xf8] sm:$0xff]
    %v8763 = vld [vmem:[#allocation7 + $0x100] sm:$0xff]
    %v8764 = vld [vmem:[#allocation7 + $0x108] sm:$0xff]
    %v8765 = vld [vmem:[#allocation7 + $0x110] sm:$0xff]
    %v8766 = vld [vmem:[#allocation7 + $0x118] sm:$0xff]
    %v8767 = vld [vmem:[#allocation7 + $0x120] sm:$0xff]
    %v8768 = vld [vmem:[#allocation7 + $0x128] sm:$0xff]
    %v8769 = vld [vmem:[#allocation7 + $0x130] sm:$0xff]
    %v8770 = vld [vmem:[#allocation7 + $0x138] sm:$0xff]
    %v8771 = vld [vmem:[#allocation7 + $0x140] sm:$0xff]
    %v8772 = vld [vmem:[#allocation7 + $0x148] sm:$0xff]
    %v8773 = vld [vmem:[#allocation7 + $0x150] sm:$0xff]
    %v8774 = vld [vmem:[#allocation7 + $0x158] sm:$0xff]
    %v8775 = vld [vmem:[#allocation7 + $0x160] sm:$0xff]
    %v8776 = vld [vmem:[#allocation7 + $0x168] sm:$0xff]
    %v8777 = vld [vmem:[#allocation7 + $0x170] sm:$0xff]
    %v8778 = vld [vmem:[#allocation7 + $0x178] sm:$0xff]
    %v8779 = vld [vmem:[#allocation7 + $0x180] sm:$0xff]
    %v8780 = vld [vmem:[#allocation7 + $0x188] sm:$0xff]
    %v8781 = vld [vmem:[#allocation7 + $0x190] sm:$0xff]
    %v8782 = vld [vmem:[#allocation7 + $0x198] sm:$0xff]
    %v8783 = vld [vmem:[#allocation7 + $0x1a0] sm:$0xff]
    %v8784 = vld [vmem:[#allocation7 + $0x1a8] sm:$0xff]
    %v8785 = vld [vmem:[#allocation7 + $0x1b0] sm:$0xff]
    %v8786 = vld [vmem:[#allocation7 + $0x1b8] sm:$0xff]
    %v8787 = vld [vmem:[#allocation7 + $0x1c0] sm:$0xff]
    %v8788 = vld [vmem:[#allocation7 + $0x1c8] sm:$0xff]
    %v8789 = vld [vmem:[#allocation7 + $0x1d0] sm:$0xff]
    %v8790 = vld [vmem:[#allocation7 + $0x1d8] sm:$0xff]
    %v8791 = vld [vmem:[#allocation7 + $0x1e0] sm:$0xff]
    %v8792 = vld [vmem:[#allocation7 + $0x1e8] sm:$0xff]
    %v8793 = vld [vmem:[#allocation7 + $0x1f0] sm:$0xff]
    %v8794 = vld [vmem:[#allocation7 + $0x1f8] sm:$0xff]
    %v8795 = vld [vmem:[%s9] sm:$0xf]
    %v8797 = vlaneseq
    %v8798 = vshrl.u32 %v8797, 7
    %v8799 = vsub.s32 0, %v8798
    %v8800 = vrot.slane %v8795, %v8799
    %v8801 = vlaneseq
    %v8802 = vshrl.u32 %v8801, 7
    %v8803 = vsub.s32 1, %v8802
    %v8804 = vrot.slane %v8795, %v8803
    %v8805 = vlaneseq
    %v8806 = vshrl.u32 %v8805, 7
    %v8807 = vsub.s32 2, %v8806
    %v8808 = vrot.slane %v8795, %v8807
    %v8809 = vlaneseq
    %v8810 = vshrl.u32 %v8809, 7
    %v8811 = vsub.s32 3, %v8810
    %v8812 = vrot.slane %v8795, %v8811
    %v8881 = vunpack.c.l.b16 %v8731
    %v8882 = vunpack.c.h.b16 %v8731
    %v8883 = vunpack.c.l.b16 %v8732
    %v8884 = vunpack.c.h.b16 %v8732
    %v8885 = vunpack.c.l.b16 %v8733
    %v8886 = vunpack.c.h.b16 %v8733
    %v8887 = vunpack.c.l.b16 %v8734
    %v8888 = vunpack.c.h.b16 %v8734
    %v8889 = vunpack.c.l.b16 %v8735
    %v8890 = vunpack.c.h.b16 %v8735
    %v8891 = vunpack.c.l.b16 %v8736
    %v8892 = vunpack.c.h.b16 %v8736
    %v8893 = vunpack.c.l.b16 %v8737
    %v8894 = vunpack.c.h.b16 %v8737
    %v8895 = vunpack.c.l.b16 %v8738
    %v8896 = vunpack.c.h.b16 %v8738
    %v8897 = vunpack.c.l.b16 %v8739
    %v8898 = vunpack.c.h.b16 %v8739
    %v8899 = vunpack.c.l.b16 %v8740
    %v8900 = vunpack.c.h.b16 %v8740
    %v8901 = vunpack.c.l.b16 %v8741
    %v8902 = vunpack.c.h.b16 %v8741
    %v8903 = vunpack.c.l.b16 %v8742
    %v8904 = vunpack.c.h.b16 %v8742
    %v8905 = vunpack.c.l.b16 %v8743
    %v8906 = vunpack.c.h.b16 %v8743
    %v8907 = vunpack.c.l.b16 %v8744
    %v8908 = vunpack.c.h.b16 %v8744
    %v8909 = vunpack.c.l.b16 %v8745
    %v8910 = vunpack.c.h.b16 %v8745
    %v8911 = vunpack.c.l.b16 %v8746
    %v8912 = vunpack.c.h.b16 %v8746
    %v8913 = vunpack.c.l.b16 %v8747
    %v8914 = vunpack.c.h.b16 %v8747
    %v8915 = vunpack.c.l.b16 %v8748
    %v8916 = vunpack.c.h.b16 %v8748
    %v8917 = vunpack.c.l.b16 %v8749
    %v8918 = vunpack.c.h.b16 %v8749
    %v8919 = vunpack.c.l.b16 %v8750
    %v8920 = vunpack.c.h.b16 %v8750
    %v8921 = vunpack.c.l.b16 %v8751
    %v8922 = vunpack.c.h.b16 %v8751
    %v8923 = vunpack.c.l.b16 %v8752
    %v8924 = vunpack.c.h.b16 %v8752
    %v8925 = vunpack.c.l.b16 %v8753
    %v8926 = vunpack.c.h.b16 %v8753
    %v8927 = vunpack.c.l.b16 %v8754
    %v8928 = vunpack.c.h.b16 %v8754
    %v8929 = vunpack.c.l.b16 %v8755
    %v8930 = vunpack.c.h.b16 %v8755
    %v8931 = vunpack.c.l.b16 %v8756
    %v8932 = vunpack.c.h.b16 %v8756
    %v8933 = vunpack.c.l.b16 %v8757
    %v8934 = vunpack.c.h.b16 %v8757
    %v8935 = vunpack.c.l.b16 %v8758
    %v8936 = vunpack.c.h.b16 %v8758
    %v8937 = vunpack.c.l.b16 %v8759
    %v8938 = vunpack.c.h.b16 %v8759
    %v8939 = vunpack.c.l.b16 %v8760
    %v8940 = vunpack.c.h.b16 %v8760
    %v8941 = vunpack.c.l.b16 %v8761
    %v8942 = vunpack.c.h.b16 %v8761
    %v8943 = vunpack.c.l.b16 %v8762
    %v8944 = vunpack.c.h.b16 %v8762
    %v8945 = vunpack.c.l.b16 %v8763
    %v8946 = vunpack.c.h.b16 %v8763
    %v8947 = vunpack.c.l.b16 %v8764
    %v8948 = vunpack.c.h.b16 %v8764
    %v8949 = vunpack.c.l.b16 %v8765
    %v8950 = vunpack.c.h.b16 %v8765
    %v8951 = vunpack.c.l.b16 %v8766
    %v8952 = vunpack.c.h.b16 %v8766
    %v8953 = vunpack.c.l.b16 %v8767
    %v8954 = vunpack.c.h.b16 %v8767
    %v8955 = vunpack.c.l.b16 %v8768
    %v8956 = vunpack.c.h.b16 %v8768
    %v8957 = vunpack.c.l.b16 %v8769
    %v8958 = vunpack.c.h.b16 %v8769
    %v8959 = vunpack.c.l.b16 %v8770
    %v8960 = vunpack.c.h.b16 %v8770
    %v8961 = vunpack.c.l.b16 %v8771
    %v8962 = vunpack.c.h.b16 %v8771
    %v8963 = vunpack.c.l.b16 %v8772
    %v8964 = vunpack.c.h.b16 %v8772
    %v8965 = vunpack.c.l.b16 %v8773
    %v8966 = vunpack.c.h.b16 %v8773
    %v8967 = vunpack.c.l.b16 %v8774
    %v8968 = vunpack.c.h.b16 %v8774
    %v8969 = vunpack.c.l.b16 %v8775
    %v8970 = vunpack.c.h.b16 %v8775
    %v8971 = vunpack.c.l.b16 %v8776
    %v8972 = vunpack.c.h.b16 %v8776
    %v8973 = vunpack.c.l.b16 %v8777
    %v8974 = vunpack.c.h.b16 %v8777
    %v8975 = vunpack.c.l.b16 %v8778
    %v8976 = vunpack.c.h.b16 %v8778
    %v8977 = vunpack.c.l.b16 %v8779
    %v8978 = vunpack.c.h.b16 %v8779
    %v8979 = vunpack.c.l.b16 %v8780
    %v8980 = vunpack.c.h.b16 %v8780
    %v8981 = vunpack.c.l.b16 %v8781
    %v8982 = vunpack.c.h.b16 %v8781
    %v8983 = vunpack.c.l.b16 %v8782
    %v8984 = vunpack.c.h.b16 %v8782
    %v8985 = vunpack.c.l.b16 %v8783
    %v8986 = vunpack.c.h.b16 %v8783
    %v8987 = vunpack.c.l.b16 %v8784
    %v8988 = vunpack.c.h.b16 %v8784
    %v8989 = vunpack.c.l.b16 %v8785
    %v8990 = vunpack.c.h.b16 %v8785
    %v8991 = vunpack.c.l.b16 %v8786
    %v8992 = vunpack.c.h.b16 %v8786
    %v8993 = vunpack.c.l.b16 %v8787
    %v8994 = vunpack.c.h.b16 %v8787
    %v8995 = vunpack.c.l.b16 %v8788
    %v8996 = vunpack.c.h.b16 %v8788
    %v8997 = vunpack.c.l.b16 %v8789
    %v8998 = vunpack.c.h.b16 %v8789
    %v8999 = vunpack.c.l.b16 %v8790
    %v9000 = vunpack.c.h.b16 %v8790
    %v9001 = vunpack.c.l.b16 %v8791
    %v9002 = vunpack.c.h.b16 %v8791
    %v9003 = vunpack.c.l.b16 %v8792
    %v9004 = vunpack.c.h.b16 %v8792
    %v9005 = vunpack.c.l.b16 %v8793
    %v9006 = vunpack.c.h.b16 %v8793
    %v9007 = vunpack.c.l.b16 %v8794
    %v9008 = vunpack.c.h.b16 %v8794
    %v9009 = vpack.c.b16 %v8885, %v8881
    %v9010 = vpack.c.b16 %v8886, %v8882
    %v9011 = vpack.c.b16 %v8887, %v8883
    %v9012 = vpack.c.b16 %v8888, %v8884
    %v9013 = vpack.c.b16 %v8893, %v8889
    %v9014 = vpack.c.b16 %v8894, %v8890
    %v9015 = vpack.c.b16 %v8895, %v8891
    %v9016 = vpack.c.b16 %v8896, %v8892
    %v9017 = vpack.c.b16 %v8901, %v8897
    %v9018 = vpack.c.b16 %v8902, %v8898
    %v9019 = vpack.c.b16 %v8903, %v8899
    %v9020 = vpack.c.b16 %v8904, %v8900
    %v9021 = vpack.c.b16 %v8909, %v8905
    %v9022 = vpack.c.b16 %v8910, %v8906
    %v9023 = vpack.c.b16 %v8911, %v8907
    %v9024 = vpack.c.b16 %v8912, %v8908
    %v9025 = vpack.c.b16 %v8917, %v8913
    %v9026 = vpack.c.b16 %v8918, %v8914
    %v9027 = vpack.c.b16 %v8919, %v8915
    %v9028 = vpack.c.b16 %v8920, %v8916
    %v9029 = vpack.c.b16 %v8925, %v8921
    %v9030 = vpack.c.b16 %v8926, %v8922
    %v9031 = vpack.c.b16 %v8927, %v8923
    %v9032 = vpack.c.b16 %v8928, %v8924
    %v9033 = vpack.c.b16 %v8933, %v8929
    %v9034 = vpack.c.b16 %v8934, %v8930
    %v9035 = vpack.c.b16 %v8935, %v8931
    %v9036 = vpack.c.b16 %v8936, %v8932
    %v9037 = vpack.c.b16 %v8941, %v8937
    %v9038 = vpack.c.b16 %v8942, %v8938
    %v9039 = vpack.c.b16 %v8943, %v8939
    %v9040 = vpack.c.b16 %v8944, %v8940
    %v9041 = vpack.c.b16 %v8949, %v8945
    %v9042 = vpack.c.b16 %v8950, %v8946
    %v9043 = vpack.c.b16 %v8951, %v8947
    %v9044 = vpack.c.b16 %v8952, %v8948
    %v9045 = vpack.c.b16 %v8957, %v8953
    %v9046 = vpack.c.b16 %v8958, %v8954
    %v9047 = vpack.c.b16 %v8959, %v8955
    %v9048 = vpack.c.b16 %v8960, %v8956
    %v9049 = vpack.c.b16 %v8965, %v8961
    %v9050 = vpack.c.b16 %v8966, %v8962
    %v9051 = vpack.c.b16 %v8967, %v8963
    %v9052 = vpack.c.b16 %v8968, %v8964
    %v9053 = vpack.c.b16 %v8973, %v8969
    %v9054 = vpack.c.b16 %v8974, %v8970
    %v9055 = vpack.c.b16 %v8975, %v8971
    %v9056 = vpack.c.b16 %v8976, %v8972
    %v9057 = vpack.c.b16 %v8981, %v8977
    %v9058 = vpack.c.b16 %v8982, %v8978
    %v9059 = vpack.c.b16 %v8983, %v8979
    %v9060 = vpack.c.b16 %v8984, %v8980
    %v9061 = vpack.c.b16 %v8989, %v8985
    %v9062 = vpack.c.b16 %v8990, %v8986
    %v9063 = vpack.c.b16 %v8991, %v8987
    %v9064 = vpack.c.b16 %v8992, %v8988
    %v9065 = vpack.c.b16 %v8997, %v8993
    %v9066 = vpack.c.b16 %v8998, %v8994
    %v9067 = vpack.c.b16 %v8999, %v8995
    %v9068 = vpack.c.b16 %v9000, %v8996
    %v9069 = vpack.c.b16 %v9005, %v9001
    %v9070 = vpack.c.b16 %v9006, %v9002
    %v9071 = vpack.c.b16 %v9007, %v9003
    %v9072 = vpack.c.b16 %v9008, %v9004
    %9137 = vmatprep.subr.bf16.mxu0 %v9038
    %9138 = vmatpush1.bf16.msra.mxu0 %v9037
    %9139 = vmatprep.subr.bf16.mxu0 %v9034
    %9140 = vmatpush1.bf16.msra.mxu0 %v9033
    %9141 = vmatprep.subr.bf16.mxu0 %v9030
    %9142 = vmatpush1.bf16.msra.mxu0 %v9029
    %9143 = vmatprep.subr.bf16.mxu0 %v9026
    %9144 = vmatpush1.bf16.msra.mxu0 %v9025
    %9145 = vmatprep.subr.bf16.mxu0 %v9022
    %9146 = vmatpush1.bf16.msra.mxu0 %v9021
    %9147 = vmatprep.subr.bf16.mxu0 %v9018
    %9148 = vmatpush1.bf16.msra.mxu0 %v9017
    %9149 = vmatprep.subr.bf16.mxu0 %v9014
    %9150 = vmatpush1.bf16.msra.mxu0 %v9013
    %9151 = vmatprep.subr.bf16.mxu0 %v9010
    %9152 = vmatpush1.bf16.msra.mxu0 %v9009
    %9153 = vmatprep.subr.bf16.mxu0 %v9070
    %9154 = vmatpush2.bf16.msra.mxu0 %v9069
    %9155 = vmatprep.subr.bf16.mxu0 %v9066
    %9156 = vmatpush2.bf16.msra.mxu0 %v9065
    %9157 = vmatprep.subr.bf16.mxu0 %v9062
    %9158 = vmatpush2.bf16.msra.mxu0 %v9061
    %9159 = vmatprep.subr.bf16.mxu0 %v9058
    %9160 = vmatpush2.bf16.msra.mxu0 %v9057
    %9161 = vmatprep.subr.bf16.mxu0 %v9054
    %9162 = vmatpush2.bf16.msra.mxu0 %v9053
    %9163 = vmatprep.subr.bf16.mxu0 %v9050
    %9164 = vmatpush2.bf16.msra.mxu0 %v9049
    %9165 = vmatprep.subr.bf16.mxu0 %v9046
    %9166 = vmatpush2.bf16.msra.mxu0 %v9045
    %9167 = vmatprep.subr.bf16.mxu0 %v9042
    %9168 = vmatpush2.bf16.msra.mxu0 %v9041
    %9169 = vmatprep.mubr.bf16.mxu0 %v8730
    %9170 = vmatmul.mubr.bf16.gmra.mxu0 %v8729
    %v9171 = vpop.f32.mrf.mxu0
    %v9172 = vadd.f32 %v8800, %v9171
    %v9173 = vpop.f32.mrf.mxu0
    %v9174 = vadd.f32 %v8804, %v9173
    %v9175 = vpop.f32.mrf.mxu0
    %v9176 = vpop.f32.mrf.mxu0
    %9177 = vdwg.mxu0
    %9178 = vmatprep.subr.bf16.mxu0 %v9040
    %9179 = vmatpush1.bf16.msra.mxu0 %v9039
    %9180 = vmatprep.subr.bf16.mxu0 %v9036
    %9181 = vmatpush1.bf16.msra.mxu0 %v9035
    %9182 = vmatprep.subr.bf16.mxu0 %v9032
    %9183 = vmatpush1.bf16.msra.mxu0 %v9031
    %9184 = vmatprep.subr.bf16.mxu0 %v9028
    %9185 = vmatpush1.bf16.msra.mxu0 %v9027
    %9186 = vmatprep.subr.bf16.mxu0 %v9024
    %9187 = vmatpush1.bf16.msra.mxu0 %v9023
    %9188 = vmatprep.subr.bf16.mxu0 %v9020
    %9189 = vmatpush1.bf16.msra.mxu0 %v9019
    %9190 = vmatprep.subr.bf16.mxu0 %v9016
    %9191 = vmatpush1.bf16.msra.mxu0 %v9015
    %9192 = vmatprep.subr.bf16.mxu0 %v9012
    %9193 = vmatpush1.bf16.msra.mxu0 %v9011
    %9194 = vmatprep.subr.bf16.mxu0 %v9072
    %9195 = vmatpush2.bf16.msra.mxu0 %v9071
    %9196 = vmatprep.subr.bf16.mxu0 %v9068
    %9197 = vmatpush2.bf16.msra.mxu0 %v9067
    %9198 = vmatprep.subr.bf16.mxu0 %v9064
    %9199 = vmatpush2.bf16.msra.mxu0 %v9063
    %9200 = vmatprep.subr.bf16.mxu0 %v9060
    %9201 = vmatpush2.bf16.msra.mxu0 %v9059
    %9202 = vmatprep.subr.bf16.mxu0 %v9056
    %9203 = vmatpush2.bf16.msra.mxu0 %v9055
    %9204 = vmatprep.subr.bf16.mxu0 %v9052
    %9205 = vmatpush2.bf16.msra.mxu0 %v9051
    %9206 = vmatprep.subr.bf16.mxu0 %v9048
    %9207 = vmatpush2.bf16.msra.mxu0 %v9047
    %9208 = vmatprep.subr.bf16.mxu0 %v9044
    %9209 = vmatpush2.bf16.msra.mxu0 %v9043
    %9210 = vmatprep.mubr.bf16.mxu0 %v8730
    %9211 = vmatmul.mubr.bf16.gmra.mxu0 %v8729
    %v9212 = vpop.f32.mrf.mxu0
    %v9213 = vadd.f32 %v8808, %v9212
    %v9214 = vpop.f32.mrf.mxu0
    %v9215 = vadd.f32 %v8812, %v9214
    %v9216 = vpop.f32.mrf.mxu0
    %v9217 = vpop.f32.mrf.mxu0
    %9218 = vdwg.mxu0
    %v9219 = vxor.u32 %v9172, 2147483648
    %v9220 = vxor.u32 %v9174, 2147483648
    %v9221 = vxor.u32 %v9213, 2147483648
    %v9222 = vmul.f32 %v9219, 1.442695
    %v9223 = vpow.pop %v9222
    %v9224 = vmul.f32 %v9220, 1.442695
    %v9225 = vpow.pop %v9224
    %v9226 = vmul.f32 %v9221, 1.442695
    %v9227 = vpow.pop %v9226
    %v9228 = vadd.f32 %v9223, 1.0
    %v9229 = vadd.f32 %v9225, 1.0
    %v9230 = vadd.f32 %v9227, 1.0
    %v9231 = vrcp.pop %v9228
    %v9232 = vmul.f32 1.0, %v9231
    %v9233 = vrcp.pop %v9229
    %v9234 = vmul.f32 1.0, %v9233
    %v9235 = vrcp.pop %v9230
    %v9236 = vmul.f32 1.0, %v9235
    %v9237 = vtanh.pop %v9215
    %v9238 = vmul.f32 %v9234, %v8210
    %v9239 = vmul.f32 %v9232, %v9237
    %v9240 = vadd.f32 %v9238, %v9239
    %v9241 = vtanh.pop %v9240
    %v9242 = vmul.f32 %v9236, %v9241
    %s9243 = scalar_lea.vmem [#allocation2], 40
    %9244 = vst [vmem:[%s9243] sm:$0xff] %v9242
    %s9245 = scalar_lea.vmem %s1, 24
    %v9246 = vld [vmem:[%s9245] sm:$0xf]
    %v9247 = vld [vmem:[#allocation5] sm:$0xff]
    %v9248 = vld [vmem:[#allocation5 + $0x8] sm:$0xff]
    %v9249 = vld [vmem:[#allocation5 + $0x10] sm:$0xff]
    %v9250 = vld [vmem:[#allocation5 + $0x18] sm:$0xff]
    %v9251 = vld [vmem:[#allocation5 + $0x20] sm:$0xff]
    %v9252 = vld [vmem:[#allocation5 + $0x28] sm:$0xff]
    %v9253 = vld [vmem:[#allocation5 + $0x30] sm:$0xff]
    %v9254 = vld [vmem:[#allocation5 + $0x38] sm:$0xff]
    %v9255 = vld [vmem:[#allocation5 + $0x40] sm:$0xff]
    %v9256 = vld [vmem:[#allocation5 + $0x48] sm:$0xff]
    %v9257 = vld [vmem:[#allocation5 + $0x50] sm:$0xff]
    %v9258 = vld [vmem:[#allocation5 + $0x58] sm:$0xff]
    %v9259 = vld [vmem:[#allocation5 + $0x60] sm:$0xff]
    %v9260 = vld [vmem:[#allocation5 + $0x68] sm:$0xff]
    %v9261 = vld [vmem:[#allocation5 + $0x70] sm:$0xff]
    %v9262 = vld [vmem:[#allocation5 + $0x78] sm:$0xff]
    %v9263 = vld [vmem:[#allocation5 + $0x80] sm:$0xff]
    %v9264 = vld [vmem:[#allocation5 + $0x88] sm:$0xff]
    %v9265 = vld [vmem:[#allocation5 + $0x90] sm:$0xff]
    %v9266 = vld [vmem:[#allocation5 + $0x98] sm:$0xff]
    %v9267 = vld [vmem:[#allocation5 + $0xa0] sm:$0xff]
    %v9268 = vld [vmem:[#allocation5 + $0xa8] sm:$0xff]
    %v9269 = vld [vmem:[#allocation5 + $0xb0] sm:$0xff]
    %v9270 = vld [vmem:[#allocation5 + $0xb8] sm:$0xff]
    %v9271 = vld [vmem:[#allocation5 + $0xc0] sm:$0xff]
    %v9272 = vld [vmem:[#allocation5 + $0xc8] sm:$0xff]
    %v9273 = vld [vmem:[#allocation5 + $0xd0] sm:$0xff]
    %v9274 = vld [vmem:[#allocation5 + $0xd8] sm:$0xff]
    %v9275 = vld [vmem:[#allocation5 + $0xe0] sm:$0xff]
    %v9276 = vld [vmem:[#allocation5 + $0xe8] sm:$0xff]
    %v9277 = vld [vmem:[#allocation5 + $0xf0] sm:$0xff]
    %v9278 = vld [vmem:[#allocation5 + $0xf8] sm:$0xff]
    %v9279 = vld [vmem:[#allocation5 + $0x100] sm:$0xff]
    %v9280 = vld [vmem:[#allocation5 + $0x108] sm:$0xff]
    %v9281 = vld [vmem:[#allocation5 + $0x110] sm:$0xff]
    %v9282 = vld [vmem:[#allocation5 + $0x118] sm:$0xff]
    %v9283 = vld [vmem:[#allocation5 + $0x120] sm:$0xff]
    %v9284 = vld [vmem:[#allocation5 + $0x128] sm:$0xff]
    %v9285 = vld [vmem:[#allocation5 + $0x130] sm:$0xff]
    %v9286 = vld [vmem:[#allocation5 + $0x138] sm:$0xff]
    %v9287 = vld [vmem:[#allocation5 + $0x140] sm:$0xff]
    %v9288 = vld [vmem:[#allocation5 + $0x148] sm:$0xff]
    %v9289 = vld [vmem:[#allocation5 + $0x150] sm:$0xff]
    %v9290 = vld [vmem:[#allocation5 + $0x158] sm:$0xff]
    %v9291 = vld [vmem:[#allocation5 + $0x160] sm:$0xff]
    %v9292 = vld [vmem:[#allocation5 + $0x168] sm:$0xff]
    %v9293 = vld [vmem:[#allocation5 + $0x170] sm:$0xff]
    %v9294 = vld [vmem:[#allocation5 + $0x178] sm:$0xff]
    %v9295 = vld [vmem:[#allocation5 + $0x180] sm:$0xff]
    %v9296 = vld [vmem:[#allocation5 + $0x188] sm:$0xff]
    %v9297 = vld [vmem:[#allocation5 + $0x190] sm:$0xff]
    %v9298 = vld [vmem:[#allocation5 + $0x198] sm:$0xff]
    %v9299 = vld [vmem:[#allocation5 + $0x1a0] sm:$0xff]
    %v9300 = vld [vmem:[#allocation5 + $0x1a8] sm:$0xff]
    %v9301 = vld [vmem:[#allocation5 + $0x1b0] sm:$0xff]
    %v9302 = vld [vmem:[#allocation5 + $0x1b8] sm:$0xff]
    %v9303 = vld [vmem:[#allocation5 + $0x1c0] sm:$0xff]
    %v9304 = vld [vmem:[#allocation5 + $0x1c8] sm:$0xff]
    %v9305 = vld [vmem:[#allocation5 + $0x1d0] sm:$0xff]
    %v9306 = vld [vmem:[#allocation5 + $0x1d8] sm:$0xff]
    %v9307 = vld [vmem:[#allocation5 + $0x1e0] sm:$0xff]
    %v9308 = vld [vmem:[#allocation5 + $0x1e8] sm:$0xff]
    %v9309 = vld [vmem:[#allocation5 + $0x1f0] sm:$0xff]
    %v9310 = vld [vmem:[#allocation5 + $0x1f8] sm:$0xff]
    %v9311 = vld [vmem:[%s7] sm:$0xf]
    %v9313 = vlaneseq
    %v9314 = vshrl.u32 %v9313, 7
    %v9315 = vsub.s32 0, %v9314
    %v9316 = vrot.slane %v9311, %v9315
    %v9317 = vlaneseq
    %v9318 = vshrl.u32 %v9317, 7
    %v9319 = vsub.s32 1, %v9318
    %v9320 = vrot.slane %v9311, %v9319
    %v9321 = vlaneseq
    %v9322 = vshrl.u32 %v9321, 7
    %v9323 = vsub.s32 2, %v9322
    %v9324 = vrot.slane %v9311, %v9323
    %v9325 = vlaneseq
    %v9326 = vshrl.u32 %v9325, 7
    %v9327 = vsub.s32 3, %v9326
    %v9328 = vrot.slane %v9311, %v9327
    %v9397 = vunpack.c.l.b16 %v9247
    %v9398 = vunpack.c.h.b16 %v9247
    %v9399 = vunpack.c.l.b16 %v9248
    %v9400 = vunpack.c.h.b16 %v9248
    %v9401 = vunpack.c.l.b16 %v9249
    %v9402 = vunpack.c.h.b16 %v9249
    %v9403 = vunpack.c.l.b16 %v9250
    %v9404 = vunpack.c.h.b16 %v9250
    %v9405 = vunpack.c.l.b16 %v9251
    %v9406 = vunpack.c.h.b16 %v9251
    %v9407 = vunpack.c.l.b16 %v9252
    %v9408 = vunpack.c.h.b16 %v9252
    %v9409 = vunpack.c.l.b16 %v9253
    %v9410 = vunpack.c.h.b16 %v9253
    %v9411 = vunpack.c.l.b16 %v9254
    %v9412 = vunpack.c.h.b16 %v9254
    %v9413 = vunpack.c.l.b16 %v9255
    %v9414 = vunpack.c.h.b16 %v9255
    %v9415 = vunpack.c.l.b16 %v9256
    %v9416 = vunpack.c.h.b16 %v9256
    %v9417 = vunpack.c.l.b16 %v9257
    %v9418 = vunpack.c.h.b16 %v9257
    %v9419 = vunpack.c.l.b16 %v9258
    %v9420 = vunpack.c.h.b16 %v9258
    %v9421 = vunpack.c.l.b16 %v9259
    %v9422 = vunpack.c.h.b16 %v9259
    %v9423 = vunpack.c.l.b16 %v9260
    %v9424 = vunpack.c.h.b16 %v9260
    %v9425 = vunpack.c.l.b16 %v9261
    %v9426 = vunpack.c.h.b16 %v9261
    %v9427 = vunpack.c.l.b16 %v9262
    %v9428 = vunpack.c.h.b16 %v9262
    %v9429 = vunpack.c.l.b16 %v9263
    %v9430 = vunpack.c.h.b16 %v9263
    %v9431 = vunpack.c.l.b16 %v9264
    %v9432 = vunpack.c.h.b16 %v9264
    %v9433 = vunpack.c.l.b16 %v9265
    %v9434 = vunpack.c.h.b16 %v9265
    %v9435 = vunpack.c.l.b16 %v9266
    %v9436 = vunpack.c.h.b16 %v9266
    %v9437 = vunpack.c.l.b16 %v9267
    %v9438 = vunpack.c.h.b16 %v9267
    %v9439 = vunpack.c.l.b16 %v9268
    %v9440 = vunpack.c.h.b16 %v9268
    %v9441 = vunpack.c.l.b16 %v9269
    %v9442 = vunpack.c.h.b16 %v9269
    %v9443 = vunpack.c.l.b16 %v9270
    %v9444 = vunpack.c.h.b16 %v9270
    %v9445 = vunpack.c.l.b16 %v9271
    %v9446 = vunpack.c.h.b16 %v9271
    %v9447 = vunpack.c.l.b16 %v9272
    %v9448 = vunpack.c.h.b16 %v9272
    %v9449 = vunpack.c.l.b16 %v9273
    %v9450 = vunpack.c.h.b16 %v9273
    %v9451 = vunpack.c.l.b16 %v9274
    %v9452 = vunpack.c.h.b16 %v9274
    %v9453 = vunpack.c.l.b16 %v9275
    %v9454 = vunpack.c.h.b16 %v9275
    %v9455 = vunpack.c.l.b16 %v9276
    %v9456 = vunpack.c.h.b16 %v9276
    %v9457 = vunpack.c.l.b16 %v9277
    %v9458 = vunpack.c.h.b16 %v9277
    %v9459 = vunpack.c.l.b16 %v9278
    %v9460 = vunpack.c.h.b16 %v9278
    %v9461 = vunpack.c.l.b16 %v9279
    %v9462 = vunpack.c.h.b16 %v9279
    %v9463 = vunpack.c.l.b16 %v9280
    %v9464 = vunpack.c.h.b16 %v9280
    %v9465 = vunpack.c.l.b16 %v9281
    %v9466 = vunpack.c.h.b16 %v9281
    %v9467 = vunpack.c.l.b16 %v9282
    %v9468 = vunpack.c.h.b16 %v9282
    %v9469 = vunpack.c.l.b16 %v9283
    %v9470 = vunpack.c.h.b16 %v9283
    %v9471 = vunpack.c.l.b16 %v9284
    %v9472 = vunpack.c.h.b16 %v9284
    %v9473 = vunpack.c.l.b16 %v9285
    %v9474 = vunpack.c.h.b16 %v9285
    %v9475 = vunpack.c.l.b16 %v9286
    %v9476 = vunpack.c.h.b16 %v9286
    %v9477 = vunpack.c.l.b16 %v9287
    %v9478 = vunpack.c.h.b16 %v9287
    %v9479 = vunpack.c.l.b16 %v9288
    %v9480 = vunpack.c.h.b16 %v9288
    %v9481 = vunpack.c.l.b16 %v9289
    %v9482 = vunpack.c.h.b16 %v9289
    %v9483 = vunpack.c.l.b16 %v9290
    %v9484 = vunpack.c.h.b16 %v9290
    %v9485 = vunpack.c.l.b16 %v9291
    %v9486 = vunpack.c.h.b16 %v9291
    %v9487 = vunpack.c.l.b16 %v9292
    %v9488 = vunpack.c.h.b16 %v9292
    %v9489 = vunpack.c.l.b16 %v9293
    %v9490 = vunpack.c.h.b16 %v9293
    %v9491 = vunpack.c.l.b16 %v9294
    %v9492 = vunpack.c.h.b16 %v9294
    %v9493 = vunpack.c.l.b16 %v9295
    %v9494 = vunpack.c.h.b16 %v9295
    %v9495 = vunpack.c.l.b16 %v9296
    %v9496 = vunpack.c.h.b16 %v9296
    %v9497 = vunpack.c.l.b16 %v9297
    %v9498 = vunpack.c.h.b16 %v9297
    %v9499 = vunpack.c.l.b16 %v9298
    %v9500 = vunpack.c.h.b16 %v9298
    %v9501 = vunpack.c.l.b16 %v9299
    %v9502 = vunpack.c.h.b16 %v9299
    %v9503 = vunpack.c.l.b16 %v9300
    %v9504 = vunpack.c.h.b16 %v9300
    %v9505 = vunpack.c.l.b16 %v9301
    %v9506 = vunpack.c.h.b16 %v9301
    %v9507 = vunpack.c.l.b16 %v9302
    %v9508 = vunpack.c.h.b16 %v9302
    %v9509 = vunpack.c.l.b16 %v9303
    %v9510 = vunpack.c.h.b16 %v9303
    %v9511 = vunpack.c.l.b16 %v9304
    %v9512 = vunpack.c.h.b16 %v9304
    %v9513 = vunpack.c.l.b16 %v9305
    %v9514 = vunpack.c.h.b16 %v9305
    %v9515 = vunpack.c.l.b16 %v9306
    %v9516 = vunpack.c.h.b16 %v9306
    %v9517 = vunpack.c.l.b16 %v9307
    %v9518 = vunpack.c.h.b16 %v9307
    %v9519 = vunpack.c.l.b16 %v9308
    %v9520 = vunpack.c.h.b16 %v9308
    %v9521 = vunpack.c.l.b16 %v9309
    %v9522 = vunpack.c.h.b16 %v9309
    %v9523 = vunpack.c.l.b16 %v9310
    %v9524 = vunpack.c.h.b16 %v9310
    %v9525 = vpack.c.b16 %v9401, %v9397
    %v9526 = vpack.c.b16 %v9402, %v9398
    %v9527 = vpack.c.b16 %v9403, %v9399
    %v9528 = vpack.c.b16 %v9404, %v9400
    %v9529 = vpack.c.b16 %v9409, %v9405
    %v9530 = vpack.c.b16 %v9410, %v9406
    %v9531 = vpack.c.b16 %v9411, %v9407
    %v9532 = vpack.c.b16 %v9412, %v9408
    %v9533 = vpack.c.b16 %v9417, %v9413
    %v9534 = vpack.c.b16 %v9418, %v9414
    %v9535 = vpack.c.b16 %v9419, %v9415
    %v9536 = vpack.c.b16 %v9420, %v9416
    %v9537 = vpack.c.b16 %v9425, %v9421
    %v9538 = vpack.c.b16 %v9426, %v9422
    %v9539 = vpack.c.b16 %v9427, %v9423
    %v9540 = vpack.c.b16 %v9428, %v9424
    %v9541 = vpack.c.b16 %v9433, %v9429
    %v9542 = vpack.c.b16 %v9434, %v9430
    %v9543 = vpack.c.b16 %v9435, %v9431
    %v9544 = vpack.c.b16 %v9436, %v9432
    %v9545 = vpack.c.b16 %v9441, %v9437
    %v9546 = vpack.c.b16 %v9442, %v9438
    %v9547 = vpack.c.b16 %v9443, %v9439
    %v9548 = vpack.c.b16 %v9444, %v9440
    %v9549 = vpack.c.b16 %v9449, %v9445
    %v9550 = vpack.c.b16 %v9450, %v9446
    %v9551 = vpack.c.b16 %v9451, %v9447
    %v9552 = vpack.c.b16 %v9452, %v9448
    %v9553 = vpack.c.b16 %v9457, %v9453
    %v9554 = vpack.c.b16 %v9458, %v9454
    %v9555 = vpack.c.b16 %v9459, %v9455
    %v9556 = vpack.c.b16 %v9460, %v9456
    %v9557 = vpack.c.b16 %v9465, %v9461
    %v9558 = vpack.c.b16 %v9466, %v9462
    %v9559 = vpack.c.b16 %v9467, %v9463
    %v9560 = vpack.c.b16 %v9468, %v9464
    %v9561 = vpack.c.b16 %v9473, %v9469
    %v9562 = vpack.c.b16 %v9474, %v9470
    %v9563 = vpack.c.b16 %v9475, %v9471
    %v9564 = vpack.c.b16 %v9476, %v9472
    %v9565 = vpack.c.b16 %v9481, %v9477
    %v9566 = vpack.c.b16 %v9482, %v9478
    %v9567 = vpack.c.b16 %v9483, %v9479
    %v9568 = vpack.c.b16 %v9484, %v9480
    %v9569 = vpack.c.b16 %v9489, %v9485
    %v9570 = vpack.c.b16 %v9490, %v9486
    %v9571 = vpack.c.b16 %v9491, %v9487
    %v9572 = vpack.c.b16 %v9492, %v9488
    %v9573 = vpack.c.b16 %v9497, %v9493
    %v9574 = vpack.c.b16 %v9498, %v9494
    %v9575 = vpack.c.b16 %v9499, %v9495
    %v9576 = vpack.c.b16 %v9500, %v9496
    %v9577 = vpack.c.b16 %v9505, %v9501
    %v9578 = vpack.c.b16 %v9506, %v9502
    %v9579 = vpack.c.b16 %v9507, %v9503
    %v9580 = vpack.c.b16 %v9508, %v9504
    %v9581 = vpack.c.b16 %v9513, %v9509
    %v9582 = vpack.c.b16 %v9514, %v9510
    %v9583 = vpack.c.b16 %v9515, %v9511
    %v9584 = vpack.c.b16 %v9516, %v9512
    %v9585 = vpack.c.b16 %v9521, %v9517
    %v9586 = vpack.c.b16 %v9522, %v9518
    %v9587 = vpack.c.b16 %v9523, %v9519
    %v9588 = vpack.c.b16 %v9524, %v9520
    %9653 = vmatprep.subr.bf16.mxu0 %v9554
    %9654 = vmatpush1.bf16.msra.mxu0 %v9553
    %9655 = vmatprep.subr.bf16.mxu0 %v9550
    %9656 = vmatpush1.bf16.msra.mxu0 %v9549
    %9657 = vmatprep.subr.bf16.mxu0 %v9546
    %9658 = vmatpush1.bf16.msra.mxu0 %v9545
    %9659 = vmatprep.subr.bf16.mxu0 %v9542
    %9660 = vmatpush1.bf16.msra.mxu0 %v9541
    %9661 = vmatprep.subr.bf16.mxu0 %v9538
    %9662 = vmatpush1.bf16.msra.mxu0 %v9537
    %9663 = vmatprep.subr.bf16.mxu0 %v9534
    %9664 = vmatpush1.bf16.msra.mxu0 %v9533
    %9665 = vmatprep.subr.bf16.mxu0 %v9530
    %9666 = vmatpush1.bf16.msra.mxu0 %v9529
    %9667 = vmatprep.subr.bf16.mxu0 %v9526
    %9668 = vmatpush1.bf16.msra.mxu0 %v9525
    %9669 = vmatprep.subr.bf16.mxu0 %v9586
    %9670 = vmatpush2.bf16.msra.mxu0 %v9585
    %9671 = vmatprep.subr.bf16.mxu0 %v9582
    %9672 = vmatpush2.bf16.msra.mxu0 %v9581
    %9673 = vmatprep.subr.bf16.mxu0 %v9578
    %9674 = vmatpush2.bf16.msra.mxu0 %v9577
    %9675 = vmatprep.subr.bf16.mxu0 %v9574
    %9676 = vmatpush2.bf16.msra.mxu0 %v9573
    %9677 = vmatprep.subr.bf16.mxu0 %v9570
    %9678 = vmatpush2.bf16.msra.mxu0 %v9569
    %9679 = vmatprep.subr.bf16.mxu0 %v9566
    %9680 = vmatpush2.bf16.msra.mxu0 %v9565
    %9681 = vmatprep.subr.bf16.mxu0 %v9562
    %9682 = vmatpush2.bf16.msra.mxu0 %v9561
    %9683 = vmatprep.subr.bf16.mxu0 %v9558
    %9684 = vmatpush2.bf16.msra.mxu0 %v9557
    %9685 = vmatprep.mubr.bf16.mxu0 %v8729
    %9686 = vmatmul.mubr.bf16.gmra.mxu0 %v9246
    %v9687 = vpop.f32.mrf.mxu0
    %v9688 = vadd.f32 %v9316, %v9687
    %v9689 = vpop.f32.mrf.mxu0
    %v9690 = vadd.f32 %v9320, %v9689
    %v9691 = vpop.f32.mrf.mxu0
    %v9692 = vpop.f32.mrf.mxu0
    %9693 = vdwg.mxu0
    %9694 = vmatprep.subr.bf16.mxu0 %v9556
    %9695 = vmatpush1.bf16.msra.mxu0 %v9555
    %9696 = vmatprep.subr.bf16.mxu0 %v9552
    %9697 = vmatpush1.bf16.msra.mxu0 %v9551
    %9698 = vmatprep.subr.bf16.mxu0 %v9548
    %9699 = vmatpush1.bf16.msra.mxu0 %v9547
    %9700 = vmatprep.subr.bf16.mxu0 %v9544
    %9701 = vmatpush1.bf16.msra.mxu0 %v9543
    %9702 = vmatprep.subr.bf16.mxu0 %v9540
    %9703 = vmatpush1.bf16.msra.mxu0 %v9539
    %9704 = vmatprep.subr.bf16.mxu0 %v9536
    %9705 = vmatpush1.bf16.msra.mxu0 %v9535
    %9706 = vmatprep.subr.bf16.mxu0 %v9532
    %9707 = vmatpush1.bf16.msra.mxu0 %v9531
    %9708 = vmatprep.subr.bf16.mxu0 %v9528
    %9709 = vmatpush1.bf16.msra.mxu0 %v9527
    %9710 = vmatprep.subr.bf16.mxu0 %v9588
    %9711 = vmatpush2.bf16.msra.mxu0 %v9587
    %9712 = vmatprep.subr.bf16.mxu0 %v9584
    %9713 = vmatpush2.bf16.msra.mxu0 %v9583
    %9714 = vmatprep.subr.bf16.mxu0 %v9580
    %9715 = vmatpush2.bf16.msra.mxu0 %v9579
    %9716 = vmatprep.subr.bf16.mxu0 %v9576
    %9717 = vmatpush2.bf16.msra.mxu0 %v9575
    %9718 = vmatprep.subr.bf16.mxu0 %v9572
    %9719 = vmatpush2.bf16.msra.mxu0 %v9571
    %9720 = vmatprep.subr.bf16.mxu0 %v9568
    %9721 = vmatpush2.bf16.msra.mxu0 %v9567
    %9722 = vmatprep.subr.bf16.mxu0 %v9564
    %9723 = vmatpush2.bf16.msra.mxu0 %v9563
    %9724 = vmatprep.subr.bf16.mxu0 %v9560
    %9725 = vmatpush2.bf16.msra.mxu0 %v9559
    %9726 = vmatprep.mubr.bf16.mxu0 %v8729
    %9727 = vmatmul.mubr.bf16.gmra.mxu0 %v9246
    %v9728 = vpop.f32.mrf.mxu0
    %v9729 = vadd.f32 %v9324, %v9728
    %v9730 = vpop.f32.mrf.mxu0
    %v9731 = vadd.f32 %v9328, %v9730
    %v9732 = vpop.f32.mrf.mxu0
    %v9733 = vpop.f32.mrf.mxu0
    %9734 = vdwg.mxu0
    %v9735 = vxor.u32 %v9688, 2147483648
    %v9736 = vxor.u32 %v9690, 2147483648
    %v9737 = vxor.u32 %v9729, 2147483648
    %v9738 = vmul.f32 %v9735, 1.442695
    %v9739 = vpow.pop %v9738
    %v9740 = vmul.f32 %v9736, 1.442695
    %v9741 = vpow.pop %v9740
    %v9742 = vmul.f32 %v9737, 1.442695
    %v9743 = vpow.pop %v9742
    %v9744 = vadd.f32 %v9739, 1.0
    %v9745 = vadd.f32 %v9741, 1.0
    %v9746 = vadd.f32 %v9743, 1.0
    %v9747 = vrcp.pop %v9744
    %v9748 = vmul.f32 1.0, %v9747
    %v9749 = vrcp.pop %v9745
    %v9750 = vmul.f32 1.0, %v9749
    %v9751 = vrcp.pop %v9746
    %v9752 = vmul.f32 1.0, %v9751
    %v9753 = vtanh.pop %v9731
    %v9754 = vmul.f32 %v9750, %v8726
    %v9755 = vmul.f32 %v9748, %v9753
    %v9756 = vadd.f32 %v9754, %v9755
    %v9757 = vtanh.pop %v9756
    %v9758 = vmul.f32 %v9752, %v9757
    %v9759 = vpack.c.bf16 %v9758, %v9758
    %v9760 = vpack.c.bf16 %v9242, %v9242
    %v9761 = vld [vmem:[#allocation7] sm:$0xff]
    %v9762 = vld [vmem:[#allocation7 + $0x8] sm:$0xff]
    %v9763 = vld [vmem:[#allocation7 + $0x10] sm:$0xff]
    %v9764 = vld [vmem:[#allocation7 + $0x18] sm:$0xff]
    %v9765 = vld [vmem:[#allocation7 + $0x20] sm:$0xff]
    %v9766 = vld [vmem:[#allocation7 + $0x28] sm:$0xff]
    %v9767 = vld [vmem:[#allocation7 + $0x30] sm:$0xff]
    %v9768 = vld [vmem:[#allocation7 + $0x38] sm:$0xff]
    %v9769 = vld [vmem:[#allocation7 + $0x40] sm:$0xff]
    %v9770 = vld [vmem:[#allocation7 + $0x48] sm:$0xff]
    %v9771 = vld [vmem:[#allocation7 + $0x50] sm:$0xff]
    %v9772 = vld [vmem:[#allocation7 + $0x58] sm:$0xff]
    %v9773 = vld [vmem:[#allocation7 + $0x60] sm:$0xff]
    %v9774 = vld [vmem:[#allocation7 + $0x68] sm:$0xff]
    %v9775 = vld [vmem:[#allocation7 + $0x70] sm:$0xff]
    %v9776 = vld [vmem:[#allocation7 + $0x78] sm:$0xff]
    %v9777 = vld [vmem:[#allocation7 + $0x80] sm:$0xff]
    %v9778 = vld [vmem:[#allocation7 + $0x88] sm:$0xff]
    %v9779 = vld [vmem:[#allocation7 + $0x90] sm:$0xff]
    %v9780 = vld [vmem:[#allocation7 + $0x98] sm:$0xff]
    %v9781 = vld [vmem:[#allocation7 + $0xa0] sm:$0xff]
    %v9782 = vld [vmem:[#allocation7 + $0xa8] sm:$0xff]
    %v9783 = vld [vmem:[#allocation7 + $0xb0] sm:$0xff]
    %v9784 = vld [vmem:[#allocation7 + $0xb8] sm:$0xff]
    %v9785 = vld [vmem:[#allocation7 + $0xc0] sm:$0xff]
    %v9786 = vld [vmem:[#allocation7 + $0xc8] sm:$0xff]
    %v9787 = vld [vmem:[#allocation7 + $0xd0] sm:$0xff]
    %v9788 = vld [vmem:[#allocation7 + $0xd8] sm:$0xff]
    %v9789 = vld [vmem:[#allocation7 + $0xe0] sm:$0xff]
    %v9790 = vld [vmem:[#allocation7 + $0xe8] sm:$0xff]
    %v9791 = vld [vmem:[#allocation7 + $0xf0] sm:$0xff]
    %v9792 = vld [vmem:[#allocation7 + $0xf8] sm:$0xff]
    %v9793 = vld [vmem:[#allocation7 + $0x100] sm:$0xff]
    %v9794 = vld [vmem:[#allocation7 + $0x108] sm:$0xff]
    %v9795 = vld [vmem:[#allocation7 + $0x110] sm:$0xff]
    %v9796 = vld [vmem:[#allocation7 + $0x118] sm:$0xff]
    %v9797 = vld [vmem:[#allocation7 + $0x120] sm:$0xff]
    %v9798 = vld [vmem:[#allocation7 + $0x128] sm:$0xff]
    %v9799 = vld [vmem:[#allocation7 + $0x130] sm:$0xff]
    %v9800 = vld [vmem:[#allocation7 + $0x138] sm:$0xff]
    %v9801 = vld [vmem:[#allocation7 + $0x140] sm:$0xff]
    %v9802 = vld [vmem:[#allocation7 + $0x148] sm:$0xff]
    %v9803 = vld [vmem:[#allocation7 + $0x150] sm:$0xff]
    %v9804 = vld [vmem:[#allocation7 + $0x158] sm:$0xff]
    %v9805 = vld [vmem:[#allocation7 + $0x160] sm:$0xff]
    %v9806 = vld [vmem:[#allocation7 + $0x168] sm:$0xff]
    %v9807 = vld [vmem:[#allocation7 + $0x170] sm:$0xff]
    %v9808 = vld [vmem:[#allocation7 + $0x178] sm:$0xff]
    %v9809 = vld [vmem:[#allocation7 + $0x180] sm:$0xff]
    %v9810 = vld [vmem:[#allocation7 + $0x188] sm:$0xff]
    %v9811 = vld [vmem:[#allocation7 + $0x190] sm:$0xff]
    %v9812 = vld [vmem:[#allocation7 + $0x198] sm:$0xff]
    %v9813 = vld [vmem:[#allocation7 + $0x1a0] sm:$0xff]
    %v9814 = vld [vmem:[#allocation7 + $0x1a8] sm:$0xff]
    %v9815 = vld [vmem:[#allocation7 + $0x1b0] sm:$0xff]
    %v9816 = vld [vmem:[#allocation7 + $0x1b8] sm:$0xff]
    %v9817 = vld [vmem:[#allocation7 + $0x1c0] sm:$0xff]
    %v9818 = vld [vmem:[#allocation7 + $0x1c8] sm:$0xff]
    %v9819 = vld [vmem:[#allocation7 + $0x1d0] sm:$0xff]
    %v9820 = vld [vmem:[#allocation7 + $0x1d8] sm:$0xff]
    %v9821 = vld [vmem:[#allocation7 + $0x1e0] sm:$0xff]
    %v9822 = vld [vmem:[#allocation7 + $0x1e8] sm:$0xff]
    %v9823 = vld [vmem:[#allocation7 + $0x1f0] sm:$0xff]
    %v9824 = vld [vmem:[#allocation7 + $0x1f8] sm:$0xff]
    %v9825 = vld [vmem:[%s9] sm:$0xf]
    %v9827 = vlaneseq
    %v9828 = vshrl.u32 %v9827, 7
    %v9829 = vsub.s32 0, %v9828
    %v9830 = vrot.slane %v9825, %v9829
    %v9831 = vlaneseq
    %v9832 = vshrl.u32 %v9831, 7
    %v9833 = vsub.s32 1, %v9832
    %v9834 = vrot.slane %v9825, %v9833
    %v9835 = vlaneseq
    %v9836 = vshrl.u32 %v9835, 7
    %v9837 = vsub.s32 2, %v9836
    %v9838 = vrot.slane %v9825, %v9837
    %v9839 = vlaneseq
    %v9840 = vshrl.u32 %v9839, 7
    %v9841 = vsub.s32 3, %v9840
    %v9842 = vrot.slane %v9825, %v9841
    %v9911 = vunpack.c.l.b16 %v9761
    %v9912 = vunpack.c.h.b16 %v9761
    %v9913 = vunpack.c.l.b16 %v9762
    %v9914 = vunpack.c.h.b16 %v9762
    %v9915 = vunpack.c.l.b16 %v9763
    %v9916 = vunpack.c.h.b16 %v9763
    %v9917 = vunpack.c.l.b16 %v9764
    %v9918 = vunpack.c.h.b16 %v9764
    %v9919 = vunpack.c.l.b16 %v9765
    %v9920 = vunpack.c.h.b16 %v9765
    %v9921 = vunpack.c.l.b16 %v9766
    %v9922 = vunpack.c.h.b16 %v9766
    %v9923 = vunpack.c.l.b16 %v9767
    %v9924 = vunpack.c.h.b16 %v9767
    %v9925 = vunpack.c.l.b16 %v9768
    %v9926 = vunpack.c.h.b16 %v9768
    %v9927 = vunpack.c.l.b16 %v9769
    %v9928 = vunpack.c.h.b16 %v9769
    %v9929 = vunpack.c.l.b16 %v9770
    %v9930 = vunpack.c.h.b16 %v9770
    %v9931 = vunpack.c.l.b16 %v9771
    %v9932 = vunpack.c.h.b16 %v9771
    %v9933 = vunpack.c.l.b16 %v9772
    %v9934 = vunpack.c.h.b16 %v9772
    %v9935 = vunpack.c.l.b16 %v9773
    %v9936 = vunpack.c.h.b16 %v9773
    %v9937 = vunpack.c.l.b16 %v9774
    %v9938 = vunpack.c.h.b16 %v9774
    %v9939 = vunpack.c.l.b16 %v9775
    %v9940 = vunpack.c.h.b16 %v9775
    %v9941 = vunpack.c.l.b16 %v9776
    %v9942 = vunpack.c.h.b16 %v9776
    %v9943 = vunpack.c.l.b16 %v9777
    %v9944 = vunpack.c.h.b16 %v9777
    %v9945 = vunpack.c.l.b16 %v9778
    %v9946 = vunpack.c.h.b16 %v9778
    %v9947 = vunpack.c.l.b16 %v9779
    %v9948 = vunpack.c.h.b16 %v9779
    %v9949 = vunpack.c.l.b16 %v9780
    %v9950 = vunpack.c.h.b16 %v9780
    %v9951 = vunpack.c.l.b16 %v9781
    %v9952 = vunpack.c.h.b16 %v9781
    %v9953 = vunpack.c.l.b16 %v9782
    %v9954 = vunpack.c.h.b16 %v9782
    %v9955 = vunpack.c.l.b16 %v9783
    %v9956 = vunpack.c.h.b16 %v9783
    %v9957 = vunpack.c.l.b16 %v9784
    %v9958 = vunpack.c.h.b16 %v9784
    %v9959 = vunpack.c.l.b16 %v9785
    %v9960 = vunpack.c.h.b16 %v9785
    %v9961 = vunpack.c.l.b16 %v9786
    %v9962 = vunpack.c.h.b16 %v9786
    %v9963 = vunpack.c.l.b16 %v9787
    %v9964 = vunpack.c.h.b16 %v9787
    %v9965 = vunpack.c.l.b16 %v9788
    %v9966 = vunpack.c.h.b16 %v9788
    %v9967 = vunpack.c.l.b16 %v9789
    %v9968 = vunpack.c.h.b16 %v9789
    %v9969 = vunpack.c.l.b16 %v9790
    %v9970 = vunpack.c.h.b16 %v9790
    %v9971 = vunpack.c.l.b16 %v9791
    %v9972 = vunpack.c.h.b16 %v9791
    %v9973 = vunpack.c.l.b16 %v9792
    %v9974 = vunpack.c.h.b16 %v9792
    %v9975 = vunpack.c.l.b16 %v9793
    %v9976 = vunpack.c.h.b16 %v9793
    %v9977 = vunpack.c.l.b16 %v9794
    %v9978 = vunpack.c.h.b16 %v9794
    %v9979 = vunpack.c.l.b16 %v9795
    %v9980 = vunpack.c.h.b16 %v9795
    %v9981 = vunpack.c.l.b16 %v9796
    %v9982 = vunpack.c.h.b16 %v9796
    %v9983 = vunpack.c.l.b16 %v9797
    %v9984 = vunpack.c.h.b16 %v9797
    %v9985 = vunpack.c.l.b16 %v9798
    %v9986 = vunpack.c.h.b16 %v9798
    %v9987 = vunpack.c.l.b16 %v9799
    %v9988 = vunpack.c.h.b16 %v9799
    %v9989 = vunpack.c.l.b16 %v9800
    %v9990 = vunpack.c.h.b16 %v9800
    %v9991 = vunpack.c.l.b16 %v9801
    %v9992 = vunpack.c.h.b16 %v9801
    %v9993 = vunpack.c.l.b16 %v9802
    %v9994 = vunpack.c.h.b16 %v9802
    %v9995 = vunpack.c.l.b16 %v9803
    %v9996 = vunpack.c.h.b16 %v9803
    %v9997 = vunpack.c.l.b16 %v9804
    %v9998 = vunpack.c.h.b16 %v9804
    %v9999 = vunpack.c.l.b16 %v9805
    %v10000 = vunpack.c.h.b16 %v9805
    %v10001 = vunpack.c.l.b16 %v9806
    %v10002 = vunpack.c.h.b16 %v9806
    %v10003 = vunpack.c.l.b16 %v9807
    %v10004 = vunpack.c.h.b16 %v9807
    %v10005 = vunpack.c.l.b16 %v9808
    %v10006 = vunpack.c.h.b16 %v9808
    %v10007 = vunpack.c.l.b16 %v9809
    %v10008 = vunpack.c.h.b16 %v9809
    %v10009 = vunpack.c.l.b16 %v9810
    %v10010 = vunpack.c.h.b16 %v9810
    %v10011 = vunpack.c.l.b16 %v9811
    %v10012 = vunpack.c.h.b16 %v9811
    %v10013 = vunpack.c.l.b16 %v9812
    %v10014 = vunpack.c.h.b16 %v9812
    %v10015 = vunpack.c.l.b16 %v9813
    %v10016 = vunpack.c.h.b16 %v9813
    %v10017 = vunpack.c.l.b16 %v9814
    %v10018 = vunpack.c.h.b16 %v9814
    %v10019 = vunpack.c.l.b16 %v9815
    %v10020 = vunpack.c.h.b16 %v9815
    %v10021 = vunpack.c.l.b16 %v9816
    %v10022 = vunpack.c.h.b16 %v9816
    %v10023 = vunpack.c.l.b16 %v9817
    %v10024 = vunpack.c.h.b16 %v9817
    %v10025 = vunpack.c.l.b16 %v9818
    %v10026 = vunpack.c.h.b16 %v9818
    %v10027 = vunpack.c.l.b16 %v9819
    %v10028 = vunpack.c.h.b16 %v9819
    %v10029 = vunpack.c.l.b16 %v9820
    %v10030 = vunpack.c.h.b16 %v9820
    %v10031 = vunpack.c.l.b16 %v9821
    %v10032 = vunpack.c.h.b16 %v9821
    %v10033 = vunpack.c.l.b16 %v9822
    %v10034 = vunpack.c.h.b16 %v9822
    %v10035 = vunpack.c.l.b16 %v9823
    %v10036 = vunpack.c.h.b16 %v9823
    %v10037 = vunpack.c.l.b16 %v9824
    %v10038 = vunpack.c.h.b16 %v9824
    %v10039 = vpack.c.b16 %v9915, %v9911
    %v10040 = vpack.c.b16 %v9916, %v9912
    %v10041 = vpack.c.b16 %v9917, %v9913
    %v10042 = vpack.c.b16 %v9918, %v9914
    %v10043 = vpack.c.b16 %v9923, %v9919
    %v10044 = vpack.c.b16 %v9924, %v9920
    %v10045 = vpack.c.b16 %v9925, %v9921
    %v10046 = vpack.c.b16 %v9926, %v9922
    %v10047 = vpack.c.b16 %v9931, %v9927
    %v10048 = vpack.c.b16 %v9932, %v9928
    %v10049 = vpack.c.b16 %v9933, %v9929
    %v10050 = vpack.c.b16 %v9934, %v9930
    %v10051 = vpack.c.b16 %v9939, %v9935
    %v10052 = vpack.c.b16 %v9940, %v9936
    %v10053 = vpack.c.b16 %v9941, %v9937
    %v10054 = vpack.c.b16 %v9942, %v9938
    %v10055 = vpack.c.b16 %v9947, %v9943
    %v10056 = vpack.c.b16 %v9948, %v9944
    %v10057 = vpack.c.b16 %v9949, %v9945
    %v10058 = vpack.c.b16 %v9950, %v9946
    %v10059 = vpack.c.b16 %v9955, %v9951
    %v10060 = vpack.c.b16 %v9956, %v9952
    %v10061 = vpack.c.b16 %v9957, %v9953
    %v10062 = vpack.c.b16 %v9958, %v9954
    %v10063 = vpack.c.b16 %v9963, %v9959
    %v10064 = vpack.c.b16 %v9964, %v9960
    %v10065 = vpack.c.b16 %v9965, %v9961
    %v10066 = vpack.c.b16 %v9966, %v9962
    %v10067 = vpack.c.b16 %v9971, %v9967
    %v10068 = vpack.c.b16 %v9972, %v9968
    %v10069 = vpack.c.b16 %v9973, %v9969
    %v10070 = vpack.c.b16 %v9974, %v9970
    %v10071 = vpack.c.b16 %v9979, %v9975
    %v10072 = vpack.c.b16 %v9980, %v9976
    %v10073 = vpack.c.b16 %v9981, %v9977
    %v10074 = vpack.c.b16 %v9982, %v9978
    %v10075 = vpack.c.b16 %v9987, %v9983
    %v10076 = vpack.c.b16 %v9988, %v9984
    %v10077 = vpack.c.b16 %v9989, %v9985
    %v10078 = vpack.c.b16 %v9990, %v9986
    %v10079 = vpack.c.b16 %v9995, %v9991
    %v10080 = vpack.c.b16 %v9996, %v9992
    %v10081 = vpack.c.b16 %v9997, %v9993
    %v10082 = vpack.c.b16 %v9998, %v9994
    %v10083 = vpack.c.b16 %v10003, %v9999
    %v10084 = vpack.c.b16 %v10004, %v10000
    %v10085 = vpack.c.b16 %v10005, %v10001
    %v10086 = vpack.c.b16 %v10006, %v10002
    %v10087 = vpack.c.b16 %v10011, %v10007
    %v10088 = vpack.c.b16 %v10012, %v10008
    %v10089 = vpack.c.b16 %v10013, %v10009
    %v10090 = vpack.c.b16 %v10014, %v10010
    %v10091 = vpack.c.b16 %v10019, %v10015
    %v10092 = vpack.c.b16 %v10020, %v10016
    %v10093 = vpack.c.b16 %v10021, %v10017
    %v10094 = vpack.c.b16 %v10022, %v10018
    %v10095 = vpack.c.b16 %v10027, %v10023
    %v10096 = vpack.c.b16 %v10028, %v10024
    %v10097 = vpack.c.b16 %v10029, %v10025
    %v10098 = vpack.c.b16 %v10030, %v10026
    %v10099 = vpack.c.b16 %v10035, %v10031
    %v10100 = vpack.c.b16 %v10036, %v10032
    %v10101 = vpack.c.b16 %v10037, %v10033
    %v10102 = vpack.c.b16 %v10038, %v10034
    %10167 = vmatprep.subr.bf16.mxu0 %v10068
    %10168 = vmatpush1.bf16.msra.mxu0 %v10067
    %10169 = vmatprep.subr.bf16.mxu0 %v10064
    %10170 = vmatpush1.bf16.msra.mxu0 %v10063
    %10171 = vmatprep.subr.bf16.mxu0 %v10060
    %10172 = vmatpush1.bf16.msra.mxu0 %v10059
    %10173 = vmatprep.subr.bf16.mxu0 %v10056
    %10174 = vmatpush1.bf16.msra.mxu0 %v10055
    %10175 = vmatprep.subr.bf16.mxu0 %v10052
    %10176 = vmatpush1.bf16.msra.mxu0 %v10051
    %10177 = vmatprep.subr.bf16.mxu0 %v10048
    %10178 = vmatpush1.bf16.msra.mxu0 %v10047
    %10179 = vmatprep.subr.bf16.mxu0 %v10044
    %10180 = vmatpush1.bf16.msra.mxu0 %v10043
    %10181 = vmatprep.subr.bf16.mxu0 %v10040
    %10182 = vmatpush1.bf16.msra.mxu0 %v10039
    %10183 = vmatprep.subr.bf16.mxu0 %v10100
    %10184 = vmatpush2.bf16.msra.mxu0 %v10099
    %10185 = vmatprep.subr.bf16.mxu0 %v10096
    %10186 = vmatpush2.bf16.msra.mxu0 %v10095
    %10187 = vmatprep.subr.bf16.mxu0 %v10092
    %10188 = vmatpush2.bf16.msra.mxu0 %v10091
    %10189 = vmatprep.subr.bf16.mxu0 %v10088
    %10190 = vmatpush2.bf16.msra.mxu0 %v10087
    %10191 = vmatprep.subr.bf16.mxu0 %v10084
    %10192 = vmatpush2.bf16.msra.mxu0 %v10083
    %10193 = vmatprep.subr.bf16.mxu0 %v10080
    %10194 = vmatpush2.bf16.msra.mxu0 %v10079
    %10195 = vmatprep.subr.bf16.mxu0 %v10076
    %10196 = vmatpush2.bf16.msra.mxu0 %v10075
    %10197 = vmatprep.subr.bf16.mxu0 %v10072
    %10198 = vmatpush2.bf16.msra.mxu0 %v10071
    %10199 = vmatprep.mubr.bf16.mxu0 %v9760
    %10200 = vmatmul.mubr.bf16.gmra.mxu0 %v9759
    %v10201 = vpop.f32.mrf.mxu0
    %v10202 = vadd.f32 %v9830, %v10201
    %v10203 = vpop.f32.mrf.mxu0
    %v10204 = vadd.f32 %v9834, %v10203
    %v10205 = vpop.f32.mrf.mxu0
    %v10206 = vpop.f32.mrf.mxu0
    %10207 = vdwg.mxu0
    %10208 = vmatprep.subr.bf16.mxu0 %v10070
    %10209 = vmatpush1.bf16.msra.mxu0 %v10069
    %10210 = vmatprep.subr.bf16.mxu0 %v10066
    %10211 = vmatpush1.bf16.msra.mxu0 %v10065
    %10212 = vmatprep.subr.bf16.mxu0 %v10062
    %10213 = vmatpush1.bf16.msra.mxu0 %v10061
    %10214 = vmatprep.subr.bf16.mxu0 %v10058
    %10215 = vmatpush1.bf16.msra.mxu0 %v10057
    %10216 = vmatprep.subr.bf16.mxu0 %v10054
    %10217 = vmatpush1.bf16.msra.mxu0 %v10053
    %10218 = vmatprep.subr.bf16.mxu0 %v10050
    %10219 = vmatpush1.bf16.msra.mxu0 %v10049
    %10220 = vmatprep.subr.bf16.mxu0 %v10046
    %10221 = vmatpush1.bf16.msra.mxu0 %v10045
    %10222 = vmatprep.subr.bf16.mxu0 %v10042
    %10223 = vmatpush1.bf16.msra.mxu0 %v10041
    %10224 = vmatprep.subr.bf16.mxu0 %v10102
    %10225 = vmatpush2.bf16.msra.mxu0 %v10101
    %10226 = vmatprep.subr.bf16.mxu0 %v10098
    %10227 = vmatpush2.bf16.msra.mxu0 %v10097
    %10228 = vmatprep.subr.bf16.mxu0 %v10094
    %10229 = vmatpush2.bf16.msra.mxu0 %v10093
    %10230 = vmatprep.subr.bf16.mxu0 %v10090
    %10231 = vmatpush2.bf16.msra.mxu0 %v10089
    %10232 = vmatprep.subr.bf16.mxu0 %v10086
    %10233 = vmatpush2.bf16.msra.mxu0 %v10085
    %10234 = vmatprep.subr.bf16.mxu0 %v10082
    %10235 = vmatpush2.bf16.msra.mxu0 %v10081
    %10236 = vmatprep.subr.bf16.mxu0 %v10078
    %10237 = vmatpush2.bf16.msra.mxu0 %v10077
    %10238 = vmatprep.subr.bf16.mxu0 %v10074
    %10239 = vmatpush2.bf16.msra.mxu0 %v10073
    %10240 = vmatprep.mubr.bf16.mxu0 %v9760
    %10241 = vmatmul.mubr.bf16.gmra.mxu0 %v9759
    %v10242 = vpop.f32.mrf.mxu0
    %v10243 = vadd.f32 %v9838, %v10242
    %v10244 = vpop.f32.mrf.mxu0
    %v10245 = vadd.f32 %v9842, %v10244
    %v10246 = vpop.f32.mrf.mxu0
    %v10247 = vpop.f32.mrf.mxu0
    %10248 = vdwg.mxu0
    %v10249 = vxor.u32 %v10202, 2147483648
    %v10250 = vxor.u32 %v10204, 2147483648
    %v10251 = vxor.u32 %v10243, 2147483648
    %v10252 = vmul.f32 %v10249, 1.442695
    %v10253 = vpow.pop %v10252
    %v10254 = vmul.f32 %v10250, 1.442695
    %v10255 = vpow.pop %v10254
    %v10256 = vmul.f32 %v10251, 1.442695
    %v10257 = vpow.pop %v10256
    %v10258 = vadd.f32 %v10253, 1.0
    %v10259 = vadd.f32 %v10255, 1.0
    %v10260 = vadd.f32 %v10257, 1.0
    %v10261 = vrcp.pop %v10258
    %v10262 = vmul.f32 1.0, %v10261
    %v10263 = vrcp.pop %v10259
    %v10264 = vmul.f32 1.0, %v10263
    %v10265 = vrcp.pop %v10260
    %v10266 = vmul.f32 1.0, %v10265
    %v10267 = vtanh.pop %v10245
    %v10268 = vmul.f32 %v10264, %v9240
    %v10269 = vmul.f32 %v10262, %v10267
    %v10270 = vadd.f32 %v10268, %v10269
    %v10271 = vtanh.pop %v10270
    %v10272 = vmul.f32 %v10266, %v10271
    %s10273 = scalar_lea.vmem [#allocation2], 48
    %10274 = vst [vmem:[%s10273] sm:$0xff] %v10272
    %s10275 = scalar_lea.vmem %s1, 28
    %v10276 = vld [vmem:[%s10275] sm:$0xf]
    %v10277 = vld [vmem:[#allocation5] sm:$0xff]
    %v10278 = vld [vmem:[#allocation5 + $0x8] sm:$0xff]
    %v10279 = vld [vmem:[#allocation5 + $0x10] sm:$0xff]
    %v10280 = vld [vmem:[#allocation5 + $0x18] sm:$0xff]
    %v10281 = vld [vmem:[#allocation5 + $0x20] sm:$0xff]
    %v10282 = vld [vmem:[#allocation5 + $0x28] sm:$0xff]
    %v10283 = vld [vmem:[#allocation5 + $0x30] sm:$0xff]
    %v10284 = vld [vmem:[#allocation5 + $0x38] sm:$0xff]
    %v10285 = vld [vmem:[#allocation5 + $0x40] sm:$0xff]
    %v10286 = vld [vmem:[#allocation5 + $0x48] sm:$0xff]
    %v10287 = vld [vmem:[#allocation5 + $0x50] sm:$0xff]
    %v10288 = vld [vmem:[#allocation5 + $0x58] sm:$0xff]
    %v10289 = vld [vmem:[#allocation5 + $0x60] sm:$0xff]
    %v10290 = vld [vmem:[#allocation5 + $0x68] sm:$0xff]
    %v10291 = vld [vmem:[#allocation5 + $0x70] sm:$0xff]
    %v10292 = vld [vmem:[#allocation5 + $0x78] sm:$0xff]
    %v10293 = vld [vmem:[#allocation5 + $0x80] sm:$0xff]
    %v10294 = vld [vmem:[#allocation5 + $0x88] sm:$0xff]
    %v10295 = vld [vmem:[#allocation5 + $0x90] sm:$0xff]
    %v10296 = vld [vmem:[#allocation5 + $0x98] sm:$0xff]
    %v10297 = vld [vmem:[#allocation5 + $0xa0] sm:$0xff]
    %v10298 = vld [vmem:[#allocation5 + $0xa8] sm:$0xff]
    %v10299 = vld [vmem:[#allocation5 + $0xb0] sm:$0xff]
    %v10300 = vld [vmem:[#allocation5 + $0xb8] sm:$0xff]
    %v10301 = vld [vmem:[#allocation5 + $0xc0] sm:$0xff]
    %v10302 = vld [vmem:[#allocation5 + $0xc8] sm:$0xff]
    %v10303 = vld [vmem:[#allocation5 + $0xd0] sm:$0xff]
    %v10304 = vld [vmem:[#allocation5 + $0xd8] sm:$0xff]
    %v10305 = vld [vmem:[#allocation5 + $0xe0] sm:$0xff]
    %v10306 = vld [vmem:[#allocation5 + $0xe8] sm:$0xff]
    %v10307 = vld [vmem:[#allocation5 + $0xf0] sm:$0xff]
    %v10308 = vld [vmem:[#allocation5 + $0xf8] sm:$0xff]
    %v10309 = vld [vmem:[#allocation5 + $0x100] sm:$0xff]
    %v10310 = vld [vmem:[#allocation5 + $0x108] sm:$0xff]
    %v10311 = vld [vmem:[#allocation5 + $0x110] sm:$0xff]
    %v10312 = vld [vmem:[#allocation5 + $0x118] sm:$0xff]
    %v10313 = vld [vmem:[#allocation5 + $0x120] sm:$0xff]
    %v10314 = vld [vmem:[#allocation5 + $0x128] sm:$0xff]
    %v10315 = vld [vmem:[#allocation5 + $0x130] sm:$0xff]
    %v10316 = vld [vmem:[#allocation5 + $0x138] sm:$0xff]
    %v10317 = vld [vmem:[#allocation5 + $0x140] sm:$0xff]
    %v10318 = vld [vmem:[#allocation5 + $0x148] sm:$0xff]
    %v10319 = vld [vmem:[#allocation5 + $0x150] sm:$0xff]
    %v10320 = vld [vmem:[#allocation5 + $0x158] sm:$0xff]
    %v10321 = vld [vmem:[#allocation5 + $0x160] sm:$0xff]
    %v10322 = vld [vmem:[#allocation5 + $0x168] sm:$0xff]
    %v10323 = vld [vmem:[#allocation5 + $0x170] sm:$0xff]
    %v10324 = vld [vmem:[#allocation5 + $0x178] sm:$0xff]
    %v10325 = vld [vmem:[#allocation5 + $0x180] sm:$0xff]
    %v10326 = vld [vmem:[#allocation5 + $0x188] sm:$0xff]
    %v10327 = vld [vmem:[#allocation5 + $0x190] sm:$0xff]
    %v10328 = vld [vmem:[#allocation5 + $0x198] sm:$0xff]
    %v10329 = vld [vmem:[#allocation5 + $0x1a0] sm:$0xff]
    %v10330 = vld [vmem:[#allocation5 + $0x1a8] sm:$0xff]
    %v10331 = vld [vmem:[#allocation5 + $0x1b0] sm:$0xff]
    %v10332 = vld [vmem:[#allocation5 + $0x1b8] sm:$0xff]
    %v10333 = vld [vmem:[#allocation5 + $0x1c0] sm:$0xff]
    %v10334 = vld [vmem:[#allocation5 + $0x1c8] sm:$0xff]
    %v10335 = vld [vmem:[#allocation5 + $0x1d0] sm:$0xff]
    %v10336 = vld [vmem:[#allocation5 + $0x1d8] sm:$0xff]
    %v10337 = vld [vmem:[#allocation5 + $0x1e0] sm:$0xff]
    %v10338 = vld [vmem:[#allocation5 + $0x1e8] sm:$0xff]
    %v10339 = vld [vmem:[#allocation5 + $0x1f0] sm:$0xff]
    %v10340 = vld [vmem:[#allocation5 + $0x1f8] sm:$0xff]
    %v10341 = vld [vmem:[%s7] sm:$0xf]
    %v10343 = vlaneseq
    %v10344 = vshrl.u32 %v10343, 7
    %v10345 = vsub.s32 0, %v10344
    %v10346 = vrot.slane %v10341, %v10345
    %v10347 = vlaneseq
    %v10348 = vshrl.u32 %v10347, 7
    %v10349 = vsub.s32 1, %v10348
    %v10350 = vrot.slane %v10341, %v10349
    %v10351 = vlaneseq
    %v10352 = vshrl.u32 %v10351, 7
    %v10353 = vsub.s32 2, %v10352
    %v10354 = vrot.slane %v10341, %v10353
    %v10355 = vlaneseq
    %v10356 = vshrl.u32 %v10355, 7
    %v10357 = vsub.s32 3, %v10356
    %v10358 = vrot.slane %v10341, %v10357
    %v10427 = vunpack.c.l.b16 %v10277
    %v10428 = vunpack.c.h.b16 %v10277
    %v10429 = vunpack.c.l.b16 %v10278
    %v10430 = vunpack.c.h.b16 %v10278
    %v10431 = vunpack.c.l.b16 %v10279
    %v10432 = vunpack.c.h.b16 %v10279
    %v10433 = vunpack.c.l.b16 %v10280
    %v10434 = vunpack.c.h.b16 %v10280
    %v10435 = vunpack.c.l.b16 %v10281
    %v10436 = vunpack.c.h.b16 %v10281
    %v10437 = vunpack.c.l.b16 %v10282
    %v10438 = vunpack.c.h.b16 %v10282
    %v10439 = vunpack.c.l.b16 %v10283
    %v10440 = vunpack.c.h.b16 %v10283
    %v10441 = vunpack.c.l.b16 %v10284
    %v10442 = vunpack.c.h.b16 %v10284
    %v10443 = vunpack.c.l.b16 %v10285
    %v10444 = vunpack.c.h.b16 %v10285
    %v10445 = vunpack.c.l.b16 %v10286
    %v10446 = vunpack.c.h.b16 %v10286
    %v10447 = vunpack.c.l.b16 %v10287
    %v10448 = vunpack.c.h.b16 %v10287
    %v10449 = vunpack.c.l.b16 %v10288
    %v10450 = vunpack.c.h.b16 %v10288
    %v10451 = vunpack.c.l.b16 %v10289
    %v10452 = vunpack.c.h.b16 %v10289
    %v10453 = vunpack.c.l.b16 %v10290
    %v10454 = vunpack.c.h.b16 %v10290
    %v10455 = vunpack.c.l.b16 %v10291
    %v10456 = vunpack.c.h.b16 %v10291
    %v10457 = vunpack.c.l.b16 %v10292
    %v10458 = vunpack.c.h.b16 %v10292
    %v10459 = vunpack.c.l.b16 %v10293
    %v10460 = vunpack.c.h.b16 %v10293
    %v10461 = vunpack.c.l.b16 %v10294
    %v10462 = vunpack.c.h.b16 %v10294
    %v10463 = vunpack.c.l.b16 %v10295
    %v10464 = vunpack.c.h.b16 %v10295
    %v10465 = vunpack.c.l.b16 %v10296
    %v10466 = vunpack.c.h.b16 %v10296
    %v10467 = vunpack.c.l.b16 %v10297
    %v10468 = vunpack.c.h.b16 %v10297
    %v10469 = vunpack.c.l.b16 %v10298
    %v10470 = vunpack.c.h.b16 %v10298
    %v10471 = vunpack.c.l.b16 %v10299
    %v10472 = vunpack.c.h.b16 %v10299
    %v10473 = vunpack.c.l.b16 %v10300
    %v10474 = vunpack.c.h.b16 %v10300
    %v10475 = vunpack.c.l.b16 %v10301
    %v10476 = vunpack.c.h.b16 %v10301
    %v10477 = vunpack.c.l.b16 %v10302
    %v10478 = vunpack.c.h.b16 %v10302
    %v10479 = vunpack.c.l.b16 %v10303
    %v10480 = vunpack.c.h.b16 %v10303
    %v10481 = vunpack.c.l.b16 %v10304
    %v10482 = vunpack.c.h.b16 %v10304
    %v10483 = vunpack.c.l.b16 %v10305
    %v10484 = vunpack.c.h.b16 %v10305
    %v10485 = vunpack.c.l.b16 %v10306
    %v10486 = vunpack.c.h.b16 %v10306
    %v10487 = vunpack.c.l.b16 %v10307
    %v10488 = vunpack.c.h.b16 %v10307
    %v10489 = vunpack.c.l.b16 %v10308
    %v10490 = vunpack.c.h.b16 %v10308
    %v10491 = vunpack.c.l.b16 %v10309
    %v10492 = vunpack.c.h.b16 %v10309
    %v10493 = vunpack.c.l.b16 %v10310
    %v10494 = vunpack.c.h.b16 %v10310
    %v10495 = vunpack.c.l.b16 %v10311
    %v10496 = vunpack.c.h.b16 %v10311
    %v10497 = vunpack.c.l.b16 %v10312
    %v10498 = vunpack.c.h.b16 %v10312
    %v10499 = vunpack.c.l.b16 %v10313
    %v10500 = vunpack.c.h.b16 %v10313
    %v10501 = vunpack.c.l.b16 %v10314
    %v10502 = vunpack.c.h.b16 %v10314
    %v10503 = vunpack.c.l.b16 %v10315
    %v10504 = vunpack.c.h.b16 %v10315
    %v10505 = vunpack.c.l.b16 %v10316
    %v10506 = vunpack.c.h.b16 %v10316
    %v10507 = vunpack.c.l.b16 %v10317
    %v10508 = vunpack.c.h.b16 %v10317
    %v10509 = vunpack.c.l.b16 %v10318
    %v10510 = vunpack.c.h.b16 %v10318
    %v10511 = vunpack.c.l.b16 %v10319
    %v10512 = vunpack.c.h.b16 %v10319
    %v10513 = vunpack.c.l.b16 %v10320
    %v10514 = vunpack.c.h.b16 %v10320
    %v10515 = vunpack.c.l.b16 %v10321
    %v10516 = vunpack.c.h.b16 %v10321
    %v10517 = vunpack.c.l.b16 %v10322
    %v10518 = vunpack.c.h.b16 %v10322
    %v10519 = vunpack.c.l.b16 %v10323
    %v10520 = vunpack.c.h.b16 %v10323
    %v10521 = vunpack.c.l.b16 %v10324
    %v10522 = vunpack.c.h.b16 %v10324
    %v10523 = vunpack.c.l.b16 %v10325
    %v10524 = vunpack.c.h.b16 %v10325
    %v10525 = vunpack.c.l.b16 %v10326
    %v10526 = vunpack.c.h.b16 %v10326
    %v10527 = vunpack.c.l.b16 %v10327
    %v10528 = vunpack.c.h.b16 %v10327
    %v10529 = vunpack.c.l.b16 %v10328
    %v10530 = vunpack.c.h.b16 %v10328
    %v10531 = vunpack.c.l.b16 %v10329
    %v10532 = vunpack.c.h.b16 %v10329
    %v10533 = vunpack.c.l.b16 %v10330
    %v10534 = vunpack.c.h.b16 %v10330
    %v10535 = vunpack.c.l.b16 %v10331
    %v10536 = vunpack.c.h.b16 %v10331
    %v10537 = vunpack.c.l.b16 %v10332
    %v10538 = vunpack.c.h.b16 %v10332
    %v10539 = vunpack.c.l.b16 %v10333
    %v10540 = vunpack.c.h.b16 %v10333
    %v10541 = vunpack.c.l.b16 %v10334
    %v10542 = vunpack.c.h.b16 %v10334
    %v10543 = vunpack.c.l.b16 %v10335
    %v10544 = vunpack.c.h.b16 %v10335
    %v10545 = vunpack.c.l.b16 %v10336
    %v10546 = vunpack.c.h.b16 %v10336
    %v10547 = vunpack.c.l.b16 %v10337
    %v10548 = vunpack.c.h.b16 %v10337
    %v10549 = vunpack.c.l.b16 %v10338
    %v10550 = vunpack.c.h.b16 %v10338
    %v10551 = vunpack.c.l.b16 %v10339
    %v10552 = vunpack.c.h.b16 %v10339
    %v10553 = vunpack.c.l.b16 %v10340
    %v10554 = vunpack.c.h.b16 %v10340
    %v10555 = vpack.c.b16 %v10431, %v10427
    %v10556 = vpack.c.b16 %v10432, %v10428
    %v10557 = vpack.c.b16 %v10433, %v10429
    %v10558 = vpack.c.b16 %v10434, %v10430
    %v10559 = vpack.c.b16 %v10439, %v10435
    %v10560 = vpack.c.b16 %v10440, %v10436
    %v10561 = vpack.c.b16 %v10441, %v10437
    %v10562 = vpack.c.b16 %v10442, %v10438
    %v10563 = vpack.c.b16 %v10447, %v10443
    %v10564 = vpack.c.b16 %v10448, %v10444
    %v10565 = vpack.c.b16 %v10449, %v10445
    %v10566 = vpack.c.b16 %v10450, %v10446
    %v10567 = vpack.c.b16 %v10455, %v10451
    %v10568 = vpack.c.b16 %v10456, %v10452
    %v10569 = vpack.c.b16 %v10457, %v10453
    %v10570 = vpack.c.b16 %v10458, %v10454
    %v10571 = vpack.c.b16 %v10463, %v10459
    %v10572 = vpack.c.b16 %v10464, %v10460
    %v10573 = vpack.c.b16 %v10465, %v10461
    %v10574 = vpack.c.b16 %v10466, %v10462
    %v10575 = vpack.c.b16 %v10471, %v10467
    %v10576 = vpack.c.b16 %v10472, %v10468
    %v10577 = vpack.c.b16 %v10473, %v10469
    %v10578 = vpack.c.b16 %v10474, %v10470
    %v10579 = vpack.c.b16 %v10479, %v10475
    %v10580 = vpack.c.b16 %v10480, %v10476
    %v10581 = vpack.c.b16 %v10481, %v10477
    %v10582 = vpack.c.b16 %v10482, %v10478
    %v10583 = vpack.c.b16 %v10487, %v10483
    %v10584 = vpack.c.b16 %v10488, %v10484
    %v10585 = vpack.c.b16 %v10489, %v10485
    %v10586 = vpack.c.b16 %v10490, %v10486
    %v10587 = vpack.c.b16 %v10495, %v10491
    %v10588 = vpack.c.b16 %v10496, %v10492
    %v10589 = vpack.c.b16 %v10497, %v10493
    %v10590 = vpack.c.b16 %v10498, %v10494
    %v10591 = vpack.c.b16 %v10503, %v10499
    %v10592 = vpack.c.b16 %v10504, %v10500
    %v10593 = vpack.c.b16 %v10505, %v10501
    %v10594 = vpack.c.b16 %v10506, %v10502
    %v10595 = vpack.c.b16 %v10511, %v10507
    %v10596 = vpack.c.b16 %v10512, %v10508
    %v10597 = vpack.c.b16 %v10513, %v10509
    %v10598 = vpack.c.b16 %v10514, %v10510
    %v10599 = vpack.c.b16 %v10519, %v10515
    %v10600 = vpack.c.b16 %v10520, %v10516
    %v10601 = vpack.c.b16 %v10521, %v10517
    %v10602 = vpack.c.b16 %v10522, %v10518
    %v10603 = vpack.c.b16 %v10527, %v10523
    %v10604 = vpack.c.b16 %v10528, %v10524
    %v10605 = vpack.c.b16 %v10529, %v10525
    %v10606 = vpack.c.b16 %v10530, %v10526
    %v10607 = vpack.c.b16 %v10535, %v10531
    %v10608 = vpack.c.b16 %v10536, %v10532
    %v10609 = vpack.c.b16 %v10537, %v10533
    %v10610 = vpack.c.b16 %v10538, %v10534
    %v10611 = vpack.c.b16 %v10543, %v10539
    %v10612 = vpack.c.b16 %v10544, %v10540
    %v10613 = vpack.c.b16 %v10545, %v10541
    %v10614 = vpack.c.b16 %v10546, %v10542
    %v10615 = vpack.c.b16 %v10551, %v10547
    %v10616 = vpack.c.b16 %v10552, %v10548
    %v10617 = vpack.c.b16 %v10553, %v10549
    %v10618 = vpack.c.b16 %v10554, %v10550
    %10683 = vmatprep.subr.bf16.mxu0 %v10584
    %10684 = vmatpush1.bf16.msra.mxu0 %v10583
    %10685 = vmatprep.subr.bf16.mxu0 %v10580
    %10686 = vmatpush1.bf16.msra.mxu0 %v10579
    %10687 = vmatprep.subr.bf16.mxu0 %v10576
    %10688 = vmatpush1.bf16.msra.mxu0 %v10575
    %10689 = vmatprep.subr.bf16.mxu0 %v10572
    %10690 = vmatpush1.bf16.msra.mxu0 %v10571
    %10691 = vmatprep.subr.bf16.mxu0 %v10568
    %10692 = vmatpush1.bf16.msra.mxu0 %v10567
    %10693 = vmatprep.subr.bf16.mxu0 %v10564
    %10694 = vmatpush1.bf16.msra.mxu0 %v10563
    %10695 = vmatprep.subr.bf16.mxu0 %v10560
    %10696 = vmatpush1.bf16.msra.mxu0 %v10559
    %10697 = vmatprep.subr.bf16.mxu0 %v10556
    %10698 = vmatpush1.bf16.msra.mxu0 %v10555
    %10699 = vmatprep.subr.bf16.mxu0 %v10616
    %10700 = vmatpush2.bf16.msra.mxu0 %v10615
    %10701 = vmatprep.subr.bf16.mxu0 %v10612
    %10702 = vmatpush2.bf16.msra.mxu0 %v10611
    %10703 = vmatprep.subr.bf16.mxu0 %v10608
    %10704 = vmatpush2.bf16.msra.mxu0 %v10607
    %10705 = vmatprep.subr.bf16.mxu0 %v10604
    %10706 = vmatpush2.bf16.msra.mxu0 %v10603
    %10707 = vmatprep.subr.bf16.mxu0 %v10600
    %10708 = vmatpush2.bf16.msra.mxu0 %v10599
    %10709 = vmatprep.subr.bf16.mxu0 %v10596
    %10710 = vmatpush2.bf16.msra.mxu0 %v10595
    %10711 = vmatprep.subr.bf16.mxu0 %v10592
    %10712 = vmatpush2.bf16.msra.mxu0 %v10591
    %10713 = vmatprep.subr.bf16.mxu0 %v10588
    %10714 = vmatpush2.bf16.msra.mxu0 %v10587
    %10715 = vmatprep.mubr.bf16.mxu0 %v9759
    %10716 = vmatmul.mubr.bf16.gmra.mxu0 %v10276
    %v10717 = vpop.f32.mrf.mxu0
    %v10718 = vadd.f32 %v10346, %v10717
    %v10719 = vpop.f32.mrf.mxu0
    %v10720 = vadd.f32 %v10350, %v10719
    %v10721 = vpop.f32.mrf.mxu0
    %v10722 = vpop.f32.mrf.mxu0
    %10723 = vdwg.mxu0
    %10724 = vmatprep.subr.bf16.mxu0 %v10586
    %10725 = vmatpush1.bf16.msra.mxu0 %v10585
    %10726 = vmatprep.subr.bf16.mxu0 %v10582
    %10727 = vmatpush1.bf16.msra.mxu0 %v10581
    %10728 = vmatprep.subr.bf16.mxu0 %v10578
    %10729 = vmatpush1.bf16.msra.mxu0 %v10577
    %10730 = vmatprep.subr.bf16.mxu0 %v10574
    %10731 = vmatpush1.bf16.msra.mxu0 %v10573
    %10732 = vmatprep.subr.bf16.mxu0 %v10570
    %10733 = vmatpush1.bf16.msra.mxu0 %v10569
    %10734 = vmatprep.subr.bf16.mxu0 %v10566
    %10735 = vmatpush1.bf16.msra.mxu0 %v10565
    %10736 = vmatprep.subr.bf16.mxu0 %v10562
    %10737 = vmatpush1.bf16.msra.mxu0 %v10561
    %10738 = vmatprep.subr.bf16.mxu0 %v10558
    %10739 = vmatpush1.bf16.msra.mxu0 %v10557
    %10740 = vmatprep.subr.bf16.mxu0 %v10618
    %10741 = vmatpush2.bf16.msra.mxu0 %v10617
    %10742 = vmatprep.subr.bf16.mxu0 %v10614
    %10743 = vmatpush2.bf16.msra.mxu0 %v10613
    %10744 = vmatprep.subr.bf16.mxu0 %v10610
    %10745 = vmatpush2.bf16.msra.mxu0 %v10609
    %10746 = vmatprep.subr.bf16.mxu0 %v10606
    %10747 = vmatpush2.bf16.msra.mxu0 %v10605
    %10748 = vmatprep.subr.bf16.mxu0 %v10602
    %10749 = vmatpush2.bf16.msra.mxu0 %v10601
    %10750 = vmatprep.subr.bf16.mxu0 %v10598
    %10751 = vmatpush2.bf16.msra.mxu0 %v10597
    %10752 = vmatprep.subr.bf16.mxu0 %v10594
    %10753 = vmatpush2.bf16.msra.mxu0 %v10593
    %10754 = vmatprep.subr.bf16.mxu0 %v10590
    %10755 = vmatpush2.bf16.msra.mxu0 %v10589
    %10756 = vmatprep.mubr.bf16.mxu0 %v9759
    %10757 = vmatmul.mubr.bf16.gmra.mxu0 %v10276
    %v10758 = vpop.f32.mrf.mxu0
    %v10759 = vadd.f32 %v10354, %v10758
    %v10760 = vpop.f32.mrf.mxu0
    %v10761 = vadd.f32 %v10358, %v10760
    %v10762 = vpop.f32.mrf.mxu0
    %v10763 = vpop.f32.mrf.mxu0
    %10764 = vdwg.mxu0
    %v10765 = vxor.u32 %v10718, 2147483648
    %v10766 = vxor.u32 %v10720, 2147483648
    %v10767 = vxor.u32 %v10759, 2147483648
    %v10768 = vmul.f32 %v10765, 1.442695
    %v10769 = vpow.pop %v10768
    %v10770 = vmul.f32 %v10766, 1.442695
    %v10771 = vpow.pop %v10770
    %v10772 = vmul.f32 %v10767, 1.442695
    %v10773 = vpow.pop %v10772
    %v10774 = vadd.f32 %v10769, 1.0
    %v10775 = vadd.f32 %v10771, 1.0
    %v10776 = vadd.f32 %v10773, 1.0
    %v10777 = vrcp.pop %v10774
    %v10778 = vmul.f32 1.0, %v10777
    %v10779 = vrcp.pop %v10775
    %v10780 = vmul.f32 1.0, %v10779
    %v10781 = vrcp.pop %v10776
    %v10782 = vmul.f32 1.0, %v10781
    %v10783 = vtanh.pop %v10761
    %v10784 = vmul.f32 %v10780, %v9756
    %v10785 = vmul.f32 %v10778, %v10783
    %v10786 = vadd.f32 %v10784, %v10785
    %v10787 = vtanh.pop %v10786
    %v10788 = vmul.f32 %v10782, %v10787
    %v10789 = vpack.c.bf16 %v10788, %v10788
    %v10790 = vpack.c.bf16 %v10272, %v10272
    %v10791 = vld [vmem:[#allocation7] sm:$0xff]
    %v10792 = vld [vmem:[#allocation7 + $0x8] sm:$0xff]
    %v10793 = vld [vmem:[#allocation7 + $0x10] sm:$0xff]
    %v10794 = vld [vmem:[#allocation7 + $0x18] sm:$0xff]
    %v10795 = vld [vmem:[#allocation7 + $0x20] sm:$0xff]
    %v10796 = vld [vmem:[#allocation7 + $0x28] sm:$0xff]
    %v10797 = vld [vmem:[#allocation7 + $0x30] sm:$0xff]
    %v10798 = vld [vmem:[#allocation7 + $0x38] sm:$0xff]
    %v10799 = vld [vmem:[#allocation7 + $0x40] sm:$0xff]
    %v10800 = vld [vmem:[#allocation7 + $0x48] sm:$0xff]
    %v10801 = vld [vmem:[#allocation7 + $0x50] sm:$0xff]
    %v10802 = vld [vmem:[#allocation7 + $0x58] sm:$0xff]
    %v10803 = vld [vmem:[#allocation7 + $0x60] sm:$0xff]
    %v10804 = vld [vmem:[#allocation7 + $0x68] sm:$0xff]
    %v10805 = vld [vmem:[#allocation7 + $0x70] sm:$0xff]
    %v10806 = vld [vmem:[#allocation7 + $0x78] sm:$0xff]
    %v10807 = vld [vmem:[#allocation7 + $0x80] sm:$0xff]
    %v10808 = vld [vmem:[#allocation7 + $0x88] sm:$0xff]
    %v10809 = vld [vmem:[#allocation7 + $0x90] sm:$0xff]
    %v10810 = vld [vmem:[#allocation7 + $0x98] sm:$0xff]
    %v10811 = vld [vmem:[#allocation7 + $0xa0] sm:$0xff]
    %v10812 = vld [vmem:[#allocation7 + $0xa8] sm:$0xff]
    %v10813 = vld [vmem:[#allocation7 + $0xb0] sm:$0xff]
    %v10814 = vld [vmem:[#allocation7 + $0xb8] sm:$0xff]
    %v10815 = vld [vmem:[#allocation7 + $0xc0] sm:$0xff]
    %v10816 = vld [vmem:[#allocation7 + $0xc8] sm:$0xff]
    %v10817 = vld [vmem:[#allocation7 + $0xd0] sm:$0xff]
    %v10818 = vld [vmem:[#allocation7 + $0xd8] sm:$0xff]
    %v10819 = vld [vmem:[#allocation7 + $0xe0] sm:$0xff]
    %v10820 = vld [vmem:[#allocation7 + $0xe8] sm:$0xff]
    %v10821 = vld [vmem:[#allocation7 + $0xf0] sm:$0xff]
    %v10822 = vld [vmem:[#allocation7 + $0xf8] sm:$0xff]
    %v10823 = vld [vmem:[#allocation7 + $0x100] sm:$0xff]
    %v10824 = vld [vmem:[#allocation7 + $0x108] sm:$0xff]
    %v10825 = vld [vmem:[#allocation7 + $0x110] sm:$0xff]
    %v10826 = vld [vmem:[#allocation7 + $0x118] sm:$0xff]
    %v10827 = vld [vmem:[#allocation7 + $0x120] sm:$0xff]
    %v10828 = vld [vmem:[#allocation7 + $0x128] sm:$0xff]
    %v10829 = vld [vmem:[#allocation7 + $0x130] sm:$0xff]
    %v10830 = vld [vmem:[#allocation7 + $0x138] sm:$0xff]
    %v10831 = vld [vmem:[#allocation7 + $0x140] sm:$0xff]
    %v10832 = vld [vmem:[#allocation7 + $0x148] sm:$0xff]
    %v10833 = vld [vmem:[#allocation7 + $0x150] sm:$0xff]
    %v10834 = vld [vmem:[#allocation7 + $0x158] sm:$0xff]
    %v10835 = vld [vmem:[#allocation7 + $0x160] sm:$0xff]
    %v10836 = vld [vmem:[#allocation7 + $0x168] sm:$0xff]
    %v10837 = vld [vmem:[#allocation7 + $0x170] sm:$0xff]
    %v10838 = vld [vmem:[#allocation7 + $0x178] sm:$0xff]
    %v10839 = vld [vmem:[#allocation7 + $0x180] sm:$0xff]
    %v10840 = vld [vmem:[#allocation7 + $0x188] sm:$0xff]
    %v10841 = vld [vmem:[#allocation7 + $0x190] sm:$0xff]
    %v10842 = vld [vmem:[#allocation7 + $0x198] sm:$0xff]
    %v10843 = vld [vmem:[#allocation7 + $0x1a0] sm:$0xff]
    %v10844 = vld [vmem:[#allocation7 + $0x1a8] sm:$0xff]
    %v10845 = vld [vmem:[#allocation7 + $0x1b0] sm:$0xff]
    %v10846 = vld [vmem:[#allocation7 + $0x1b8] sm:$0xff]
    %v10847 = vld [vmem:[#allocation7 + $0x1c0] sm:$0xff]
    %v10848 = vld [vmem:[#allocation7 + $0x1c8] sm:$0xff]
    %v10849 = vld [vmem:[#allocation7 + $0x1d0] sm:$0xff]
    %v10850 = vld [vmem:[#allocation7 + $0x1d8] sm:$0xff]
    %v10851 = vld [vmem:[#allocation7 + $0x1e0] sm:$0xff]
    %v10852 = vld [vmem:[#allocation7 + $0x1e8] sm:$0xff]
    %v10853 = vld [vmem:[#allocation7 + $0x1f0] sm:$0xff]
    %v10854 = vld [vmem:[#allocation7 + $0x1f8] sm:$0xff]
    %v10855 = vld [vmem:[%s9] sm:$0xf]
    %v10857 = vlaneseq
    %v10858 = vshrl.u32 %v10857, 7
    %v10859 = vsub.s32 0, %v10858
    %v10860 = vrot.slane %v10855, %v10859
    %v10861 = vlaneseq
    %v10862 = vshrl.u32 %v10861, 7
    %v10863 = vsub.s32 1, %v10862
    %v10864 = vrot.slane %v10855, %v10863
    %v10865 = vlaneseq
    %v10866 = vshrl.u32 %v10865, 7
    %v10867 = vsub.s32 2, %v10866
    %v10868 = vrot.slane %v10855, %v10867
    %v10869 = vlaneseq
    %v10870 = vshrl.u32 %v10869, 7
    %v10871 = vsub.s32 3, %v10870
    %v10872 = vrot.slane %v10855, %v10871
    %v10941 = vunpack.c.l.b16 %v10791
    %v10942 = vunpack.c.h.b16 %v10791
    %v10943 = vunpack.c.l.b16 %v10792
    %v10944 = vunpack.c.h.b16 %v10792
    %v10945 = vunpack.c.l.b16 %v10793
    %v10946 = vunpack.c.h.b16 %v10793
    %v10947 = vunpack.c.l.b16 %v10794
    %v10948 = vunpack.c.h.b16 %v10794
    %v10949 = vunpack.c.l.b16 %v10795
    %v10950 = vunpack.c.h.b16 %v10795
    %v10951 = vunpack.c.l.b16 %v10796
    %v10952 = vunpack.c.h.b16 %v10796
    %v10953 = vunpack.c.l.b16 %v10797
    %v10954 = vunpack.c.h.b16 %v10797
    %v10955 = vunpack.c.l.b16 %v10798
    %v10956 = vunpack.c.h.b16 %v10798
    %v10957 = vunpack.c.l.b16 %v10799
    %v10958 = vunpack.c.h.b16 %v10799
    %v10959 = vunpack.c.l.b16 %v10800
    %v10960 = vunpack.c.h.b16 %v10800
    %v10961 = vunpack.c.l.b16 %v10801
    %v10962 = vunpack.c.h.b16 %v10801
    %v10963 = vunpack.c.l.b16 %v10802
    %v10964 = vunpack.c.h.b16 %v10802
    %v10965 = vunpack.c.l.b16 %v10803
    %v10966 = vunpack.c.h.b16 %v10803
    %v10967 = vunpack.c.l.b16 %v10804
    %v10968 = vunpack.c.h.b16 %v10804
    %v10969 = vunpack.c.l.b16 %v10805
    %v10970 = vunpack.c.h.b16 %v10805
    %v10971 = vunpack.c.l.b16 %v10806
    %v10972 = vunpack.c.h.b16 %v10806
    %v10973 = vunpack.c.l.b16 %v10807
    %v10974 = vunpack.c.h.b16 %v10807
    %v10975 = vunpack.c.l.b16 %v10808
    %v10976 = vunpack.c.h.b16 %v10808
    %v10977 = vunpack.c.l.b16 %v10809
    %v10978 = vunpack.c.h.b16 %v10809
    %v10979 = vunpack.c.l.b16 %v10810
    %v10980 = vunpack.c.h.b16 %v10810
    %v10981 = vunpack.c.l.b16 %v10811
    %v10982 = vunpack.c.h.b16 %v10811
    %v10983 = vunpack.c.l.b16 %v10812
    %v10984 = vunpack.c.h.b16 %v10812
    %v10985 = vunpack.c.l.b16 %v10813
    %v10986 = vunpack.c.h.b16 %v10813
    %v10987 = vunpack.c.l.b16 %v10814
    %v10988 = vunpack.c.h.b16 %v10814
    %v10989 = vunpack.c.l.b16 %v10815
    %v10990 = vunpack.c.h.b16 %v10815
    %v10991 = vunpack.c.l.b16 %v10816
    %v10992 = vunpack.c.h.b16 %v10816
    %v10993 = vunpack.c.l.b16 %v10817
    %v10994 = vunpack.c.h.b16 %v10817
    %v10995 = vunpack.c.l.b16 %v10818
    %v10996 = vunpack.c.h.b16 %v10818
    %v10997 = vunpack.c.l.b16 %v10819
    %v10998 = vunpack.c.h.b16 %v10819
    %v10999 = vunpack.c.l.b16 %v10820
    %v11000 = vunpack.c.h.b16 %v10820
    %v11001 = vunpack.c.l.b16 %v10821
    %v11002 = vunpack.c.h.b16 %v10821
    %v11003 = vunpack.c.l.b16 %v10822
    %v11004 = vunpack.c.h.b16 %v10822
    %v11005 = vunpack.c.l.b16 %v10823
    %v11006 = vunpack.c.h.b16 %v10823
    %v11007 = vunpack.c.l.b16 %v10824
    %v11008 = vunpack.c.h.b16 %v10824
    %v11009 = vunpack.c.l.b16 %v10825
    %v11010 = vunpack.c.h.b16 %v10825
    %v11011 = vunpack.c.l.b16 %v10826
    %v11012 = vunpack.c.h.b16 %v10826
    %v11013 = vunpack.c.l.b16 %v10827
    %v11014 = vunpack.c.h.b16 %v10827
    %v11015 = vunpack.c.l.b16 %v10828
    %v11016 = vunpack.c.h.b16 %v10828
    %v11017 = vunpack.c.l.b16 %v10829
    %v11018 = vunpack.c.h.b16 %v10829
    %v11019 = vunpack.c.l.b16 %v10830
    %v11020 = vunpack.c.h.b16 %v10830
    %v11021 = vunpack.c.l.b16 %v10831
    %v11022 = vunpack.c.h.b16 %v10831
    %v11023 = vunpack.c.l.b16 %v10832
    %v11024 = vunpack.c.h.b16 %v10832
    %v11025 = vunpack.c.l.b16 %v10833
    %v11026 = vunpack.c.h.b16 %v10833
    %v11027 = vunpack.c.l.b16 %v10834
    %v11028 = vunpack.c.h.b16 %v10834
    %v11029 = vunpack.c.l.b16 %v10835
    %v11030 = vunpack.c.h.b16 %v10835
    %v11031 = vunpack.c.l.b16 %v10836
    %v11032 = vunpack.c.h.b16 %v10836
    %v11033 = vunpack.c.l.b16 %v10837
    %v11034 = vunpack.c.h.b16 %v10837
    %v11035 = vunpack.c.l.b16 %v10838
    %v11036 = vunpack.c.h.b16 %v10838
    %v11037 = vunpack.c.l.b16 %v10839
    %v11038 = vunpack.c.h.b16 %v10839
    %v11039 = vunpack.c.l.b16 %v10840
    %v11040 = vunpack.c.h.b16 %v10840
    %v11041 = vunpack.c.l.b16 %v10841
    %v11042 = vunpack.c.h.b16 %v10841
    %v11043 = vunpack.c.l.b16 %v10842
    %v11044 = vunpack.c.h.b16 %v10842
    %v11045 = vunpack.c.l.b16 %v10843
    %v11046 = vunpack.c.h.b16 %v10843
    %v11047 = vunpack.c.l.b16 %v10844
    %v11048 = vunpack.c.h.b16 %v10844
    %v11049 = vunpack.c.l.b16 %v10845
    %v11050 = vunpack.c.h.b16 %v10845
    %v11051 = vunpack.c.l.b16 %v10846
    %v11052 = vunpack.c.h.b16 %v10846
    %v11053 = vunpack.c.l.b16 %v10847
    %v11054 = vunpack.c.h.b16 %v10847
    %v11055 = vunpack.c.l.b16 %v10848
    %v11056 = vunpack.c.h.b16 %v10848
    %v11057 = vunpack.c.l.b16 %v10849
    %v11058 = vunpack.c.h.b16 %v10849
    %v11059 = vunpack.c.l.b16 %v10850
    %v11060 = vunpack.c.h.b16 %v10850
    %v11061 = vunpack.c.l.b16 %v10851
    %v11062 = vunpack.c.h.b16 %v10851
    %v11063 = vunpack.c.l.b16 %v10852
    %v11064 = vunpack.c.h.b16 %v10852
    %v11065 = vunpack.c.l.b16 %v10853
    %v11066 = vunpack.c.h.b16 %v10853
    %v11067 = vunpack.c.l.b16 %v10854
    %v11068 = vunpack.c.h.b16 %v10854
    %v11069 = vpack.c.b16 %v10945, %v10941
    %v11070 = vpack.c.b16 %v10946, %v10942
    %v11071 = vpack.c.b16 %v10947, %v10943
    %v11072 = vpack.c.b16 %v10948, %v10944
    %v11073 = vpack.c.b16 %v10953, %v10949
    %v11074 = vpack.c.b16 %v10954, %v10950
    %v11075 = vpack.c.b16 %v10955, %v10951
    %v11076 = vpack.c.b16 %v10956, %v10952
    %v11077 = vpack.c.b16 %v10961, %v10957
    %v11078 = vpack.c.b16 %v10962, %v10958
    %v11079 = vpack.c.b16 %v10963, %v10959
    %v11080 = vpack.c.b16 %v10964, %v10960
    %v11081 = vpack.c.b16 %v10969, %v10965
    %v11082 = vpack.c.b16 %v10970, %v10966
    %v11083 = vpack.c.b16 %v10971, %v10967
    %v11084 = vpack.c.b16 %v10972, %v10968
    %v11085 = vpack.c.b16 %v10977, %v10973
    %v11086 = vpack.c.b16 %v10978, %v10974
    %v11087 = vpack.c.b16 %v10979, %v10975
    %v11088 = vpack.c.b16 %v10980, %v10976
    %v11089 = vpack.c.b16 %v10985, %v10981
    %v11090 = vpack.c.b16 %v10986, %v10982
    %v11091 = vpack.c.b16 %v10987, %v10983
    %v11092 = vpack.c.b16 %v10988, %v10984
    %v11093 = vpack.c.b16 %v10993, %v10989
    %v11094 = vpack.c.b16 %v10994, %v10990
    %v11095 = vpack.c.b16 %v10995, %v10991
    %v11096 = vpack.c.b16 %v10996, %v10992
    %v11097 = vpack.c.b16 %v11001, %v10997
    %v11098 = vpack.c.b16 %v11002, %v10998
    %v11099 = vpack.c.b16 %v11003, %v10999
    %v11100 = vpack.c.b16 %v11004, %v11000
    %v11101 = vpack.c.b16 %v11009, %v11005
    %v11102 = vpack.c.b16 %v11010, %v11006
    %v11103 = vpack.c.b16 %v11011, %v11007
    %v11104 = vpack.c.b16 %v11012, %v11008
    %v11105 = vpack.c.b16 %v11017, %v11013
    %v11106 = vpack.c.b16 %v11018, %v11014
    %v11107 = vpack.c.b16 %v11019, %v11015
    %v11108 = vpack.c.b16 %v11020, %v11016
    %v11109 = vpack.c.b16 %v11025, %v11021
    %v11110 = vpack.c.b16 %v11026, %v11022
    %v11111 = vpack.c.b16 %v11027, %v11023
    %v11112 = vpack.c.b16 %v11028, %v11024
    %v11113 = vpack.c.b16 %v11033, %v11029
    %v11114 = vpack.c.b16 %v11034, %v11030
    %v11115 = vpack.c.b16 %v11035, %v11031
    %v11116 = vpack.c.b16 %v11036, %v11032
    %v11117 = vpack.c.b16 %v11041, %v11037
    %v11118 = vpack.c.b16 %v11042, %v11038
    %v11119 = vpack.c.b16 %v11043, %v11039
    %v11120 = vpack.c.b16 %v11044, %v11040
    %v11121 = vpack.c.b16 %v11049, %v11045
    %v11122 = vpack.c.b16 %v11050, %v11046
    %v11123 = vpack.c.b16 %v11051, %v11047
    %v11124 = vpack.c.b16 %v11052, %v11048
    %v11125 = vpack.c.b16 %v11057, %v11053
    %v11126 = vpack.c.b16 %v11058, %v11054
    %v11127 = vpack.c.b16 %v11059, %v11055
    %v11128 = vpack.c.b16 %v11060, %v11056
    %v11129 = vpack.c.b16 %v11065, %v11061
    %v11130 = vpack.c.b16 %v11066, %v11062
    %v11131 = vpack.c.b16 %v11067, %v11063
    %v11132 = vpack.c.b16 %v11068, %v11064
    %11197 = vmatprep.subr.bf16.mxu0 %v11098
    %11198 = vmatpush1.bf16.msra.mxu0 %v11097
    %11199 = vmatprep.subr.bf16.mxu0 %v11094
    %11200 = vmatpush1.bf16.msra.mxu0 %v11093
    %11201 = vmatprep.subr.bf16.mxu0 %v11090
    %11202 = vmatpush1.bf16.msra.mxu0 %v11089
    %11203 = vmatprep.subr.bf16.mxu0 %v11086
    %11204 = vmatpush1.bf16.msra.mxu0 %v11085
    %11205 = vmatprep.subr.bf16.mxu0 %v11082
    %11206 = vmatpush1.bf16.msra.mxu0 %v11081
    %11207 = vmatprep.subr.bf16.mxu0 %v11078
    %11208 = vmatpush1.bf16.msra.mxu0 %v11077
    %11209 = vmatprep.subr.bf16.mxu0 %v11074
    %11210 = vmatpush1.bf16.msra.mxu0 %v11073
    %11211 = vmatprep.subr.bf16.mxu0 %v11070
    %11212 = vmatpush1.bf16.msra.mxu0 %v11069
    %11213 = vmatprep.subr.bf16.mxu0 %v11130
    %11214 = vmatpush2.bf16.msra.mxu0 %v11129
    %11215 = vmatprep.subr.bf16.mxu0 %v11126
    %11216 = vmatpush2.bf16.msra.mxu0 %v11125
    %11217 = vmatprep.subr.bf16.mxu0 %v11122
    %11218 = vmatpush2.bf16.msra.mxu0 %v11121
    %11219 = vmatprep.subr.bf16.mxu0 %v11118
    %11220 = vmatpush2.bf16.msra.mxu0 %v11117
    %11221 = vmatprep.subr.bf16.mxu0 %v11114
    %11222 = vmatpush2.bf16.msra.mxu0 %v11113
    %11223 = vmatprep.subr.bf16.mxu0 %v11110
    %11224 = vmatpush2.bf16.msra.mxu0 %v11109
    %11225 = vmatprep.subr.bf16.mxu0 %v11106
    %11226 = vmatpush2.bf16.msra.mxu0 %v11105
    %11227 = vmatprep.subr.bf16.mxu0 %v11102
    %11228 = vmatpush2.bf16.msra.mxu0 %v11101
    %11229 = vmatprep.mubr.bf16.mxu0 %v10790
    %11230 = vmatmul.mubr.bf16.gmra.mxu0 %v10789
    %v11231 = vpop.f32.mrf.mxu0
    %v11232 = vadd.f32 %v10860, %v11231
    %v11233 = vpop.f32.mrf.mxu0
    %v11234 = vadd.f32 %v10864, %v11233
    %v11235 = vpop.f32.mrf.mxu0
    %v11236 = vpop.f32.mrf.mxu0
    %11237 = vdwg.mxu0
    %11238 = vmatprep.subr.bf16.mxu0 %v11100
    %11239 = vmatpush1.bf16.msra.mxu0 %v11099
    %11240 = vmatprep.subr.bf16.mxu0 %v11096
    %11241 = vmatpush1.bf16.msra.mxu0 %v11095
    %11242 = vmatprep.subr.bf16.mxu0 %v11092
    %11243 = vmatpush1.bf16.msra.mxu0 %v11091
    %11244 = vmatprep.subr.bf16.mxu0 %v11088
    %11245 = vmatpush1.bf16.msra.mxu0 %v11087
    %11246 = vmatprep.subr.bf16.mxu0 %v11084
    %11247 = vmatpush1.bf16.msra.mxu0 %v11083
    %11248 = vmatprep.subr.bf16.mxu0 %v11080
    %11249 = vmatpush1.bf16.msra.mxu0 %v11079
    %11250 = vmatprep.subr.bf16.mxu0 %v11076
    %11251 = vmatpush1.bf16.msra.mxu0 %v11075
    %11252 = vmatprep.subr.bf16.mxu0 %v11072
    %11253 = vmatpush1.bf16.msra.mxu0 %v11071
    %11254 = vmatprep.subr.bf16.mxu0 %v11132
    %11255 = vmatpush2.bf16.msra.mxu0 %v11131
    %11256 = vmatprep.subr.bf16.mxu0 %v11128
    %11257 = vmatpush2.bf16.msra.mxu0 %v11127
    %11258 = vmatprep.subr.bf16.mxu0 %v11124
    %11259 = vmatpush2.bf16.msra.mxu0 %v11123
    %11260 = vmatprep.subr.bf16.mxu0 %v11120
    %11261 = vmatpush2.bf16.msra.mxu0 %v11119
    %11262 = vmatprep.subr.bf16.mxu0 %v11116
    %11263 = vmatpush2.bf16.msra.mxu0 %v11115
    %11264 = vmatprep.subr.bf16.mxu0 %v11112
    %11265 = vmatpush2.bf16.msra.mxu0 %v11111
    %11266 = vmatprep.subr.bf16.mxu0 %v11108
    %11267 = vmatpush2.bf16.msra.mxu0 %v11107
    %11268 = vmatprep.subr.bf16.mxu0 %v11104
    %11269 = vmatpush2.bf16.msra.mxu0 %v11103
    %11270 = vmatprep.mubr.bf16.mxu0 %v10790
    %11271 = vmatmul.mubr.bf16.gmra.mxu0 %v10789
    %v11272 = vpop.f32.mrf.mxu0
    %v11273 = vadd.f32 %v10868, %v11272
    %v11274 = vpop.f32.mrf.mxu0
    %v11275 = vadd.f32 %v10872, %v11274
    %v11276 = vpop.f32.mrf.mxu0
    %v11277 = vpop.f32.mrf.mxu0
    %11278 = vdwg.mxu0
    %v11279 = vxor.u32 %v11232, 2147483648
    %v11280 = vxor.u32 %v11234, 2147483648
    %v11281 = vxor.u32 %v11273, 2147483648
    %v11282 = vmul.f32 %v11279, 1.442695
    %v11283 = vpow.pop %v11282
    %v11284 = vmul.f32 %v11280, 1.442695
    %v11285 = vpow.pop %v11284
    %v11286 = vmul.f32 %v11281, 1.442695
    %v11287 = vpow.pop %v11286
    %v11288 = vadd.f32 %v11283, 1.0
    %v11289 = vadd.f32 %v11285, 1.0
    %v11290 = vadd.f32 %v11287, 1.0
    %v11291 = vrcp.pop %v11288
    %v11292 = vmul.f32 1.0, %v11291
    %v11293 = vrcp.pop %v11289
    %v11294 = vmul.f32 1.0, %v11293
    %v11295 = vrcp.pop %v11290
    %v11296 = vmul.f32 1.0, %v11295
    %v11297 = vtanh.pop %v11275
    %v11298 = vmul.f32 %v11294, %v10270
    %v11299 = vmul.f32 %v11292, %v11297
    %v11300 = vadd.f32 %v11298, %v11299
    %v11301 = vtanh.pop %v11300
    %v11302 = vmul.f32 %v11296, %v11301
    %s11303 = scalar_lea.vmem [#allocation2], 56
    %11304 = vst [vmem:[%s11303] sm:$0xff] %v11302
    %v11305 = vld [vmem:[#allocation2] sm:$0xff]
    %v11306 = vld [vmem:[#allocation2 + $0x8] sm:$0xff]
    %v11307 = vld [vmem:[#allocation2 + $0x10] sm:$0xff]
    %v11308 = vld [vmem:[#allocation2 + $0x18] sm:$0xff]
    %v11309 = vld [vmem:[#allocation2 + $0x20] sm:$0xff]
    %v11310 = vld [vmem:[#allocation2 + $0x28] sm:$0xff]
    %v11311 = vld [vmem:[#allocation2 + $0x30] sm:$0xff]
    %v11312 = vld [vmem:[#allocation2 + $0x38] sm:$0xff]
    %v11313 = vpack.c.bf16 %v11306, %v11305
    %v11314 = vpack.c.bf16 %v11308, %v11307
    %v11315 = vpack.c.bf16 %v11310, %v11309
    %v11316 = vpack.c.bf16 %v11312, %v11311
    %v11317 = vld [vmem:[#allocation8] sm:$0xff]
    %v11318 = vld [vmem:[#allocation8 + $0x8] sm:$0xff]
    %v11319 = vld [vmem:[#allocation8 + $0x10] sm:$0xff]
    %v11320 = vld [vmem:[#allocation8 + $0x18] sm:$0xff]
    %v11321 = vld [vmem:[#allocation8 + $0x20] sm:$0xff]
    %v11322 = vld [vmem:[#allocation8 + $0x28] sm:$0xff]
    %v11323 = vld [vmem:[#allocation8 + $0x30] sm:$0xff]
    %v11324 = vld [vmem:[#allocation8 + $0x38] sm:$0xff]
    %v11325 = vld [vmem:[#allocation8 + $0x40] sm:$0xff]
    %v11326 = vld [vmem:[#allocation8 + $0x48] sm:$0xff]
    %v11327 = vld [vmem:[#allocation8 + $0x50] sm:$0xff]
    %v11328 = vld [vmem:[#allocation8 + $0x58] sm:$0xff]
    %v11329 = vld [vmem:[#allocation8 + $0x60] sm:$0xff]
    %v11330 = vld [vmem:[#allocation8 + $0x68] sm:$0xff]
    %v11331 = vld [vmem:[#allocation8 + $0x70] sm:$0xff]
    %v11332 = vld [vmem:[#allocation8 + $0x78] sm:$0xff]
    %v11333 = vld [vmem:[#allocation8 + $0x80] sm:$0xff]
    %v11334 = vld [vmem:[#allocation8 + $0x88] sm:$0xff]
    %v11335 = vld [vmem:[#allocation8 + $0x90] sm:$0xff]
    %v11336 = vld [vmem:[#allocation8 + $0x98] sm:$0xff]
    %v11337 = vld [vmem:[#allocation8 + $0xa0] sm:$0xff]
    %v11338 = vld [vmem:[#allocation8 + $0xa8] sm:$0xff]
    %v11339 = vld [vmem:[#allocation8 + $0xb0] sm:$0xff]
    %v11340 = vld [vmem:[#allocation8 + $0xb8] sm:$0xff]
    %v11341 = vld [vmem:[#allocation8 + $0xc0] sm:$0xff]
    %v11342 = vld [vmem:[#allocation8 + $0xc8] sm:$0xff]
    %v11343 = vld [vmem:[#allocation8 + $0xd0] sm:$0xff]
    %v11344 = vld [vmem:[#allocation8 + $0xd8] sm:$0xff]
    %v11345 = vld [vmem:[#allocation8 + $0xe0] sm:$0xff]
    %v11346 = vld [vmem:[#allocation8 + $0xe8] sm:$0xff]
    %v11347 = vld [vmem:[#allocation8 + $0xf0] sm:$0xff]
    %v11348 = vld [vmem:[#allocation8 + $0xf8] sm:$0xff]
    %v11349 = vld [vmem:[%s11] sm:$0xf]
    %v11351 = vlaneseq
    %v11352 = vshrl.u32 %v11351, 7
    %v11353 = vsub.s32 0, %v11352
    %v11354 = vrot.slane %v11349, %v11353
    %v11355 = vlaneseq
    %v11356 = vshrl.u32 %v11355, 7
    %v11357 = vsub.s32 1, %v11356
    %v11358 = vrot.slane %v11349, %v11357
    %v11359 = vlaneseq
    %v11360 = vshrl.u32 %v11359, 7
    %v11361 = vsub.s32 2, %v11360
    %v11362 = vrot.slane %v11349, %v11361
    %v11363 = vlaneseq
    %v11364 = vshrl.u32 %v11363, 7
    %v11365 = vsub.s32 3, %v11364
    %v11366 = vrot.slane %v11349, %v11365
    %v11403 = vunpack.c.l.b16 %v11317
    %v11404 = vunpack.c.h.b16 %v11317
    %v11405 = vunpack.c.l.b16 %v11318
    %v11406 = vunpack.c.h.b16 %v11318
    %v11407 = vunpack.c.l.b16 %v11319
    %v11408 = vunpack.c.h.b16 %v11319
    %v11409 = vunpack.c.l.b16 %v11320
    %v11410 = vunpack.c.h.b16 %v11320
    %v11411 = vunpack.c.l.b16 %v11321
    %v11412 = vunpack.c.h.b16 %v11321
    %v11413 = vunpack.c.l.b16 %v11322
    %v11414 = vunpack.c.h.b16 %v11322
    %v11415 = vunpack.c.l.b16 %v11323
    %v11416 = vunpack.c.h.b16 %v11323
    %v11417 = vunpack.c.l.b16 %v11324
    %v11418 = vunpack.c.h.b16 %v11324
    %v11419 = vunpack.c.l.b16 %v11325
    %v11420 = vunpack.c.h.b16 %v11325
    %v11421 = vunpack.c.l.b16 %v11326
    %v11422 = vunpack.c.h.b16 %v11326
    %v11423 = vunpack.c.l.b16 %v11327
    %v11424 = vunpack.c.h.b16 %v11327
    %v11425 = vunpack.c.l.b16 %v11328
    %v11426 = vunpack.c.h.b16 %v11328
    %v11427 = vunpack.c.l.b16 %v11329
    %v11428 = vunpack.c.h.b16 %v11329
    %v11429 = vunpack.c.l.b16 %v11330
    %v11430 = vunpack.c.h.b16 %v11330
    %v11431 = vunpack.c.l.b16 %v11331
    %v11432 = vunpack.c.h.b16 %v11331
    %v11433 = vunpack.c.l.b16 %v11332
    %v11434 = vunpack.c.h.b16 %v11332
    %v11435 = vunpack.c.l.b16 %v11333
    %v11436 = vunpack.c.h.b16 %v11333
    %v11437 = vunpack.c.l.b16 %v11334
    %v11438 = vunpack.c.h.b16 %v11334
    %v11439 = vunpack.c.l.b16 %v11335
    %v11440 = vunpack.c.h.b16 %v11335
    %v11441 = vunpack.c.l.b16 %v11336
    %v11442 = vunpack.c.h.b16 %v11336
    %v11443 = vunpack.c.l.b16 %v11337
    %v11444 = vunpack.c.h.b16 %v11337
    %v11445 = vunpack.c.l.b16 %v11338
    %v11446 = vunpack.c.h.b16 %v11338
    %v11447 = vunpack.c.l.b16 %v11339
    %v11448 = vunpack.c.h.b16 %v11339
    %v11449 = vunpack.c.l.b16 %v11340
    %v11450 = vunpack.c.h.b16 %v11340
    %v11451 = vunpack.c.l.b16 %v11341
    %v11452 = vunpack.c.h.b16 %v11341
    %v11453 = vunpack.c.l.b16 %v11342
    %v11454 = vunpack.c.h.b16 %v11342
    %v11455 = vunpack.c.l.b16 %v11343
    %v11456 = vunpack.c.h.b16 %v11343
    %v11457 = vunpack.c.l.b16 %v11344
    %v11458 = vunpack.c.h.b16 %v11344
    %v11459 = vunpack.c.l.b16 %v11345
    %v11460 = vunpack.c.h.b16 %v11345
    %v11461 = vunpack.c.l.b16 %v11346
    %v11462 = vunpack.c.h.b16 %v11346
    %v11463 = vunpack.c.l.b16 %v11347
    %v11464 = vunpack.c.h.b16 %v11347
    %v11465 = vunpack.c.l.b16 %v11348
    %v11466 = vunpack.c.h.b16 %v11348
    %v11467 = vpack.c.b16 %v11407, %v11403
    %v11468 = vpack.c.b16 %v11408, %v11404
    %v11469 = vpack.c.b16 %v11409, %v11405
    %v11470 = vpack.c.b16 %v11410, %v11406
    %v11471 = vpack.c.b16 %v11415, %v11411
    %v11472 = vpack.c.b16 %v11416, %v11412
    %v11473 = vpack.c.b16 %v11417, %v11413
    %v11474 = vpack.c.b16 %v11418, %v11414
    %v11475 = vpack.c.b16 %v11423, %v11419
    %v11476 = vpack.c.b16 %v11424, %v11420
    %v11477 = vpack.c.b16 %v11425, %v11421
    %v11478 = vpack.c.b16 %v11426, %v11422
    %v11479 = vpack.c.b16 %v11431, %v11427
    %v11480 = vpack.c.b16 %v11432, %v11428
    %v11481 = vpack.c.b16 %v11433, %v11429
    %v11482 = vpack.c.b16 %v11434, %v11430
    %v11483 = vpack.c.b16 %v11439, %v11435
    %v11484 = vpack.c.b16 %v11440, %v11436
    %v11485 = vpack.c.b16 %v11441, %v11437
    %v11486 = vpack.c.b16 %v11442, %v11438
    %v11487 = vpack.c.b16 %v11447, %v11443
    %v11488 = vpack.c.b16 %v11448, %v11444
    %v11489 = vpack.c.b16 %v11449, %v11445
    %v11490 = vpack.c.b16 %v11450, %v11446
    %v11491 = vpack.c.b16 %v11455, %v11451
    %v11492 = vpack.c.b16 %v11456, %v11452
    %v11493 = vpack.c.b16 %v11457, %v11453
    %v11494 = vpack.c.b16 %v11458, %v11454
    %v11495 = vpack.c.b16 %v11463, %v11459
    %v11496 = vpack.c.b16 %v11464, %v11460
    %v11497 = vpack.c.b16 %v11465, %v11461
    %v11498 = vpack.c.b16 %v11466, %v11462
    %11531 = vmatprep.subr.bf16.mxu0 %v11496
    %11532 = vmatpush1.bf16.msra.mxu0 %v11495
    %11533 = vmatprep.subr.bf16.mxu0 %v11492
    %11534 = vmatpush1.bf16.msra.mxu0 %v11491
    %11535 = vmatprep.subr.bf16.mxu0 %v11488
    %11536 = vmatpush1.bf16.msra.mxu0 %v11487
    %11537 = vmatprep.subr.bf16.mxu0 %v11484
    %11538 = vmatpush1.bf16.msra.mxu0 %v11483
    %11539 = vmatprep.subr.bf16.mxu0 %v11480
    %11540 = vmatpush1.bf16.msra.mxu0 %v11479
    %11541 = vmatprep.subr.bf16.mxu0 %v11476
    %11542 = vmatpush1.bf16.msra.mxu0 %v11475
    %11543 = vmatprep.subr.bf16.mxu0 %v11472
    %11544 = vmatpush1.bf16.msra.mxu0 %v11471
    %11545 = vmatprep.subr.bf16.mxu0 %v11468
    %11546 = vmatpush1.bf16.msra.mxu0 %v11467
    %11547 = vmatprep.subr.bf16.mxu0 0
    %11548 = vmatpush2.bf16.msra.mxu0 0
    %11549 = vmatprep.subr.bf16.mxu0 0
    %11550 = vmatpush2.bf16.msra.mxu0 0
    %11551 = vmatprep.subr.bf16.mxu0 0
    %11552 = vmatpush2.bf16.msra.mxu0 0
    %11553 = vmatprep.subr.bf16.mxu0 0
    %11554 = vmatpush2.bf16.msra.mxu0 0
    %11555 = vmatprep.subr.bf16.mxu0 0
    %11556 = vmatpush2.bf16.msra.mxu0 0
    %11557 = vmatprep.subr.bf16.mxu0 0
    %11558 = vmatpush2.bf16.msra.mxu0 0
    %11559 = vmatprep.subr.bf16.mxu0 0
    %11560 = vmatpush2.bf16.msra.mxu0 0
    %11561 = vmatprep.subr.bf16.mxu0 0
    %11562 = vmatpush2.bf16.msra.mxu0 0
    %11563 = vmatprep.mubr.bf16.mxu0 0
    %11564 = vmatmul.mubr.bf16.gmra.mxu0 %v11313
    %v11565 = vpop.f32.mrf.mxu0
    %v11566 = vadd.f32 %v11354, %v11565
    %v11567 = vpop.f32.mrf.mxu0
    %v11568 = vadd.f32 %v11358, %v11567
    %v11569 = vpop.f32.mrf.mxu0
    %v11570 = vadd.f32 %v11354, %v11569
    %v11571 = vpop.f32.mrf.mxu0
    %v11572 = vadd.f32 %v11358, %v11571
    %11573 = vmatprep.mubr.bf16.mxu0 0
    %11574 = vmatmul.mubr.bf16.gmra.mxu0 %v11314
    %v11575 = vpop.f32.mrf.mxu0
    %v11576 = vadd.f32 %v11354, %v11575
    %v11577 = vpop.f32.mrf.mxu0
    %v11578 = vadd.f32 %v11358, %v11577
    %v11579 = vpop.f32.mrf.mxu0
    %v11580 = vadd.f32 %v11354, %v11579
    %v11581 = vpop.f32.mrf.mxu0
    %v11582 = vadd.f32 %v11358, %v11581
    %11583 = vmatprep.mubr.bf16.mxu0 0
    %11584 = vmatmul.mubr.bf16.gmra.mxu0 %v11315
    %v11585 = vpop.f32.mrf.mxu0
    %v11586 = vadd.f32 %v11354, %v11585
    %v11587 = vpop.f32.mrf.mxu0
    %v11588 = vadd.f32 %v11358, %v11587
    %v11589 = vpop.f32.mrf.mxu0
    %v11590 = vadd.f32 %v11354, %v11589
    %v11591 = vpop.f32.mrf.mxu0
    %v11592 = vadd.f32 %v11358, %v11591
    %11593 = vmatprep.mubr.bf16.mxu0 0
    %11594 = vmatmul.mubr.bf16.gmra.mxu0 %v11316
    %v11595 = vpop.f32.mrf.mxu0
    %v11596 = vadd.f32 %v11354, %v11595
    %v11597 = vpop.f32.mrf.mxu0
    %v11598 = vadd.f32 %v11358, %v11597
    %v11599 = vpop.f32.mrf.mxu0
    %v11600 = vadd.f32 %v11354, %v11599
    %v11601 = vpop.f32.mrf.mxu0
    %v11602 = vadd.f32 %v11358, %v11601
    %11603 = vdwg.mxu0
    %11604 = vmatprep.subr.bf16.mxu0 %v11498
    %11605 = vmatpush1.bf16.msra.mxu0 %v11497
    %11606 = vmatprep.subr.bf16.mxu0 %v11494
    %11607 = vmatpush1.bf16.msra.mxu0 %v11493
    %11608 = vmatprep.subr.bf16.mxu0 %v11490
    %11609 = vmatpush1.bf16.msra.mxu0 %v11489
    %11610 = vmatprep.subr.bf16.mxu0 %v11486
    %11611 = vmatpush1.bf16.msra.mxu0 %v11485
    %11612 = vmatprep.subr.bf16.mxu0 %v11482
    %11613 = vmatpush1.bf16.msra.mxu0 %v11481
    %11614 = vmatprep.subr.bf16.mxu0 %v11478
    %11615 = vmatpush1.bf16.msra.mxu0 %v11477
    %11616 = vmatprep.subr.bf16.mxu0 %v11474
    %11617 = vmatpush1.bf16.msra.mxu0 %v11473
    %11618 = vmatprep.subr.bf16.mxu0 %v11470
    %11619 = vmatpush1.bf16.msra.mxu0 %v11469
    %11620 = vmatprep.subr.bf16.mxu0 0
    %11621 = vmatpush2.bf16.msra.mxu0 0
    %11622 = vmatprep.subr.bf16.mxu0 0
    %11623 = vmatpush2.bf16.msra.mxu0 0
    %11624 = vmatprep.subr.bf16.mxu0 0
    %11625 = vmatpush2.bf16.msra.mxu0 0
    %11626 = vmatprep.subr.bf16.mxu0 0
    %11627 = vmatpush2.bf16.msra.mxu0 0
    %11628 = vmatprep.subr.bf16.mxu0 0
    %11629 = vmatpush2.bf16.msra.mxu0 0
    %11630 = vmatprep.subr.bf16.mxu0 0
    %11631 = vmatpush2.bf16.msra.mxu0 0
    %11632 = vmatprep.subr.bf16.mxu0 0
    %11633 = vmatpush2.bf16.msra.mxu0 0
    %11634 = vmatprep.subr.bf16.mxu0 0
    %11635 = vmatpush2.bf16.msra.mxu0 0
    %11636 = vmatprep.mubr.bf16.mxu0 0
    %11637 = vmatmul.mubr.bf16.gmra.mxu0 %v11313
    %v11638 = vpop.f32.mrf.mxu0
    %v11639 = vadd.f32 %v11362, %v11638
    %v11640 = vpop.f32.mrf.mxu0
    %v11641 = vadd.f32 %v11366, %v11640
    %v11642 = vpop.f32.mrf.mxu0
    %v11643 = vadd.f32 %v11362, %v11642
    %v11644 = vpop.f32.mrf.mxu0
    %v11645 = vadd.f32 %v11366, %v11644
    %11646 = vmatprep.mubr.bf16.mxu0 0
    %11647 = vmatmul.mubr.bf16.gmra.mxu0 %v11314
    %v11648 = vpop.f32.mrf.mxu0
    %v11649 = vadd.f32 %v11362, %v11648
    %v11650 = vpop.f32.mrf.mxu0
    %v11651 = vadd.f32 %v11366, %v11650
    %v11652 = vpop.f32.mrf.mxu0
    %v11653 = vadd.f32 %v11362, %v11652
    %v11654 = vpop.f32.mrf.mxu0
    %v11655 = vadd.f32 %v11366, %v11654
    %11656 = vmatprep.mubr.bf16.mxu0 0
    %11657 = vmatmul.mubr.bf16.gmra.mxu0 %v11315
    %v11658 = vpop.f32.mrf.mxu0
    %v11659 = vadd.f32 %v11362, %v11658
    %v11660 = vpop.f32.mrf.mxu0
    %v11661 = vadd.f32 %v11366, %v11660
    %v11662 = vpop.f32.mrf.mxu0
    %v11663 = vadd.f32 %v11362, %v11662
    %v11664 = vpop.f32.mrf.mxu0
    %v11665 = vadd.f32 %v11366, %v11664
    %11666 = vmatprep.mubr.bf16.mxu0 0
    %11667 = vmatmul.mubr.bf16.gmra.mxu0 %v11316
    %v11668 = vpop.f32.mrf.mxu0
    %v11669 = vadd.f32 %v11362, %v11668
    %v11670 = vpop.f32.mrf.mxu0
    %v11671 = vadd.f32 %v11366, %v11670
    %v11672 = vpop.f32.mrf.mxu0
    %v11673 = vadd.f32 %v11362, %v11672
    %v11674 = vpop.f32.mrf.mxu0
    %v11675 = vadd.f32 %v11366, %v11674
    %11676 = vdwg.mxu0
    %11677 = vst [vmem:[%s12] sm:$0xff] %v11566
    %11678 = vst [vmem:[%s12 + $0x8] sm:$0xff] %v11568
    %11679 = vst [vmem:[%s12 + $0x10] sm:$0xff] %v11639
    %11680 = vst [vmem:[%s12 + $0x18] sm:$0xff] %v11641
    %11681 = vst [vmem:[%s12 + $0x20] sm:$0xff] %v11570
    %11682 = vst [vmem:[%s12 + $0x28] sm:$0xff] %v11572
    %11683 = vst [vmem:[%s12 + $0x30] sm:$0xff] %v11643
    %11684 = vst [vmem:[%s12 + $0x38] sm:$0xff] %v11645
    %11685 = vst [vmem:[%s12 + $0x40] sm:$0xff] %v11576
    %11686 = vst [vmem:[%s12 + $0x48] sm:$0xff] %v11578
    %11687 = vst [vmem:[%s12 + $0x50] sm:$0xff] %v11649
    %11688 = vst [vmem:[%s12 + $0x58] sm:$0xff] %v11651
    %11689 = vst [vmem:[%s12 + $0x60] sm:$0xff] %v11580
    %11690 = vst [vmem:[%s12 + $0x68] sm:$0xff] %v11582
    %11691 = vst [vmem:[%s12 + $0x70] sm:$0xff] %v11653
    %11692 = vst [vmem:[%s12 + $0x78] sm:$0xff] %v11655
    %11693 = vst [vmem:[%s12 + $0x80] sm:$0xff] %v11586
    %11694 = vst [vmem:[%s12 + $0x88] sm:$0xff] %v11588
    %11695 = vst [vmem:[%s12 + $0x90] sm:$0xff] %v11659
    %11696 = vst [vmem:[%s12 + $0x98] sm:$0xff] %v11661
    %11697 = vst [vmem:[%s12 + $0xa0] sm:$0xff] %v11590
    %11698 = vst [vmem:[%s12 + $0xa8] sm:$0xff] %v11592
    %11699 = vst [vmem:[%s12 + $0xb0] sm:$0xff] %v11663
    %11700 = vst [vmem:[%s12 + $0xb8] sm:$0xff] %v11665
    %11701 = vst [vmem:[%s12 + $0xc0] sm:$0xff] %v11596
    %11702 = vst [vmem:[%s12 + $0xc8] sm:$0xff] %v11598
    %11703 = vst [vmem:[%s12 + $0xd0] sm:$0xff] %v11669
    %11704 = vst [vmem:[%s12 + $0xd8] sm:$0xff] %v11671
    %11705 = vst [vmem:[%s12 + $0xe0] sm:$0xff] %v11600
    %11706 = vst [vmem:[%s12 + $0xe8] sm:$0xff] %v11602
    %11707 = vst [vmem:[%s12 + $0xf0] sm:$0xff] %v11673
    %11708 = vst [vmem:[%s12 + $0xf8] sm:$0xff] %v11675
    // Predicated region
    $region66: #{seq2seq_forward.1} parent=1 // pred_check
      _
    $region67: #{seq2seq_forward.1} parent=1 // pred_check_branch
      %11710 = sbr.rel (0) target = $region69
    $region68: #{seq2seq_forward.1} parent=1 // pred_region
      _
    $region69: #{seq2seq_forward.1} parent=1 // pred_fallthru
      _
    // Predicated region
    $region70: #{seq2seq_forward.1} parent=1 // pred_check
      _
    $region71: #{seq2seq_forward.1} parent=1 // pred_check_branch
      %11712 = sbr.rel (0) target = $region73
    $region72: #{seq2seq_forward.1} parent=1 // pred_region
      _
    $region73: #{seq2seq_forward.1} parent=1 // pred_fallthru
      _
    %11713 = vsyncpa [#allocation4], 1
    %11714 = vsyncpa [#allocation6], 1
    %11715 = vsyncpa [#allocation9], 1

</llo_original>
